<compile_context>
chip_gen: v5e
topology: v5e:2x2
jax: 0.10.0
libtpu: 0.0.40
codegen_flags: <defaults>
</compile_context>

<pallas_src>
import functools
import numpy as np

import jax
import jax.numpy as jnp
from jax import lax
from jax.experimental import pallas as pl
from jax.experimental.pallas import tpu as pltpu


# -----------------------------------------------------------------------------
# Fused kernel: one batch element per grid step.
#   [y1; skip] = [w1; w3_centered] @ im2col(x)        (one MXU matmul)
#   a1  = LeakyReLU(IN1(y1))
#   y2  = IN2(w2 @ im2col(a1))
#   out = LeakyReLU(y2 + skip)
# -----------------------------------------------------------------------------
def _res_block_kernel(x_ref, mask_ref, w1s_ref, b1s_ref, g1_ref, be1_ref,
                      w2_ref, b2_ref, g2_ref, be2_ref,
                      o_ref,
                      xpad_ref, apad_ref, col1_ref, col2_ref,
                      *, D, H, W, pad):
    Cin = x_ref.shape[1]
    Cout = o_ref.shape[1]
    HW = H * W
    DHW = D * H * W
    f32 = jnp.float32
    bf16 = jnp.bfloat16

    def zero_halo(pad_ref):
        # Only the halo lanes need zeros (body is fully overwritten below).
        # Done every step (cheap) so the 'parallel' batch axis stays megacore-safe.
        C = pad_ref.shape[0]
        pad_ref[:, 0:pad] = jnp.zeros((C, pad), bf16)
        pad_ref[:, pad + DHW:DHW + 2 * pad] = jnp.zeros((C, pad), bf16)

    def im2col(pad_ref, col_ref):
        # 27 shifted + boundary-masked tap views written as row blocks of col_ref.
        # Masks are precomputed on the host (grid-invariant input); the center tap
        # (t=13) is unmasked and is exactly the staged activation.
        C = pad_ref.shape[0]
        for kd in range(3):
            for kh in range(3):
                for kw in range(3):
                    t = (kd * 3 + kh) * 3 + kw
                    off = (kd - 1) * HW + (kh - 1) * W + (kw - 1)
                    view = pad_ref[:, pad + off:pad + off + DHW]       # (C, DHW) bf16
                    if t == 13:
                        col_ref[t * C:(t + 1) * C, :] = view
                    else:
                        m = mask_ref[t:t + 1, :].astype(bf16)          # (1, DHW)
                        col_ref[t * C:(t + 1) * C, :] = view * m

    def instance_norm(y, g, b):
        # Per-(sample, channel) stats over the spatial (lane) axis; biased variance,
        # eps=1e-5 -- PyTorch InstanceNorm3d(affine=True) defaults.  All fp32.
        m = jnp.mean(y, axis=1, keepdims=True)
        c = y - m
        v = jnp.mean(c * c, axis=1, keepdims=True)
        return c * lax.rsqrt(v + 1e-5) * g + b

    def leaky_relu(v):
        return jnp.where(v >= 0, v, 0.01 * v)

    zero_halo(xpad_ref)
    zero_halo(apad_ref)

    # Stage x in bf16 (MXU operand dtype); everything downstream accumulates fp32.
    xpad_ref[:, pad:pad + DHW] = x_ref[0].astype(bf16)

    # conv1 (3x3x3, pad 1) + fused 1x1x1 skip conv: ONE matmul with a stacked LHS.
    im2col(xpad_ref, col1_ref)
    y1s = jnp.dot(w1s_ref[...], col1_ref[...],
                  preferred_element_type=f32) + b1s_ref[...]           # (2*Cout, DHW)
    y1, skip = y1s[:Cout], y1s[Cout:]
    a1 = leaky_relu(instance_norm(y1, g1_ref[...], be1_ref[...]))

    # conv2 (3x3x3, pad 1) + InstanceNorm.
    apad_ref[:, pad:pad + DHW] = a1.astype(bf16)
    im2col(apad_ref, col2_ref)
    y2 = jnp.dot(w2_ref[...], col2_ref[...],
                 preferred_element_type=f32) + b2_ref[...]             # (Cout, DHW)
    y2 = instance_norm(y2, g2_ref[...], be2_ref[...])

    # Residual add + final LeakyReLU, fp32; single lane-dense store.
    o_ref[0] = leaky_relu(y2 + skip).astype(o_ref.dtype)


# -----------------------------------------------------------------------------
# Wrapper: PyTorch NCDHW in / NCDHW out; PyTorch-layout weights.
# -----------------------------------------------------------------------------
def basic_res_block(x_ncdhw, params):
    """x_ncdhw: (N, Cin, D, H, W) f32; params in PyTorch Conv3d/InstanceNorm3d layouts."""
    N, Cin, D, H, W = x_ncdhw.shape
    Cout = params["b1"].shape[0]
    HW = H * W
    DHW = D * H * W
    # Halo must cover the largest tap offset, rounded up to a lane multiple.
    PAD = max(128, ((HW + W + 1 + 127) // 128) * 128)
    assert DHW % 128 == 0, "flat spatial axis must stay lane-dense"

    # ---- host-side, geometry-only boundary masks (27, DHW) ----
    sidx = np.arange(DHW)
    d_i, h_i, w_i = sidx // HW, (sidx // W) % H, sidx % W
    masks = np.empty((27, DHW), np.float32)
    for kd in range(3):
        for kh in range(3):
            for kw in range(3):
                t = (kd * 3 + kh) * 3 + kw
                dd, dh, dw = kd - 1, kh - 1, kw - 1
                masks[t] = ((d_i + dd >= 0) & (d_i + dd < D) &
                            (h_i + dh >= 0) & (h_i + dh < H) &
                            (w_i + dw >= 0) & (w_i + dw < W)).astype(np.float32)
    masks = jnp.asarray(masks)

    def conv_w_2d(w):                 # (Co, Ci, 3,3,3) -> (Co, 27*Ci), tap-major
        return jnp.transpose(w, (0, 2, 3, 4, 1)).reshape(w.shape[0], -1)

    def col_vec(v):                   # (C,) -> (C, 1)  broadcast over lanes
        return v.reshape(-1, 1)

    # conv1 LHS with the 1x1x1 skip conv stacked below it (center tap t=13),
    # cast to bf16 for the MXU; biases stay fp32.
    w1s = jnp.zeros((2 * Cout, 27 * Cin), jnp.float32)
    w1s = w1s.at[:Cout].set(conv_w_2d(params["w1"]))
    w1s = w1s.at[Cout:, 13 * Cin:14 * Cin].set(params["w3"].reshape(Cout, Cin))
    w1s = w1s.astype(jnp.bfloat16)
    b1s = col_vec(jnp.concatenate([params["b1"], params["b3"]]))
    w2m = conv_w_2d(params["w2"]).astype(jnp.bfloat16)

    x2 = x_ncdhw.reshape(N, Cin, DHW)          # contiguous-dim reshape (free)

    kernel = functools.partial(_res_block_kernel, D=D, H=H, W=W, pad=PAD)

    def rep(shape):                   # whole-array, grid-invariant block
        return pl.BlockSpec(shape, lambda n: (0,) * len(shape))

    out = pl.pallas_call(
        kernel,
        out_shape=jax.ShapeDtypeStruct((N, Cout, DHW), jnp.float32),
        grid=(N,),
        in_specs=[
            pl.BlockSpec((1, Cin, DHW), lambda n: (n, 0, 0)),    # x (per sample)
            rep((27, DHW)),                                      # boundary masks
            rep((2 * Cout, 27 * Cin)), rep((2 * Cout, 1)),       # w1+w3 stacked, b1+b3
            rep((Cout, 1)), rep((Cout, 1)),                      # g1, be1
            rep((Cout, 27 * Cout)), rep((Cout, 1)),              # w2, b2
            rep((Cout, 1)), rep((Cout, 1)),                      # g2, be2
        ],
        out_specs=pl.BlockSpec((1, Cout, DHW), lambda n: (n, 0, 0)),
        scratch_shapes=[
            pltpu.VMEM((Cin, DHW + 2 * PAD), jnp.bfloat16),      # padded x
            pltpu.VMEM((Cout, DHW + 2 * PAD), jnp.bfloat16),     # padded act1
            pltpu.VMEM((27 * Cin, DHW), jnp.bfloat16),           # im2col conv1
            pltpu.VMEM((27 * Cout, DHW), jnp.bfloat16),          # im2col conv2
        ],
        compiler_params=pltpu.CompilerParams(
            dimension_semantics=("parallel",),
            vmem_limit_bytes=32 * 1024 * 1024,
        ),
    )(x2, masks,
      w1s, b1s, col_vec(params["g1"]), col_vec(params["be1"]),
      w2m, col_vec(params["b2"]), col_vec(params["g2"]), col_vec(params["be2"]))
    return out.reshape(N, Cout, D, H, W)


# -----------------------------------------------------------------------------
# Pure-JAX fp32 reference (PyTorch semantics) for the correctness check.
# -----------------------------------------------------------------------------
def _conv_ref(x, w, b, padding):
    dn = lax.conv_dimension_numbers(x.shape, w.shape, ("NCDHW", "OIDHW", "NCDHW"))
    y = lax.conv_general_dilated(x, w, (1, 1, 1), [(padding, padding)] * 3,
                                 dimension_numbers=dn)
    return y + b.reshape(1, -1, 1, 1, 1)


def _in_ref(y, g, b):
    m = jnp.mean(y, axis=(2, 3, 4), keepdims=True)
    v = jnp.mean((y - m) ** 2, axis=(2, 3, 4), keepdims=True)
    return ((y - m) * lax.rsqrt(v + 1e-5) * g.reshape(1, -1, 1, 1, 1)
            + b.reshape(1, -1, 1, 1, 1))


def _lrelu_ref(v):
    return jnp.where(v >= 0, v, 0.01 * v)


def reference(x, p):
    y = _lrelu_ref(_in_ref(_conv_ref(x, p["w1"], p["b1"], 1), p["g1"], p["be1"]))
    y = _in_ref(_conv_ref(y, p["w2"], p["b2"], 1), p["g2"], p["be2"])
    skip = _conv_ref(x, p["w3"], p["b3"], 0)
    return _lrelu_ref(y + skip)


if __name__ == "__main__":
    N, Cin, Cout = 2, 4, 8
    D = H = W = 8

    keys = jax.random.split(jax.random.PRNGKey(0), 11)
    params = {
        "w1": 0.1 * jax.random.normal(keys[0], (Cout, Cin, 3, 3, 3), jnp.float32),
        "b1": 0.05 * jax.random.normal(keys[1], (Cout,), jnp.float32),
        "w2": 0.1 * jax.random.normal(keys[2], (Cout, Cout, 3, 3, 3), jnp.float32),
        "b2": 0.05 * jax.random.normal(keys[3], (Cout,), jnp.float32),
        "w3": 0.1 * jax.random.normal(keys[4], (Cout, Cin, 1, 1, 1), jnp.float32),
        "b3": 0.05 * jax.random.normal(keys[5], (Cout,), jnp.float32),
        "g1": 1.0 + 0.1 * jax.random.normal(keys[6], (Cout,), jnp.float32),
        "be1": 0.1 * jax.random.normal(keys[7], (Cout,), jnp.float32),
        "g2": 1.0 + 0.1 * jax.random.normal(keys[8], (Cout,), jnp.float32),
        "be2": 0.1 * jax.random.normal(keys[9], (Cout,), jnp.float32),
    }
    # Input in PyTorch NCDHW convention (use_1x1conv=True, stride=1, k=3, pad=1).
    x = jax.random.normal(keys[10], (N, Cin, D, H, W), jnp.float32)

    out = jax.block_until_ready(basic_res_block(x, params))
    ref = jax.block_until_ready(reference(x, params))

    # bf16 MXU operands through two chained 3^3 convs bound the abs error around
    # 1e-2 (fp32 accumulation / InstanceNorm / residual keep it there), hence the
    # 2e-2 tolerance vs the fp32 reference.
    np.testing.assert_allclose(np.asarray(out), np.asarray(ref), rtol=2e-2, atol=2e-2)
    assert out.shape == (N, Cout, D, H, W)
    print("KERNEL_OK")
</pallas_src>

<mosaic_0001>
module attributes {stable_mosaic.version = 11 : i64} {
  func.func @_res_block_kernel(%arg0: i32, %arg1: memref<1x4x512xf32, #tpu.memory_space<vmem>>, %arg2: memref<27x512xf32, #tpu.memory_space<vmem>>, %arg3: memref<16x108xbf16, #tpu.memory_space<vmem>>, %arg4: memref<16x1xf32, #tpu.memory_space<vmem>>, %arg5: memref<8x1xf32, #tpu.memory_space<vmem>>, %arg6: memref<8x1xf32, #tpu.memory_space<vmem>>, %arg7: memref<8x216xbf16, #tpu.memory_space<vmem>>, %arg8: memref<8x1xf32, #tpu.memory_space<vmem>>, %arg9: memref<8x1xf32, #tpu.memory_space<vmem>>, %arg10: memref<8x1xf32, #tpu.memory_space<vmem>>, %arg11: memref<1x8x512xf32, #tpu.memory_space<vmem>>, %arg12: memref<4x768xbf16, #tpu.memory_space<vmem>>, %arg13: memref<8x768xbf16, #tpu.memory_space<vmem>>, %arg14: memref<108x512xbf16, #tpu.memory_space<vmem>>, %arg15: memref<216x512xbf16, #tpu.memory_space<vmem>>) attributes {dimension_semantics = [#tpu.dimension_semantics<parallel>], iteration_bounds = array<i64: 2>, scalar_prefetch = 0 : i64, scratch_operands = 4 : i64, tpu.core_type = #tpu.core_type<tc>, window_params = [{transform_indices = @transform_0, window_bounds = array<i64: 1, 4, 512>}, {pipeline_mode = #tpu.pipeline_mode<synchronous>, transform_indices = @transform_1, window_bounds = array<i64: 27, 512>}, {pipeline_mode = #tpu.pipeline_mode<synchronous>, transform_indices = @transform_2, window_bounds = array<i64: 16, 108>}, {pipeline_mode = #tpu.pipeline_mode<synchronous>, transform_indices = @transform_3, window_bounds = array<i64: 16, 1>}, {pipeline_mode = #tpu.pipeline_mode<synchronous>, transform_indices = @transform_4, window_bounds = array<i64: 8, 1>}, {pipeline_mode = #tpu.pipeline_mode<synchronous>, transform_indices = @transform_5, window_bounds = array<i64: 8, 1>}, {pipeline_mode = #tpu.pipeline_mode<synchronous>, transform_indices = @transform_6, window_bounds = array<i64: 8, 216>}, {pipeline_mode = #tpu.pipeline_mode<synchronous>, transform_indices = @transform_7, window_bounds = array<i64: 8, 1>}, {pipeline_mode = #tpu.pipeline_mode<synchronous>, transform_indices = @transform_8, window_bounds = array<i64: 8, 1>}, {pipeline_mode = #tpu.pipeline_mode<synchronous>, transform_indices = @transform_9, window_bounds = array<i64: 8, 1>}, {transform_indices = @transform_10, window_bounds = array<i64: 1, 8, 512>}]} {
    %cst = arith.constant 0.000000e+00 : bf16
    %0 = vector.broadcast %cst : bf16 to vector<4x128xbf16>
    %c0 = arith.constant 0 : index
    %c0_0 = arith.constant 0 : index
    %1 = vector.load %arg12[%c0, %c0_0] : memref<4x768xbf16, #tpu.memory_space<vmem>>, vector<4x128xbf16>
    tpu.vector_store %arg12[%c0, %c0_0], %0 {strides = array<i32>} : memref<4x768xbf16, #tpu.memory_space<vmem>>, vector<4x128xbf16>,
    %cst_1 = arith.constant 0.000000e+00 : bf16
    %2 = vector.broadcast %cst_1 : bf16 to vector<4x128xbf16>
    %c0_2 = arith.constant 0 : index
    %c640 = arith.constant 640 : index
    %3 = vector.load %arg12[%c0_2, %c640] : memref<4x768xbf16, #tpu.memory_space<vmem>>, vector<4x128xbf16>
    tpu.vector_store %arg12[%c0_2, %c640], %2 {strides = array<i32>} : memref<4x768xbf16, #tpu.memory_space<vmem>>, vector<4x128xbf16>,
    %cst_3 = arith.constant 0.000000e+00 : bf16
    %4 = vector.broadcast %cst_3 : bf16 to vector<8x128xbf16>
    %c0_4 = arith.constant 0 : index
    %c0_5 = arith.constant 0 : index
    %5 = vector.load %arg13[%c0_4, %c0_5] : memref<8x768xbf16, #tpu.memory_space<vmem>>, vector<8x128xbf16>
    tpu.vector_store %arg13[%c0_4, %c0_5], %4 {strides = array<i32>} : memref<8x768xbf16, #tpu.memory_space<vmem>>, vector<8x128xbf16>,
    %cst_6 = arith.constant 0.000000e+00 : bf16
    %6 = vector.broadcast %cst_6 : bf16 to vector<8x128xbf16>
    %c0_7 = arith.constant 0 : index
    %c640_8 = arith.constant 640 : index
    %7 = vector.load %arg13[%c0_7, %c640_8] : memref<8x768xbf16, #tpu.memory_space<vmem>>, vector<8x128xbf16>
    tpu.vector_store %arg13[%c0_7, %c640_8], %6 {strides = array<i32>} : memref<8x768xbf16, #tpu.memory_space<vmem>>, vector<8x128xbf16>,
    %c0_9 = arith.constant 0 : index
    %c0_10 = arith.constant 0 : index
    %c0_11 = arith.constant 0 : index
    %8 = vector.load %arg1[%c0_9, %c0_10, %c0_11] : memref<1x4x512xf32, #tpu.memory_space<vmem>>, vector<1x4x512xf32>
    %9 = vector.shape_cast %8 : vector<1x4x512xf32> to vector<4x512xf32>
    %10 = arith.truncf %9 : vector<4x512xf32> to vector<4x512xbf16>
    %c0_12 = arith.constant 0 : index
    %c128 = arith.constant 128 : index
    %11 = vector.load %arg12[%c0_12, %c128] : memref<4x768xbf16, #tpu.memory_space<vmem>>, vector<4x512xbf16>
    tpu.vector_store %arg12[%c0_12, %c128], %10 {strides = array<i32>} : memref<4x768xbf16, #tpu.memory_space<vmem>>, vector<4x512xbf16>,
    %c0_13 = arith.constant 0 : index
    %c55 = arith.constant 55 : index
    %12 = vector.load %arg12[%c0_13, %c55] : memref<4x768xbf16, #tpu.memory_space<vmem>>, vector<4x512xbf16>
    %c0_14 = arith.constant 0 : index
    %c0_15 = arith.constant 0 : index
    %13 = vector.load %arg2[%c0_14, %c0_15] : memref<27x512xf32, #tpu.memory_space<vmem>>, vector<1x512xf32>
    %14 = arith.truncf %13 : vector<1x512xf32> to vector<1x512xbf16>
    %15 = vector.broadcast %14 : vector<1x512xbf16> to vector<4x512xbf16>
    %16 = arith.mulf %12, %15 : vector<4x512xbf16>
    %c0_16 = arith.constant 0 : index
    %c0_17 = arith.constant 0 : index
    %17 = vector.load %arg14[%c0_16, %c0_17] : memref<108x512xbf16, #tpu.memory_space<vmem>>, vector<4x512xbf16>
    tpu.vector_store %arg14[%c0_16, %c0_17], %16 {strides = array<i32>} : memref<108x512xbf16, #tpu.memory_space<vmem>>, vector<4x512xbf16>,
    %c0_18 = arith.constant 0 : index
    %c56 = arith.constant 56 : index
    %18 = vector.load %arg12[%c0_18, %c56] : memref<4x768xbf16, #tpu.memory_space<vmem>>, vector<4x512xbf16>
    %c1 = arith.constant 1 : index
    %c0_19 = arith.constant 0 : index
    %19 = vector.load %arg2[%c1, %c0_19] : memref<27x512xf32, #tpu.memory_space<vmem>>, vector<1x512xf32>
    %20 = arith.truncf %19 : vector<1x512xf32> to vector<1x512xbf16>
    %21 = vector.broadcast %20 : vector<1x512xbf16> to vector<4x512xbf16>
    %22 = arith.mulf %18, %21 : vector<4x512xbf16>
    %c4 = arith.constant 4 : index
    %c0_20 = arith.constant 0 : index
    %23 = vector.load %arg14[%c4, %c0_20] : memref<108x512xbf16, #tpu.memory_space<vmem>>, vector<4x512xbf16>
    tpu.vector_store %arg14[%c4, %c0_20], %22 {strides = array<i32>} : memref<108x512xbf16, #tpu.memory_space<vmem>>, vector<4x512xbf16>,
    %c0_21 = arith.constant 0 : index
    %c57 = arith.constant 57 : index
    %24 = vector.load %arg12[%c0_21, %c57] : memref<4x768xbf16, #tpu.memory_space<vmem>>, vector<4x512xbf16>
    %c2 = arith.constant 2 : index
    %c0_22 = arith.constant 0 : index
    %25 = vector.load %arg2[%c2, %c0_22] : memref<27x512xf32, #tpu.memory_space<vmem>>, vector<1x512xf32>
    %26 = arith.truncf %25 : vector<1x512xf32> to vector<1x512xbf16>
    %27 = vector.broadcast %26 : vector<1x512xbf16> to vector<4x512xbf16>
    %28 = arith.mulf %24, %27 : vector<4x512xbf16>
    %c8 = arith.constant 8 : index
    %c0_23 = arith.constant 0 : index
    %29 = vector.load %arg14[%c8, %c0_23] : memref<108x512xbf16, #tpu.memory_space<vmem>>, vector<4x512xbf16>
    tpu.vector_store %arg14[%c8, %c0_23], %28 {strides = array<i32>} : memref<108x512xbf16, #tpu.memory_space<vmem>>, vector<4x512xbf16>,
    %c0_24 = arith.constant 0 : index
    %c63 = arith.constant 63 : index
    %30 = vector.load %arg12[%c0_24, %c63] : memref<4x768xbf16, #tpu.memory_space<vmem>>, vector<4x512xbf16>
    %c3 = arith.constant 3 : index
    %c0_25 = arith.constant 0 : index
    %31 = vector.load %arg2[%c3, %c0_25] : memref<27x512xf32, #tpu.memory_space<vmem>>, vector<1x512xf32>
    %32 = arith.truncf %31 : vector<1x512xf32> to vector<1x512xbf16>
    %33 = vector.broadcast %32 : vector<1x512xbf16> to vector<4x512xbf16>
    %34 = arith.mulf %30, %33 : vector<4x512xbf16>
    %c12 = arith.constant 12 : index
    %c0_26 = arith.constant 0 : index
    %35 = vector.load %arg14[%c12, %c0_26] : memref<108x512xbf16, #tpu.memory_space<vmem>>, vector<4x512xbf16>
    tpu.vector_store %arg14[%c12, %c0_26], %34 {strides = array<i32>} : memref<108x512xbf16, #tpu.memory_space<vmem>>, vector<4x512xbf16>,
    %c0_27 = arith.constant 0 : index
    %c64 = arith.constant 64 : index
    %36 = vector.load %arg12[%c0_27, %c64] : memref<4x768xbf16, #tpu.memory_space<vmem>>, vector<4x512xbf16>
    %c4_28 = arith.constant 4 : index
    %c0_29 = arith.constant 0 : index
    %37 = vector.load %arg2[%c4_28, %c0_29] : memref<27x512xf32, #tpu.memory_space<vmem>>, vector<1x512xf32>
    %38 = arith.truncf %37 : vector<1x512xf32> to vector<1x512xbf16>
    %39 = vector.broadcast %38 : vector<1x512xbf16> to vector<4x512xbf16>
    %40 = arith.mulf %36, %39 : vector<4x512xbf16>
    %c16 = arith.constant 16 : index
    %c0_30 = arith.constant 0 : index
    %41 = vector.load %arg14[%c16, %c0_30] : memref<108x512xbf16, #tpu.memory_space<vmem>>, vector<4x512xbf16>
    tpu.vector_store %arg14[%c16, %c0_30], %40 {strides = array<i32>} : memref<108x512xbf16, #tpu.memory_space<vmem>>, vector<4x512xbf16>,
    %c0_31 = arith.constant 0 : index
    %c65 = arith.constant 65 : index
    %42 = vector.load %arg12[%c0_31, %c65] : memref<4x768xbf16, #tpu.memory_space<vmem>>, vector<4x512xbf16>
    %c5 = arith.constant 5 : index
    %c0_32 = arith.constant 0 : index
    %43 = vector.load %arg2[%c5, %c0_32] : memref<27x512xf32, #tpu.memory_space<vmem>>, vector<1x512xf32>
    %44 = arith.truncf %43 : vector<1x512xf32> to vector<1x512xbf16>
    %45 = vector.broadcast %44 : vector<1x512xbf16> to vector<4x512xbf16>
    %46 = arith.mulf %42, %45 : vector<4x512xbf16>
    %c20 = arith.constant 20 : index
    %c0_33 = arith.constant 0 : index
    %47 = vector.load %arg14[%c20, %c0_33] : memref<108x512xbf16, #tpu.memory_space<vmem>>, vector<4x512xbf16>
    tpu.vector_store %arg14[%c20, %c0_33], %46 {strides = array<i32>} : memref<108x512xbf16, #tpu.memory_space<vmem>>, vector<4x512xbf16>,
    %c0_34 = arith.constant 0 : index
    %c71 = arith.constant 71 : index
    %48 = vector.load %arg12[%c0_34, %c71] : memref<4x768xbf16, #tpu.memory_space<vmem>>, vector<4x512xbf16>
    %c6 = arith.constant 6 : index
    %c0_35 = arith.constant 0 : index
    %49 = vector.load %arg2[%c6, %c0_35] : memref<27x512xf32, #tpu.memory_space<vmem>>, vector<1x512xf32>
    %50 = arith.truncf %49 : vector<1x512xf32> to vector<1x512xbf16>
    %51 = vector.broadcast %50 : vector<1x512xbf16> to vector<4x512xbf16>
    %52 = arith.mulf %48, %51 : vector<4x512xbf16>
    %c24 = arith.constant 24 : index
    %c0_36 = arith.constant 0 : index
    %53 = vector.load %arg14[%c24, %c0_36] : memref<108x512xbf16, #tpu.memory_space<vmem>>, vector<4x512xbf16>
    tpu.vector_store %arg14[%c24, %c0_36], %52 {strides = array<i32>} : memref<108x512xbf16, #tpu.memory_space<vmem>>, vector<4x512xbf16>,
    %c0_37 = arith.constant 0 : index
    %c72 = arith.constant 72 : index
    %54 = vector.load %arg12[%c0_37, %c72] : memref<4x768xbf16, #tpu.memory_space<vmem>>, vector<4x512xbf16>
    %c7 = arith.constant 7 : index
    %c0_38 = arith.constant 0 : index
    %55 = vector.load %arg2[%c7, %c0_38] : memref<27x512xf32, #tpu.memory_space<vmem>>, vector<1x512xf32>
    %56 = arith.truncf %55 : vector<1x512xf32> to vector<1x512xbf16>
    %57 = vector.broadcast %56 : vector<1x512xbf16> to vector<4x512xbf16>
    %58 = arith.mulf %54, %57 : vector<4x512xbf16>
    %c28 = arith.constant 28 : index
    %c0_39 = arith.constant 0 : index
    %59 = vector.load %arg14[%c28, %c0_39] : memref<108x512xbf16, #tpu.memory_space<vmem>>, vector<4x512xbf16>
    tpu.vector_store %arg14[%c28, %c0_39], %58 {strides = array<i32>} : memref<108x512xbf16, #tpu.memory_space<vmem>>, vector<4x512xbf16>,
    %c0_40 = arith.constant 0 : index
    %c73 = arith.constant 73 : index
    %60 = vector.load %arg12[%c0_40, %c73] : memref<4x768xbf16, #tpu.memory_space<vmem>>, vector<4x512xbf16>
    %c8_41 = arith.constant 8 : index
    %c0_42 = arith.constant 0 : index
    %61 = vector.load %arg2[%c8_41, %c0_42] : memref<27x512xf32, #tpu.memory_space<vmem>>, vector<1x512xf32>
    %62 = arith.truncf %61 : vector<1x512xf32> to vector<1x512xbf16>
    %63 = vector.broadcast %62 : vector<1x512xbf16> to vector<4x512xbf16>
    %64 = arith.mulf %60, %63 : vector<4x512xbf16>
    %c32 = arith.constant 32 : index
    %c0_43 = arith.constant 0 : index
    %65 = vector.load %arg14[%c32, %c0_43] : memref<108x512xbf16, #tpu.memory_space<vmem>>, vector<4x512xbf16>
    tpu.vector_store %arg14[%c32, %c0_43], %64 {strides = array<i32>} : memref<108x512xbf16, #tpu.memory_space<vmem>>, vector<4x512xbf16>,
    %c0_44 = arith.constant 0 : index
    %c119 = arith.constant 119 : index
    %66 = vector.load %arg12[%c0_44, %c119] : memref<4x768xbf16, #tpu.memory_space<vmem>>, vector<4x512xbf16>
    %c9 = arith.constant 9 : index
    %c0_45 = arith.constant 0 : index
    %67 = vector.load %arg2[%c9, %c0_45] : memref<27x512xf32, #tpu.memory_space<vmem>>, vector<1x512xf32>
    %68 = arith.truncf %67 : vector<1x512xf32> to vector<1x512xbf16>
    %69 = vector.broadcast %68 : vector<1x512xbf16> to vector<4x512xbf16>
    %70 = arith.mulf %66, %69 : vector<4x512xbf16>
    %c36 = arith.constant 36 : index
    %c0_46 = arith.constant 0 : index
    %71 = vector.load %arg14[%c36, %c0_46] : memref<108x512xbf16, #tpu.memory_space<vmem>>, vector<4x512xbf16>
    tpu.vector_store %arg14[%c36, %c0_46], %70 {strides = array<i32>} : memref<108x512xbf16, #tpu.memory_space<vmem>>, vector<4x512xbf16>,
    %c0_47 = arith.constant 0 : index
    %c120 = arith.constant 120 : index
    %72 = vector.load %arg12[%c0_47, %c120] : memref<4x768xbf16, #tpu.memory_space<vmem>>, vector<4x512xbf16>
    %c10 = arith.constant 10 : index
    %c0_48 = arith.constant 0 : index
    %73 = vector.load %arg2[%c10, %c0_48] : memref<27x512xf32, #tpu.memory_space<vmem>>, vector<1x512xf32>
    %74 = arith.truncf %73 : vector<1x512xf32> to vector<1x512xbf16>
    %75 = vector.broadcast %74 : vector<1x512xbf16> to vector<4x512xbf16>
    %76 = arith.mulf %72, %75 : vector<4x512xbf16>
    %c40 = arith.constant 40 : index
    %c0_49 = arith.constant 0 : index
    %77 = vector.load %arg14[%c40, %c0_49] : memref<108x512xbf16, #tpu.memory_space<vmem>>, vector<4x512xbf16>
    tpu.vector_store %arg14[%c40, %c0_49], %76 {strides = array<i32>} : memref<108x512xbf16, #tpu.memory_space<vmem>>, vector<4x512xbf16>,
    %c0_50 = arith.constant 0 : index
    %c121 = arith.constant 121 : index
    %78 = vector.load %arg12[%c0_50, %c121] : memref<4x768xbf16, #tpu.memory_space<vmem>>, vector<4x512xbf16>
    %c11 = arith.constant 11 : index
    %c0_51 = arith.constant 0 : index
    %79 = vector.load %arg2[%c11, %c0_51] : memref<27x512xf32, #tpu.memory_space<vmem>>, vector<1x512xf32>
    %80 = arith.truncf %79 : vector<1x512xf32> to vector<1x512xbf16>
    %81 = vector.broadcast %80 : vector<1x512xbf16> to vector<4x512xbf16>
    %82 = arith.mulf %78, %81 : vector<4x512xbf16>
    %c44 = arith.constant 44 : index
    %c0_52 = arith.constant 0 : index
    %83 = vector.load %arg14[%c44, %c0_52] : memref<108x512xbf16, #tpu.memory_space<vmem>>, vector<4x512xbf16>
    tpu.vector_store %arg14[%c44, %c0_52], %82 {strides = array<i32>} : memref<108x512xbf16, #tpu.memory_space<vmem>>, vector<4x512xbf16>,
    %c0_53 = arith.constant 0 : index
    %c127 = arith.constant 127 : index
    %84 = vector.load %arg12[%c0_53, %c127] : memref<4x768xbf16, #tpu.memory_space<vmem>>, vector<4x512xbf16>
    %c12_54 = arith.constant 12 : index
    %c0_55 = arith.constant 0 : index
    %85 = vector.load %arg2[%c12_54, %c0_55] : memref<27x512xf32, #tpu.memory_space<vmem>>, vector<1x512xf32>
    %86 = arith.truncf %85 : vector<1x512xf32> to vector<1x512xbf16>
    %87 = vector.broadcast %86 : vector<1x512xbf16> to vector<4x512xbf16>
    %88 = arith.mulf %84, %87 : vector<4x512xbf16>
    %c48 = arith.constant 48 : index
    %c0_56 = arith.constant 0 : index
    %89 = vector.load %arg14[%c48, %c0_56] : memref<108x512xbf16, #tpu.memory_space<vmem>>, vector<4x512xbf16>
    tpu.vector_store %arg14[%c48, %c0_56], %88 {strides = array<i32>} : memref<108x512xbf16, #tpu.memory_space<vmem>>, vector<4x512xbf16>,
    %c0_57 = arith.constant 0 : index
    %c128_58 = arith.constant 128 : index
    %90 = vector.load %arg12[%c0_57, %c128_58] : memref<4x768xbf16, #tpu.memory_space<vmem>>, vector<4x512xbf16>
    %c52 = arith.constant 52 : index
    %c0_59 = arith.constant 0 : index
    %91 = vector.load %arg14[%c52, %c0_59] : memref<108x512xbf16, #tpu.memory_space<vmem>>, vector<4x512xbf16>
    tpu.vector_store %arg14[%c52, %c0_59], %90 {strides = array<i32>} : memref<108x512xbf16, #tpu.memory_space<vmem>>, vector<4x512xbf16>,
    %c0_60 = arith.constant 0 : index
    %c129 = arith.constant 129 : index
    %92 = vector.load %arg12[%c0_60, %c129] : memref<4x768xbf16, #tpu.memory_space<vmem>>, vector<4x512xbf16>
    %c14 = arith.constant 14 : index
    %c0_61 = arith.constant 0 : index
    %93 = vector.load %arg2[%c14, %c0_61] : memref<27x512xf32, #tpu.memory_space<vmem>>, vector<1x512xf32>
    %94 = arith.truncf %93 : vector<1x512xf32> to vector<1x512xbf16>
    %95 = vector.broadcast %94 : vector<1x512xbf16> to vector<4x512xbf16>
    %96 = arith.mulf %92, %95 : vector<4x512xbf16>
    %c56_62 = arith.constant 56 : index
    %c0_63 = arith.constant 0 : index
    %97 = vector.load %arg14[%c56_62, %c0_63] : memref<108x512xbf16, #tpu.memory_space<vmem>>, vector<4x512xbf16>
    tpu.vector_store %arg14[%c56_62, %c0_63], %96 {strides = array<i32>} : memref<108x512xbf16, #tpu.memory_space<vmem>>, vector<4x512xbf16>,
    %c0_64 = arith.constant 0 : index
    %c135 = arith.constant 135 : index
    %98 = vector.load %arg12[%c0_64, %c135] : memref<4x768xbf16, #tpu.memory_space<vmem>>, vector<4x512xbf16>
    %c15 = arith.constant 15 : index
    %c0_65 = arith.constant 0 : index
    %99 = vector.load %arg2[%c15, %c0_65] : memref<27x512xf32, #tpu.memory_space<vmem>>, vector<1x512xf32>
    %100 = arith.truncf %99 : vector<1x512xf32> to vector<1x512xbf16>
    %101 = vector.broadcast %100 : vector<1x512xbf16> to vector<4x512xbf16>
    %102 = arith.mulf %98, %101 : vector<4x512xbf16>
    %c60 = arith.constant 60 : index
    %c0_66 = arith.constant 0 : index
    %103 = vector.load %arg14[%c60, %c0_66] : memref<108x512xbf16, #tpu.memory_space<vmem>>, vector<4x512xbf16>
    tpu.vector_store %arg14[%c60, %c0_66], %102 {strides = array<i32>} : memref<108x512xbf16, #tpu.memory_space<vmem>>, vector<4x512xbf16>,
    %c0_67 = arith.constant 0 : index
    %c136 = arith.constant 136 : index
    %104 = vector.load %arg12[%c0_67, %c136] : memref<4x768xbf16, #tpu.memory_space<vmem>>, vector<4x512xbf16>
    %c16_68 = arith.constant 16 : index
    %c0_69 = arith.constant 0 : index
    %105 = vector.load %arg2[%c16_68, %c0_69] : memref<27x512xf32, #tpu.memory_space<vmem>>, vector<1x512xf32>
    %106 = arith.truncf %105 : vector<1x512xf32> to vector<1x512xbf16>
    %107 = vector.broadcast %106 : vector<1x512xbf16> to vector<4x512xbf16>
    %108 = arith.mulf %104, %107 : vector<4x512xbf16>
    %c64_70 = arith.constant 64 : index
    %c0_71 = arith.constant 0 : index
    %109 = vector.load %arg14[%c64_70, %c0_71] : memref<108x512xbf16, #tpu.memory_space<vmem>>, vector<4x512xbf16>
    tpu.vector_store %arg14[%c64_70, %c0_71], %108 {strides = array<i32>} : memref<108x512xbf16, #tpu.memory_space<vmem>>, vector<4x512xbf16>,
    %c0_72 = arith.constant 0 : index
    %c137 = arith.constant 137 : index
    %110 = vector.load %arg12[%c0_72, %c137] : memref<4x768xbf16, #tpu.memory_space<vmem>>, vector<4x512xbf16>
    %c17 = arith.constant 17 : index
    %c0_73 = arith.constant 0 : index
    %111 = vector.load %arg2[%c17, %c0_73] : memref<27x512xf32, #tpu.memory_space<vmem>>, vector<1x512xf32>
    %112 = arith.truncf %111 : vector<1x512xf32> to vector<1x512xbf16>
    %113 = vector.broadcast %112 : vector<1x512xbf16> to vector<4x512xbf16>
    %114 = arith.mulf %110, %113 : vector<4x512xbf16>
    %c68 = arith.constant 68 : index
    %c0_74 = arith.constant 0 : index
    %115 = vector.load %arg14[%c68, %c0_74] : memref<108x512xbf16, #tpu.memory_space<vmem>>, vector<4x512xbf16>
    tpu.vector_store %arg14[%c68, %c0_74], %114 {strides = array<i32>} : memref<108x512xbf16, #tpu.memory_space<vmem>>, vector<4x512xbf16>,
    %c0_75 = arith.constant 0 : index
    %c183 = arith.constant 183 : index
    %116 = vector.load %arg12[%c0_75, %c183] : memref<4x768xbf16, #tpu.memory_space<vmem>>, vector<4x512xbf16>
    %c18 = arith.constant 18 : index
    %c0_76 = arith.constant 0 : index
    %117 = vector.load %arg2[%c18, %c0_76] : memref<27x512xf32, #tpu.memory_space<vmem>>, vector<1x512xf32>
    %118 = arith.truncf %117 : vector<1x512xf32> to vector<1x512xbf16>
    %119 = vector.broadcast %118 : vector<1x512xbf16> to vector<4x512xbf16>
    %120 = arith.mulf %116, %119 : vector<4x512xbf16>
    %c72_77 = arith.constant 72 : index
    %c0_78 = arith.constant 0 : index
    %121 = vector.load %arg14[%c72_77, %c0_78] : memref<108x512xbf16, #tpu.memory_space<vmem>>, vector<4x512xbf16>
    tpu.vector_store %arg14[%c72_77, %c0_78], %120 {strides = array<i32>} : memref<108x512xbf16, #tpu.memory_space<vmem>>, vector<4x512xbf16>,
    %c0_79 = arith.constant 0 : index
    %c184 = arith.constant 184 : index
    %122 = vector.load %arg12[%c0_79, %c184] : memref<4x768xbf16, #tpu.memory_space<vmem>>, vector<4x512xbf16>
    %c19 = arith.constant 19 : index
    %c0_80 = arith.constant 0 : index
    %123 = vector.load %arg2[%c19, %c0_80] : memref<27x512xf32, #tpu.memory_space<vmem>>, vector<1x512xf32>
    %124 = arith.truncf %123 : vector<1x512xf32> to vector<1x512xbf16>
    %125 = vector.broadcast %124 : vector<1x512xbf16> to vector<4x512xbf16>
    %126 = arith.mulf %122, %125 : vector<4x512xbf16>
    %c76 = arith.constant 76 : index
    %c0_81 = arith.constant 0 : index
    %127 = vector.load %arg14[%c76, %c0_81] : memref<108x512xbf16, #tpu.memory_space<vmem>>, vector<4x512xbf16>
    tpu.vector_store %arg14[%c76, %c0_81], %126 {strides = array<i32>} : memref<108x512xbf16, #tpu.memory_space<vmem>>, vector<4x512xbf16>,
    %c0_82 = arith.constant 0 : index
    %c185 = arith.constant 185 : index
    %128 = vector.load %arg12[%c0_82, %c185] : memref<4x768xbf16, #tpu.memory_space<vmem>>, vector<4x512xbf16>
    %c20_83 = arith.constant 20 : index
    %c0_84 = arith.constant 0 : index
    %129 = vector.load %arg2[%c20_83, %c0_84] : memref<27x512xf32, #tpu.memory_space<vmem>>, vector<1x512xf32>
    %130 = arith.truncf %129 : vector<1x512xf32> to vector<1x512xbf16>
    %131 = vector.broadcast %130 : vector<1x512xbf16> to vector<4x512xbf16>
    %132 = arith.mulf %128, %131 : vector<4x512xbf16>
    %c80 = arith.constant 80 : index
    %c0_85 = arith.constant 0 : index
    %133 = vector.load %arg14[%c80, %c0_85] : memref<108x512xbf16, #tpu.memory_space<vmem>>, vector<4x512xbf16>
    tpu.vector_store %arg14[%c80, %c0_85], %132 {strides = array<i32>} : memref<108x512xbf16, #tpu.memory_space<vmem>>, vector<4x512xbf16>,
    %c0_86 = arith.constant 0 : index
    %c191 = arith.constant 191 : index
    %134 = vector.load %arg12[%c0_86, %c191] : memref<4x768xbf16, #tpu.memory_space<vmem>>, vector<4x512xbf16>
    %c21 = arith.constant 21 : index
    %c0_87 = arith.constant 0 : index
    %135 = vector.load %arg2[%c21, %c0_87] : memref<27x512xf32, #tpu.memory_space<vmem>>, vector<1x512xf32>
    %136 = arith.truncf %135 : vector<1x512xf32> to vector<1x512xbf16>
    %137 = vector.broadcast %136 : vector<1x512xbf16> to vector<4x512xbf16>
    %138 = arith.mulf %134, %137 : vector<4x512xbf16>
    %c84 = arith.constant 84 : index
    %c0_88 = arith.constant 0 : index
    %139 = vector.load %arg14[%c84, %c0_88] : memref<108x512xbf16, #tpu.memory_space<vmem>>, vector<4x512xbf16>
    tpu.vector_store %arg14[%c84, %c0_88], %138 {strides = array<i32>} : memref<108x512xbf16, #tpu.memory_space<vmem>>, vector<4x512xbf16>,
    %c0_89 = arith.constant 0 : index
    %c192 = arith.constant 192 : index
    %140 = vector.load %arg12[%c0_89, %c192] : memref<4x768xbf16, #tpu.memory_space<vmem>>, vector<4x512xbf16>
    %c22 = arith.constant 22 : index
    %c0_90 = arith.constant 0 : index
    %141 = vector.load %arg2[%c22, %c0_90] : memref<27x512xf32, #tpu.memory_space<vmem>>, vector<1x512xf32>
    %142 = arith.truncf %141 : vector<1x512xf32> to vector<1x512xbf16>
    %143 = vector.broadcast %142 : vector<1x512xbf16> to vector<4x512xbf16>
    %144 = arith.mulf %140, %143 : vector<4x512xbf16>
    %c88 = arith.constant 88 : index
    %c0_91 = arith.constant 0 : index
    %145 = vector.load %arg14[%c88, %c0_91] : memref<108x512xbf16, #tpu.memory_space<vmem>>, vector<4x512xbf16>
    tpu.vector_store %arg14[%c88, %c0_91], %144 {strides = array<i32>} : memref<108x512xbf16, #tpu.memory_space<vmem>>, vector<4x512xbf16>,
    %c0_92 = arith.constant 0 : index
    %c193 = arith.constant 193 : index
    %146 = vector.load %arg12[%c0_92, %c193] : memref<4x768xbf16, #tpu.memory_space<vmem>>, vector<4x512xbf16>
    %c23 = arith.constant 23 : index
    %c0_93 = arith.constant 0 : index
    %147 = vector.load %arg2[%c23, %c0_93] : memref<27x512xf32, #tpu.memory_space<vmem>>, vector<1x512xf32>
    %148 = arith.truncf %147 : vector<1x512xf32> to vector<1x512xbf16>
    %149 = vector.broadcast %148 : vector<1x512xbf16> to vector<4x512xbf16>
    %150 = arith.mulf %146, %149 : vector<4x512xbf16>
    %c92 = arith.constant 92 : index
    %c0_94 = arith.constant 0 : index
    %151 = vector.load %arg14[%c92, %c0_94] : memref<108x512xbf16, #tpu.memory_space<vmem>>, vector<4x512xbf16>
    tpu.vector_store %arg14[%c92, %c0_94], %150 {strides = array<i32>} : memref<108x512xbf16, #tpu.memory_space<vmem>>, vector<4x512xbf16>,
    %c0_95 = arith.constant 0 : index
    %c199 = arith.constant 199 : index
    %152 = vector.load %arg12[%c0_95, %c199] : memref<4x768xbf16, #tpu.memory_space<vmem>>, vector<4x512xbf16>
    %c24_96 = arith.constant 24 : index
    %c0_97 = arith.constant 0 : index
    %153 = vector.load %arg2[%c24_96, %c0_97] : memref<27x512xf32, #tpu.memory_space<vmem>>, vector<1x512xf32>
    %154 = arith.truncf %153 : vector<1x512xf32> to vector<1x512xbf16>
    %155 = vector.broadcast %154 : vector<1x512xbf16> to vector<4x512xbf16>
    %156 = arith.mulf %152, %155 : vector<4x512xbf16>
    %c96 = arith.constant 96 : index
    %c0_98 = arith.constant 0 : index
    %157 = vector.load %arg14[%c96, %c0_98] : memref<108x512xbf16, #tpu.memory_space<vmem>>, vector<4x512xbf16>
    tpu.vector_store %arg14[%c96, %c0_98], %156 {strides = array<i32>} : memref<108x512xbf16, #tpu.memory_space<vmem>>, vector<4x512xbf16>,
    %c0_99 = arith.constant 0 : index
    %c200 = arith.constant 200 : index
    %158 = vector.load %arg12[%c0_99, %c200] : memref<4x768xbf16, #tpu.memory_space<vmem>>, vector<4x512xbf16>
    %c25 = arith.constant 25 : index
    %c0_100 = arith.constant 0 : index
    %159 = vector.load %arg2[%c25, %c0_100] : memref<27x512xf32, #tpu.memory_space<vmem>>, vector<1x512xf32>
    %160 = arith.truncf %159 : vector<1x512xf32> to vector<1x512xbf16>
    %161 = vector.broadcast %160 : vector<1x512xbf16> to vector<4x512xbf16>
    %162 = arith.mulf %158, %161 : vector<4x512xbf16>
    %c100 = arith.constant 100 : index
    %c0_101 = arith.constant 0 : index
    %163 = vector.load %arg14[%c100, %c0_101] : memref<108x512xbf16, #tpu.memory_space<vmem>>, vector<4x512xbf16>
    tpu.vector_store %arg14[%c100, %c0_101], %162 {strides = array<i32>} : memref<108x512xbf16, #tpu.memory_space<vmem>>, vector<4x512xbf16>,
    %c0_102 = arith.constant 0 : index
    %c201 = arith.constant 201 : index
    %164 = vector.load %arg12[%c0_102, %c201] : memref<4x768xbf16, #tpu.memory_space<vmem>>, vector<4x512xbf16>
    %c26 = arith.constant 26 : index
    %c0_103 = arith.constant 0 : index
    %165 = vector.load %arg2[%c26, %c0_103] : memref<27x512xf32, #tpu.memory_space<vmem>>, vector<1x512xf32>
    %166 = arith.truncf %165 : vector<1x512xf32> to vector<1x512xbf16>
    %167 = vector.broadcast %166 : vector<1x512xbf16> to vector<4x512xbf16>
    %168 = arith.mulf %164, %167 : vector<4x512xbf16>
    %c104 = arith.constant 104 : index
    %c0_104 = arith.constant 0 : index
    %169 = vector.load %arg14[%c104, %c0_104] : memref<108x512xbf16, #tpu.memory_space<vmem>>, vector<4x512xbf16>
    tpu.vector_store %arg14[%c104, %c0_104], %168 {strides = array<i32>} : memref<108x512xbf16, #tpu.memory_space<vmem>>, vector<4x512xbf16>,
    %c0_105 = arith.constant 0 : index
    %c0_106 = arith.constant 0 : index
    %170 = vector.load %arg3[%c0_105, %c0_106] : memref<16x108xbf16, #tpu.memory_space<vmem>>, vector<16x108xbf16>
    %c0_107 = arith.constant 0 : index
    %c0_108 = arith.constant 0 : index
    %171 = vector.load %arg14[%c0_107, %c0_108] : memref<108x512xbf16, #tpu.memory_space<vmem>>, vector<108x512xbf16>
    %cst_109 = arith.constant dense<0.000000e+00> : vector<16x512xf32>
    %172 = tpu.matmul %170, %171, %cst_109 {dimension_numbers = #tpu.dot_dimension_numbers<[1], [0], [0], [1], [0, 0, 1, 1], [], []>} : vector<16x108xbf16>, vector<108x512xbf16>, vector<16x512xf32> -> vector<16x512xf32>
    %c0_110 = arith.constant 0 : index
    %c0_111 = arith.constant 0 : index
    %173 = vector.load %arg4[%c0_110, %c0_111] : memref<16x1xf32, #tpu.memory_space<vmem>>, vector<16x1xf32>
    %174 = vector.broadcast %173 : vector<16x1xf32> to vector<16x512xf32>
    %175 = arith.addf %172, %174 : vector<16x512xf32>
    %176 = vector.extract_strided_slice %175 {offsets = [0, 0], sizes = [8, 512], strides = [1, 1]} : vector<16x512xf32> to vector<8x512xf32>
    %177 = vector.extract_strided_slice %175 {offsets = [8, 0], sizes = [8, 512], strides = [1, 1]} : vector<16x512xf32> to vector<8x512xf32>
    %c0_112 = arith.constant 0 : index
    %c0_113 = arith.constant 0 : index
    %178 = vector.load %arg5[%c0_112, %c0_113] : memref<8x1xf32, #tpu.memory_space<vmem>>, vector<8x1xf32>
    %c0_114 = arith.constant 0 : index
    %c0_115 = arith.constant 0 : index
    %179 = vector.load %arg6[%c0_114, %c0_115] : memref<8x1xf32, #tpu.memory_space<vmem>>, vector<8x1xf32>
    %cst_116 = arith.constant dense<0.000000e+00> : vector<8xf32>
    %180 = vector.multi_reduction <add>, %176, %cst_116 [1] : vector<8x512xf32> to vector<8xf32>
    %181 = vector.shape_cast %180 : vector<8xf32> to vector<8x1xf32>
    %cst_117 = arith.constant 5.120000e+02 : f32
    %182 = vector.broadcast %cst_117 : f32 to vector<8x1xf32>
    %183 = arith.divf %181, %182 : vector<8x1xf32>
    %184 = vector.broadcast %183 : vector<8x1xf32> to vector<8x512xf32>
    %185 = arith.subf %176, %184 : vector<8x512xf32>
    %186 = arith.mulf %185, %185 : vector<8x512xf32>
    %cst_118 = arith.constant dense<0.000000e+00> : vector<8xf32>
    %187 = vector.multi_reduction <add>, %186, %cst_118 [1] : vector<8x512xf32> to vector<8xf32>
    %188 = vector.shape_cast %187 : vector<8xf32> to vector<8x1xf32>
    %cst_119 = arith.constant 5.120000e+02 : f32
    %189 = vector.broadcast %cst_119 : f32 to vector<8x1xf32>
    %190 = arith.divf %188, %189 : vector<8x1xf32>
    %cst_120 = arith.constant 9.99999974E-6 : f32
    %191 = vector.broadcast %cst_120 : f32 to vector<8x1xf32>
    %192 = arith.addf %190, %191 : vector<8x1xf32>
    %193 = math.rsqrt %192 : vector<8x1xf32>
    %194 = vector.broadcast %193 : vector<8x1xf32> to vector<8x512xf32>
    %195 = arith.mulf %185, %194 : vector<8x512xf32>
    %196 = vector.broadcast %178 : vector<8x1xf32> to vector<8x512xf32>
    %197 = arith.mulf %195, %196 : vector<8x512xf32>
    %198 = vector.broadcast %179 : vector<8x1xf32> to vector<8x512xf32>
    %199 = arith.addf %197, %198 : vector<8x512xf32>
    %cst_121 = arith.constant 0.000000e+00 : f32
    %200 = vector.broadcast %cst_121 : f32 to vector<8x512xf32>
    %201 = arith.cmpf oge, %199, %200 : vector<8x512xf32>
    %cst_122 = arith.constant 0.00999999977 : f32
    %202 = vector.broadcast %cst_122 : f32 to vector<8x512xf32>
    %203 = arith.mulf %202, %199 : vector<8x512xf32>
    %204 = arith.select %201, %199, %203 : vector<8x512xi1>, vector<8x512xf32>
    %205 = arith.truncf %204 : vector<8x512xf32> to vector<8x512xbf16>
    %c0_123 = arith.constant 0 : index
    %c128_124 = arith.constant 128 : index
    %206 = vector.load %arg13[%c0_123, %c128_124] : memref<8x768xbf16, #tpu.memory_space<vmem>>, vector<8x512xbf16>
    tpu.vector_store %arg13[%c0_123, %c128_124], %205 {strides = array<i32>} : memref<8x768xbf16, #tpu.memory_space<vmem>>, vector<8x512xbf16>,
    %c0_125 = arith.constant 0 : index
    %c55_126 = arith.constant 55 : index
    %207 = vector.load %arg13[%c0_125, %c55_126] : memref<8x768xbf16, #tpu.memory_space<vmem>>, vector<8x512xbf16>
    %c0_127 = arith.constant 0 : index
    %c0_128 = arith.constant 0 : index
    %208 = vector.load %arg2[%c0_127, %c0_128] : memref<27x512xf32, #tpu.memory_space<vmem>>, vector<1x512xf32>
    %209 = arith.truncf %208 : vector<1x512xf32> to vector<1x512xbf16>
    %210 = vector.broadcast %209 : vector<1x512xbf16> to vector<8x512xbf16>
    %211 = arith.mulf %207, %210 : vector<8x512xbf16>
    %c0_129 = arith.constant 0 : index
    %c0_130 = arith.constant 0 : index
    %212 = vector.load %arg15[%c0_129, %c0_130] : memref<216x512xbf16, #tpu.memory_space<vmem>>, vector<8x512xbf16>
    tpu.vector_store %arg15[%c0_129, %c0_130], %211 {strides = array<i32>} : memref<216x512xbf16, #tpu.memory_space<vmem>>, vector<8x512xbf16>,
    %c0_131 = arith.constant 0 : index
    %c56_132 = arith.constant 56 : index
    %213 = vector.load %arg13[%c0_131, %c56_132] : memref<8x768xbf16, #tpu.memory_space<vmem>>, vector<8x512xbf16>
    %c1_133 = arith.constant 1 : index
    %c0_134 = arith.constant 0 : index
    %214 = vector.load %arg2[%c1_133, %c0_134] : memref<27x512xf32, #tpu.memory_space<vmem>>, vector<1x512xf32>
    %215 = arith.truncf %214 : vector<1x512xf32> to vector<1x512xbf16>
    %216 = vector.broadcast %215 : vector<1x512xbf16> to vector<8x512xbf16>
    %217 = arith.mulf %213, %216 : vector<8x512xbf16>
    %c8_135 = arith.constant 8 : index
    %c0_136 = arith.constant 0 : index
    %218 = vector.load %arg15[%c8_135, %c0_136] : memref<216x512xbf16, #tpu.memory_space<vmem>>, vector<8x512xbf16>
    tpu.vector_store %arg15[%c8_135, %c0_136], %217 {strides = array<i32>} : memref<216x512xbf16, #tpu.memory_space<vmem>>, vector<8x512xbf16>,
    %c0_137 = arith.constant 0 : index
    %c57_138 = arith.constant 57 : index
    %219 = vector.load %arg13[%c0_137, %c57_138] : memref<8x768xbf16, #tpu.memory_space<vmem>>, vector<8x512xbf16>
    %c2_139 = arith.constant 2 : index
    %c0_140 = arith.constant 0 : index
    %220 = vector.load %arg2[%c2_139, %c0_140] : memref<27x512xf32, #tpu.memory_space<vmem>>, vector<1x512xf32>
    %221 = arith.truncf %220 : vector<1x512xf32> to vector<1x512xbf16>
    %222 = vector.broadcast %221 : vector<1x512xbf16> to vector<8x512xbf16>
    %223 = arith.mulf %219, %222 : vector<8x512xbf16>
    %c16_141 = arith.constant 16 : index
    %c0_142 = arith.constant 0 : index
    %224 = vector.load %arg15[%c16_141, %c0_142] : memref<216x512xbf16, #tpu.memory_space<vmem>>, vector<8x512xbf16>
    tpu.vector_store %arg15[%c16_141, %c0_142], %223 {strides = array<i32>} : memref<216x512xbf16, #tpu.memory_space<vmem>>, vector<8x512xbf16>,
    %c0_143 = arith.constant 0 : index
    %c63_144 = arith.constant 63 : index
    %225 = vector.load %arg13[%c0_143, %c63_144] : memref<8x768xbf16, #tpu.memory_space<vmem>>, vector<8x512xbf16>
    %c3_145 = arith.constant 3 : index
    %c0_146 = arith.constant 0 : index
    %226 = vector.load %arg2[%c3_145, %c0_146] : memref<27x512xf32, #tpu.memory_space<vmem>>, vector<1x512xf32>
    %227 = arith.truncf %226 : vector<1x512xf32> to vector<1x512xbf16>
    %228 = vector.broadcast %227 : vector<1x512xbf16> to vector<8x512xbf16>
    %229 = arith.mulf %225, %228 : vector<8x512xbf16>
    %c24_147 = arith.constant 24 : index
    %c0_148 = arith.constant 0 : index
    %230 = vector.load %arg15[%c24_147, %c0_148] : memref<216x512xbf16, #tpu.memory_space<vmem>>, vector<8x512xbf16>
    tpu.vector_store %arg15[%c24_147, %c0_148], %229 {strides = array<i32>} : memref<216x512xbf16, #tpu.memory_space<vmem>>, vector<8x512xbf16>,
    %c0_149 = arith.constant 0 : index
    %c64_150 = arith.constant 64 : index
    %231 = vector.load %arg13[%c0_149, %c64_150] : memref<8x768xbf16, #tpu.memory_space<vmem>>, vector<8x512xbf16>
    %c4_151 = arith.constant 4 : index
    %c0_152 = arith.constant 0 : index
    %232 = vector.load %arg2[%c4_151, %c0_152] : memref<27x512xf32, #tpu.memory_space<vmem>>, vector<1x512xf32>
    %233 = arith.truncf %232 : vector<1x512xf32> to vector<1x512xbf16>
    %234 = vector.broadcast %233 : vector<1x512xbf16> to vector<8x512xbf16>
    %235 = arith.mulf %231, %234 : vector<8x512xbf16>
    %c32_153 = arith.constant 32 : index
    %c0_154 = arith.constant 0 : index
    %236 = vector.load %arg15[%c32_153, %c0_154] : memref<216x512xbf16, #tpu.memory_space<vmem>>, vector<8x512xbf16>
    tpu.vector_store %arg15[%c32_153, %c0_154], %235 {strides = array<i32>} : memref<216x512xbf16, #tpu.memory_space<vmem>>, vector<8x512xbf16>,
    %c0_155 = arith.constant 0 : index
    %c65_156 = arith.constant 65 : index
    %237 = vector.load %arg13[%c0_155, %c65_156] : memref<8x768xbf16, #tpu.memory_space<vmem>>, vector<8x512xbf16>
    %c5_157 = arith.constant 5 : index
    %c0_158 = arith.constant 0 : index
    %238 = vector.load %arg2[%c5_157, %c0_158] : memref<27x512xf32, #tpu.memory_space<vmem>>, vector<1x512xf32>
    %239 = arith.truncf %238 : vector<1x512xf32> to vector<1x512xbf16>
    %240 = vector.broadcast %239 : vector<1x512xbf16> to vector<8x512xbf16>
    %241 = arith.mulf %237, %240 : vector<8x512xbf16>
    %c40_159 = arith.constant 40 : index
    %c0_160 = arith.constant 0 : index
    %242 = vector.load %arg15[%c40_159, %c0_160] : memref<216x512xbf16, #tpu.memory_space<vmem>>, vector<8x512xbf16>
    tpu.vector_store %arg15[%c40_159, %c0_160], %241 {strides = array<i32>} : memref<216x512xbf16, #tpu.memory_space<vmem>>, vector<8x512xbf16>,
    %c0_161 = arith.constant 0 : index
    %c71_162 = arith.constant 71 : index
    %243 = vector.load %arg13[%c0_161, %c71_162] : memref<8x768xbf16, #tpu.memory_space<vmem>>, vector<8x512xbf16>
    %c6_163 = arith.constant 6 : index
    %c0_164 = arith.constant 0 : index
    %244 = vector.load %arg2[%c6_163, %c0_164] : memref<27x512xf32, #tpu.memory_space<vmem>>, vector<1x512xf32>
    %245 = arith.truncf %244 : vector<1x512xf32> to vector<1x512xbf16>
    %246 = vector.broadcast %245 : vector<1x512xbf16> to vector<8x512xbf16>
    %247 = arith.mulf %243, %246 : vector<8x512xbf16>
    %c48_165 = arith.constant 48 : index
    %c0_166 = arith.constant 0 : index
    %248 = vector.load %arg15[%c48_165, %c0_166] : memref<216x512xbf16, #tpu.memory_space<vmem>>, vector<8x512xbf16>
    tpu.vector_store %arg15[%c48_165, %c0_166], %247 {strides = array<i32>} : memref<216x512xbf16, #tpu.memory_space<vmem>>, vector<8x512xbf16>,
    %c0_167 = arith.constant 0 : index
    %c72_168 = arith.constant 72 : index
    %249 = vector.load %arg13[%c0_167, %c72_168] : memref<8x768xbf16, #tpu.memory_space<vmem>>, vector<8x512xbf16>
    %c7_169 = arith.constant 7 : index
    %c0_170 = arith.constant 0 : index
    %250 = vector.load %arg2[%c7_169, %c0_170] : memref<27x512xf32, #tpu.memory_space<vmem>>, vector<1x512xf32>
    %251 = arith.truncf %250 : vector<1x512xf32> to vector<1x512xbf16>
    %252 = vector.broadcast %251 : vector<1x512xbf16> to vector<8x512xbf16>
    %253 = arith.mulf %249, %252 : vector<8x512xbf16>
    %c56_171 = arith.constant 56 : index
    %c0_172 = arith.constant 0 : index
    %254 = vector.load %arg15[%c56_171, %c0_172] : memref<216x512xbf16, #tpu.memory_space<vmem>>, vector<8x512xbf16>
    tpu.vector_store %arg15[%c56_171, %c0_172], %253 {strides = array<i32>} : memref<216x512xbf16, #tpu.memory_space<vmem>>, vector<8x512xbf16>,
    %c0_173 = arith.constant 0 : index
    %c73_174 = arith.constant 73 : index
    %255 = vector.load %arg13[%c0_173, %c73_174] : memref<8x768xbf16, #tpu.memory_space<vmem>>, vector<8x512xbf16>
    %c8_175 = arith.constant 8 : index
    %c0_176 = arith.constant 0 : index
    %256 = vector.load %arg2[%c8_175, %c0_176] : memref<27x512xf32, #tpu.memory_space<vmem>>, vector<1x512xf32>
    %257 = arith.truncf %256 : vector<1x512xf32> to vector<1x512xbf16>
    %258 = vector.broadcast %257 : vector<1x512xbf16> to vector<8x512xbf16>
    %259 = arith.mulf %255, %258 : vector<8x512xbf16>
    %c64_177 = arith.constant 64 : index
    %c0_178 = arith.constant 0 : index
    %260 = vector.load %arg15[%c64_177, %c0_178] : memref<216x512xbf16, #tpu.memory_space<vmem>>, vector<8x512xbf16>
    tpu.vector_store %arg15[%c64_177, %c0_178], %259 {strides = array<i32>} : memref<216x512xbf16, #tpu.memory_space<vmem>>, vector<8x512xbf16>,
    %c0_179 = arith.constant 0 : index
    %c119_180 = arith.constant 119 : index
    %261 = vector.load %arg13[%c0_179, %c119_180] : memref<8x768xbf16, #tpu.memory_space<vmem>>, vector<8x512xbf16>
    %c9_181 = arith.constant 9 : index
    %c0_182 = arith.constant 0 : index
    %262 = vector.load %arg2[%c9_181, %c0_182] : memref<27x512xf32, #tpu.memory_space<vmem>>, vector<1x512xf32>
    %263 = arith.truncf %262 : vector<1x512xf32> to vector<1x512xbf16>
    %264 = vector.broadcast %263 : vector<1x512xbf16> to vector<8x512xbf16>
    %265 = arith.mulf %261, %264 : vector<8x512xbf16>
    %c72_183 = arith.constant 72 : index
    %c0_184 = arith.constant 0 : index
    %266 = vector.load %arg15[%c72_183, %c0_184] : memref<216x512xbf16, #tpu.memory_space<vmem>>, vector<8x512xbf16>
    tpu.vector_store %arg15[%c72_183, %c0_184], %265 {strides = array<i32>} : memref<216x512xbf16, #tpu.memory_space<vmem>>, vector<8x512xbf16>,
    %c0_185 = arith.constant 0 : index
    %c120_186 = arith.constant 120 : index
    %267 = vector.load %arg13[%c0_185, %c120_186] : memref<8x768xbf16, #tpu.memory_space<vmem>>, vector<8x512xbf16>
    %c10_187 = arith.constant 10 : index
    %c0_188 = arith.constant 0 : index
    %268 = vector.load %arg2[%c10_187, %c0_188] : memref<27x512xf32, #tpu.memory_space<vmem>>, vector<1x512xf32>
    %269 = arith.truncf %268 : vector<1x512xf32> to vector<1x512xbf16>
    %270 = vector.broadcast %269 : vector<1x512xbf16> to vector<8x512xbf16>
    %271 = arith.mulf %267, %270 : vector<8x512xbf16>
    %c80_189 = arith.constant 80 : index
    %c0_190 = arith.constant 0 : index
    %272 = vector.load %arg15[%c80_189, %c0_190] : memref<216x512xbf16, #tpu.memory_space<vmem>>, vector<8x512xbf16>
    tpu.vector_store %arg15[%c80_189, %c0_190], %271 {strides = array<i32>} : memref<216x512xbf16, #tpu.memory_space<vmem>>, vector<8x512xbf16>,
    %c0_191 = arith.constant 0 : index
    %c121_192 = arith.constant 121 : index
    %273 = vector.load %arg13[%c0_191, %c121_192] : memref<8x768xbf16, #tpu.memory_space<vmem>>, vector<8x512xbf16>
    %c11_193 = arith.constant 11 : index
    %c0_194 = arith.constant 0 : index
    %274 = vector.load %arg2[%c11_193, %c0_194] : memref<27x512xf32, #tpu.memory_space<vmem>>, vector<1x512xf32>
    %275 = arith.truncf %274 : vector<1x512xf32> to vector<1x512xbf16>
    %276 = vector.broadcast %275 : vector<1x512xbf16> to vector<8x512xbf16>
    %277 = arith.mulf %273, %276 : vector<8x512xbf16>
    %c88_195 = arith.constant 88 : index
    %c0_196 = arith.constant 0 : index
    %278 = vector.load %arg15[%c88_195, %c0_196] : memref<216x512xbf16, #tpu.memory_space<vmem>>, vector<8x512xbf16>
    tpu.vector_store %arg15[%c88_195, %c0_196], %277 {strides = array<i32>} : memref<216x512xbf16, #tpu.memory_space<vmem>>, vector<8x512xbf16>,
    %c0_197 = arith.constant 0 : index
    %c127_198 = arith.constant 127 : index
    %279 = vector.load %arg13[%c0_197, %c127_198] : memref<8x768xbf16, #tpu.memory_space<vmem>>, vector<8x512xbf16>
    %c12_199 = arith.constant 12 : index
    %c0_200 = arith.constant 0 : index
    %280 = vector.load %arg2[%c12_199, %c0_200] : memref<27x512xf32, #tpu.memory_space<vmem>>, vector<1x512xf32>
    %281 = arith.truncf %280 : vector<1x512xf32> to vector<1x512xbf16>
    %282 = vector.broadcast %281 : vector<1x512xbf16> to vector<8x512xbf16>
    %283 = arith.mulf %279, %282 : vector<8x512xbf16>
    %c96_201 = arith.constant 96 : index
    %c0_202 = arith.constant 0 : index
    %284 = vector.load %arg15[%c96_201, %c0_202] : memref<216x512xbf16, #tpu.memory_space<vmem>>, vector<8x512xbf16>
    tpu.vector_store %arg15[%c96_201, %c0_202], %283 {strides = array<i32>} : memref<216x512xbf16, #tpu.memory_space<vmem>>, vector<8x512xbf16>,
    %c0_203 = arith.constant 0 : index
    %c128_204 = arith.constant 128 : index
    %285 = vector.load %arg13[%c0_203, %c128_204] : memref<8x768xbf16, #tpu.memory_space<vmem>>, vector<8x512xbf16>
    %c104_205 = arith.constant 104 : index
    %c0_206 = arith.constant 0 : index
    %286 = vector.load %arg15[%c104_205, %c0_206] : memref<216x512xbf16, #tpu.memory_space<vmem>>, vector<8x512xbf16>
    tpu.vector_store %arg15[%c104_205, %c0_206], %285 {strides = array<i32>} : memref<216x512xbf16, #tpu.memory_space<vmem>>, vector<8x512xbf16>,
    %c0_207 = arith.constant 0 : index
    %c129_208 = arith.constant 129 : index
    %287 = vector.load %arg13[%c0_207, %c129_208] : memref<8x768xbf16, #tpu.memory_space<vmem>>, vector<8x512xbf16>
    %c14_209 = arith.constant 14 : index
    %c0_210 = arith.constant 0 : index
    %288 = vector.load %arg2[%c14_209, %c0_210] : memref<27x512xf32, #tpu.memory_space<vmem>>, vector<1x512xf32>
    %289 = arith.truncf %288 : vector<1x512xf32> to vector<1x512xbf16>
    %290 = vector.broadcast %289 : vector<1x512xbf16> to vector<8x512xbf16>
    %291 = arith.mulf %287, %290 : vector<8x512xbf16>
    %c112 = arith.constant 112 : index
    %c0_211 = arith.constant 0 : index
    %292 = vector.load %arg15[%c112, %c0_211] : memref<216x512xbf16, #tpu.memory_space<vmem>>, vector<8x512xbf16>
    tpu.vector_store %arg15[%c112, %c0_211], %291 {strides = array<i32>} : memref<216x512xbf16, #tpu.memory_space<vmem>>, vector<8x512xbf16>,
    %c0_212 = arith.constant 0 : index
    %c135_213 = arith.constant 135 : index
    %293 = vector.load %arg13[%c0_212, %c135_213] : memref<8x768xbf16, #tpu.memory_space<vmem>>, vector<8x512xbf16>
    %c15_214 = arith.constant 15 : index
    %c0_215 = arith.constant 0 : index
    %294 = vector.load %arg2[%c15_214, %c0_215] : memref<27x512xf32, #tpu.memory_space<vmem>>, vector<1x512xf32>
    %295 = arith.truncf %294 : vector<1x512xf32> to vector<1x512xbf16>
    %296 = vector.broadcast %295 : vector<1x512xbf16> to vector<8x512xbf16>
    %297 = arith.mulf %293, %296 : vector<8x512xbf16>
    %c120_216 = arith.constant 120 : index
    %c0_217 = arith.constant 0 : index
    %298 = vector.load %arg15[%c120_216, %c0_217] : memref<216x512xbf16, #tpu.memory_space<vmem>>, vector<8x512xbf16>
    tpu.vector_store %arg15[%c120_216, %c0_217], %297 {strides = array<i32>} : memref<216x512xbf16, #tpu.memory_space<vmem>>, vector<8x512xbf16>,
    %c0_218 = arith.constant 0 : index
    %c136_219 = arith.constant 136 : index
    %299 = vector.load %arg13[%c0_218, %c136_219] : memref<8x768xbf16, #tpu.memory_space<vmem>>, vector<8x512xbf16>
    %c16_220 = arith.constant 16 : index
    %c0_221 = arith.constant 0 : index
    %300 = vector.load %arg2[%c16_220, %c0_221] : memref<27x512xf32, #tpu.memory_space<vmem>>, vector<1x512xf32>
    %301 = arith.truncf %300 : vector<1x512xf32> to vector<1x512xbf16>
    %302 = vector.broadcast %301 : vector<1x512xbf16> to vector<8x512xbf16>
    %303 = arith.mulf %299, %302 : vector<8x512xbf16>
    %c128_222 = arith.constant 128 : index
    %c0_223 = arith.constant 0 : index
    %304 = vector.load %arg15[%c128_222, %c0_223] : memref<216x512xbf16, #tpu.memory_space<vmem>>, vector<8x512xbf16>
    tpu.vector_store %arg15[%c128_222, %c0_223], %303 {strides = array<i32>} : memref<216x512xbf16, #tpu.memory_space<vmem>>, vector<8x512xbf16>,
    %c0_224 = arith.constant 0 : index
    %c137_225 = arith.constant 137 : index
    %305 = vector.load %arg13[%c0_224, %c137_225] : memref<8x768xbf16, #tpu.memory_space<vmem>>, vector<8x512xbf16>
    %c17_226 = arith.constant 17 : index
    %c0_227 = arith.constant 0 : index
    %306 = vector.load %arg2[%c17_226, %c0_227] : memref<27x512xf32, #tpu.memory_space<vmem>>, vector<1x512xf32>
    %307 = arith.truncf %306 : vector<1x512xf32> to vector<1x512xbf16>
    %308 = vector.broadcast %307 : vector<1x512xbf16> to vector<8x512xbf16>
    %309 = arith.mulf %305, %308 : vector<8x512xbf16>
    %c136_228 = arith.constant 136 : index
    %c0_229 = arith.constant 0 : index
    %310 = vector.load %arg15[%c136_228, %c0_229] : memref<216x512xbf16, #tpu.memory_space<vmem>>, vector<8x512xbf16>
    tpu.vector_store %arg15[%c136_228, %c0_229], %309 {strides = array<i32>} : memref<216x512xbf16, #tpu.memory_space<vmem>>, vector<8x512xbf16>,
    %c0_230 = arith.constant 0 : index
    %c183_231 = arith.constant 183 : index
    %311 = vector.load %arg13[%c0_230, %c183_231] : memref<8x768xbf16, #tpu.memory_space<vmem>>, vector<8x512xbf16>
    %c18_232 = arith.constant 18 : index
    %c0_233 = arith.constant 0 : index
    %312 = vector.load %arg2[%c18_232, %c0_233] : memref<27x512xf32, #tpu.memory_space<vmem>>, vector<1x512xf32>
    %313 = arith.truncf %312 : vector<1x512xf32> to vector<1x512xbf16>
    %314 = vector.broadcast %313 : vector<1x512xbf16> to vector<8x512xbf16>
    %315 = arith.mulf %311, %314 : vector<8x512xbf16>
    %c144 = arith.constant 144 : index
    %c0_234 = arith.constant 0 : index
    %316 = vector.load %arg15[%c144, %c0_234] : memref<216x512xbf16, #tpu.memory_space<vmem>>, vector<8x512xbf16>
    tpu.vector_store %arg15[%c144, %c0_234], %315 {strides = array<i32>} : memref<216x512xbf16, #tpu.memory_space<vmem>>, vector<8x512xbf16>,
    %c0_235 = arith.constant 0 : index
    %c184_236 = arith.constant 184 : index
    %317 = vector.load %arg13[%c0_235, %c184_236] : memref<8x768xbf16, #tpu.memory_space<vmem>>, vector<8x512xbf16>
    %c19_237 = arith.constant 19 : index
    %c0_238 = arith.constant 0 : index
    %318 = vector.load %arg2[%c19_237, %c0_238] : memref<27x512xf32, #tpu.memory_space<vmem>>, vector<1x512xf32>
    %319 = arith.truncf %318 : vector<1x512xf32> to vector<1x512xbf16>
    %320 = vector.broadcast %319 : vector<1x512xbf16> to vector<8x512xbf16>
    %321 = arith.mulf %317, %320 : vector<8x512xbf16>
    %c152 = arith.constant 152 : index
    %c0_239 = arith.constant 0 : index
    %322 = vector.load %arg15[%c152, %c0_239] : memref<216x512xbf16, #tpu.memory_space<vmem>>, vector<8x512xbf16>
    tpu.vector_store %arg15[%c152, %c0_239], %321 {strides = array<i32>} : memref<216x512xbf16, #tpu.memory_space<vmem>>, vector<8x512xbf16>,
    %c0_240 = arith.constant 0 : index
    %c185_241 = arith.constant 185 : index
    %323 = vector.load %arg13[%c0_240, %c185_241] : memref<8x768xbf16, #tpu.memory_space<vmem>>, vector<8x512xbf16>
    %c20_242 = arith.constant 20 : index
    %c0_243 = arith.constant 0 : index
    %324 = vector.load %arg2[%c20_242, %c0_243] : memref<27x512xf32, #tpu.memory_space<vmem>>, vector<1x512xf32>
    %325 = arith.truncf %324 : vector<1x512xf32> to vector<1x512xbf16>
    %326 = vector.broadcast %325 : vector<1x512xbf16> to vector<8x512xbf16>
    %327 = arith.mulf %323, %326 : vector<8x512xbf16>
    %c160 = arith.constant 160 : index
    %c0_244 = arith.constant 0 : index
    %328 = vector.load %arg15[%c160, %c0_244] : memref<216x512xbf16, #tpu.memory_space<vmem>>, vector<8x512xbf16>
    tpu.vector_store %arg15[%c160, %c0_244], %327 {strides = array<i32>} : memref<216x512xbf16, #tpu.memory_space<vmem>>, vector<8x512xbf16>,
    %c0_245 = arith.constant 0 : index
    %c191_246 = arith.constant 191 : index
    %329 = vector.load %arg13[%c0_245, %c191_246] : memref<8x768xbf16, #tpu.memory_space<vmem>>, vector<8x512xbf16>
    %c21_247 = arith.constant 21 : index
    %c0_248 = arith.constant 0 : index
    %330 = vector.load %arg2[%c21_247, %c0_248] : memref<27x512xf32, #tpu.memory_space<vmem>>, vector<1x512xf32>
    %331 = arith.truncf %330 : vector<1x512xf32> to vector<1x512xbf16>
    %332 = vector.broadcast %331 : vector<1x512xbf16> to vector<8x512xbf16>
    %333 = arith.mulf %329, %332 : vector<8x512xbf16>
    %c168 = arith.constant 168 : index
    %c0_249 = arith.constant 0 : index
    %334 = vector.load %arg15[%c168, %c0_249] : memref<216x512xbf16, #tpu.memory_space<vmem>>, vector<8x512xbf16>
    tpu.vector_store %arg15[%c168, %c0_249], %333 {strides = array<i32>} : memref<216x512xbf16, #tpu.memory_space<vmem>>, vector<8x512xbf16>,
    %c0_250 = arith.constant 0 : index
    %c192_251 = arith.constant 192 : index
    %335 = vector.load %arg13[%c0_250, %c192_251] : memref<8x768xbf16, #tpu.memory_space<vmem>>, vector<8x512xbf16>
    %c22_252 = arith.constant 22 : index
    %c0_253 = arith.constant 0 : index
    %336 = vector.load %arg2[%c22_252, %c0_253] : memref<27x512xf32, #tpu.memory_space<vmem>>, vector<1x512xf32>
    %337 = arith.truncf %336 : vector<1x512xf32> to vector<1x512xbf16>
    %338 = vector.broadcast %337 : vector<1x512xbf16> to vector<8x512xbf16>
    %339 = arith.mulf %335, %338 : vector<8x512xbf16>
    %c176 = arith.constant 176 : index
    %c0_254 = arith.constant 0 : index
    %340 = vector.load %arg15[%c176, %c0_254] : memref<216x512xbf16, #tpu.memory_space<vmem>>, vector<8x512xbf16>
    tpu.vector_store %arg15[%c176, %c0_254], %339 {strides = array<i32>} : memref<216x512xbf16, #tpu.memory_space<vmem>>, vector<8x512xbf16>,
    %c0_255 = arith.constant 0 : index
    %c193_256 = arith.constant 193 : index
    %341 = vector.load %arg13[%c0_255, %c193_256] : memref<8x768xbf16, #tpu.memory_space<vmem>>, vector<8x512xbf16>
    %c23_257 = arith.constant 23 : index
    %c0_258 = arith.constant 0 : index
    %342 = vector.load %arg2[%c23_257, %c0_258] : memref<27x512xf32, #tpu.memory_space<vmem>>, vector<1x512xf32>
    %343 = arith.truncf %342 : vector<1x512xf32> to vector<1x512xbf16>
    %344 = vector.broadcast %343 : vector<1x512xbf16> to vector<8x512xbf16>
    %345 = arith.mulf %341, %344 : vector<8x512xbf16>
    %c184_259 = arith.constant 184 : index
    %c0_260 = arith.constant 0 : index
    %346 = vector.load %arg15[%c184_259, %c0_260] : memref<216x512xbf16, #tpu.memory_space<vmem>>, vector<8x512xbf16>
    tpu.vector_store %arg15[%c184_259, %c0_260], %345 {strides = array<i32>} : memref<216x512xbf16, #tpu.memory_space<vmem>>, vector<8x512xbf16>,
    %c0_261 = arith.constant 0 : index
    %c199_262 = arith.constant 199 : index
    %347 = vector.load %arg13[%c0_261, %c199_262] : memref<8x768xbf16, #tpu.memory_space<vmem>>, vector<8x512xbf16>
    %c24_263 = arith.constant 24 : index
    %c0_264 = arith.constant 0 : index
    %348 = vector.load %arg2[%c24_263, %c0_264] : memref<27x512xf32, #tpu.memory_space<vmem>>, vector<1x512xf32>
    %349 = arith.truncf %348 : vector<1x512xf32> to vector<1x512xbf16>
    %350 = vector.broadcast %349 : vector<1x512xbf16> to vector<8x512xbf16>
    %351 = arith.mulf %347, %350 : vector<8x512xbf16>
    %c192_265 = arith.constant 192 : index
    %c0_266 = arith.constant 0 : index
    %352 = vector.load %arg15[%c192_265, %c0_266] : memref<216x512xbf16, #tpu.memory_space<vmem>>, vector<8x512xbf16>
    tpu.vector_store %arg15[%c192_265, %c0_266], %351 {strides = array<i32>} : memref<216x512xbf16, #tpu.memory_space<vmem>>, vector<8x512xbf16>,
    %c0_267 = arith.constant 0 : index
    %c200_268 = arith.constant 200 : index
    %353 = vector.load %arg13[%c0_267, %c200_268] : memref<8x768xbf16, #tpu.memory_space<vmem>>, vector<8x512xbf16>
    %c25_269 = arith.constant 25 : index
    %c0_270 = arith.constant 0 : index
    %354 = vector.load %arg2[%c25_269, %c0_270] : memref<27x512xf32, #tpu.memory_space<vmem>>, vector<1x512xf32>
    %355 = arith.truncf %354 : vector<1x512xf32> to vector<1x512xbf16>
    %356 = vector.broadcast %355 : vector<1x512xbf16> to vector<8x512xbf16>
    %357 = arith.mulf %353, %356 : vector<8x512xbf16>
    %c200_271 = arith.constant 200 : index
    %c0_272 = arith.constant 0 : index
    %358 = vector.load %arg15[%c200_271, %c0_272] : memref<216x512xbf16, #tpu.memory_space<vmem>>, vector<8x512xbf16>
    tpu.vector_store %arg15[%c200_271, %c0_272], %357 {strides = array<i32>} : memref<216x512xbf16, #tpu.memory_space<vmem>>, vector<8x512xbf16>,
    %c0_273 = arith.constant 0 : index
    %c201_274 = arith.constant 201 : index
    %359 = vector.load %arg13[%c0_273, %c201_274] : memref<8x768xbf16, #tpu.memory_space<vmem>>, vector<8x512xbf16>
    %c26_275 = arith.constant 26 : index
    %c0_276 = arith.constant 0 : index
    %360 = vector.load %arg2[%c26_275, %c0_276] : memref<27x512xf32, #tpu.memory_space<vmem>>, vector<1x512xf32>
    %361 = arith.truncf %360 : vector<1x512xf32> to vector<1x512xbf16>
    %362 = vector.broadcast %361 : vector<1x512xbf16> to vector<8x512xbf16>
    %363 = arith.mulf %359, %362 : vector<8x512xbf16>
    %c208 = arith.constant 208 : index
    %c0_277 = arith.constant 0 : index
    %364 = vector.load %arg15[%c208, %c0_277] : memref<216x512xbf16, #tpu.memory_space<vmem>>, vector<8x512xbf16>
    tpu.vector_store %arg15[%c208, %c0_277], %363 {strides = array<i32>} : memref<216x512xbf16, #tpu.memory_space<vmem>>, vector<8x512xbf16>,
    %c0_278 = arith.constant 0 : index
    %c0_279 = arith.constant 0 : index
    %365 = vector.load %arg7[%c0_278, %c0_279] : memref<8x216xbf16, #tpu.memory_space<vmem>>, vector<8x216xbf16>
    %c0_280 = arith.constant 0 : index
    %c0_281 = arith.constant 0 : index
    %366 = vector.load %arg15[%c0_280, %c0_281] : memref<216x512xbf16, #tpu.memory_space<vmem>>, vector<216x512xbf16>
    %cst_282 = arith.constant dense<0.000000e+00> : vector<8x512xf32>
    %367 = tpu.matmul %365, %366, %cst_282 {dimension_numbers = #tpu.dot_dimension_numbers<[1], [0], [0], [1], [0, 0, 1, 1], [], []>} : vector<8x216xbf16>, vector<216x512xbf16>, vector<8x512xf32> -> vector<8x512xf32>
    %c0_283 = arith.constant 0 : index
    %c0_284 = arith.constant 0 : index
    %368 = vector.load %arg8[%c0_283, %c0_284] : memref<8x1xf32, #tpu.memory_space<vmem>>, vector<8x1xf32>
    %369 = vector.broadcast %368 : vector<8x1xf32> to vector<8x512xf32>
    %370 = arith.addf %367, %369 : vector<8x512xf32>
    %c0_285 = arith.constant 0 : index
    %c0_286 = arith.constant 0 : index
    %371 = vector.load %arg9[%c0_285, %c0_286] : memref<8x1xf32, #tpu.memory_space<vmem>>, vector<8x1xf32>
    %c0_287 = arith.constant 0 : index
    %c0_288 = arith.constant 0 : index
    %372 = vector.load %arg10[%c0_287, %c0_288] : memref<8x1xf32, #tpu.memory_space<vmem>>, vector<8x1xf32>
    %cst_289 = arith.constant dense<0.000000e+00> : vector<8xf32>
    %373 = vector.multi_reduction <add>, %370, %cst_289 [1] : vector<8x512xf32> to vector<8xf32>
    %374 = vector.shape_cast %373 : vector<8xf32> to vector<8x1xf32>
    %cst_290 = arith.constant 5.120000e+02 : f32
    %375 = vector.broadcast %cst_290 : f32 to vector<8x1xf32>
    %376 = arith.divf %374, %375 : vector<8x1xf32>
    %377 = vector.broadcast %376 : vector<8x1xf32> to vector<8x512xf32>
    %378 = arith.subf %370, %377 : vector<8x512xf32>
    %379 = arith.mulf %378, %378 : vector<8x512xf32>
    %cst_291 = arith.constant dense<0.000000e+00> : vector<8xf32>
    %380 = vector.multi_reduction <add>, %379, %cst_291 [1] : vector<8x512xf32> to vector<8xf32>
    %381 = vector.shape_cast %380 : vector<8xf32> to vector<8x1xf32>
    %cst_292 = arith.constant 5.120000e+02 : f32
    %382 = vector.broadcast %cst_292 : f32 to vector<8x1xf32>
    %383 = arith.divf %381, %382 : vector<8x1xf32>
    %cst_293 = arith.constant 9.99999974E-6 : f32
    %384 = vector.broadcast %cst_293 : f32 to vector<8x1xf32>
    %385 = arith.addf %383, %384 : vector<8x1xf32>
    %386 = math.rsqrt %385 : vector<8x1xf32>
    %387 = vector.broadcast %386 : vector<8x1xf32> to vector<8x512xf32>
    %388 = arith.mulf %378, %387 : vector<8x512xf32>
    %389 = vector.broadcast %371 : vector<8x1xf32> to vector<8x512xf32>
    %390 = arith.mulf %388, %389 : vector<8x512xf32>
    %391 = vector.broadcast %372 : vector<8x1xf32> to vector<8x512xf32>
    %392 = arith.addf %390, %391 : vector<8x512xf32>
    %393 = arith.addf %392, %177 : vector<8x512xf32>
    %cst_294 = arith.constant 0.000000e+00 : f32
    %394 = vector.broadcast %cst_294 : f32 to vector<8x512xf32>
    %395 = arith.cmpf oge, %393, %394 : vector<8x512xf32>
    %cst_295 = arith.constant 0.00999999977 : f32
    %396 = vector.broadcast %cst_295 : f32 to vector<8x512xf32>
    %397 = arith.mulf %396, %393 : vector<8x512xf32>
    %398 = arith.select %395, %393, %397 : vector<8x512xi1>, vector<8x512xf32>
    %c0_296 = arith.constant 0 : index
    %c0_297 = arith.constant 0 : index
    %c0_298 = arith.constant 0 : index
    %399 = vector.load %arg11[%c0_296, %c0_297, %c0_298] : memref<1x8x512xf32, #tpu.memory_space<vmem>>, vector<1x8x512xf32>
    %400 = vector.shape_cast %399 : vector<1x8x512xf32> to vector<8x512xf32>
    %401 = vector.shape_cast %398 : vector<8x512xf32> to vector<1x8x512xf32>
    tpu.vector_store %arg11[%c0_296, %c0_297, %c0_298], %401 {strides = array<i32>} : memref<1x8x512xf32, #tpu.memory_space<vmem>>, vector<1x8x512xf32>,
    return
  }
  func.func @transform_0(%arg0: i32) -> (i32, i32, i32) {
    %c0_i32 = arith.constant 0 : i32
    %c0_i32_0 = arith.constant 0 : i32
    %c0_i32_1 = arith.constant 0 : i32
    return %arg0, %c0_i32, %c0_i32_0 : i32, i32, i32
  }
  func.func @transform_1(%arg0: i32) -> (i32, i32) {
    %c0_i32 = arith.constant 0 : i32
    %c0_i32_0 = arith.constant 0 : i32
    %c0_i32_1 = arith.constant 0 : i32
    return %c0_i32, %c0_i32_0 : i32, i32
  }
  func.func @transform_2(%arg0: i32) -> (i32, i32) {
    %c0_i32 = arith.constant 0 : i32
    %c0_i32_0 = arith.constant 0 : i32
    %c0_i32_1 = arith.constant 0 : i32
    return %c0_i32, %c0_i32_0 : i32, i32
  }
  func.func @transform_3(%arg0: i32) -> (i32, i32) {
    %c0_i32 = arith.constant 0 : i32
    %c0_i32_0 = arith.constant 0 : i32
    %c0_i32_1 = arith.constant 0 : i32
    return %c0_i32, %c0_i32_0 : i32, i32
  }
  func.func @transform_4(%arg0: i32) -> (i32, i32) {
    %c0_i32 = arith.constant 0 : i32
    %c0_i32_0 = arith.constant 0 : i32
    %c0_i32_1 = arith.constant 0 : i32
    return %c0_i32, %c0_i32_0 : i32, i32
  }
  func.func @transform_5(%arg0: i32) -> (i32, i32) {
    %c0_i32 = arith.constant 0 : i32
    %c0_i32_0 = arith.constant 0 : i32
    %c0_i32_1 = arith.constant 0 : i32
    return %c0_i32, %c0_i32_0 : i32, i32
  }
  func.func @transform_6(%arg0: i32) -> (i32, i32) {
    %c0_i32 = arith.constant 0 : i32
    %c0_i32_0 = arith.constant 0 : i32
    %c0_i32_1 = arith.constant 0 : i32
    return %c0_i32, %c0_i32_0 : i32, i32
  }
  func.func @transform_7(%arg0: i32) -> (i32, i32) {
    %c0_i32 = arith.constant 0 : i32
    %c0_i32_0 = arith.constant 0 : i32
    %c0_i32_1 = arith.constant 0 : i32
    return %c0_i32, %c0_i32_0 : i32, i32
  }
  func.func @transform_8(%arg0: i32) -> (i32, i32) {
    %c0_i32 = arith.constant 0 : i32
    %c0_i32_0 = arith.constant 0 : i32
    %c0_i32_1 = arith.constant 0 : i32
    return %c0_i32, %c0_i32_0 : i32, i32
  }
  func.func @transform_9(%arg0: i32) -> (i32, i32) {
    %c0_i32 = arith.constant 0 : i32
    %c0_i32_0 = arith.constant 0 : i32
    %c0_i32_1 = arith.constant 0 : i32
    return %c0_i32, %c0_i32_0 : i32, i32
  }
  func.func @transform_10(%arg0: i32) -> (i32, i32, i32) {
    %c0_i32 = arith.constant 0 : i32
    %c0_i32_0 = arith.constant 0 : i32
    %c0_i32_1 = arith.constant 0 : i32
    return %arg0, %c0_i32, %c0_i32_0 : i32, i32, i32
  }
}

</mosaic_0001>

<llo_original>
// kernel: tpu_custom_call.1
$region0: #{tpu_custom_call.1}
  #allocation0 [shape = 'u32[]', space=smem, size = 0x4, offset = 0x4, fixed_abs, tag = 'smem constant byte address 0x4 - core index']
  #allocation1 [shape = 'u32[72,128]{1,0:T(1,128)}', space=vmem, size = 0x9000, scoped, tag = 'internal scratch']
  #allocation2 [shape = 'bf16[4,768]{1,0:T(4,128)(2,1)}', space=vmem, size = 0x1800, scoped, tag = 'scratch operand']
  #allocation3 [shape = 'bf16[8,768]{1,0:T(8,128)(2,1)}', space=vmem, size = 0x3000, scoped, tag = 'scratch operand']
  #allocation4 [shape = 'bf16[108,512]{1,0:T(8,128)(2,1)}', space=vmem, size = 0x1c000, scoped, tag = 'scratch operand']
  #allocation5 [shape = 'bf16[216,512]{1,0:T(8,128)(2,1)}', space=vmem, size = 0x36000, scoped, tag = 'scratch operand']
  %s0 = inlined_call_operand.hbm [shape: f32[2,4,512], index: 0, kind: input, shape index: {}]
  %s1 = inlined_call_operand.hbm [shape: f32[27,512], index: 1, kind: input, shape index: {}]
  %s2 = inlined_call_operand.vmem [shape: bf16[16,108], index: 2, kind: input, shape index: {}]
  %s3 = inlined_call_operand.vmem [shape: f32[16,1], index: 3, kind: input, shape index: {}]
  %s4 = inlined_call_operand.vmem [shape: f32[8,1], index: 4, kind: input, shape index: {}]
  %s5 = inlined_call_operand.vmem [shape: f32[8,1], index: 5, kind: input, shape index: {}]
  %s6 = inlined_call_operand.vmem [shape: bf16[8,216], index: 6, kind: input, shape index: {}]
  %s7 = inlined_call_operand.vmem [shape: f32[8,1], index: 7, kind: input, shape index: {}]
  %s8 = inlined_call_operand.vmem [shape: f32[8,1], index: 8, kind: input, shape index: {}]
  %s9 = inlined_call_operand.vmem [shape: f32[8,1], index: 9, kind: input, shape index: {}]
  %s10 = inlined_call_operand.hbm [shape: f32[2,8,512], index: 10, kind: output, shape index: {}]
  %s11 = sld [smem:[#allocation0]]
  $region81: #{tpu_custom_call.1} parent=0
    _
  %s13 = ssub.s32 1, %s11
  %s14 = scalar_select 0, %s13, %s11
  $region1: #{tpu_custom_call.1} parent=0
    #allocation6 [shape = 'u8[16384]{0}', space=vmem, size = 0x4000, scoped, tag = 'input window, operand 0']
    #allocation7 [shape = 's32[2]{0}', space=sflag, size = 0x8, scoped, tag = 'scoped memory for tpu_custom_call.1']
    #allocation8 [shape = 's32[2]{0}', space=sflag, size = 0x8, scoped, tag = 'scoped memory for tpu_custom_call.1']
    #allocation9 [shape = 'u8[65536]{0}', space=vmem, size = 0x10000, scoped, tag = 'input window, operand 1, single buffered']
    #allocation10 [shape = 's32[1]{0}', space=sflag, size = 0x4, scoped, tag = 'scoped memory for tpu_custom_call.1']
    #allocation11 [shape = 'u8[32768]{0}', space=vmem, size = 0x8000, scoped, tag = 'output window, operand 0']
    %15 = vsyncpa [#allocation7], 0
    %s16 = scalar_lea.sflag [#allocation7], 1
    %17 = vsyncpa %s16, 0
    %18 = vsyncpa [#allocation10], 0
    %19 = vsyncpa [#allocation8], 0
    %s20 = scalar_lea.sflag [#allocation8], 1
    %21 = vsyncpa %s20, 0
    loop: start=0, step=1, limit=4
    $region2: #{tpu_custom_call.1} parent=1 // loop_pre_header
      _
    $region3: #{tpu_custom_call.1} parent=1 // loop_header
      %s23 = sphi 0, %s27
      %p24 = scmp.ge.s32.totalorder %s23, 4
      %s33 = sphi 0, %s35
      %s36 = sphi 0, %s33
      %s37 = sphi 0, %s36
      %s53 = sphi 0, %s37
      %s57 = sphi 0, %s57
      %s59 = sphi 0, %s57
      %s60 = sphi 0, %s59
      %s74 = sphi 0, %s60
      %s78 = sphi 0, %s78
      %s80 = sphi 0, %s78
      %s81 = sphi 0, %s80
      %s95 = sphi 0, %s81
      %s99 = sphi 0, %s99
      %s101 = sphi 0, %s99
      %s102 = sphi 0, %s101
      %s116 = sphi 0, %s102
      %s120 = sphi 0, %s120
      %s122 = sphi 0, %s120
      %s123 = sphi 0, %s122
      %s137 = sphi 0, %s123
      %s141 = sphi 0, %s141
      %s143 = sphi 0, %s141
      %s144 = sphi 0, %s143
      %s158 = sphi 0, %s144
      %s162 = sphi 0, %s162
      %s164 = sphi 0, %s162
      %s165 = sphi 0, %s164
      %s179 = sphi 0, %s165
      %s183 = sphi 0, %s183
      %s185 = sphi 0, %s183
      %s186 = sphi 0, %s185
      %s200 = sphi 0, %s186
      %s204 = sphi 0, %s204
      %s206 = sphi 0, %s204
      %s207 = sphi 0, %s206
      %s221 = sphi 0, %s207
      %s225 = sphi 0, %s225
      %s227 = sphi 0, %s225
      %s228 = sphi 0, %s227
      %s242 = sphi 0, %s228
      %s248 = sphi 0, %s250
      %s251 = sphi 0, %s248
      %s252 = sphi 0, %s251
      %s268 = sphi 0, %s252
    $region4: #{tpu_custom_call.1} parent=1 // loop_header_branch
      %26 = sbr.rel (%p24) target = $region8
    $region5: #{tpu_custom_call.1} parent=1 // loop_body
      %s28 = ssub.s32 %s23, 1
      %s29 = ssub.s32 %s23, 2
      %s30 = sadd.s32 %s23, 1
      %s31 = ssub.s32 %s23, %s30
      %p32 = scmp.eq.s32.totalorder %s31, 0
      %s34 = sadd.s32 %s33, 1
      %s35 = scalar_select %p32, %s33, %s34
      %p38 = pneg %p32
      %p39 = scmp.eq.s32.totalorder %s23, 1
      %p40 = por %p38, %p39
      %p41 = scmp.ne.s32.totalorder %s33, %s36
      %p42 = scmp.eq.s32.totalorder %s23, 0
      %p43 = por %p41, %p42
      %p44 = scmp.ne.s32.totalorder %s33, %s36
      %p45 = scmp.eq.s32.totalorder %s28, 1
      %p46 = por %p44, %p45
      %p47 = scmp.ne.s32.totalorder %s36, %s37
      %p48 = scmp.eq.s32.totalorder %s28, 0
      %p49 = por %p47, %p48
      %p50 = scmp.ne.s32.totalorder %s36, %s37
      %p51 = scmp.eq.s32.totalorder %s29, 1
      %p52 = por %p50, %p51
      %p54 = scmp.ne.s32.totalorder %s37, %s53
      %p55 = scmp.eq.s32.totalorder %s29, 0
      %p56 = por %p54, %p55
      %s58 = sadd.s32 %s57, 1
      %p61 = scmp.eq.s32.totalorder %s23, 1
      %p62 = scmp.ne.s32.totalorder %s57, %s59
      %p63 = scmp.eq.s32.totalorder %s23, 0
      %p64 = por %p62, %p63
      %p65 = scmp.ne.s32.totalorder %s57, %s59
      %p66 = scmp.eq.s32.totalorder %s28, 1
      %p67 = por %p65, %p66
      %p68 = scmp.ne.s32.totalorder %s59, %s60
      %p69 = scmp.eq.s32.totalorder %s28, 0
      %p70 = por %p68, %p69
      %p71 = scmp.ne.s32.totalorder %s59, %s60
      %p72 = scmp.eq.s32.totalorder %s29, 1
      %p73 = por %p71, %p72
      %p75 = scmp.ne.s32.totalorder %s60, %s74
      %p76 = scmp.eq.s32.totalorder %s29, 0
      %p77 = por %p75, %p76
      %s79 = sadd.s32 %s78, 1
      %p82 = scmp.eq.s32.totalorder %s23, 1
      %p83 = scmp.ne.s32.totalorder %s78, %s80
      %p84 = scmp.eq.s32.totalorder %s23, 0
      %p85 = por %p83, %p84
      %p86 = scmp.ne.s32.totalorder %s78, %s80
      %p87 = scmp.eq.s32.totalorder %s28, 1
      %p88 = por %p86, %p87
      %p89 = scmp.ne.s32.totalorder %s80, %s81
      %p90 = scmp.eq.s32.totalorder %s28, 0
      %p91 = por %p89, %p90
      %p92 = scmp.ne.s32.totalorder %s80, %s81
      %p93 = scmp.eq.s32.totalorder %s29, 1
      %p94 = por %p92, %p93
      %p96 = scmp.ne.s32.totalorder %s81, %s95
      %p97 = scmp.eq.s32.totalorder %s29, 0
      %p98 = por %p96, %p97
      %s100 = sadd.s32 %s99, 1
      %p103 = scmp.eq.s32.totalorder %s23, 1
      %p104 = scmp.ne.s32.totalorder %s99, %s101
      %p105 = scmp.eq.s32.totalorder %s23, 0
      %p106 = por %p104, %p105
      %p107 = scmp.ne.s32.totalorder %s99, %s101
      %p108 = scmp.eq.s32.totalorder %s28, 1
      %p109 = por %p107, %p108
      %p110 = scmp.ne.s32.totalorder %s101, %s102
      %p111 = scmp.eq.s32.totalorder %s28, 0
      %p112 = por %p110, %p111
      %p113 = scmp.ne.s32.totalorder %s101, %s102
      %p114 = scmp.eq.s32.totalorder %s29, 1
      %p115 = por %p113, %p114
      %p117 = scmp.ne.s32.totalorder %s102, %s116
      %p118 = scmp.eq.s32.totalorder %s29, 0
      %p119 = por %p117, %p118
      %s121 = sadd.s32 %s120, 1
      %p124 = scmp.eq.s32.totalorder %s23, 1
      %p125 = scmp.ne.s32.totalorder %s120, %s122
      %p126 = scmp.eq.s32.totalorder %s23, 0
      %p127 = por %p125, %p126
      %p128 = scmp.ne.s32.totalorder %s120, %s122
      %p129 = scmp.eq.s32.totalorder %s28, 1
      %p130 = por %p128, %p129
      %p131 = scmp.ne.s32.totalorder %s122, %s123
      %p132 = scmp.eq.s32.totalorder %s28, 0
      %p133 = por %p131, %p132
      %p134 = scmp.ne.s32.totalorder %s122, %s123
      %p135 = scmp.eq.s32.totalorder %s29, 1
      %p136 = por %p134, %p135
      %p138 = scmp.ne.s32.totalorder %s123, %s137
      %p139 = scmp.eq.s32.totalorder %s29, 0
      %p140 = por %p138, %p139
      %s142 = sadd.s32 %s141, 1
      %p145 = scmp.eq.s32.totalorder %s23, 1
      %p146 = scmp.ne.s32.totalorder %s141, %s143
      %p147 = scmp.eq.s32.totalorder %s23, 0
      %p148 = por %p146, %p147
      %p149 = scmp.ne.s32.totalorder %s141, %s143
      %p150 = scmp.eq.s32.totalorder %s28, 1
      %p151 = por %p149, %p150
      %p152 = scmp.ne.s32.totalorder %s143, %s144
      %p153 = scmp.eq.s32.totalorder %s28, 0
      %p154 = por %p152, %p153
      %p155 = scmp.ne.s32.totalorder %s143, %s144
      %p156 = scmp.eq.s32.totalorder %s29, 1
      %p157 = por %p155, %p156
      %p159 = scmp.ne.s32.totalorder %s144, %s158
      %p160 = scmp.eq.s32.totalorder %s29, 0
      %p161 = por %p159, %p160
      %s163 = sadd.s32 %s162, 1
      %p166 = scmp.eq.s32.totalorder %s23, 1
      %p167 = scmp.ne.s32.totalorder %s162, %s164
      %p168 = scmp.eq.s32.totalorder %s23, 0
      %p169 = por %p167, %p168
      %p170 = scmp.ne.s32.totalorder %s162, %s164
      %p171 = scmp.eq.s32.totalorder %s28, 1
      %p172 = por %p170, %p171
      %p173 = scmp.ne.s32.totalorder %s164, %s165
      %p174 = scmp.eq.s32.totalorder %s28, 0
      %p175 = por %p173, %p174
      %p176 = scmp.ne.s32.totalorder %s164, %s165
      %p177 = scmp.eq.s32.totalorder %s29, 1
      %p178 = por %p176, %p177
      %p180 = scmp.ne.s32.totalorder %s165, %s179
      %p181 = scmp.eq.s32.totalorder %s29, 0
      %p182 = por %p180, %p181
      %s184 = sadd.s32 %s183, 1
      %p187 = scmp.eq.s32.totalorder %s23, 1
      %p188 = scmp.ne.s32.totalorder %s183, %s185
      %p189 = scmp.eq.s32.totalorder %s23, 0
      %p190 = por %p188, %p189
      %p191 = scmp.ne.s32.totalorder %s183, %s185
      %p192 = scmp.eq.s32.totalorder %s28, 1
      %p193 = por %p191, %p192
      %p194 = scmp.ne.s32.totalorder %s185, %s186
      %p195 = scmp.eq.s32.totalorder %s28, 0
      %p196 = por %p194, %p195
      %p197 = scmp.ne.s32.totalorder %s185, %s186
      %p198 = scmp.eq.s32.totalorder %s29, 1
      %p199 = por %p197, %p198
      %p201 = scmp.ne.s32.totalorder %s186, %s200
      %p202 = scmp.eq.s32.totalorder %s29, 0
      %p203 = por %p201, %p202
      %s205 = sadd.s32 %s204, 1
      %p208 = scmp.eq.s32.totalorder %s23, 1
      %p209 = scmp.ne.s32.totalorder %s204, %s206
      %p210 = scmp.eq.s32.totalorder %s23, 0
      %p211 = por %p209, %p210
      %p212 = scmp.ne.s32.totalorder %s204, %s206
      %p213 = scmp.eq.s32.totalorder %s28, 1
      %p214 = por %p212, %p213
      %p215 = scmp.ne.s32.totalorder %s206, %s207
      %p216 = scmp.eq.s32.totalorder %s28, 0
      %p217 = por %p215, %p216
      %p218 = scmp.ne.s32.totalorder %s206, %s207
      %p219 = scmp.eq.s32.totalorder %s29, 1
      %p220 = por %p218, %p219
      %p222 = scmp.ne.s32.totalorder %s207, %s221
      %p223 = scmp.eq.s32.totalorder %s29, 0
      %p224 = por %p222, %p223
      %s226 = sadd.s32 %s225, 1
      %p229 = scmp.eq.s32.totalorder %s23, 1
      %p230 = scmp.ne.s32.totalorder %s225, %s227
      %p231 = scmp.eq.s32.totalorder %s23, 0
      %p232 = por %p230, %p231
      %p233 = scmp.ne.s32.totalorder %s225, %s227
      %p234 = scmp.eq.s32.totalorder %s28, 1
      %p235 = por %p233, %p234
      %p236 = scmp.ne.s32.totalorder %s227, %s228
      %p237 = scmp.eq.s32.totalorder %s28, 0
      %p238 = por %p236, %p237
      %p239 = scmp.ne.s32.totalorder %s227, %s228
      %p240 = scmp.eq.s32.totalorder %s29, 1
      %p241 = por %p239, %p240
      %p243 = scmp.ne.s32.totalorder %s228, %s242
      %p244 = scmp.eq.s32.totalorder %s29, 0
      %p245 = por %p243, %p244
      %s246 = ssub.s32 %s23, %s30
      %p247 = scmp.eq.s32.totalorder %s246, 0
      %s249 = sadd.s32 %s248, 1
      %s250 = scalar_select %p247, %s248, %s249
      %p253 = pneg %p247
      %p254 = scmp.eq.s32.totalorder %s23, 1
      %p255 = por %p253, %p254
      %p256 = scmp.ne.s32.totalorder %s248, %s251
      %p257 = scmp.eq.s32.totalorder %s23, 0
      %p258 = por %p256, %p257
      %p259 = scmp.ne.s32.totalorder %s248, %s251
      %p260 = scmp.eq.s32.totalorder %s28, 1
      %p261 = por %p259, %p260
      %p262 = scmp.ne.s32.totalorder %s251, %s252
      %p263 = scmp.eq.s32.totalorder %s28, 0
      %p264 = por %p262, %p263
      %p265 = scmp.ne.s32.totalorder %s251, %s252
      %p266 = scmp.eq.s32.totalorder %s29, 1
      %p267 = por %p265, %p266
      %p269 = scmp.ne.s32.totalorder %s252, %s268
      %p270 = scmp.eq.s32.totalorder %s29, 0
      %p271 = por %p269, %p270
      %p272 = scmp.le.s32.totalorder 1, %s23
      %p273 = scmp.lt.s32.totalorder %s23, 3
      %p274 = pnand %p272, %p273
      %p275 = pneg %p274
      // Predicated region
      $region9: #{tpu_custom_call.1} parent=5 // pred_check
        _
      $region10: #{tpu_custom_call.1} parent=5 // pred_check_branch
        %277 = sbr.rel (%p274) target = $region12
      $region11: #{tpu_custom_call.1} parent=5 // pred_region
        %s278 = ssub.s32 %s23, 1
        // Predicated region
        $region13: #{tpu_custom_call.1} parent=11 // pred_check
          %p279 = pneg %p70
        $region14: #{tpu_custom_call.1} parent=11 // pred_check_branch
          %281 = sbr.rel (%p279) target = $region16
        $region15: #{tpu_custom_call.1} parent=11 // pred_region
          %283 = vsyncadd [#allocation10], 0
          %s284 = sshll.u32 %s1, 4
          %s285 = int_to_ptr.hbm [resolvable:$true] %s284
          %s286 = sshll.u32 [#allocation9], 4
          %s287 = int_to_ptr.vmem [resolvable:$true] %s286
          %292 = dma.hbm_to_vmem [thread:$0]  %s285, 2048, %s287, [#allocation10], 512, 512, 32
        $region16: #{tpu_custom_call.1} parent=11 // pred_fallthru
          _
        // Predicated region
        $region17: #{tpu_custom_call.1} parent=11 // pred_check
          %p293 = pneg %p91
        $region18: #{tpu_custom_call.1} parent=11 // pred_check_branch
          %295 = sbr.rel (%p293) target = $region20
        $region19: #{tpu_custom_call.1} parent=11 // pred_region
          _
        $region20: #{tpu_custom_call.1} parent=11 // pred_fallthru
          _
        // Predicated region
        $region21: #{tpu_custom_call.1} parent=11 // pred_check
          %p296 = pneg %p112
        $region22: #{tpu_custom_call.1} parent=11 // pred_check_branch
          %298 = sbr.rel (%p296) target = $region24
        $region23: #{tpu_custom_call.1} parent=11 // pred_region
          _
        $region24: #{tpu_custom_call.1} parent=11 // pred_fallthru
          _
        // Predicated region
        $region25: #{tpu_custom_call.1} parent=11 // pred_check
          %p299 = pneg %p133
        $region26: #{tpu_custom_call.1} parent=11 // pred_check_branch
          %301 = sbr.rel (%p299) target = $region28
        $region27: #{tpu_custom_call.1} parent=11 // pred_region
          _
        $region28: #{tpu_custom_call.1} parent=11 // pred_fallthru
          _
        // Predicated region
        $region29: #{tpu_custom_call.1} parent=11 // pred_check
          %p302 = pneg %p154
        $region30: #{tpu_custom_call.1} parent=11 // pred_check_branch
          %304 = sbr.rel (%p302) target = $region32
        $region31: #{tpu_custom_call.1} parent=11 // pred_region
          _
        $region32: #{tpu_custom_call.1} parent=11 // pred_fallthru
          _
        // Predicated region
        $region33: #{tpu_custom_call.1} parent=11 // pred_check
          %p305 = pneg %p175
        $region34: #{tpu_custom_call.1} parent=11 // pred_check_branch
          %307 = sbr.rel (%p305) target = $region36
        $region35: #{tpu_custom_call.1} parent=11 // pred_region
          _
        $region36: #{tpu_custom_call.1} parent=11 // pred_fallthru
          _
        // Predicated region
        $region37: #{tpu_custom_call.1} parent=11 // pred_check
          %p308 = pneg %p196
        $region38: #{tpu_custom_call.1} parent=11 // pred_check_branch
          %310 = sbr.rel (%p308) target = $region40
        $region39: #{tpu_custom_call.1} parent=11 // pred_region
          _
        $region40: #{tpu_custom_call.1} parent=11 // pred_fallthru
          _
        // Predicated region
        $region41: #{tpu_custom_call.1} parent=11 // pred_check
          %p311 = pneg %p217
        $region42: #{tpu_custom_call.1} parent=11 // pred_check_branch
          %313 = sbr.rel (%p311) target = $region44
        $region43: #{tpu_custom_call.1} parent=11 // pred_region
          _
        $region44: #{tpu_custom_call.1} parent=11 // pred_fallthru
          _
        // Predicated region
        $region45: #{tpu_custom_call.1} parent=11 // pred_check
          %p314 = pneg %p238
        $region46: #{tpu_custom_call.1} parent=11 // pred_check_branch
          %316 = sbr.rel (%p314) target = $region48
        $region47: #{tpu_custom_call.1} parent=11 // pred_region
          _
        $region48: #{tpu_custom_call.1} parent=11 // pred_fallthru
          _
      $region12: #{tpu_custom_call.1} parent=5 // pred_fallthru
        _
      %p317 = scmp.lt.s32.totalorder %s23, 2
      // Predicated region
      $region49: #{tpu_custom_call.1} parent=5 // pred_check
        %p318 = pneg %p317
      $region50: #{tpu_custom_call.1} parent=5 // pred_check_branch
        %320 = sbr.rel (%p318) target = $region52
      $region51: #{tpu_custom_call.1} parent=5 // pred_region
        // Predicated region
        $region53: #{tpu_custom_call.1} parent=51 // pred_check
          %p321 = pneg %p43
        $region54: #{tpu_custom_call.1} parent=51 // pred_check_branch
          %323 = sbr.rel (%p321) target = $region56
        $region55: #{tpu_custom_call.1} parent=51 // pred_region
          %s324 = sand.u32 %s33, 1
          %s325 = scalar_lea.sflag [#allocation7], %s324
          %s326 = sand.u32 %s33, 1
          %s327 = smul.addr %s326, 16
          %s328 = scalar_lea.vmem [#allocation6], %s327
          %330 = vsyncadd %s325, 0
          %s331 = smul.addr %s23, 4
          %s332 = smul.addr %s331, 4
          %s333 = scalar_lea.hbm %s0, %s332
          %s335 = sshll.u32 %s333, 4
          %s336 = int_to_ptr.hbm [resolvable:$true] %s335
          %s337 = sshll.u32 %s328, 4
          %s338 = int_to_ptr.vmem [resolvable:$true] %s337
          %340 = dma.hbm_to_vmem [thread:$0]  %s336, 256, %s338, %s325
        $region56: #{tpu_custom_call.1} parent=51 // pred_fallthru
          _
      $region52: #{tpu_custom_call.1} parent=5 // pred_fallthru
        _
      %p341 = scmp.le.s32.totalorder 1, %s23
      %p342 = scmp.lt.s32.totalorder %s23, 3
      %p343 = pnand %p341, %p342
      %p344 = pneg %p343
      // Predicated region
      $region57: #{tpu_custom_call.1} parent=5 // pred_check
        _
      $region58: #{tpu_custom_call.1} parent=5 // pred_check_branch
        %346 = sbr.rel (%p343) target = $region60
      $region59: #{tpu_custom_call.1} parent=5 // pred_region
        %s347 = ssub.s32 %s23, 1
        %s348 = sand.u32 %s36, 1
        %s349 = scalar_lea.sflag [#allocation7], %s348
        %s350 = sand.u32 %s36, 1
        %s351 = smul.addr %s350, 16
        %s352 = scalar_lea.vmem [#allocation6], %s351
        // Predicated region
        $region61: #{tpu_custom_call.1} parent=59 // pred_check
          %p353 = pneg %p49
        $region62: #{tpu_custom_call.1} parent=59 // pred_check_branch
          %355 = sbr.rel (%p353) target = $region64
        $region63: #{tpu_custom_call.1} parent=59 // pred_region
          %357 = dma.done %s349, 256
        $region64: #{tpu_custom_call.1} parent=59 // pred_fallthru
          _
        // Predicated region
        $region65: #{tpu_custom_call.1} parent=59 // pred_check
          %p358 = pneg %p70
        $region66: #{tpu_custom_call.1} parent=59 // pred_check_branch
          %360 = sbr.rel (%p358) target = $region68
        $region67: #{tpu_custom_call.1} parent=59 // pred_region
          %362 = dma.done [#allocation10], 2048
        $region68: #{tpu_custom_call.1} parent=59 // pred_fallthru
          _
        %s363 = sand.u32 %s36, 1
        %s364 = scalar_lea.sflag [#allocation7], %s363
        %s365 = sand.u32 %s36, 1
        %s366 = smul.addr %s365, 16
        %s367 = scalar_lea.vmem [#allocation6], %s366
        %p368 = pneg %p49
        %p369 = pneg %p46
        %p370 = pneg %p70
        %p371 = pneg %p67
        %p372 = pneg %p91
        %p373 = pneg %p88
        %p374 = pneg %p112
        %p375 = pneg %p109
        %p376 = pneg %p133
        %p377 = pneg %p130
        %p378 = pneg %p154
        %p379 = pneg %p151
        %p380 = pneg %p175
        %p381 = pneg %p172
        %p382 = pneg %p196
        %p383 = pneg %p193
        %p384 = pneg %p217
        %p385 = pneg %p214
        %p386 = pneg %p238
        %p387 = pneg %p235
        %p388 = pneg %p264
        %p389 = pneg %p261
        %s390 = sand.u32 %s251, 1
        %s391 = scalar_lea.sflag [#allocation8], %s390
        %s392 = sand.u32 %s251, 1
        %s393 = smul.addr %s392, 32
        %s394 = scalar_lea.vmem [#allocation11], %s393
        %396 = vst [vmem:[#allocation2] sm:$0x3] 0
        %397 = vst [vmem:[#allocation2 + $0xa] sm:$0x3] 0
        %398 = vst [vmem:[#allocation3] sm:$0xf] 0
        %399 = vst [vmem:[#allocation3 + $0x14] sm:$0xf] 0
        %v400 = vld [vmem:[%s352] sm:$0xff]
        %v401 = vld [vmem:[%s352 + $0x8] sm:$0xff]
        %404 = vst [vmem:[#allocation1] ss:$2 sm:$0xff] %v400
        %s405 = scalar_lea.vmem [#allocation1], 16
        %406 = vst [vmem:[%s405] ss:$2 sm:$0xff] %v401
        %v407 = vld.sshfl [vmem:[#allocation1] sm:$0xff pattern:$0x75316420]
        %v408 = vld.sshfl [vmem:[#allocation1 + $0x8] sm:$0xff pattern:$0x75316420]
        %v409 = vld.sshfl [vmem:[#allocation1 + $0x10] sm:$0xff pattern:$0x75316420]
        %v410 = vld.sshfl [vmem:[#allocation1 + $0x18] sm:$0xff pattern:$0x75316420]
        %v415 = vpack.c.bf16 %v408, %v407
        %v416 = vpack.c.bf16 %v410, %v409
        %v419 = vrot.slane %v415, 2
        %v420 = vrot.slane %v416, 4
        %v421 = vrot.slane %v416, 6
        %vm422 = vcmask 1041408
        %v425 = vsel %vm422, %v415, %v419
        %vm426 = vcmask 1045508
        %v429 = vsel %vm426, %v420, %v421
        %vm430 = vcmask 1043456
        %v431 = vsel %vm430, %v425, %v429
        %433 = vst [vmem:[#allocation2 + $0x2] sm:$0xff] %v431
        %v434 = vld [vmem:[#allocation2] sm:$0xff]
        %v435 = vld [vmem:[#allocation2 + $0x8] sm:$0x3]
        %v436 = vld [vmem:[#allocation9] ss:$8 sm:$0xf]
        %v438 = vperm.slane %v436, 0
        %v439 = vperm.slane %v436, 1
        %v440 = vperm.slane %v436, 2
        %v441 = vperm.slane %v436, 3
        %v446 = vpack.c.bf16 %v439, %v438
        %v447 = vpack.c.bf16 %v441, %v440
        %v450 = vunpack.c.l.b16 %v446
        %v451 = vunpack.c.h.b16 %v446
        %v452 = vunpack.c.l.b16 %v447
        %v453 = vunpack.c.h.b16 %v447
        %v454 = vpack.c.b16 %v450, %v450
        %v455 = vpack.c.b16 %v451, %v451
        %v456 = vpack.c.b16 %v452, %v452
        %v457 = vpack.c.b16 %v453, %v453
        %v459 = vpack.i.b16 %v454, %v454
        %v461 = vperm.slane %v459, 0
        %v463 = vpack.i.b16 %v455, %v455
        %v465 = vperm.slane %v463, 0
        %v467 = vpack.i.b16 %v456, %v456
        %v469 = vperm.slane %v467, 0
        %v471 = vpack.i.b16 %v457, %v457
        %v473 = vperm.slane %v471, 0
        %v474 = vunpack.c.l.bf16 %v434
        %v475 = vunpack.c.h.bf16 %v434
        %v476 = vunpack.c.l.bf16 %v435
        %v477 = vunpack.c.l.bf16 %v461
        %v478 = vunpack.c.l.bf16 %v465
        %v479 = vunpack.c.l.bf16 %v469
        %v480 = vunpack.c.l.bf16 %v473
        %v485 = vrot.slane %v478, 4
        %v486 = vrot.slane %v480, 4
        %v487 = vsel %vm430, %v477, %v485
        %v488 = vsel %vm430, %v479, %v486
        %489 = vrot.lane.b32.xlu0 %v487, 55
        %v490 = vpop.permute.xlu0 %489
        %491 = vrot.lane.b32.xlu0 %v488, 55
        %v492 = vpop.permute.xlu0 %491
        %v493 = vrot.slane %v490, 4
        %v494 = vrot.slane %v492, 4
        %vm495 = vcmask 449536
        %v496 = vsel %vm495, %v493, %v490
        %v497 = vsel %vm430, %v493, %v494
        %v498 = vsel %vm495, %v497, %v492
        %v502 = vmul.f32 %v474, %v496
        %v503 = vmul.f32 %v475, %v498
        %v504 = vmul.f32 %v476, %v494
        %508 = vst [vmem:[#allocation1] ss:$2 sm:$0xff] %v502
        %s509 = scalar_lea.vmem [#allocation1], 16
        %510 = vst [vmem:[%s509] ss:$2 sm:$0xff] %v503
        %s511 = scalar_lea.vmem [#allocation1], 32
        %512 = vst [vmem:[%s511] ss:$2 sm:$0xff] %v504
        %v513 = vld.sshfl [vmem:[#allocation1] sm:$0xff pattern:$0x75316420]
        %v514 = vld.sshfl [vmem:[#allocation1 + $0x8] sm:$0xff pattern:$0x75316420]
        %v515 = vld.sshfl [vmem:[#allocation1 + $0x10] sm:$0xff pattern:$0x75316420]
        %v516 = vld.sshfl [vmem:[#allocation1 + $0x18] sm:$0xff pattern:$0x75316420]
        %v517 = vld.sshfl [vmem:[#allocation1 + $0x20] sm:$0xff pattern:$0x75316420]
        %v523 = vpack.c.bf16 %v514, %v513
        %v524 = vpack.c.bf16 %v516, %v515
        %v525 = vpack.c.bf16 %v517, %v517
        %529 = vrot.lane.b32.xlu0 %v523, 73
        %v530 = vpop.permute.xlu0 %529
        %531 = vrot.lane.b32.xlu0 %v524, 73
        %v532 = vpop.permute.xlu0 %531
        %533 = vrot.lane.b32.xlu0 %v525, 73
        %v534 = vpop.permute.xlu0 %533
        %v535 = vrot.slane %v530, 4
        %v536 = vrot.slane %v532, 4
        %v537 = vrot.slane %v534, 4
        %vm538 = vcmask 1043456
        %v539 = vsel %vm538, %v535, %v536
        %vm540 = vcmask 596992
        %v541 = vsel %vm540, %v530, %v539
        %v542 = vsel %vm538, %v536, %v537
        %v543 = vsel %vm540, %v532, %v542
        %546 = vst [vmem:[#allocation4] sm:$0x33] %v541
        %547 = vst [vmem:[#allocation4 + $0x8] sm:$0x33] %v543
        %v548 = vld [vmem:[#allocation2] sm:$0xff]
        %v549 = vld [vmem:[#allocation2 + $0x8] sm:$0x3]
        %s550 = scalar_lea.vmem [#allocation9], 1
        %v551 = vld [vmem:[%s550] ss:$8 sm:$0xf]
        %v553 = vperm.slane %v551, 0
        %v554 = vperm.slane %v551, 1
        %v555 = vperm.slane %v551, 2
        %v556 = vperm.slane %v551, 3
        %v561 = vpack.c.bf16 %v554, %v553
        %v562 = vpack.c.bf16 %v556, %v555
        %v565 = vunpack.c.l.b16 %v561
        %v566 = vunpack.c.h.b16 %v561
        %v567 = vunpack.c.l.b16 %v562
        %v568 = vunpack.c.h.b16 %v562
        %v569 = vpack.c.b16 %v565, %v565
        %v570 = vpack.c.b16 %v566, %v566
        %v571 = vpack.c.b16 %v567, %v567
        %v572 = vpack.c.b16 %v568, %v568
        %v574 = vpack.i.b16 %v569, %v569
        %v576 = vperm.slane %v574, 0
        %v578 = vpack.i.b16 %v570, %v570
        %v580 = vperm.slane %v578, 0
        %v582 = vpack.i.b16 %v571, %v571
        %v584 = vperm.slane %v582, 0
        %v586 = vpack.i.b16 %v572, %v572
        %v588 = vperm.slane %v586, 0
        %v589 = vunpack.c.l.bf16 %v548
        %v590 = vunpack.c.h.bf16 %v548
        %v591 = vunpack.c.l.bf16 %v549
        %v592 = vunpack.c.l.bf16 %v576
        %v593 = vunpack.c.l.bf16 %v580
        %v594 = vunpack.c.l.bf16 %v584
        %v595 = vunpack.c.l.bf16 %v588
        %v600 = vrot.slane %v593, 4
        %v601 = vrot.slane %v595, 4
        %v602 = vsel %vm430, %v592, %v600
        %v603 = vsel %vm430, %v594, %v601
        %604 = vrot.lane.b32.xlu0 %v602, 56
        %v605 = vpop.permute.xlu0 %604
        %606 = vrot.lane.b32.xlu0 %v603, 56
        %v607 = vpop.permute.xlu0 %606
        %v608 = vrot.slane %v605, 4
        %v609 = vrot.slane %v607, 4
        %vm610 = vcmask 457728
        %v611 = vsel %vm610, %v608, %v605
        %v612 = vsel %vm430, %v608, %v609
        %v613 = vsel %vm610, %v612, %v607
        %v617 = vmul.f32 %v589, %v611
        %v618 = vmul.f32 %v590, %v613
        %v619 = vmul.f32 %v591, %v609
        %623 = vst [vmem:[#allocation1] ss:$2 sm:$0xff] %v617
        %s624 = scalar_lea.vmem [#allocation1], 16
        %625 = vst [vmem:[%s624] ss:$2 sm:$0xff] %v618
        %s626 = scalar_lea.vmem [#allocation1], 32
        %627 = vst [vmem:[%s626] ss:$2 sm:$0xff] %v619
        %v628 = vld.sshfl [vmem:[#allocation1] sm:$0xff pattern:$0x75316420]
        %v629 = vld.sshfl [vmem:[#allocation1 + $0x8] sm:$0xff pattern:$0x75316420]
        %v630 = vld.sshfl [vmem:[#allocation1 + $0x10] sm:$0xff pattern:$0x75316420]
        %v631 = vld.sshfl [vmem:[#allocation1 + $0x18] sm:$0xff pattern:$0x75316420]
        %v632 = vld.sshfl [vmem:[#allocation1 + $0x20] sm:$0xff pattern:$0x75316420]
        %v638 = vpack.c.bf16 %v629, %v628
        %v639 = vpack.c.bf16 %v631, %v630
        %v640 = vpack.c.bf16 %v632, %v632
        %v644 = vrot.slane %v638, 6
        %v645 = vrot.slane %v639, 6
        %v646 = vrot.slane %v640, 6
        %647 = vrot.lane.b32.xlu0 %v644, 72
        %v648 = vpop.permute.xlu0 %647
        %649 = vrot.lane.b32.xlu0 %v645, 72
        %v650 = vpop.permute.xlu0 %649
        %651 = vrot.lane.b32.xlu0 %v646, 72
        %v652 = vpop.permute.xlu0 %651
        %v653 = vrot.slane %v648, 4
        %v654 = vrot.slane %v650, 4
        %v655 = vrot.slane %v652, 4
        %v656 = vsel %vm538, %v653, %v654
        %vm657 = vcmask 588800
        %v658 = vsel %vm657, %v648, %v656
        %v659 = vsel %vm538, %v654, %v655
        %v660 = vsel %vm657, %v650, %v659
        %663 = vst [vmem:[#allocation4] sm:$0xcc] %v658
        %664 = vst [vmem:[#allocation4 + $0x8] sm:$0xcc] %v660
        %v665 = vld [vmem:[#allocation2] sm:$0xff]
        %v666 = vld [vmem:[#allocation2 + $0x8] sm:$0x3]
        %s667 = scalar_lea.vmem [#allocation9], 2
        %v668 = vld [vmem:[%s667] ss:$8 sm:$0xf]
        %v670 = vperm.slane %v668, 0
        %v671 = vperm.slane %v668, 1
        %v672 = vperm.slane %v668, 2
        %v673 = vperm.slane %v668, 3
        %v678 = vpack.c.bf16 %v671, %v670
        %v679 = vpack.c.bf16 %v673, %v672
        %v682 = vunpack.c.l.b16 %v678
        %v683 = vunpack.c.h.b16 %v678
        %v684 = vunpack.c.l.b16 %v679
        %v685 = vunpack.c.h.b16 %v679
        %v686 = vpack.c.b16 %v682, %v682
        %v687 = vpack.c.b16 %v683, %v683
        %v688 = vpack.c.b16 %v684, %v684
        %v689 = vpack.c.b16 %v685, %v685
        %v691 = vpack.i.b16 %v686, %v686
        %v693 = vperm.slane %v691, 0
        %v695 = vpack.i.b16 %v687, %v687
        %v697 = vperm.slane %v695, 0
        %v699 = vpack.i.b16 %v688, %v688
        %v701 = vperm.slane %v699, 0
        %v703 = vpack.i.b16 %v689, %v689
        %v705 = vperm.slane %v703, 0
        %v706 = vunpack.c.l.bf16 %v665
        %v707 = vunpack.c.h.bf16 %v665
        %v708 = vunpack.c.l.bf16 %v666
        %v709 = vunpack.c.l.bf16 %v693
        %v710 = vunpack.c.l.bf16 %v697
        %v711 = vunpack.c.l.bf16 %v701
        %v712 = vunpack.c.l.bf16 %v705
        %v717 = vrot.slane %v710, 4
        %v718 = vrot.slane %v712, 4
        %v719 = vsel %vm430, %v709, %v717
        %v720 = vsel %vm430, %v711, %v718
        %721 = vrot.lane.b32.xlu0 %v719, 57
        %v722 = vpop.permute.xlu0 %721
        %723 = vrot.lane.b32.xlu0 %v720, 57
        %v724 = vpop.permute.xlu0 %723
        %v725 = vrot.slane %v722, 4
        %v726 = vrot.slane %v724, 4
        %vm727 = vcmask 465920
        %v728 = vsel %vm727, %v725, %v722
        %v729 = vsel %vm430, %v725, %v726
        %v730 = vsel %vm727, %v729, %v724
        %v734 = vmul.f32 %v706, %v728
        %v735 = vmul.f32 %v707, %v730
        %v736 = vmul.f32 %v708, %v726
        %740 = vst [vmem:[#allocation1] ss:$2 sm:$0xff] %v734
        %s741 = scalar_lea.vmem [#allocation1], 16
        %742 = vst [vmem:[%s741] ss:$2 sm:$0xff] %v735
        %s743 = scalar_lea.vmem [#allocation1], 32
        %744 = vst [vmem:[%s743] ss:$2 sm:$0xff] %v736
        %v745 = vld.sshfl [vmem:[#allocation1] sm:$0xff pattern:$0x75316420]
        %v746 = vld.sshfl [vmem:[#allocation1 + $0x8] sm:$0xff pattern:$0x75316420]
        %v747 = vld.sshfl [vmem:[#allocation1 + $0x10] sm:$0xff pattern:$0x75316420]
        %v748 = vld.sshfl [vmem:[#allocation1 + $0x18] sm:$0xff pattern:$0x75316420]
        %v749 = vld.sshfl [vmem:[#allocation1 + $0x20] sm:$0xff pattern:$0x75316420]
        %v755 = vpack.c.bf16 %v746, %v745
        %v756 = vpack.c.bf16 %v748, %v747
        %v757 = vpack.c.bf16 %v749, %v749
        %761 = vrot.lane.b32.xlu0 %v755, 71
        %v762 = vpop.permute.xlu0 %761
        %763 = vrot.lane.b32.xlu0 %v756, 71
        %v764 = vpop.permute.xlu0 %763
        %765 = vrot.lane.b32.xlu0 %v757, 71
        %v766 = vpop.permute.xlu0 %765
        %v767 = vrot.slane %v762, 4
        %v768 = vrot.slane %v764, 4
        %v769 = vrot.slane %v766, 4
        %v770 = vsel %vm538, %v767, %v768
        %vm771 = vcmask 580608
        %v772 = vsel %vm771, %v762, %v770
        %v773 = vsel %vm538, %v768, %v769
        %v774 = vsel %vm771, %v764, %v773
        %777 = vst [vmem:[#allocation4 + $0x10] sm:$0x33] %v772
        %778 = vst [vmem:[#allocation4 + $0x18] sm:$0x33] %v774
        %v779 = vld [vmem:[#allocation2] sm:$0xff]
        %v780 = vld [vmem:[#allocation2 + $0x8] sm:$0x3]
        %s781 = scalar_lea.vmem [#allocation9], 3
        %v782 = vld [vmem:[%s781] ss:$8 sm:$0xf]
        %v784 = vperm.slane %v782, 0
        %v785 = vperm.slane %v782, 1
        %v786 = vperm.slane %v782, 2
        %v787 = vperm.slane %v782, 3
        %v792 = vpack.c.bf16 %v785, %v784
        %v793 = vpack.c.bf16 %v787, %v786
        %v796 = vunpack.c.l.b16 %v792
        %v797 = vunpack.c.h.b16 %v792
        %v798 = vunpack.c.l.b16 %v793
        %v799 = vunpack.c.h.b16 %v793
        %v800 = vpack.c.b16 %v796, %v796
        %v801 = vpack.c.b16 %v797, %v797
        %v802 = vpack.c.b16 %v798, %v798
        %v803 = vpack.c.b16 %v799, %v799
        %v805 = vpack.i.b16 %v800, %v800
        %v807 = vperm.slane %v805, 0
        %v809 = vpack.i.b16 %v801, %v801
        %v811 = vperm.slane %v809, 0
        %v813 = vpack.i.b16 %v802, %v802
        %v815 = vperm.slane %v813, 0
        %v817 = vpack.i.b16 %v803, %v803
        %v819 = vperm.slane %v817, 0
        %v820 = vunpack.c.l.bf16 %v779
        %v821 = vunpack.c.h.bf16 %v779
        %v822 = vunpack.c.l.bf16 %v780
        %v823 = vunpack.c.l.bf16 %v807
        %v824 = vunpack.c.l.bf16 %v811
        %v825 = vunpack.c.l.bf16 %v815
        %v826 = vunpack.c.l.bf16 %v819
        %v831 = vrot.slane %v824, 4
        %v832 = vrot.slane %v826, 4
        %v833 = vsel %vm430, %v823, %v831
        %v834 = vsel %vm430, %v825, %v832
        %835 = vrot.lane.b32.xlu0 %v833, 63
        %v836 = vpop.permute.xlu0 %835
        %837 = vrot.lane.b32.xlu0 %v834, 63
        %v838 = vpop.permute.xlu0 %837
        %v839 = vrot.slane %v836, 4
        %v840 = vrot.slane %v838, 4
        %vm841 = vcmask 515072
        %v842 = vsel %vm841, %v839, %v836
        %v843 = vsel %vm430, %v839, %v840
        %v844 = vsel %vm841, %v843, %v838
        %v848 = vmul.f32 %v820, %v842
        %v849 = vmul.f32 %v821, %v844
        %v850 = vmul.f32 %v822, %v840
        %854 = vst [vmem:[#allocation1] ss:$2 sm:$0xff] %v848
        %s855 = scalar_lea.vmem [#allocation1], 16
        %856 = vst [vmem:[%s855] ss:$2 sm:$0xff] %v849
        %s857 = scalar_lea.vmem [#allocation1], 32
        %858 = vst [vmem:[%s857] ss:$2 sm:$0xff] %v850
        %v859 = vld.sshfl [vmem:[#allocation1] sm:$0xff pattern:$0x75316420]
        %v860 = vld.sshfl [vmem:[#allocation1 + $0x8] sm:$0xff pattern:$0x75316420]
        %v861 = vld.sshfl [vmem:[#allocation1 + $0x10] sm:$0xff pattern:$0x75316420]
        %v862 = vld.sshfl [vmem:[#allocation1 + $0x18] sm:$0xff pattern:$0x75316420]
        %v863 = vld.sshfl [vmem:[#allocation1 + $0x20] sm:$0xff pattern:$0x75316420]
        %v869 = vpack.c.bf16 %v860, %v859
        %v870 = vpack.c.bf16 %v862, %v861
        %v871 = vpack.c.bf16 %v863, %v863
        %v875 = vrot.slane %v869, 6
        %v876 = vrot.slane %v870, 6
        %v877 = vrot.slane %v871, 6
        %878 = vrot.lane.b32.xlu0 %v875, 65
        %v879 = vpop.permute.xlu0 %878
        %880 = vrot.lane.b32.xlu0 %v876, 65
        %v881 = vpop.permute.xlu0 %880
        %882 = vrot.lane.b32.xlu0 %v877, 65
        %v883 = vpop.permute.xlu0 %882
        %v884 = vrot.slane %v879, 4
        %v885 = vrot.slane %v881, 4
        %v886 = vrot.slane %v883, 4
        %v887 = vsel %vm538, %v884, %v885
        %vm888 = vcmask 531456
        %v889 = vsel %vm888, %v879, %v887
        %v890 = vsel %vm538, %v885, %v886
        %v891 = vsel %vm888, %v881, %v890
        %894 = vst [vmem:[#allocation4 + $0x10] sm:$0xcc] %v889
        %895 = vst [vmem:[#allocation4 + $0x18] sm:$0xcc] %v891
        %v896 = vld [vmem:[#allocation2] sm:$0xff]
        %v897 = vld [vmem:[#allocation2 + $0x8] sm:$0x3]
        %s898 = scalar_lea.vmem [#allocation9], 4
        %v899 = vld [vmem:[%s898] ss:$8 sm:$0xf]
        %v901 = vperm.slane %v899, 0
        %v902 = vperm.slane %v899, 1
        %v903 = vperm.slane %v899, 2
        %v904 = vperm.slane %v899, 3
        %v909 = vpack.c.bf16 %v902, %v901
        %v910 = vpack.c.bf16 %v904, %v903
        %v913 = vunpack.c.l.b16 %v909
        %v914 = vunpack.c.h.b16 %v909
        %v915 = vunpack.c.l.b16 %v910
        %v916 = vunpack.c.h.b16 %v910
        %v917 = vpack.c.b16 %v913, %v913
        %v918 = vpack.c.b16 %v914, %v914
        %v919 = vpack.c.b16 %v915, %v915
        %v920 = vpack.c.b16 %v916, %v916
        %v922 = vpack.i.b16 %v917, %v917
        %v924 = vperm.slane %v922, 0
        %v926 = vpack.i.b16 %v918, %v918
        %v928 = vperm.slane %v926, 0
        %v930 = vpack.i.b16 %v919, %v919
        %v932 = vperm.slane %v930, 0
        %v934 = vpack.i.b16 %v920, %v920
        %v936 = vperm.slane %v934, 0
        %v937 = vunpack.c.l.bf16 %v896
        %v938 = vunpack.c.h.bf16 %v896
        %v939 = vunpack.c.l.bf16 %v897
        %v940 = vunpack.c.l.bf16 %v924
        %v941 = vunpack.c.l.bf16 %v928
        %v942 = vunpack.c.l.bf16 %v932
        %v943 = vunpack.c.l.bf16 %v936
        %v948 = vrot.slane %v941, 4
        %v949 = vrot.slane %v943, 4
        %v950 = vsel %vm430, %v940, %v948
        %v951 = vsel %vm430, %v942, %v949
        %952 = vrot.lane.b32.xlu0 %v950, 64
        %v953 = vpop.permute.xlu0 %952
        %954 = vrot.lane.b32.xlu0 %v951, 64
        %v955 = vpop.permute.xlu0 %954
        %v956 = vrot.slane %v953, 4
        %v957 = vrot.slane %v955, 4
        %vm958 = vcmask 523264
        %v959 = vsel %vm958, %v956, %v953
        %v960 = vsel %vm430, %v956, %v957
        %v961 = vsel %vm958, %v960, %v955
        %v965 = vmul.f32 %v937, %v959
        %v966 = vmul.f32 %v938, %v961
        %v967 = vmul.f32 %v939, %v957
        %971 = vst [vmem:[#allocation1] ss:$2 sm:$0xff] %v965
        %s972 = scalar_lea.vmem [#allocation1], 16
        %973 = vst [vmem:[%s972] ss:$2 sm:$0xff] %v966
        %s974 = scalar_lea.vmem [#allocation1], 32
        %975 = vst [vmem:[%s974] ss:$2 sm:$0xff] %v967
        %v976 = vld.sshfl [vmem:[#allocation1] sm:$0xff pattern:$0x75316420]
        %v977 = vld.sshfl [vmem:[#allocation1 + $0x8] sm:$0xff pattern:$0x75316420]
        %v978 = vld.sshfl [vmem:[#allocation1 + $0x10] sm:$0xff pattern:$0x75316420]
        %v979 = vld.sshfl [vmem:[#allocation1 + $0x18] sm:$0xff pattern:$0x75316420]
        %v980 = vld.sshfl [vmem:[#allocation1 + $0x20] sm:$0xff pattern:$0x75316420]
        %v986 = vpack.c.bf16 %v977, %v976
        %v987 = vpack.c.bf16 %v979, %v978
        %v988 = vpack.c.bf16 %v980, %v980
        %992 = vrot.lane.b32.xlu0 %v986, 64
        %v993 = vpop.permute.xlu0 %992
        %994 = vrot.lane.b32.xlu0 %v987, 64
        %v995 = vpop.permute.xlu0 %994
        %996 = vrot.lane.b32.xlu0 %v988, 64
        %v997 = vpop.permute.xlu0 %996
        %v998 = vrot.slane %v993, 4
        %v999 = vrot.slane %v995, 4
        %v1000 = vrot.slane %v997, 4
        %v1001 = vsel %vm538, %v998, %v999
        %vm1002 = vcmask 523264
        %v1003 = vsel %vm1002, %v993, %v1001
        %v1004 = vsel %vm538, %v999, %v1000
        %v1005 = vsel %vm1002, %v995, %v1004
        %1008 = vst [vmem:[#allocation4 + $0x20] sm:$0x33] %v1003
        %1009 = vst [vmem:[#allocation4 + $0x28] sm:$0x33] %v1005
        %v1010 = vld [vmem:[#allocation2] sm:$0xff]
        %v1011 = vld [vmem:[#allocation2 + $0x8] sm:$0x3]
        %s1012 = scalar_lea.vmem [#allocation9], 5
        %v1013 = vld [vmem:[%s1012] ss:$8 sm:$0xf]
        %v1015 = vperm.slane %v1013, 0
        %v1016 = vperm.slane %v1013, 1
        %v1017 = vperm.slane %v1013, 2
        %v1018 = vperm.slane %v1013, 3
        %v1023 = vpack.c.bf16 %v1016, %v1015
        %v1024 = vpack.c.bf16 %v1018, %v1017
        %v1027 = vunpack.c.l.b16 %v1023
        %v1028 = vunpack.c.h.b16 %v1023
        %v1029 = vunpack.c.l.b16 %v1024
        %v1030 = vunpack.c.h.b16 %v1024
        %v1031 = vpack.c.b16 %v1027, %v1027
        %v1032 = vpack.c.b16 %v1028, %v1028
        %v1033 = vpack.c.b16 %v1029, %v1029
        %v1034 = vpack.c.b16 %v1030, %v1030
        %v1036 = vpack.i.b16 %v1031, %v1031
        %v1038 = vperm.slane %v1036, 0
        %v1040 = vpack.i.b16 %v1032, %v1032
        %v1042 = vperm.slane %v1040, 0
        %v1044 = vpack.i.b16 %v1033, %v1033
        %v1046 = vperm.slane %v1044, 0
        %v1048 = vpack.i.b16 %v1034, %v1034
        %v1050 = vperm.slane %v1048, 0
        %v1051 = vunpack.c.l.bf16 %v1010
        %v1052 = vunpack.c.h.bf16 %v1010
        %v1053 = vunpack.c.l.bf16 %v1011
        %v1054 = vunpack.c.l.bf16 %v1038
        %v1055 = vunpack.c.l.bf16 %v1042
        %v1056 = vunpack.c.l.bf16 %v1046
        %v1057 = vunpack.c.l.bf16 %v1050
        %v1062 = vrot.slane %v1055, 4
        %v1063 = vrot.slane %v1057, 4
        %v1064 = vsel %vm430, %v1054, %v1062
        %v1065 = vsel %vm430, %v1056, %v1063
        %1066 = vrot.lane.b32.xlu0 %v1064, 65
        %v1067 = vpop.permute.xlu0 %1066
        %1068 = vrot.lane.b32.xlu0 %v1065, 65
        %v1069 = vpop.permute.xlu0 %1068
        %v1070 = vrot.slane %v1067, 4
        %v1071 = vrot.slane %v1069, 4
        %vm1072 = vcmask 531456
        %v1073 = vsel %vm1072, %v1070, %v1067
        %v1074 = vsel %vm430, %v1070, %v1071
        %v1075 = vsel %vm1072, %v1074, %v1069
        %v1079 = vmul.f32 %v1051, %v1073
        %v1080 = vmul.f32 %v1052, %v1075
        %v1081 = vmul.f32 %v1053, %v1071
        %1085 = vst [vmem:[#allocation1] ss:$2 sm:$0xff] %v1079
        %s1086 = scalar_lea.vmem [#allocation1], 16
        %1087 = vst [vmem:[%s1086] ss:$2 sm:$0xff] %v1080
        %s1088 = scalar_lea.vmem [#allocation1], 32
        %1089 = vst [vmem:[%s1088] ss:$2 sm:$0xff] %v1081
        %v1090 = vld.sshfl [vmem:[#allocation1] sm:$0xff pattern:$0x75316420]
        %v1091 = vld.sshfl [vmem:[#allocation1 + $0x8] sm:$0xff pattern:$0x75316420]
        %v1092 = vld.sshfl [vmem:[#allocation1 + $0x10] sm:$0xff pattern:$0x75316420]
        %v1093 = vld.sshfl [vmem:[#allocation1 + $0x18] sm:$0xff pattern:$0x75316420]
        %v1094 = vld.sshfl [vmem:[#allocation1 + $0x20] sm:$0xff pattern:$0x75316420]
        %v1100 = vpack.c.bf16 %v1091, %v1090
        %v1101 = vpack.c.bf16 %v1093, %v1092
        %v1102 = vpack.c.bf16 %v1094, %v1094
        %v1106 = vrot.slane %v1100, 6
        %v1107 = vrot.slane %v1101, 6
        %v1108 = vrot.slane %v1102, 6
        %1109 = vrot.lane.b32.xlu0 %v1106, 63
        %v1110 = vpop.permute.xlu0 %1109
        %1111 = vrot.lane.b32.xlu0 %v1107, 63
        %v1112 = vpop.permute.xlu0 %1111
        %1113 = vrot.lane.b32.xlu0 %v1108, 63
        %v1114 = vpop.permute.xlu0 %1113
        %v1115 = vrot.slane %v1110, 4
        %v1116 = vrot.slane %v1112, 4
        %v1117 = vrot.slane %v1114, 4
        %v1118 = vsel %vm538, %v1115, %v1116
        %vm1119 = vcmask 515072
        %v1120 = vsel %vm1119, %v1110, %v1118
        %v1121 = vsel %vm538, %v1116, %v1117
        %v1122 = vsel %vm1119, %v1112, %v1121
        %1125 = vst [vmem:[#allocation4 + $0x20] sm:$0xcc] %v1120
        %1126 = vst [vmem:[#allocation4 + $0x28] sm:$0xcc] %v1122
        %v1127 = vld [vmem:[#allocation2] sm:$0xff]
        %v1128 = vld [vmem:[#allocation2 + $0x8] sm:$0x3]
        %s1129 = scalar_lea.vmem [#allocation9], 6
        %v1130 = vld [vmem:[%s1129] ss:$8 sm:$0xf]
        %v1132 = vperm.slane %v1130, 0
        %v1133 = vperm.slane %v1130, 1
        %v1134 = vperm.slane %v1130, 2
        %v1135 = vperm.slane %v1130, 3
        %v1140 = vpack.c.bf16 %v1133, %v1132
        %v1141 = vpack.c.bf16 %v1135, %v1134
        %v1144 = vunpack.c.l.b16 %v1140
        %v1145 = vunpack.c.h.b16 %v1140
        %v1146 = vunpack.c.l.b16 %v1141
        %v1147 = vunpack.c.h.b16 %v1141
        %v1148 = vpack.c.b16 %v1144, %v1144
        %v1149 = vpack.c.b16 %v1145, %v1145
        %v1150 = vpack.c.b16 %v1146, %v1146
        %v1151 = vpack.c.b16 %v1147, %v1147
        %v1153 = vpack.i.b16 %v1148, %v1148
        %v1155 = vperm.slane %v1153, 0
        %v1157 = vpack.i.b16 %v1149, %v1149
        %v1159 = vperm.slane %v1157, 0
        %v1161 = vpack.i.b16 %v1150, %v1150
        %v1163 = vperm.slane %v1161, 0
        %v1165 = vpack.i.b16 %v1151, %v1151
        %v1167 = vperm.slane %v1165, 0
        %v1168 = vunpack.c.l.bf16 %v1127
        %v1169 = vunpack.c.h.bf16 %v1127
        %v1170 = vunpack.c.l.bf16 %v1128
        %v1171 = vunpack.c.l.bf16 %v1155
        %v1172 = vunpack.c.l.bf16 %v1159
        %v1173 = vunpack.c.l.bf16 %v1163
        %v1174 = vunpack.c.l.bf16 %v1167
        %v1179 = vrot.slane %v1172, 4
        %v1180 = vrot.slane %v1174, 4
        %v1181 = vsel %vm430, %v1171, %v1179
        %v1182 = vsel %vm430, %v1173, %v1180
        %1183 = vrot.lane.b32.xlu0 %v1181, 71
        %v1184 = vpop.permute.xlu0 %1183
        %1185 = vrot.lane.b32.xlu0 %v1182, 71
        %v1186 = vpop.permute.xlu0 %1185
        %v1187 = vrot.slane %v1184, 4
        %v1188 = vrot.slane %v1186, 4
        %vm1189 = vcmask 580608
        %v1190 = vsel %vm1189, %v1187, %v1184
        %v1191 = vsel %vm430, %v1187, %v1188
        %v1192 = vsel %vm1189, %v1191, %v1186
        %v1196 = vmul.f32 %v1168, %v1190
        %v1197 = vmul.f32 %v1169, %v1192
        %v1198 = vmul.f32 %v1170, %v1188
        %1202 = vst [vmem:[#allocation1] ss:$2 sm:$0xff] %v1196
        %s1203 = scalar_lea.vmem [#allocation1], 16
        %1204 = vst [vmem:[%s1203] ss:$2 sm:$0xff] %v1197
        %s1205 = scalar_lea.vmem [#allocation1], 32
        %1206 = vst [vmem:[%s1205] ss:$2 sm:$0xff] %v1198
        %v1207 = vld.sshfl [vmem:[#allocation1] sm:$0xff pattern:$0x75316420]
        %v1208 = vld.sshfl [vmem:[#allocation1 + $0x8] sm:$0xff pattern:$0x75316420]
        %v1209 = vld.sshfl [vmem:[#allocation1 + $0x10] sm:$0xff pattern:$0x75316420]
        %v1210 = vld.sshfl [vmem:[#allocation1 + $0x18] sm:$0xff pattern:$0x75316420]
        %v1211 = vld.sshfl [vmem:[#allocation1 + $0x20] sm:$0xff pattern:$0x75316420]
        %v1217 = vpack.c.bf16 %v1208, %v1207
        %v1218 = vpack.c.bf16 %v1210, %v1209
        %v1219 = vpack.c.bf16 %v1211, %v1211
        %1223 = vrot.lane.b32.xlu0 %v1217, 57
        %v1224 = vpop.permute.xlu0 %1223
        %1225 = vrot.lane.b32.xlu0 %v1218, 57
        %v1226 = vpop.permute.xlu0 %1225
        %1227 = vrot.lane.b32.xlu0 %v1219, 57
        %v1228 = vpop.permute.xlu0 %1227
        %v1229 = vrot.slane %v1224, 4
        %v1230 = vrot.slane %v1226, 4
        %v1231 = vrot.slane %v1228, 4
        %v1232 = vsel %vm538, %v1229, %v1230
        %vm1233 = vcmask 465920
        %v1234 = vsel %vm1233, %v1224, %v1232
        %v1235 = vsel %vm538, %v1230, %v1231
        %v1236 = vsel %vm1233, %v1226, %v1235
        %1239 = vst [vmem:[#allocation4 + $0x30] sm:$0x33] %v1234
        %1240 = vst [vmem:[#allocation4 + $0x38] sm:$0x33] %v1236
        %v1241 = vld [vmem:[#allocation2] sm:$0xff]
        %v1242 = vld [vmem:[#allocation2 + $0x8] sm:$0x3]
        %s1243 = scalar_lea.vmem [#allocation9], 7
        %v1244 = vld [vmem:[%s1243] ss:$8 sm:$0xf]
        %v1246 = vperm.slane %v1244, 0
        %v1247 = vperm.slane %v1244, 1
        %v1248 = vperm.slane %v1244, 2
        %v1249 = vperm.slane %v1244, 3
        %v1254 = vpack.c.bf16 %v1247, %v1246
        %v1255 = vpack.c.bf16 %v1249, %v1248
        %v1258 = vunpack.c.l.b16 %v1254
        %v1259 = vunpack.c.h.b16 %v1254
        %v1260 = vunpack.c.l.b16 %v1255
        %v1261 = vunpack.c.h.b16 %v1255
        %v1262 = vpack.c.b16 %v1258, %v1258
        %v1263 = vpack.c.b16 %v1259, %v1259
        %v1264 = vpack.c.b16 %v1260, %v1260
        %v1265 = vpack.c.b16 %v1261, %v1261
        %v1267 = vpack.i.b16 %v1262, %v1262
        %v1269 = vperm.slane %v1267, 0
        %v1271 = vpack.i.b16 %v1263, %v1263
        %v1273 = vperm.slane %v1271, 0
        %v1275 = vpack.i.b16 %v1264, %v1264
        %v1277 = vperm.slane %v1275, 0
        %v1279 = vpack.i.b16 %v1265, %v1265
        %v1281 = vperm.slane %v1279, 0
        %v1282 = vunpack.c.l.bf16 %v1241
        %v1283 = vunpack.c.h.bf16 %v1241
        %v1284 = vunpack.c.l.bf16 %v1242
        %v1285 = vunpack.c.l.bf16 %v1269
        %v1286 = vunpack.c.l.bf16 %v1273
        %v1287 = vunpack.c.l.bf16 %v1277
        %v1288 = vunpack.c.l.bf16 %v1281
        %v1293 = vrot.slane %v1286, 4
        %v1294 = vrot.slane %v1288, 4
        %v1295 = vsel %vm430, %v1285, %v1293
        %v1296 = vsel %vm430, %v1287, %v1294
        %1297 = vrot.lane.b32.xlu0 %v1295, 72
        %v1298 = vpop.permute.xlu0 %1297
        %1299 = vrot.lane.b32.xlu0 %v1296, 72
        %v1300 = vpop.permute.xlu0 %1299
        %v1301 = vrot.slane %v1298, 4
        %v1302 = vrot.slane %v1300, 4
        %vm1303 = vcmask 588800
        %v1304 = vsel %vm1303, %v1301, %v1298
        %v1305 = vsel %vm430, %v1301, %v1302
        %v1306 = vsel %vm1303, %v1305, %v1300
        %v1310 = vmul.f32 %v1282, %v1304
        %v1311 = vmul.f32 %v1283, %v1306
        %v1312 = vmul.f32 %v1284, %v1302
        %1316 = vst [vmem:[#allocation1] ss:$2 sm:$0xff] %v1310
        %s1317 = scalar_lea.vmem [#allocation1], 16
        %1318 = vst [vmem:[%s1317] ss:$2 sm:$0xff] %v1311
        %s1319 = scalar_lea.vmem [#allocation1], 32
        %1320 = vst [vmem:[%s1319] ss:$2 sm:$0xff] %v1312
        %v1321 = vld.sshfl [vmem:[#allocation1] sm:$0xff pattern:$0x75316420]
        %v1322 = vld.sshfl [vmem:[#allocation1 + $0x8] sm:$0xff pattern:$0x75316420]
        %v1323 = vld.sshfl [vmem:[#allocation1 + $0x10] sm:$0xff pattern:$0x75316420]
        %v1324 = vld.sshfl [vmem:[#allocation1 + $0x18] sm:$0xff pattern:$0x75316420]
        %v1325 = vld.sshfl [vmem:[#allocation1 + $0x20] sm:$0xff pattern:$0x75316420]
        %v1331 = vpack.c.bf16 %v1322, %v1321
        %v1332 = vpack.c.bf16 %v1324, %v1323
        %v1333 = vpack.c.bf16 %v1325, %v1325
        %v1337 = vrot.slane %v1331, 6
        %v1338 = vrot.slane %v1332, 6
        %v1339 = vrot.slane %v1333, 6
        %1340 = vrot.lane.b32.xlu0 %v1337, 56
        %v1341 = vpop.permute.xlu0 %1340
        %1342 = vrot.lane.b32.xlu0 %v1338, 56
        %v1343 = vpop.permute.xlu0 %1342
        %1344 = vrot.lane.b32.xlu0 %v1339, 56
        %v1345 = vpop.permute.xlu0 %1344
        %v1346 = vrot.slane %v1341, 4
        %v1347 = vrot.slane %v1343, 4
        %v1348 = vrot.slane %v1345, 4
        %v1349 = vsel %vm538, %v1346, %v1347
        %vm1350 = vcmask 457728
        %v1351 = vsel %vm1350, %v1341, %v1349
        %v1352 = vsel %vm538, %v1347, %v1348
        %v1353 = vsel %vm1350, %v1343, %v1352
        %1356 = vst [vmem:[#allocation4 + $0x30] sm:$0xcc] %v1351
        %1357 = vst [vmem:[#allocation4 + $0x38] sm:$0xcc] %v1353
        %v1358 = vld [vmem:[#allocation2] sm:$0xff]
        %v1359 = vld [vmem:[#allocation2 + $0x8] sm:$0x3]
        %s1360 = scalar_lea.vmem [#allocation9], 32
        %v1361 = vld [vmem:[%s1360] ss:$8 sm:$0xf]
        %v1363 = vperm.slane %v1361, 0
        %v1364 = vperm.slane %v1361, 1
        %v1365 = vperm.slane %v1361, 2
        %v1366 = vperm.slane %v1361, 3
        %v1371 = vpack.c.bf16 %v1364, %v1363
        %v1372 = vpack.c.bf16 %v1366, %v1365
        %v1375 = vunpack.c.l.b16 %v1371
        %v1376 = vunpack.c.h.b16 %v1371
        %v1377 = vunpack.c.l.b16 %v1372
        %v1378 = vunpack.c.h.b16 %v1372
        %v1379 = vpack.c.b16 %v1375, %v1375
        %v1380 = vpack.c.b16 %v1376, %v1376
        %v1381 = vpack.c.b16 %v1377, %v1377
        %v1382 = vpack.c.b16 %v1378, %v1378
        %v1384 = vpack.i.b16 %v1379, %v1379
        %v1386 = vperm.slane %v1384, 0
        %v1388 = vpack.i.b16 %v1380, %v1380
        %v1390 = vperm.slane %v1388, 0
        %v1392 = vpack.i.b16 %v1381, %v1381
        %v1394 = vperm.slane %v1392, 0
        %v1396 = vpack.i.b16 %v1382, %v1382
        %v1398 = vperm.slane %v1396, 0
        %v1399 = vunpack.c.l.bf16 %v1358
        %v1400 = vunpack.c.h.bf16 %v1358
        %v1401 = vunpack.c.l.bf16 %v1359
        %v1402 = vunpack.c.l.bf16 %v1386
        %v1403 = vunpack.c.l.bf16 %v1390
        %v1404 = vunpack.c.l.bf16 %v1394
        %v1405 = vunpack.c.l.bf16 %v1398
        %v1410 = vrot.slane %v1403, 4
        %v1411 = vrot.slane %v1405, 4
        %v1412 = vsel %vm430, %v1402, %v1410
        %v1413 = vsel %vm430, %v1404, %v1411
        %1414 = vrot.lane.b32.xlu0 %v1412, 73
        %v1415 = vpop.permute.xlu0 %1414
        %1416 = vrot.lane.b32.xlu0 %v1413, 73
        %v1417 = vpop.permute.xlu0 %1416
        %v1418 = vrot.slane %v1415, 4
        %v1419 = vrot.slane %v1417, 4
        %vm1420 = vcmask 596992
        %v1421 = vsel %vm1420, %v1418, %v1415
        %v1422 = vsel %vm430, %v1418, %v1419
        %v1423 = vsel %vm1420, %v1422, %v1417
        %v1427 = vmul.f32 %v1399, %v1421
        %v1428 = vmul.f32 %v1400, %v1423
        %v1429 = vmul.f32 %v1401, %v1419
        %1433 = vst [vmem:[#allocation1] ss:$2 sm:$0xff] %v1427
        %s1434 = scalar_lea.vmem [#allocation1], 16
        %1435 = vst [vmem:[%s1434] ss:$2 sm:$0xff] %v1428
        %s1436 = scalar_lea.vmem [#allocation1], 32
        %1437 = vst [vmem:[%s1436] ss:$2 sm:$0xff] %v1429
        %v1438 = vld.sshfl [vmem:[#allocation1] sm:$0xff pattern:$0x75316420]
        %v1439 = vld.sshfl [vmem:[#allocation1 + $0x8] sm:$0xff pattern:$0x75316420]
        %v1440 = vld.sshfl [vmem:[#allocation1 + $0x10] sm:$0xff pattern:$0x75316420]
        %v1441 = vld.sshfl [vmem:[#allocation1 + $0x18] sm:$0xff pattern:$0x75316420]
        %v1442 = vld.sshfl [vmem:[#allocation1 + $0x20] sm:$0xff pattern:$0x75316420]
        %v1448 = vpack.c.bf16 %v1439, %v1438
        %v1449 = vpack.c.bf16 %v1441, %v1440
        %v1450 = vpack.c.bf16 %v1442, %v1442
        %1454 = vrot.lane.b32.xlu0 %v1448, 55
        %v1455 = vpop.permute.xlu0 %1454
        %1456 = vrot.lane.b32.xlu0 %v1449, 55
        %v1457 = vpop.permute.xlu0 %1456
        %1458 = vrot.lane.b32.xlu0 %v1450, 55
        %v1459 = vpop.permute.xlu0 %1458
        %v1460 = vrot.slane %v1455, 4
        %v1461 = vrot.slane %v1457, 4
        %v1462 = vrot.slane %v1459, 4
        %v1463 = vsel %vm538, %v1460, %v1461
        %vm1464 = vcmask 449536
        %v1465 = vsel %vm1464, %v1455, %v1463
        %v1466 = vsel %vm538, %v1461, %v1462
        %v1467 = vsel %vm1464, %v1457, %v1466
        %1470 = vst [vmem:[#allocation4 + $0x40] sm:$0x33] %v1465
        %1471 = vst [vmem:[#allocation4 + $0x48] sm:$0x33] %v1467
        %v1472 = vld [vmem:[#allocation2] sm:$0xff]
        %v1473 = vld [vmem:[#allocation2 + $0x8] sm:$0x3]
        %s1474 = scalar_lea.vmem [#allocation9], 33
        %v1475 = vld [vmem:[%s1474] ss:$8 sm:$0xf]
        %v1477 = vperm.slane %v1475, 0
        %v1478 = vperm.slane %v1475, 1
        %v1479 = vperm.slane %v1475, 2
        %v1480 = vperm.slane %v1475, 3
        %v1485 = vpack.c.bf16 %v1478, %v1477
        %v1486 = vpack.c.bf16 %v1480, %v1479
        %v1489 = vunpack.c.l.b16 %v1485
        %v1490 = vunpack.c.h.b16 %v1485
        %v1491 = vunpack.c.l.b16 %v1486
        %v1492 = vunpack.c.h.b16 %v1486
        %v1493 = vpack.c.b16 %v1489, %v1489
        %v1494 = vpack.c.b16 %v1490, %v1490
        %v1495 = vpack.c.b16 %v1491, %v1491
        %v1496 = vpack.c.b16 %v1492, %v1492
        %v1498 = vpack.i.b16 %v1493, %v1493
        %v1500 = vperm.slane %v1498, 0
        %v1502 = vpack.i.b16 %v1494, %v1494
        %v1504 = vperm.slane %v1502, 0
        %v1506 = vpack.i.b16 %v1495, %v1495
        %v1508 = vperm.slane %v1506, 0
        %v1510 = vpack.i.b16 %v1496, %v1496
        %v1512 = vperm.slane %v1510, 0
        %v1513 = vunpack.c.l.bf16 %v1472
        %v1514 = vunpack.c.h.bf16 %v1472
        %v1515 = vunpack.c.l.bf16 %v1473
        %v1516 = vunpack.c.l.bf16 %v1500
        %v1517 = vunpack.c.l.bf16 %v1504
        %v1518 = vunpack.c.l.bf16 %v1508
        %v1519 = vunpack.c.l.bf16 %v1512
        %v1524 = vrot.slane %v1517, 4
        %v1525 = vrot.slane %v1519, 4
        %v1526 = vsel %vm430, %v1516, %v1524
        %v1527 = vsel %vm430, %v1518, %v1525
        %1528 = vrot.lane.b32.xlu0 %v1526, 119
        %v1529 = vpop.permute.xlu0 %1528
        %1530 = vrot.lane.b32.xlu0 %v1527, 119
        %v1531 = vpop.permute.xlu0 %1530
        %v1532 = vrot.slane %v1529, 4
        %v1533 = vrot.slane %v1531, 4
        %vm1534 = vcmask 973824
        %v1535 = vsel %vm1534, %v1532, %v1529
        %v1536 = vsel %vm430, %v1532, %v1533
        %v1537 = vsel %vm1534, %v1536, %v1531
        %v1541 = vmul.f32 %v1513, %v1535
        %v1542 = vmul.f32 %v1514, %v1537
        %v1543 = vmul.f32 %v1515, %v1533
        %1547 = vst [vmem:[#allocation1] ss:$2 sm:$0xff] %v1541
        %s1548 = scalar_lea.vmem [#allocation1], 16
        %1549 = vst [vmem:[%s1548] ss:$2 sm:$0xff] %v1542
        %s1550 = scalar_lea.vmem [#allocation1], 32
        %1551 = vst [vmem:[%s1550] ss:$2 sm:$0xff] %v1543
        %v1552 = vld.sshfl [vmem:[#allocation1] sm:$0xff pattern:$0x75316420]
        %v1553 = vld.sshfl [vmem:[#allocation1 + $0x8] sm:$0xff pattern:$0x75316420]
        %v1554 = vld.sshfl [vmem:[#allocation1 + $0x10] sm:$0xff pattern:$0x75316420]
        %v1555 = vld.sshfl [vmem:[#allocation1 + $0x18] sm:$0xff pattern:$0x75316420]
        %v1556 = vld.sshfl [vmem:[#allocation1 + $0x20] sm:$0xff pattern:$0x75316420]
        %v1562 = vpack.c.bf16 %v1553, %v1552
        %v1563 = vpack.c.bf16 %v1555, %v1554
        %v1564 = vpack.c.bf16 %v1556, %v1556
        %v1568 = vrot.slane %v1562, 6
        %v1569 = vrot.slane %v1563, 6
        %v1570 = vrot.slane %v1564, 6
        %1571 = vrot.lane.b32.xlu0 %v1568, 9
        %v1572 = vpop.permute.xlu0 %1571
        %1573 = vrot.lane.b32.xlu0 %v1569, 9
        %v1574 = vpop.permute.xlu0 %1573
        %1575 = vrot.lane.b32.xlu0 %v1570, 9
        %v1576 = vpop.permute.xlu0 %1575
        %v1577 = vrot.slane %v1572, 4
        %v1578 = vrot.slane %v1574, 4
        %v1579 = vrot.slane %v1576, 4
        %v1580 = vsel %vm538, %v1577, %v1578
        %vm1581 = vcmask 72704
        %v1582 = vsel %vm1581, %v1572, %v1580
        %v1583 = vsel %vm538, %v1578, %v1579
        %v1584 = vsel %vm1581, %v1574, %v1583
        %1587 = vst [vmem:[#allocation4 + $0x40] sm:$0xcc] %v1582
        %1588 = vst [vmem:[#allocation4 + $0x48] sm:$0xcc] %v1584
        %v1589 = vld [vmem:[#allocation2] sm:$0xff]
        %v1590 = vld [vmem:[#allocation2 + $0x8] sm:$0x3]
        %s1591 = scalar_lea.vmem [#allocation9], 34
        %v1592 = vld [vmem:[%s1591] ss:$8 sm:$0xf]
        %v1594 = vperm.slane %v1592, 0
        %v1595 = vperm.slane %v1592, 1
        %v1596 = vperm.slane %v1592, 2
        %v1597 = vperm.slane %v1592, 3
        %v1602 = vpack.c.bf16 %v1595, %v1594
        %v1603 = vpack.c.bf16 %v1597, %v1596
        %v1606 = vunpack.c.l.b16 %v1602
        %v1607 = vunpack.c.h.b16 %v1602
        %v1608 = vunpack.c.l.b16 %v1603
        %v1609 = vunpack.c.h.b16 %v1603
        %v1610 = vpack.c.b16 %v1606, %v1606
        %v1611 = vpack.c.b16 %v1607, %v1607
        %v1612 = vpack.c.b16 %v1608, %v1608
        %v1613 = vpack.c.b16 %v1609, %v1609
        %v1615 = vpack.i.b16 %v1610, %v1610
        %v1617 = vperm.slane %v1615, 0
        %v1619 = vpack.i.b16 %v1611, %v1611
        %v1621 = vperm.slane %v1619, 0
        %v1623 = vpack.i.b16 %v1612, %v1612
        %v1625 = vperm.slane %v1623, 0
        %v1627 = vpack.i.b16 %v1613, %v1613
        %v1629 = vperm.slane %v1627, 0
        %v1630 = vunpack.c.l.bf16 %v1589
        %v1631 = vunpack.c.h.bf16 %v1589
        %v1632 = vunpack.c.l.bf16 %v1590
        %v1633 = vunpack.c.l.bf16 %v1617
        %v1634 = vunpack.c.l.bf16 %v1621
        %v1635 = vunpack.c.l.bf16 %v1625
        %v1636 = vunpack.c.l.bf16 %v1629
        %v1641 = vrot.slane %v1634, 4
        %v1642 = vrot.slane %v1636, 4
        %v1643 = vsel %vm430, %v1633, %v1641
        %v1644 = vsel %vm430, %v1635, %v1642
        %1645 = vrot.lane.b32.xlu0 %v1643, 120
        %v1646 = vpop.permute.xlu0 %1645
        %1647 = vrot.lane.b32.xlu0 %v1644, 120
        %v1648 = vpop.permute.xlu0 %1647
        %v1649 = vrot.slane %v1646, 4
        %v1650 = vrot.slane %v1648, 4
        %vm1651 = vcmask 982016
        %v1652 = vsel %vm1651, %v1649, %v1646
        %v1653 = vsel %vm430, %v1649, %v1650
        %v1654 = vsel %vm1651, %v1653, %v1648
        %v1658 = vmul.f32 %v1630, %v1652
        %v1659 = vmul.f32 %v1631, %v1654
        %v1660 = vmul.f32 %v1632, %v1650
        %1664 = vst [vmem:[#allocation1] ss:$2 sm:$0xff] %v1658
        %s1665 = scalar_lea.vmem [#allocation1], 16
        %1666 = vst [vmem:[%s1665] ss:$2 sm:$0xff] %v1659
        %s1667 = scalar_lea.vmem [#allocation1], 32
        %1668 = vst [vmem:[%s1667] ss:$2 sm:$0xff] %v1660
        %v1669 = vld.sshfl [vmem:[#allocation1] sm:$0xff pattern:$0x75316420]
        %v1670 = vld.sshfl [vmem:[#allocation1 + $0x8] sm:$0xff pattern:$0x75316420]
        %v1671 = vld.sshfl [vmem:[#allocation1 + $0x10] sm:$0xff pattern:$0x75316420]
        %v1672 = vld.sshfl [vmem:[#allocation1 + $0x18] sm:$0xff pattern:$0x75316420]
        %v1673 = vld.sshfl [vmem:[#allocation1 + $0x20] sm:$0xff pattern:$0x75316420]
        %v1679 = vpack.c.bf16 %v1670, %v1669
        %v1680 = vpack.c.bf16 %v1672, %v1671
        %v1681 = vpack.c.bf16 %v1673, %v1673
        %1685 = vrot.lane.b32.xlu0 %v1679, 8
        %v1686 = vpop.permute.xlu0 %1685
        %1687 = vrot.lane.b32.xlu0 %v1680, 8
        %v1688 = vpop.permute.xlu0 %1687
        %1689 = vrot.lane.b32.xlu0 %v1681, 8
        %v1690 = vpop.permute.xlu0 %1689
        %v1691 = vrot.slane %v1686, 4
        %v1692 = vrot.slane %v1688, 4
        %v1693 = vrot.slane %v1690, 4
        %v1694 = vsel %vm538, %v1691, %v1692
        %vm1695 = vcmask 64512
        %v1696 = vsel %vm1695, %v1686, %v1694
        %v1697 = vsel %vm538, %v1692, %v1693
        %v1698 = vsel %vm1695, %v1688, %v1697
        %1701 = vst [vmem:[#allocation4 + $0x50] sm:$0x33] %v1696
        %1702 = vst [vmem:[#allocation4 + $0x58] sm:$0x33] %v1698
        %v1703 = vld [vmem:[#allocation2] sm:$0xff]
        %v1704 = vld [vmem:[#allocation2 + $0x8] sm:$0x3]
        %s1705 = scalar_lea.vmem [#allocation9], 35
        %v1706 = vld [vmem:[%s1705] ss:$8 sm:$0xf]
        %v1708 = vperm.slane %v1706, 0
        %v1709 = vperm.slane %v1706, 1
        %v1710 = vperm.slane %v1706, 2
        %v1711 = vperm.slane %v1706, 3
        %v1716 = vpack.c.bf16 %v1709, %v1708
        %v1717 = vpack.c.bf16 %v1711, %v1710
        %v1720 = vunpack.c.l.b16 %v1716
        %v1721 = vunpack.c.h.b16 %v1716
        %v1722 = vunpack.c.l.b16 %v1717
        %v1723 = vunpack.c.h.b16 %v1717
        %v1724 = vpack.c.b16 %v1720, %v1720
        %v1725 = vpack.c.b16 %v1721, %v1721
        %v1726 = vpack.c.b16 %v1722, %v1722
        %v1727 = vpack.c.b16 %v1723, %v1723
        %v1729 = vpack.i.b16 %v1724, %v1724
        %v1731 = vperm.slane %v1729, 0
        %v1733 = vpack.i.b16 %v1725, %v1725
        %v1735 = vperm.slane %v1733, 0
        %v1737 = vpack.i.b16 %v1726, %v1726
        %v1739 = vperm.slane %v1737, 0
        %v1741 = vpack.i.b16 %v1727, %v1727
        %v1743 = vperm.slane %v1741, 0
        %v1744 = vunpack.c.l.bf16 %v1703
        %v1745 = vunpack.c.h.bf16 %v1703
        %v1746 = vunpack.c.l.bf16 %v1704
        %v1747 = vunpack.c.l.bf16 %v1731
        %v1748 = vunpack.c.l.bf16 %v1735
        %v1749 = vunpack.c.l.bf16 %v1739
        %v1750 = vunpack.c.l.bf16 %v1743
        %v1755 = vrot.slane %v1748, 4
        %v1756 = vrot.slane %v1750, 4
        %v1757 = vsel %vm430, %v1747, %v1755
        %v1758 = vsel %vm430, %v1749, %v1756
        %1759 = vrot.lane.b32.xlu0 %v1757, 121
        %v1760 = vpop.permute.xlu0 %1759
        %1761 = vrot.lane.b32.xlu0 %v1758, 121
        %v1762 = vpop.permute.xlu0 %1761
        %v1763 = vrot.slane %v1760, 4
        %v1764 = vrot.slane %v1762, 4
        %vm1765 = vcmask 990208
        %v1766 = vsel %vm1765, %v1763, %v1760
        %v1767 = vsel %vm430, %v1763, %v1764
        %v1768 = vsel %vm1765, %v1767, %v1762
        %v1772 = vmul.f32 %v1744, %v1766
        %v1773 = vmul.f32 %v1745, %v1768
        %v1774 = vmul.f32 %v1746, %v1764
        %1778 = vst [vmem:[#allocation1] ss:$2 sm:$0xff] %v1772
        %s1779 = scalar_lea.vmem [#allocation1], 16
        %1780 = vst [vmem:[%s1779] ss:$2 sm:$0xff] %v1773
        %s1781 = scalar_lea.vmem [#allocation1], 32
        %1782 = vst [vmem:[%s1781] ss:$2 sm:$0xff] %v1774
        %v1783 = vld.sshfl [vmem:[#allocation1] sm:$0xff pattern:$0x75316420]
        %v1784 = vld.sshfl [vmem:[#allocation1 + $0x8] sm:$0xff pattern:$0x75316420]
        %v1785 = vld.sshfl [vmem:[#allocation1 + $0x10] sm:$0xff pattern:$0x75316420]
        %v1786 = vld.sshfl [vmem:[#allocation1 + $0x18] sm:$0xff pattern:$0x75316420]
        %v1787 = vld.sshfl [vmem:[#allocation1 + $0x20] sm:$0xff pattern:$0x75316420]
        %v1793 = vpack.c.bf16 %v1784, %v1783
        %v1794 = vpack.c.bf16 %v1786, %v1785
        %v1795 = vpack.c.bf16 %v1787, %v1787
        %v1799 = vrot.slane %v1793, 6
        %v1800 = vrot.slane %v1794, 6
        %v1801 = vrot.slane %v1795, 6
        %1802 = vrot.lane.b32.xlu0 %v1799, 7
        %v1803 = vpop.permute.xlu0 %1802
        %1804 = vrot.lane.b32.xlu0 %v1800, 7
        %v1805 = vpop.permute.xlu0 %1804
        %1806 = vrot.lane.b32.xlu0 %v1801, 7
        %v1807 = vpop.permute.xlu0 %1806
        %v1808 = vrot.slane %v1803, 4
        %v1809 = vrot.slane %v1805, 4
        %v1810 = vrot.slane %v1807, 4
        %v1811 = vsel %vm538, %v1808, %v1809
        %vm1812 = vcmask 56320
        %v1813 = vsel %vm1812, %v1803, %v1811
        %v1814 = vsel %vm538, %v1809, %v1810
        %v1815 = vsel %vm1812, %v1805, %v1814
        %1818 = vst [vmem:[#allocation4 + $0x50] sm:$0xcc] %v1813
        %1819 = vst [vmem:[#allocation4 + $0x58] sm:$0xcc] %v1815
        %v1820 = vld [vmem:[#allocation2] sm:$0xff]
        %v1821 = vld [vmem:[#allocation2 + $0x8] sm:$0x3]
        %s1822 = scalar_lea.vmem [#allocation9], 36
        %v1823 = vld [vmem:[%s1822] ss:$8 sm:$0xf]
        %v1825 = vperm.slane %v1823, 0
        %v1826 = vperm.slane %v1823, 1
        %v1827 = vperm.slane %v1823, 2
        %v1828 = vperm.slane %v1823, 3
        %v1833 = vpack.c.bf16 %v1826, %v1825
        %v1834 = vpack.c.bf16 %v1828, %v1827
        %v1837 = vunpack.c.l.b16 %v1833
        %v1838 = vunpack.c.h.b16 %v1833
        %v1839 = vunpack.c.l.b16 %v1834
        %v1840 = vunpack.c.h.b16 %v1834
        %v1841 = vpack.c.b16 %v1837, %v1837
        %v1842 = vpack.c.b16 %v1838, %v1838
        %v1843 = vpack.c.b16 %v1839, %v1839
        %v1844 = vpack.c.b16 %v1840, %v1840
        %v1846 = vpack.i.b16 %v1841, %v1841
        %v1848 = vperm.slane %v1846, 0
        %v1850 = vpack.i.b16 %v1842, %v1842
        %v1852 = vperm.slane %v1850, 0
        %v1854 = vpack.i.b16 %v1843, %v1843
        %v1856 = vperm.slane %v1854, 0
        %v1858 = vpack.i.b16 %v1844, %v1844
        %v1860 = vperm.slane %v1858, 0
        %v1861 = vunpack.c.l.bf16 %v1820
        %v1862 = vunpack.c.h.bf16 %v1820
        %v1863 = vunpack.c.l.bf16 %v1821
        %v1864 = vunpack.c.l.bf16 %v1848
        %v1865 = vunpack.c.l.bf16 %v1852
        %v1866 = vunpack.c.l.bf16 %v1856
        %v1867 = vunpack.c.l.bf16 %v1860
        %v1872 = vrot.slane %v1865, 4
        %v1873 = vrot.slane %v1867, 4
        %v1874 = vsel %vm430, %v1864, %v1872
        %v1875 = vsel %vm430, %v1866, %v1873
        %1876 = vrot.lane.b32.xlu0 %v1874, 127
        %v1877 = vpop.permute.xlu0 %1876
        %1878 = vrot.lane.b32.xlu0 %v1875, 127
        %v1879 = vpop.permute.xlu0 %1878
        %v1880 = vrot.slane %v1877, 4
        %v1881 = vrot.slane %v1879, 4
        %vm1882 = vcmask 1039360
        %v1883 = vsel %vm1882, %v1880, %v1877
        %v1884 = vsel %vm430, %v1880, %v1881
        %v1885 = vsel %vm1882, %v1884, %v1879
        %v1889 = vmul.f32 %v1861, %v1883
        %v1890 = vmul.f32 %v1862, %v1885
        %v1891 = vmul.f32 %v1863, %v1881
        %1895 = vst [vmem:[#allocation1] ss:$2 sm:$0xff] %v1889
        %s1896 = scalar_lea.vmem [#allocation1], 16
        %1897 = vst [vmem:[%s1896] ss:$2 sm:$0xff] %v1890
        %s1898 = scalar_lea.vmem [#allocation1], 32
        %1899 = vst [vmem:[%s1898] ss:$2 sm:$0xff] %v1891
        %v1900 = vld.sshfl [vmem:[#allocation1] sm:$0xff pattern:$0x75316420]
        %v1901 = vld.sshfl [vmem:[#allocation1 + $0x8] sm:$0xff pattern:$0x75316420]
        %v1902 = vld.sshfl [vmem:[#allocation1 + $0x10] sm:$0xff pattern:$0x75316420]
        %v1903 = vld.sshfl [vmem:[#allocation1 + $0x18] sm:$0xff pattern:$0x75316420]
        %v1904 = vld.sshfl [vmem:[#allocation1 + $0x20] sm:$0xff pattern:$0x75316420]
        %v1910 = vpack.c.bf16 %v1901, %v1900
        %v1911 = vpack.c.bf16 %v1903, %v1902
        %v1912 = vpack.c.bf16 %v1904, %v1904
        %1916 = vrot.lane.b32.xlu0 %v1910, 1
        %v1917 = vpop.permute.xlu0 %1916
        %1918 = vrot.lane.b32.xlu0 %v1911, 1
        %v1919 = vpop.permute.xlu0 %1918
        %1920 = vrot.lane.b32.xlu0 %v1912, 1
        %v1921 = vpop.permute.xlu0 %1920
        %v1922 = vrot.slane %v1917, 4
        %v1923 = vrot.slane %v1919, 4
        %v1924 = vrot.slane %v1921, 4
        %v1925 = vsel %vm538, %v1922, %v1923
        %vm1926 = vcmask 7168
        %v1927 = vsel %vm1926, %v1917, %v1925
        %v1928 = vsel %vm538, %v1923, %v1924
        %v1929 = vsel %vm1926, %v1919, %v1928
        %1932 = vst [vmem:[#allocation4 + $0x60] sm:$0x33] %v1927
        %1933 = vst [vmem:[#allocation4 + $0x68] sm:$0x33] %v1929
        %v1934 = vld [vmem:[#allocation2 + $0x2] sm:$0xff]
        %s1936 = scalar_lea.vmem [#allocation1], 1
        %1937 = vst [vmem:[%s1936] ss:$2 sm:$0xff] %v1934
        %v1938 = vld.sshfl [vmem:[#allocation1] sm:$0xff pattern:$0x75643120]
        %v1939 = vld.sshfl [vmem:[#allocation1 + $0x8] sm:$0xff pattern:$0x75643120]
        %1942 = vst [vmem:[#allocation4 + $0x60] sm:$0xcc] %v1938
        %1943 = vst [vmem:[#allocation4 + $0x68] sm:$0xcc] %v1939
        %v1944 = vld [vmem:[#allocation2 + $0x2] sm:$0xff]
        %v1945 = vld [vmem:[#allocation2 + $0xa] sm:$0x3]
        %s1946 = scalar_lea.vmem [#allocation9], 38
        %v1947 = vld [vmem:[%s1946] ss:$8 sm:$0xf]
        %v1949 = vperm.slane %v1947, 0
        %v1950 = vperm.slane %v1947, 1
        %v1951 = vperm.slane %v1947, 2
        %v1952 = vperm.slane %v1947, 3
        %v1957 = vpack.c.bf16 %v1950, %v1949
        %v1958 = vpack.c.bf16 %v1952, %v1951
        %v1961 = vunpack.c.l.b16 %v1957
        %v1962 = vunpack.c.h.b16 %v1957
        %v1963 = vunpack.c.l.b16 %v1958
        %v1964 = vunpack.c.h.b16 %v1958
        %v1965 = vpack.c.b16 %v1961, %v1961
        %v1966 = vpack.c.b16 %v1962, %v1962
        %v1967 = vpack.c.b16 %v1963, %v1963
        %v1968 = vpack.c.b16 %v1964, %v1964
        %v1970 = vpack.i.b16 %v1965, %v1965
        %v1972 = vperm.slane %v1970, 0
        %v1974 = vpack.i.b16 %v1966, %v1966
        %v1976 = vperm.slane %v1974, 0
        %v1978 = vpack.i.b16 %v1967, %v1967
        %v1980 = vperm.slane %v1978, 0
        %v1982 = vpack.i.b16 %v1968, %v1968
        %v1984 = vperm.slane %v1982, 0
        %v1985 = vunpack.c.l.bf16 %v1944
        %v1986 = vunpack.c.h.bf16 %v1944
        %v1987 = vunpack.c.l.bf16 %v1945
        %v1988 = vunpack.c.l.bf16 %v1972
        %v1989 = vunpack.c.l.bf16 %v1976
        %v1990 = vunpack.c.l.bf16 %v1980
        %v1991 = vunpack.c.l.bf16 %v1984
        %v1996 = vrot.slane %v1989, 4
        %v1997 = vrot.slane %v1991, 4
        %v1998 = vsel %vm430, %v1988, %v1996
        %v1999 = vsel %vm430, %v1990, %v1997
        %2000 = vrot.lane.b32.xlu0 %v1998, 1
        %v2001 = vpop.permute.xlu0 %2000
        %2002 = vrot.lane.b32.xlu0 %v1999, 1
        %v2003 = vpop.permute.xlu0 %2002
        %v2004 = vrot.slane %v2001, 4
        %v2005 = vrot.slane %v2003, 4
        %vm2006 = vcmask 7168
        %v2007 = vsel %vm2006, %v2004, %v2001
        %v2008 = vsel %vm430, %v2004, %v2005
        %v2009 = vsel %vm2006, %v2008, %v2003
        %v2013 = vmul.f32 %v1985, %v2007
        %v2014 = vmul.f32 %v1986, %v2009
        %v2015 = vmul.f32 %v1987, %v2005
        %2019 = vst [vmem:[#allocation1] ss:$2 sm:$0xff] %v2013
        %s2020 = scalar_lea.vmem [#allocation1], 16
        %2021 = vst [vmem:[%s2020] ss:$2 sm:$0xff] %v2014
        %s2022 = scalar_lea.vmem [#allocation1], 32
        %2023 = vst [vmem:[%s2022] ss:$2 sm:$0xff] %v2015
        %v2024 = vld.sshfl [vmem:[#allocation1] sm:$0xff pattern:$0x75316420]
        %v2025 = vld.sshfl [vmem:[#allocation1 + $0x8] sm:$0xff pattern:$0x75316420]
        %v2026 = vld.sshfl [vmem:[#allocation1 + $0x10] sm:$0xff pattern:$0x75316420]
        %v2027 = vld.sshfl [vmem:[#allocation1 + $0x18] sm:$0xff pattern:$0x75316420]
        %v2028 = vld.sshfl [vmem:[#allocation1 + $0x20] sm:$0xff pattern:$0x75316420]
        %v2034 = vpack.c.bf16 %v2025, %v2024
        %v2035 = vpack.c.bf16 %v2027, %v2026
        %v2036 = vpack.c.bf16 %v2028, %v2028
        %2040 = vrot.lane.b32.xlu0 %v2034, 127
        %v2041 = vpop.permute.xlu0 %2040
        %2042 = vrot.lane.b32.xlu0 %v2035, 127
        %v2043 = vpop.permute.xlu0 %2042
        %2044 = vrot.lane.b32.xlu0 %v2036, 127
        %v2045 = vpop.permute.xlu0 %2044
        %v2046 = vrot.slane %v2041, 4
        %v2047 = vrot.slane %v2043, 4
        %v2048 = vrot.slane %v2045, 4
        %v2049 = vsel %vm538, %v2046, %v2047
        %vm2050 = vcmask 1039360
        %v2051 = vsel %vm2050, %v2041, %v2049
        %v2052 = vsel %vm538, %v2047, %v2048
        %v2053 = vsel %vm2050, %v2043, %v2052
        %2056 = vst [vmem:[#allocation4 + $0x70] sm:$0x33] %v2051
        %2057 = vst [vmem:[#allocation4 + $0x78] sm:$0x33] %v2053
        %v2058 = vld [vmem:[#allocation2 + $0x2] sm:$0xff]
        %v2059 = vld [vmem:[#allocation2 + $0xa] sm:$0x3]
        %s2060 = scalar_lea.vmem [#allocation9], 39
        %v2061 = vld [vmem:[%s2060] ss:$8 sm:$0xf]
        %v2063 = vperm.slane %v2061, 0
        %v2064 = vperm.slane %v2061, 1
        %v2065 = vperm.slane %v2061, 2
        %v2066 = vperm.slane %v2061, 3
        %v2071 = vpack.c.bf16 %v2064, %v2063
        %v2072 = vpack.c.bf16 %v2066, %v2065
        %v2075 = vunpack.c.l.b16 %v2071
        %v2076 = vunpack.c.h.b16 %v2071
        %v2077 = vunpack.c.l.b16 %v2072
        %v2078 = vunpack.c.h.b16 %v2072
        %v2079 = vpack.c.b16 %v2075, %v2075
        %v2080 = vpack.c.b16 %v2076, %v2076
        %v2081 = vpack.c.b16 %v2077, %v2077
        %v2082 = vpack.c.b16 %v2078, %v2078
        %v2084 = vpack.i.b16 %v2079, %v2079
        %v2086 = vperm.slane %v2084, 0
        %v2088 = vpack.i.b16 %v2080, %v2080
        %v2090 = vperm.slane %v2088, 0
        %v2092 = vpack.i.b16 %v2081, %v2081
        %v2094 = vperm.slane %v2092, 0
        %v2096 = vpack.i.b16 %v2082, %v2082
        %v2098 = vperm.slane %v2096, 0
        %v2099 = vunpack.c.l.bf16 %v2058
        %v2100 = vunpack.c.h.bf16 %v2058
        %v2101 = vunpack.c.l.bf16 %v2059
        %v2102 = vunpack.c.l.bf16 %v2086
        %v2103 = vunpack.c.l.bf16 %v2090
        %v2104 = vunpack.c.l.bf16 %v2094
        %v2105 = vunpack.c.l.bf16 %v2098
        %v2110 = vrot.slane %v2103, 4
        %v2111 = vrot.slane %v2105, 4
        %v2112 = vsel %vm430, %v2102, %v2110
        %v2113 = vsel %vm430, %v2104, %v2111
        %2114 = vrot.lane.b32.xlu0 %v2112, 7
        %v2115 = vpop.permute.xlu0 %2114
        %2116 = vrot.lane.b32.xlu0 %v2113, 7
        %v2117 = vpop.permute.xlu0 %2116
        %v2118 = vrot.slane %v2115, 4
        %v2119 = vrot.slane %v2117, 4
        %vm2120 = vcmask 56320
        %v2121 = vsel %vm2120, %v2118, %v2115
        %v2122 = vsel %vm430, %v2118, %v2119
        %v2123 = vsel %vm2120, %v2122, %v2117
        %v2127 = vmul.f32 %v2099, %v2121
        %v2128 = vmul.f32 %v2100, %v2123
        %v2129 = vmul.f32 %v2101, %v2119
        %2133 = vst [vmem:[#allocation1] ss:$2 sm:$0xff] %v2127
        %s2134 = scalar_lea.vmem [#allocation1], 16
        %2135 = vst [vmem:[%s2134] ss:$2 sm:$0xff] %v2128
        %s2136 = scalar_lea.vmem [#allocation1], 32
        %2137 = vst [vmem:[%s2136] ss:$2 sm:$0xff] %v2129
        %v2138 = vld.sshfl [vmem:[#allocation1] sm:$0xff pattern:$0x75316420]
        %v2139 = vld.sshfl [vmem:[#allocation1 + $0x8] sm:$0xff pattern:$0x75316420]
        %v2140 = vld.sshfl [vmem:[#allocation1 + $0x10] sm:$0xff pattern:$0x75316420]
        %v2141 = vld.sshfl [vmem:[#allocation1 + $0x18] sm:$0xff pattern:$0x75316420]
        %v2142 = vld.sshfl [vmem:[#allocation1 + $0x20] sm:$0xff pattern:$0x75316420]
        %v2148 = vpack.c.bf16 %v2139, %v2138
        %v2149 = vpack.c.bf16 %v2141, %v2140
        %v2150 = vpack.c.bf16 %v2142, %v2142
        %v2154 = vrot.slane %v2148, 6
        %v2155 = vrot.slane %v2149, 6
        %v2156 = vrot.slane %v2150, 6
        %2157 = vrot.lane.b32.xlu0 %v2154, 121
        %v2158 = vpop.permute.xlu0 %2157
        %2159 = vrot.lane.b32.xlu0 %v2155, 121
        %v2160 = vpop.permute.xlu0 %2159
        %2161 = vrot.lane.b32.xlu0 %v2156, 121
        %v2162 = vpop.permute.xlu0 %2161
        %v2163 = vrot.slane %v2158, 4
        %v2164 = vrot.slane %v2160, 4
        %v2165 = vrot.slane %v2162, 4
        %v2166 = vsel %vm538, %v2163, %v2164
        %vm2167 = vcmask 990208
        %v2168 = vsel %vm2167, %v2158, %v2166
        %v2169 = vsel %vm538, %v2164, %v2165
        %v2170 = vsel %vm2167, %v2160, %v2169
        %2173 = vst [vmem:[#allocation4 + $0x70] sm:$0xcc] %v2168
        %2174 = vst [vmem:[#allocation4 + $0x78] sm:$0xcc] %v2170
        %v2175 = vld [vmem:[#allocation2 + $0x2] sm:$0xff]
        %v2176 = vld [vmem:[#allocation2 + $0xa] sm:$0x3]
        %s2177 = scalar_lea.vmem [#allocation9], 64
        %v2178 = vld [vmem:[%s2177] ss:$8 sm:$0xf]
        %v2180 = vperm.slane %v2178, 0
        %v2181 = vperm.slane %v2178, 1
        %v2182 = vperm.slane %v2178, 2
        %v2183 = vperm.slane %v2178, 3
        %v2188 = vpack.c.bf16 %v2181, %v2180
        %v2189 = vpack.c.bf16 %v2183, %v2182
        %v2192 = vunpack.c.l.b16 %v2188
        %v2193 = vunpack.c.h.b16 %v2188
        %v2194 = vunpack.c.l.b16 %v2189
        %v2195 = vunpack.c.h.b16 %v2189
        %v2196 = vpack.c.b16 %v2192, %v2192
        %v2197 = vpack.c.b16 %v2193, %v2193
        %v2198 = vpack.c.b16 %v2194, %v2194
        %v2199 = vpack.c.b16 %v2195, %v2195
        %v2201 = vpack.i.b16 %v2196, %v2196
        %v2203 = vperm.slane %v2201, 0
        %v2205 = vpack.i.b16 %v2197, %v2197
        %v2207 = vperm.slane %v2205, 0
        %v2209 = vpack.i.b16 %v2198, %v2198
        %v2211 = vperm.slane %v2209, 0
        %v2213 = vpack.i.b16 %v2199, %v2199
        %v2215 = vperm.slane %v2213, 0
        %v2216 = vunpack.c.l.bf16 %v2175
        %v2217 = vunpack.c.h.bf16 %v2175
        %v2218 = vunpack.c.l.bf16 %v2176
        %v2219 = vunpack.c.l.bf16 %v2203
        %v2220 = vunpack.c.l.bf16 %v2207
        %v2221 = vunpack.c.l.bf16 %v2211
        %v2222 = vunpack.c.l.bf16 %v2215
        %v2227 = vrot.slane %v2220, 4
        %v2228 = vrot.slane %v2222, 4
        %v2229 = vsel %vm430, %v2219, %v2227
        %v2230 = vsel %vm430, %v2221, %v2228
        %2231 = vrot.lane.b32.xlu0 %v2229, 8
        %v2232 = vpop.permute.xlu0 %2231
        %2233 = vrot.lane.b32.xlu0 %v2230, 8
        %v2234 = vpop.permute.xlu0 %2233
        %v2235 = vrot.slane %v2232, 4
        %v2236 = vrot.slane %v2234, 4
        %vm2237 = vcmask 64512
        %v2238 = vsel %vm2237, %v2235, %v2232
        %v2239 = vsel %vm430, %v2235, %v2236
        %v2240 = vsel %vm2237, %v2239, %v2234
        %v2244 = vmul.f32 %v2216, %v2238
        %v2245 = vmul.f32 %v2217, %v2240
        %v2246 = vmul.f32 %v2218, %v2236
        %2250 = vst [vmem:[#allocation1] ss:$2 sm:$0xff] %v2244
        %s2251 = scalar_lea.vmem [#allocation1], 16
        %2252 = vst [vmem:[%s2251] ss:$2 sm:$0xff] %v2245
        %s2253 = scalar_lea.vmem [#allocation1], 32
        %2254 = vst [vmem:[%s2253] ss:$2 sm:$0xff] %v2246
        %v2255 = vld.sshfl [vmem:[#allocation1] sm:$0xff pattern:$0x75316420]
        %v2256 = vld.sshfl [vmem:[#allocation1 + $0x8] sm:$0xff pattern:$0x75316420]
        %v2257 = vld.sshfl [vmem:[#allocation1 + $0x10] sm:$0xff pattern:$0x75316420]
        %v2258 = vld.sshfl [vmem:[#allocation1 + $0x18] sm:$0xff pattern:$0x75316420]
        %v2259 = vld.sshfl [vmem:[#allocation1 + $0x20] sm:$0xff pattern:$0x75316420]
        %v2265 = vpack.c.bf16 %v2256, %v2255
        %v2266 = vpack.c.bf16 %v2258, %v2257
        %v2267 = vpack.c.bf16 %v2259, %v2259
        %2271 = vrot.lane.b32.xlu0 %v2265, 120
        %v2272 = vpop.permute.xlu0 %2271
        %2273 = vrot.lane.b32.xlu0 %v2266, 120
        %v2274 = vpop.permute.xlu0 %2273
        %2275 = vrot.lane.b32.xlu0 %v2267, 120
        %v2276 = vpop.permute.xlu0 %2275
        %v2277 = vrot.slane %v2272, 4
        %v2278 = vrot.slane %v2274, 4
        %v2279 = vrot.slane %v2276, 4
        %v2280 = vsel %vm538, %v2277, %v2278
        %vm2281 = vcmask 982016
        %v2282 = vsel %vm2281, %v2272, %v2280
        %v2283 = vsel %vm538, %v2278, %v2279
        %v2284 = vsel %vm2281, %v2274, %v2283
        %2287 = vst [vmem:[#allocation4 + $0x80] sm:$0x33] %v2282
        %2288 = vst [vmem:[#allocation4 + $0x88] sm:$0x33] %v2284
        %v2289 = vld [vmem:[#allocation2 + $0x2] sm:$0xff]
        %v2290 = vld [vmem:[#allocation2 + $0xa] sm:$0x3]
        %s2291 = scalar_lea.vmem [#allocation9], 65
        %v2292 = vld [vmem:[%s2291] ss:$8 sm:$0xf]
        %v2294 = vperm.slane %v2292, 0
        %v2295 = vperm.slane %v2292, 1
        %v2296 = vperm.slane %v2292, 2
        %v2297 = vperm.slane %v2292, 3
        %v2302 = vpack.c.bf16 %v2295, %v2294
        %v2303 = vpack.c.bf16 %v2297, %v2296
        %v2306 = vunpack.c.l.b16 %v2302
        %v2307 = vunpack.c.h.b16 %v2302
        %v2308 = vunpack.c.l.b16 %v2303
        %v2309 = vunpack.c.h.b16 %v2303
        %v2310 = vpack.c.b16 %v2306, %v2306
        %v2311 = vpack.c.b16 %v2307, %v2307
        %v2312 = vpack.c.b16 %v2308, %v2308
        %v2313 = vpack.c.b16 %v2309, %v2309
        %v2315 = vpack.i.b16 %v2310, %v2310
        %v2317 = vperm.slane %v2315, 0
        %v2319 = vpack.i.b16 %v2311, %v2311
        %v2321 = vperm.slane %v2319, 0
        %v2323 = vpack.i.b16 %v2312, %v2312
        %v2325 = vperm.slane %v2323, 0
        %v2327 = vpack.i.b16 %v2313, %v2313
        %v2329 = vperm.slane %v2327, 0
        %v2330 = vunpack.c.l.bf16 %v2289
        %v2331 = vunpack.c.h.bf16 %v2289
        %v2332 = vunpack.c.l.bf16 %v2290
        %v2333 = vunpack.c.l.bf16 %v2317
        %v2334 = vunpack.c.l.bf16 %v2321
        %v2335 = vunpack.c.l.bf16 %v2325
        %v2336 = vunpack.c.l.bf16 %v2329
        %v2341 = vrot.slane %v2334, 4
        %v2342 = vrot.slane %v2336, 4
        %v2343 = vsel %vm430, %v2333, %v2341
        %v2344 = vsel %vm430, %v2335, %v2342
        %2345 = vrot.lane.b32.xlu0 %v2343, 9
        %v2346 = vpop.permute.xlu0 %2345
        %2347 = vrot.lane.b32.xlu0 %v2344, 9
        %v2348 = vpop.permute.xlu0 %2347
        %v2349 = vrot.slane %v2346, 4
        %v2350 = vrot.slane %v2348, 4
        %vm2351 = vcmask 72704
        %v2352 = vsel %vm2351, %v2349, %v2346
        %v2353 = vsel %vm430, %v2349, %v2350
        %v2354 = vsel %vm2351, %v2353, %v2348
        %v2358 = vmul.f32 %v2330, %v2352
        %v2359 = vmul.f32 %v2331, %v2354
        %v2360 = vmul.f32 %v2332, %v2350
        %2364 = vst [vmem:[#allocation1] ss:$2 sm:$0xff] %v2358
        %s2365 = scalar_lea.vmem [#allocation1], 16
        %2366 = vst [vmem:[%s2365] ss:$2 sm:$0xff] %v2359
        %s2367 = scalar_lea.vmem [#allocation1], 32
        %2368 = vst [vmem:[%s2367] ss:$2 sm:$0xff] %v2360
        %v2369 = vld.sshfl [vmem:[#allocation1] sm:$0xff pattern:$0x75316420]
        %v2370 = vld.sshfl [vmem:[#allocation1 + $0x8] sm:$0xff pattern:$0x75316420]
        %v2371 = vld.sshfl [vmem:[#allocation1 + $0x10] sm:$0xff pattern:$0x75316420]
        %v2372 = vld.sshfl [vmem:[#allocation1 + $0x18] sm:$0xff pattern:$0x75316420]
        %v2373 = vld.sshfl [vmem:[#allocation1 + $0x20] sm:$0xff pattern:$0x75316420]
        %v2379 = vpack.c.bf16 %v2370, %v2369
        %v2380 = vpack.c.bf16 %v2372, %v2371
        %v2381 = vpack.c.bf16 %v2373, %v2373
        %v2385 = vrot.slane %v2379, 6
        %v2386 = vrot.slane %v2380, 6
        %v2387 = vrot.slane %v2381, 6
        %2388 = vrot.lane.b32.xlu0 %v2385, 119
        %v2389 = vpop.permute.xlu0 %2388
        %2390 = vrot.lane.b32.xlu0 %v2386, 119
        %v2391 = vpop.permute.xlu0 %2390
        %2392 = vrot.lane.b32.xlu0 %v2387, 119
        %v2393 = vpop.permute.xlu0 %2392
        %v2394 = vrot.slane %v2389, 4
        %v2395 = vrot.slane %v2391, 4
        %v2396 = vrot.slane %v2393, 4
        %v2397 = vsel %vm538, %v2394, %v2395
        %vm2398 = vcmask 973824
        %v2399 = vsel %vm2398, %v2389, %v2397
        %v2400 = vsel %vm538, %v2395, %v2396
        %v2401 = vsel %vm2398, %v2391, %v2400
        %2404 = vst [vmem:[#allocation4 + $0x80] sm:$0xcc] %v2399
        %2405 = vst [vmem:[#allocation4 + $0x88] sm:$0xcc] %v2401
        %v2406 = vld [vmem:[#allocation2 + $0x2] sm:$0xff]
        %v2407 = vld [vmem:[#allocation2 + $0xa] sm:$0x3]
        %s2408 = scalar_lea.vmem [#allocation9], 66
        %v2409 = vld [vmem:[%s2408] ss:$8 sm:$0xf]
        %v2411 = vperm.slane %v2409, 0
        %v2412 = vperm.slane %v2409, 1
        %v2413 = vperm.slane %v2409, 2
        %v2414 = vperm.slane %v2409, 3
        %v2419 = vpack.c.bf16 %v2412, %v2411
        %v2420 = vpack.c.bf16 %v2414, %v2413
        %v2423 = vunpack.c.l.b16 %v2419
        %v2424 = vunpack.c.h.b16 %v2419
        %v2425 = vunpack.c.l.b16 %v2420
        %v2426 = vunpack.c.h.b16 %v2420
        %v2427 = vpack.c.b16 %v2423, %v2423
        %v2428 = vpack.c.b16 %v2424, %v2424
        %v2429 = vpack.c.b16 %v2425, %v2425
        %v2430 = vpack.c.b16 %v2426, %v2426
        %v2432 = vpack.i.b16 %v2427, %v2427
        %v2434 = vperm.slane %v2432, 0
        %v2436 = vpack.i.b16 %v2428, %v2428
        %v2438 = vperm.slane %v2436, 0
        %v2440 = vpack.i.b16 %v2429, %v2429
        %v2442 = vperm.slane %v2440, 0
        %v2444 = vpack.i.b16 %v2430, %v2430
        %v2446 = vperm.slane %v2444, 0
        %v2447 = vunpack.c.l.bf16 %v2406
        %v2448 = vunpack.c.h.bf16 %v2406
        %v2449 = vunpack.c.l.bf16 %v2407
        %v2450 = vunpack.c.l.bf16 %v2434
        %v2451 = vunpack.c.l.bf16 %v2438
        %v2452 = vunpack.c.l.bf16 %v2442
        %v2453 = vunpack.c.l.bf16 %v2446
        %v2458 = vrot.slane %v2451, 4
        %v2459 = vrot.slane %v2453, 4
        %v2460 = vsel %vm430, %v2450, %v2458
        %v2461 = vsel %vm430, %v2452, %v2459
        %2462 = vrot.lane.b32.xlu0 %v2460, 55
        %v2463 = vpop.permute.xlu0 %2462
        %2464 = vrot.lane.b32.xlu0 %v2461, 55
        %v2465 = vpop.permute.xlu0 %2464
        %v2466 = vrot.slane %v2463, 4
        %v2467 = vrot.slane %v2465, 4
        %v2468 = vsel %vm495, %v2466, %v2463
        %v2469 = vsel %vm430, %v2466, %v2467
        %v2470 = vsel %vm495, %v2469, %v2465
        %v2474 = vmul.f32 %v2447, %v2468
        %v2475 = vmul.f32 %v2448, %v2470
        %v2476 = vmul.f32 %v2449, %v2467
        %2480 = vst [vmem:[#allocation1] ss:$2 sm:$0xff] %v2474
        %s2481 = scalar_lea.vmem [#allocation1], 16
        %2482 = vst [vmem:[%s2481] ss:$2 sm:$0xff] %v2475
        %s2483 = scalar_lea.vmem [#allocation1], 32
        %2484 = vst [vmem:[%s2483] ss:$2 sm:$0xff] %v2476
        %v2485 = vld.sshfl [vmem:[#allocation1] sm:$0xff pattern:$0x75316420]
        %v2486 = vld.sshfl [vmem:[#allocation1 + $0x8] sm:$0xff pattern:$0x75316420]
        %v2487 = vld.sshfl [vmem:[#allocation1 + $0x10] sm:$0xff pattern:$0x75316420]
        %v2488 = vld.sshfl [vmem:[#allocation1 + $0x18] sm:$0xff pattern:$0x75316420]
        %v2489 = vld.sshfl [vmem:[#allocation1 + $0x20] sm:$0xff pattern:$0x75316420]
        %v2495 = vpack.c.bf16 %v2486, %v2485
        %v2496 = vpack.c.bf16 %v2488, %v2487
        %v2497 = vpack.c.bf16 %v2489, %v2489
        %2501 = vrot.lane.b32.xlu0 %v2495, 73
        %v2502 = vpop.permute.xlu0 %2501
        %2503 = vrot.lane.b32.xlu0 %v2496, 73
        %v2504 = vpop.permute.xlu0 %2503
        %2505 = vrot.lane.b32.xlu0 %v2497, 73
        %v2506 = vpop.permute.xlu0 %2505
        %v2507 = vrot.slane %v2502, 4
        %v2508 = vrot.slane %v2504, 4
        %v2509 = vrot.slane %v2506, 4
        %v2510 = vsel %vm538, %v2507, %v2508
        %v2511 = vsel %vm540, %v2502, %v2510
        %v2512 = vsel %vm538, %v2508, %v2509
        %v2513 = vsel %vm540, %v2504, %v2512
        %2516 = vst [vmem:[#allocation4 + $0x90] sm:$0x33] %v2511
        %2517 = vst [vmem:[#allocation4 + $0x98] sm:$0x33] %v2513
        %v2518 = vld [vmem:[#allocation2 + $0x2] sm:$0xff]
        %v2519 = vld [vmem:[#allocation2 + $0xa] sm:$0x3]
        %s2520 = scalar_lea.vmem [#allocation9], 67
        %v2521 = vld [vmem:[%s2520] ss:$8 sm:$0xf]
        %v2523 = vperm.slane %v2521, 0
        %v2524 = vperm.slane %v2521, 1
        %v2525 = vperm.slane %v2521, 2
        %v2526 = vperm.slane %v2521, 3
        %v2531 = vpack.c.bf16 %v2524, %v2523
        %v2532 = vpack.c.bf16 %v2526, %v2525
        %v2535 = vunpack.c.l.b16 %v2531
        %v2536 = vunpack.c.h.b16 %v2531
        %v2537 = vunpack.c.l.b16 %v2532
        %v2538 = vunpack.c.h.b16 %v2532
        %v2539 = vpack.c.b16 %v2535, %v2535
        %v2540 = vpack.c.b16 %v2536, %v2536
        %v2541 = vpack.c.b16 %v2537, %v2537
        %v2542 = vpack.c.b16 %v2538, %v2538
        %v2544 = vpack.i.b16 %v2539, %v2539
        %v2546 = vperm.slane %v2544, 0
        %v2548 = vpack.i.b16 %v2540, %v2540
        %v2550 = vperm.slane %v2548, 0
        %v2552 = vpack.i.b16 %v2541, %v2541
        %v2554 = vperm.slane %v2552, 0
        %v2556 = vpack.i.b16 %v2542, %v2542
        %v2558 = vperm.slane %v2556, 0
        %v2559 = vunpack.c.l.bf16 %v2518
        %v2560 = vunpack.c.h.bf16 %v2518
        %v2561 = vunpack.c.l.bf16 %v2519
        %v2562 = vunpack.c.l.bf16 %v2546
        %v2563 = vunpack.c.l.bf16 %v2550
        %v2564 = vunpack.c.l.bf16 %v2554
        %v2565 = vunpack.c.l.bf16 %v2558
        %v2570 = vrot.slane %v2563, 4
        %v2571 = vrot.slane %v2565, 4
        %v2572 = vsel %vm430, %v2562, %v2570
        %v2573 = vsel %vm430, %v2564, %v2571
        %2574 = vrot.lane.b32.xlu0 %v2572, 56
        %v2575 = vpop.permute.xlu0 %2574
        %2576 = vrot.lane.b32.xlu0 %v2573, 56
        %v2577 = vpop.permute.xlu0 %2576
        %v2578 = vrot.slane %v2575, 4
        %v2579 = vrot.slane %v2577, 4
        %v2580 = vsel %vm610, %v2578, %v2575
        %v2581 = vsel %vm430, %v2578, %v2579
        %v2582 = vsel %vm610, %v2581, %v2577
        %v2586 = vmul.f32 %v2559, %v2580
        %v2587 = vmul.f32 %v2560, %v2582
        %v2588 = vmul.f32 %v2561, %v2579
        %2592 = vst [vmem:[#allocation1] ss:$2 sm:$0xff] %v2586
        %s2593 = scalar_lea.vmem [#allocation1], 16
        %2594 = vst [vmem:[%s2593] ss:$2 sm:$0xff] %v2587
        %s2595 = scalar_lea.vmem [#allocation1], 32
        %2596 = vst [vmem:[%s2595] ss:$2 sm:$0xff] %v2588
        %v2597 = vld.sshfl [vmem:[#allocation1] sm:$0xff pattern:$0x75316420]
        %v2598 = vld.sshfl [vmem:[#allocation1 + $0x8] sm:$0xff pattern:$0x75316420]
        %v2599 = vld.sshfl [vmem:[#allocation1 + $0x10] sm:$0xff pattern:$0x75316420]
        %v2600 = vld.sshfl [vmem:[#allocation1 + $0x18] sm:$0xff pattern:$0x75316420]
        %v2601 = vld.sshfl [vmem:[#allocation1 + $0x20] sm:$0xff pattern:$0x75316420]
        %v2607 = vpack.c.bf16 %v2598, %v2597
        %v2608 = vpack.c.bf16 %v2600, %v2599
        %v2609 = vpack.c.bf16 %v2601, %v2601
        %v2613 = vrot.slane %v2607, 6
        %v2614 = vrot.slane %v2608, 6
        %v2615 = vrot.slane %v2609, 6
        %2616 = vrot.lane.b32.xlu0 %v2613, 72
        %v2617 = vpop.permute.xlu0 %2616
        %2618 = vrot.lane.b32.xlu0 %v2614, 72
        %v2619 = vpop.permute.xlu0 %2618
        %2620 = vrot.lane.b32.xlu0 %v2615, 72
        %v2621 = vpop.permute.xlu0 %2620
        %v2622 = vrot.slane %v2617, 4
        %v2623 = vrot.slane %v2619, 4
        %v2624 = vrot.slane %v2621, 4
        %v2625 = vsel %vm538, %v2622, %v2623
        %v2626 = vsel %vm657, %v2617, %v2625
        %v2627 = vsel %vm538, %v2623, %v2624
        %v2628 = vsel %vm657, %v2619, %v2627
        %2631 = vst [vmem:[#allocation4 + $0x90] sm:$0xcc] %v2626
        %2632 = vst [vmem:[#allocation4 + $0x98] sm:$0xcc] %v2628
        %v2633 = vld [vmem:[#allocation2 + $0x2] sm:$0xff]
        %v2634 = vld [vmem:[#allocation2 + $0xa] sm:$0x3]
        %s2635 = scalar_lea.vmem [#allocation9], 68
        %v2636 = vld [vmem:[%s2635] ss:$8 sm:$0xf]
        %v2638 = vperm.slane %v2636, 0
        %v2639 = vperm.slane %v2636, 1
        %v2640 = vperm.slane %v2636, 2
        %v2641 = vperm.slane %v2636, 3
        %v2646 = vpack.c.bf16 %v2639, %v2638
        %v2647 = vpack.c.bf16 %v2641, %v2640
        %v2650 = vunpack.c.l.b16 %v2646
        %v2651 = vunpack.c.h.b16 %v2646
        %v2652 = vunpack.c.l.b16 %v2647
        %v2653 = vunpack.c.h.b16 %v2647
        %v2654 = vpack.c.b16 %v2650, %v2650
        %v2655 = vpack.c.b16 %v2651, %v2651
        %v2656 = vpack.c.b16 %v2652, %v2652
        %v2657 = vpack.c.b16 %v2653, %v2653
        %v2659 = vpack.i.b16 %v2654, %v2654
        %v2661 = vperm.slane %v2659, 0
        %v2663 = vpack.i.b16 %v2655, %v2655
        %v2665 = vperm.slane %v2663, 0
        %v2667 = vpack.i.b16 %v2656, %v2656
        %v2669 = vperm.slane %v2667, 0
        %v2671 = vpack.i.b16 %v2657, %v2657
        %v2673 = vperm.slane %v2671, 0
        %v2674 = vunpack.c.l.bf16 %v2633
        %v2675 = vunpack.c.h.bf16 %v2633
        %v2676 = vunpack.c.l.bf16 %v2634
        %v2677 = vunpack.c.l.bf16 %v2661
        %v2678 = vunpack.c.l.bf16 %v2665
        %v2679 = vunpack.c.l.bf16 %v2669
        %v2680 = vunpack.c.l.bf16 %v2673
        %v2685 = vrot.slane %v2678, 4
        %v2686 = vrot.slane %v2680, 4
        %v2687 = vsel %vm430, %v2677, %v2685
        %v2688 = vsel %vm430, %v2679, %v2686
        %2689 = vrot.lane.b32.xlu0 %v2687, 57
        %v2690 = vpop.permute.xlu0 %2689
        %2691 = vrot.lane.b32.xlu0 %v2688, 57
        %v2692 = vpop.permute.xlu0 %2691
        %v2693 = vrot.slane %v2690, 4
        %v2694 = vrot.slane %v2692, 4
        %v2695 = vsel %vm727, %v2693, %v2690
        %v2696 = vsel %vm430, %v2693, %v2694
        %v2697 = vsel %vm727, %v2696, %v2692
        %v2701 = vmul.f32 %v2674, %v2695
        %v2702 = vmul.f32 %v2675, %v2697
        %v2703 = vmul.f32 %v2676, %v2694
        %2707 = vst [vmem:[#allocation1] ss:$2 sm:$0xff] %v2701
        %s2708 = scalar_lea.vmem [#allocation1], 16
        %2709 = vst [vmem:[%s2708] ss:$2 sm:$0xff] %v2702
        %s2710 = scalar_lea.vmem [#allocation1], 32
        %2711 = vst [vmem:[%s2710] ss:$2 sm:$0xff] %v2703
        %v2712 = vld.sshfl [vmem:[#allocation1] sm:$0xff pattern:$0x75316420]
        %v2713 = vld.sshfl [vmem:[#allocation1 + $0x8] sm:$0xff pattern:$0x75316420]
        %v2714 = vld.sshfl [vmem:[#allocation1 + $0x10] sm:$0xff pattern:$0x75316420]
        %v2715 = vld.sshfl [vmem:[#allocation1 + $0x18] sm:$0xff pattern:$0x75316420]
        %v2716 = vld.sshfl [vmem:[#allocation1 + $0x20] sm:$0xff pattern:$0x75316420]
        %v2722 = vpack.c.bf16 %v2713, %v2712
        %v2723 = vpack.c.bf16 %v2715, %v2714
        %v2724 = vpack.c.bf16 %v2716, %v2716
        %2728 = vrot.lane.b32.xlu0 %v2722, 71
        %v2729 = vpop.permute.xlu0 %2728
        %2730 = vrot.lane.b32.xlu0 %v2723, 71
        %v2731 = vpop.permute.xlu0 %2730
        %2732 = vrot.lane.b32.xlu0 %v2724, 71
        %v2733 = vpop.permute.xlu0 %2732
        %v2734 = vrot.slane %v2729, 4
        %v2735 = vrot.slane %v2731, 4
        %v2736 = vrot.slane %v2733, 4
        %v2737 = vsel %vm538, %v2734, %v2735
        %v2738 = vsel %vm771, %v2729, %v2737
        %v2739 = vsel %vm538, %v2735, %v2736
        %v2740 = vsel %vm771, %v2731, %v2739
        %2743 = vst [vmem:[#allocation4 + $0xa0] sm:$0x33] %v2738
        %2744 = vst [vmem:[#allocation4 + $0xa8] sm:$0x33] %v2740
        %v2745 = vld [vmem:[#allocation2 + $0x2] sm:$0xff]
        %v2746 = vld [vmem:[#allocation2 + $0xa] sm:$0x3]
        %s2747 = scalar_lea.vmem [#allocation9], 69
        %v2748 = vld [vmem:[%s2747] ss:$8 sm:$0xf]
        %v2750 = vperm.slane %v2748, 0
        %v2751 = vperm.slane %v2748, 1
        %v2752 = vperm.slane %v2748, 2
        %v2753 = vperm.slane %v2748, 3
        %v2758 = vpack.c.bf16 %v2751, %v2750
        %v2759 = vpack.c.bf16 %v2753, %v2752
        %v2762 = vunpack.c.l.b16 %v2758
        %v2763 = vunpack.c.h.b16 %v2758
        %v2764 = vunpack.c.l.b16 %v2759
        %v2765 = vunpack.c.h.b16 %v2759
        %v2766 = vpack.c.b16 %v2762, %v2762
        %v2767 = vpack.c.b16 %v2763, %v2763
        %v2768 = vpack.c.b16 %v2764, %v2764
        %v2769 = vpack.c.b16 %v2765, %v2765
        %v2771 = vpack.i.b16 %v2766, %v2766
        %v2773 = vperm.slane %v2771, 0
        %v2775 = vpack.i.b16 %v2767, %v2767
        %v2777 = vperm.slane %v2775, 0
        %v2779 = vpack.i.b16 %v2768, %v2768
        %v2781 = vperm.slane %v2779, 0
        %v2783 = vpack.i.b16 %v2769, %v2769
        %v2785 = vperm.slane %v2783, 0
        %v2786 = vunpack.c.l.bf16 %v2745
        %v2787 = vunpack.c.h.bf16 %v2745
        %v2788 = vunpack.c.l.bf16 %v2746
        %v2789 = vunpack.c.l.bf16 %v2773
        %v2790 = vunpack.c.l.bf16 %v2777
        %v2791 = vunpack.c.l.bf16 %v2781
        %v2792 = vunpack.c.l.bf16 %v2785
        %v2797 = vrot.slane %v2790, 4
        %v2798 = vrot.slane %v2792, 4
        %v2799 = vsel %vm430, %v2789, %v2797
        %v2800 = vsel %vm430, %v2791, %v2798
        %2801 = vrot.lane.b32.xlu0 %v2799, 63
        %v2802 = vpop.permute.xlu0 %2801
        %2803 = vrot.lane.b32.xlu0 %v2800, 63
        %v2804 = vpop.permute.xlu0 %2803
        %v2805 = vrot.slane %v2802, 4
        %v2806 = vrot.slane %v2804, 4
        %v2807 = vsel %vm841, %v2805, %v2802
        %v2808 = vsel %vm430, %v2805, %v2806
        %v2809 = vsel %vm841, %v2808, %v2804
        %v2813 = vmul.f32 %v2786, %v2807
        %v2814 = vmul.f32 %v2787, %v2809
        %v2815 = vmul.f32 %v2788, %v2806
        %2819 = vst [vmem:[#allocation1] ss:$2 sm:$0xff] %v2813
        %s2820 = scalar_lea.vmem [#allocation1], 16
        %2821 = vst [vmem:[%s2820] ss:$2 sm:$0xff] %v2814
        %s2822 = scalar_lea.vmem [#allocation1], 32
        %2823 = vst [vmem:[%s2822] ss:$2 sm:$0xff] %v2815
        %v2824 = vld.sshfl [vmem:[#allocation1] sm:$0xff pattern:$0x75316420]
        %v2825 = vld.sshfl [vmem:[#allocation1 + $0x8] sm:$0xff pattern:$0x75316420]
        %v2826 = vld.sshfl [vmem:[#allocation1 + $0x10] sm:$0xff pattern:$0x75316420]
        %v2827 = vld.sshfl [vmem:[#allocation1 + $0x18] sm:$0xff pattern:$0x75316420]
        %v2828 = vld.sshfl [vmem:[#allocation1 + $0x20] sm:$0xff pattern:$0x75316420]
        %v2834 = vpack.c.bf16 %v2825, %v2824
        %v2835 = vpack.c.bf16 %v2827, %v2826
        %v2836 = vpack.c.bf16 %v2828, %v2828
        %v2840 = vrot.slane %v2834, 6
        %v2841 = vrot.slane %v2835, 6
        %v2842 = vrot.slane %v2836, 6
        %2843 = vrot.lane.b32.xlu0 %v2840, 65
        %v2844 = vpop.permute.xlu0 %2843
        %2845 = vrot.lane.b32.xlu0 %v2841, 65
        %v2846 = vpop.permute.xlu0 %2845
        %2847 = vrot.lane.b32.xlu0 %v2842, 65
        %v2848 = vpop.permute.xlu0 %2847
        %v2849 = vrot.slane %v2844, 4
        %v2850 = vrot.slane %v2846, 4
        %v2851 = vrot.slane %v2848, 4
        %v2852 = vsel %vm538, %v2849, %v2850
        %v2853 = vsel %vm888, %v2844, %v2852
        %v2854 = vsel %vm538, %v2850, %v2851
        %v2855 = vsel %vm888, %v2846, %v2854
        %2858 = vst [vmem:[#allocation4 + $0xa0] sm:$0xcc] %v2853
        %2859 = vst [vmem:[#allocation4 + $0xa8] sm:$0xcc] %v2855
        %v2860 = vld [vmem:[#allocation2 + $0x2] sm:$0xff]
        %v2861 = vld [vmem:[#allocation2 + $0xa] sm:$0x3]
        %s2862 = scalar_lea.vmem [#allocation9], 70
        %v2863 = vld [vmem:[%s2862] ss:$8 sm:$0xf]
        %v2865 = vperm.slane %v2863, 0
        %v2866 = vperm.slane %v2863, 1
        %v2867 = vperm.slane %v2863, 2
        %v2868 = vperm.slane %v2863, 3
        %v2873 = vpack.c.bf16 %v2866, %v2865
        %v2874 = vpack.c.bf16 %v2868, %v2867
        %v2877 = vunpack.c.l.b16 %v2873
        %v2878 = vunpack.c.h.b16 %v2873
        %v2879 = vunpack.c.l.b16 %v2874
        %v2880 = vunpack.c.h.b16 %v2874
        %v2881 = vpack.c.b16 %v2877, %v2877
        %v2882 = vpack.c.b16 %v2878, %v2878
        %v2883 = vpack.c.b16 %v2879, %v2879
        %v2884 = vpack.c.b16 %v2880, %v2880
        %v2886 = vpack.i.b16 %v2881, %v2881
        %v2888 = vperm.slane %v2886, 0
        %v2890 = vpack.i.b16 %v2882, %v2882
        %v2892 = vperm.slane %v2890, 0
        %v2894 = vpack.i.b16 %v2883, %v2883
        %v2896 = vperm.slane %v2894, 0
        %v2898 = vpack.i.b16 %v2884, %v2884
        %v2900 = vperm.slane %v2898, 0
        %v2901 = vunpack.c.l.bf16 %v2860
        %v2902 = vunpack.c.h.bf16 %v2860
        %v2903 = vunpack.c.l.bf16 %v2861
        %v2904 = vunpack.c.l.bf16 %v2888
        %v2905 = vunpack.c.l.bf16 %v2892
        %v2906 = vunpack.c.l.bf16 %v2896
        %v2907 = vunpack.c.l.bf16 %v2900
        %v2912 = vrot.slane %v2905, 4
        %v2913 = vrot.slane %v2907, 4
        %v2914 = vsel %vm430, %v2904, %v2912
        %v2915 = vsel %vm430, %v2906, %v2913
        %2916 = vrot.lane.b32.xlu0 %v2914, 64
        %v2917 = vpop.permute.xlu0 %2916
        %2918 = vrot.lane.b32.xlu0 %v2915, 64
        %v2919 = vpop.permute.xlu0 %2918
        %v2920 = vrot.slane %v2917, 4
        %v2921 = vrot.slane %v2919, 4
        %v2922 = vsel %vm958, %v2920, %v2917
        %v2923 = vsel %vm430, %v2920, %v2921
        %v2924 = vsel %vm958, %v2923, %v2919
        %v2928 = vmul.f32 %v2901, %v2922
        %v2929 = vmul.f32 %v2902, %v2924
        %v2930 = vmul.f32 %v2903, %v2921
        %2934 = vst [vmem:[#allocation1] ss:$2 sm:$0xff] %v2928
        %s2935 = scalar_lea.vmem [#allocation1], 16
        %2936 = vst [vmem:[%s2935] ss:$2 sm:$0xff] %v2929
        %s2937 = scalar_lea.vmem [#allocation1], 32
        %2938 = vst [vmem:[%s2937] ss:$2 sm:$0xff] %v2930
        %v2939 = vld.sshfl [vmem:[#allocation1] sm:$0xff pattern:$0x75316420]
        %v2940 = vld.sshfl [vmem:[#allocation1 + $0x8] sm:$0xff pattern:$0x75316420]
        %v2941 = vld.sshfl [vmem:[#allocation1 + $0x10] sm:$0xff pattern:$0x75316420]
        %v2942 = vld.sshfl [vmem:[#allocation1 + $0x18] sm:$0xff pattern:$0x75316420]
        %v2943 = vld.sshfl [vmem:[#allocation1 + $0x20] sm:$0xff pattern:$0x75316420]
        %v2949 = vpack.c.bf16 %v2940, %v2939
        %v2950 = vpack.c.bf16 %v2942, %v2941
        %v2951 = vpack.c.bf16 %v2943, %v2943
        %2955 = vrot.lane.b32.xlu0 %v2949, 64
        %v2956 = vpop.permute.xlu0 %2955
        %2957 = vrot.lane.b32.xlu0 %v2950, 64
        %v2958 = vpop.permute.xlu0 %2957
        %2959 = vrot.lane.b32.xlu0 %v2951, 64
        %v2960 = vpop.permute.xlu0 %2959
        %v2961 = vrot.slane %v2956, 4
        %v2962 = vrot.slane %v2958, 4
        %v2963 = vrot.slane %v2960, 4
        %v2964 = vsel %vm538, %v2961, %v2962
        %v2965 = vsel %vm1002, %v2956, %v2964
        %v2966 = vsel %vm538, %v2962, %v2963
        %v2967 = vsel %vm1002, %v2958, %v2966
        %2970 = vst [vmem:[#allocation4 + $0xb0] sm:$0x33] %v2965
        %2971 = vst [vmem:[#allocation4 + $0xb8] sm:$0x33] %v2967
        %v2972 = vld [vmem:[#allocation2 + $0x2] sm:$0xff]
        %v2973 = vld [vmem:[#allocation2 + $0xa] sm:$0x3]
        %s2974 = scalar_lea.vmem [#allocation9], 71
        %v2975 = vld [vmem:[%s2974] ss:$8 sm:$0xf]
        %v2977 = vperm.slane %v2975, 0
        %v2978 = vperm.slane %v2975, 1
        %v2979 = vperm.slane %v2975, 2
        %v2980 = vperm.slane %v2975, 3
        %v2985 = vpack.c.bf16 %v2978, %v2977
        %v2986 = vpack.c.bf16 %v2980, %v2979
        %v2989 = vunpack.c.l.b16 %v2985
        %v2990 = vunpack.c.h.b16 %v2985
        %v2991 = vunpack.c.l.b16 %v2986
        %v2992 = vunpack.c.h.b16 %v2986
        %v2993 = vpack.c.b16 %v2989, %v2989
        %v2994 = vpack.c.b16 %v2990, %v2990
        %v2995 = vpack.c.b16 %v2991, %v2991
        %v2996 = vpack.c.b16 %v2992, %v2992
        %v2998 = vpack.i.b16 %v2993, %v2993
        %v3000 = vperm.slane %v2998, 0
        %v3002 = vpack.i.b16 %v2994, %v2994
        %v3004 = vperm.slane %v3002, 0
        %v3006 = vpack.i.b16 %v2995, %v2995
        %v3008 = vperm.slane %v3006, 0
        %v3010 = vpack.i.b16 %v2996, %v2996
        %v3012 = vperm.slane %v3010, 0
        %v3013 = vunpack.c.l.bf16 %v2972
        %v3014 = vunpack.c.h.bf16 %v2972
        %v3015 = vunpack.c.l.bf16 %v2973
        %v3016 = vunpack.c.l.bf16 %v3000
        %v3017 = vunpack.c.l.bf16 %v3004
        %v3018 = vunpack.c.l.bf16 %v3008
        %v3019 = vunpack.c.l.bf16 %v3012
        %v3024 = vrot.slane %v3017, 4
        %v3025 = vrot.slane %v3019, 4
        %v3026 = vsel %vm430, %v3016, %v3024
        %v3027 = vsel %vm430, %v3018, %v3025
        %3028 = vrot.lane.b32.xlu0 %v3026, 65
        %v3029 = vpop.permute.xlu0 %3028
        %3030 = vrot.lane.b32.xlu0 %v3027, 65
        %v3031 = vpop.permute.xlu0 %3030
        %v3032 = vrot.slane %v3029, 4
        %v3033 = vrot.slane %v3031, 4
        %v3034 = vsel %vm1072, %v3032, %v3029
        %v3035 = vsel %vm430, %v3032, %v3033
        %v3036 = vsel %vm1072, %v3035, %v3031
        %v3040 = vmul.f32 %v3013, %v3034
        %v3041 = vmul.f32 %v3014, %v3036
        %v3042 = vmul.f32 %v3015, %v3033
        %3046 = vst [vmem:[#allocation1] ss:$2 sm:$0xff] %v3040
        %s3047 = scalar_lea.vmem [#allocation1], 16
        %3048 = vst [vmem:[%s3047] ss:$2 sm:$0xff] %v3041
        %s3049 = scalar_lea.vmem [#allocation1], 32
        %3050 = vst [vmem:[%s3049] ss:$2 sm:$0xff] %v3042
        %v3051 = vld.sshfl [vmem:[#allocation1] sm:$0xff pattern:$0x75316420]
        %v3052 = vld.sshfl [vmem:[#allocation1 + $0x8] sm:$0xff pattern:$0x75316420]
        %v3053 = vld.sshfl [vmem:[#allocation1 + $0x10] sm:$0xff pattern:$0x75316420]
        %v3054 = vld.sshfl [vmem:[#allocation1 + $0x18] sm:$0xff pattern:$0x75316420]
        %v3055 = vld.sshfl [vmem:[#allocation1 + $0x20] sm:$0xff pattern:$0x75316420]
        %v3061 = vpack.c.bf16 %v3052, %v3051
        %v3062 = vpack.c.bf16 %v3054, %v3053
        %v3063 = vpack.c.bf16 %v3055, %v3055
        %v3067 = vrot.slane %v3061, 6
        %v3068 = vrot.slane %v3062, 6
        %v3069 = vrot.slane %v3063, 6
        %3070 = vrot.lane.b32.xlu0 %v3067, 63
        %v3071 = vpop.permute.xlu0 %3070
        %3072 = vrot.lane.b32.xlu0 %v3068, 63
        %v3073 = vpop.permute.xlu0 %3072
        %3074 = vrot.lane.b32.xlu0 %v3069, 63
        %v3075 = vpop.permute.xlu0 %3074
        %v3076 = vrot.slane %v3071, 4
        %v3077 = vrot.slane %v3073, 4
        %v3078 = vrot.slane %v3075, 4
        %v3079 = vsel %vm538, %v3076, %v3077
        %v3080 = vsel %vm1119, %v3071, %v3079
        %v3081 = vsel %vm538, %v3077, %v3078
        %v3082 = vsel %vm1119, %v3073, %v3081
        %3085 = vst [vmem:[#allocation4 + $0xb0] sm:$0xcc] %v3080
        %3086 = vst [vmem:[#allocation4 + $0xb8] sm:$0xcc] %v3082
        %v3087 = vld [vmem:[#allocation2 + $0x2] sm:$0xff]
        %v3088 = vld [vmem:[#allocation2 + $0xa] sm:$0x3]
        %s3089 = scalar_lea.vmem [#allocation9], 96
        %v3090 = vld [vmem:[%s3089] ss:$8 sm:$0xf]
        %v3092 = vperm.slane %v3090, 0
        %v3093 = vperm.slane %v3090, 1
        %v3094 = vperm.slane %v3090, 2
        %v3095 = vperm.slane %v3090, 3
        %v3100 = vpack.c.bf16 %v3093, %v3092
        %v3101 = vpack.c.bf16 %v3095, %v3094
        %v3104 = vunpack.c.l.b16 %v3100
        %v3105 = vunpack.c.h.b16 %v3100
        %v3106 = vunpack.c.l.b16 %v3101
        %v3107 = vunpack.c.h.b16 %v3101
        %v3108 = vpack.c.b16 %v3104, %v3104
        %v3109 = vpack.c.b16 %v3105, %v3105
        %v3110 = vpack.c.b16 %v3106, %v3106
        %v3111 = vpack.c.b16 %v3107, %v3107
        %v3113 = vpack.i.b16 %v3108, %v3108
        %v3115 = vperm.slane %v3113, 0
        %v3117 = vpack.i.b16 %v3109, %v3109
        %v3119 = vperm.slane %v3117, 0
        %v3121 = vpack.i.b16 %v3110, %v3110
        %v3123 = vperm.slane %v3121, 0
        %v3125 = vpack.i.b16 %v3111, %v3111
        %v3127 = vperm.slane %v3125, 0
        %v3128 = vunpack.c.l.bf16 %v3087
        %v3129 = vunpack.c.h.bf16 %v3087
        %v3130 = vunpack.c.l.bf16 %v3088
        %v3131 = vunpack.c.l.bf16 %v3115
        %v3132 = vunpack.c.l.bf16 %v3119
        %v3133 = vunpack.c.l.bf16 %v3123
        %v3134 = vunpack.c.l.bf16 %v3127
        %v3139 = vrot.slane %v3132, 4
        %v3140 = vrot.slane %v3134, 4
        %v3141 = vsel %vm430, %v3131, %v3139
        %v3142 = vsel %vm430, %v3133, %v3140
        %3143 = vrot.lane.b32.xlu0 %v3141, 71
        %v3144 = vpop.permute.xlu0 %3143
        %3145 = vrot.lane.b32.xlu0 %v3142, 71
        %v3146 = vpop.permute.xlu0 %3145
        %v3147 = vrot.slane %v3144, 4
        %v3148 = vrot.slane %v3146, 4
        %v3149 = vsel %vm1189, %v3147, %v3144
        %v3150 = vsel %vm430, %v3147, %v3148
        %v3151 = vsel %vm1189, %v3150, %v3146
        %v3155 = vmul.f32 %v3128, %v3149
        %v3156 = vmul.f32 %v3129, %v3151
        %v3157 = vmul.f32 %v3130, %v3148
        %3161 = vst [vmem:[#allocation1] ss:$2 sm:$0xff] %v3155
        %s3162 = scalar_lea.vmem [#allocation1], 16
        %3163 = vst [vmem:[%s3162] ss:$2 sm:$0xff] %v3156
        %s3164 = scalar_lea.vmem [#allocation1], 32
        %3165 = vst [vmem:[%s3164] ss:$2 sm:$0xff] %v3157
        %v3166 = vld.sshfl [vmem:[#allocation1] sm:$0xff pattern:$0x75316420]
        %v3167 = vld.sshfl [vmem:[#allocation1 + $0x8] sm:$0xff pattern:$0x75316420]
        %v3168 = vld.sshfl [vmem:[#allocation1 + $0x10] sm:$0xff pattern:$0x75316420]
        %v3169 = vld.sshfl [vmem:[#allocation1 + $0x18] sm:$0xff pattern:$0x75316420]
        %v3170 = vld.sshfl [vmem:[#allocation1 + $0x20] sm:$0xff pattern:$0x75316420]
        %v3176 = vpack.c.bf16 %v3167, %v3166
        %v3177 = vpack.c.bf16 %v3169, %v3168
        %v3178 = vpack.c.bf16 %v3170, %v3170
        %3182 = vrot.lane.b32.xlu0 %v3176, 57
        %v3183 = vpop.permute.xlu0 %3182
        %3184 = vrot.lane.b32.xlu0 %v3177, 57
        %v3185 = vpop.permute.xlu0 %3184
        %3186 = vrot.lane.b32.xlu0 %v3178, 57
        %v3187 = vpop.permute.xlu0 %3186
        %v3188 = vrot.slane %v3183, 4
        %v3189 = vrot.slane %v3185, 4
        %v3190 = vrot.slane %v3187, 4
        %v3191 = vsel %vm538, %v3188, %v3189
        %v3192 = vsel %vm1233, %v3183, %v3191
        %v3193 = vsel %vm538, %v3189, %v3190
        %v3194 = vsel %vm1233, %v3185, %v3193
        %3197 = vst [vmem:[#allocation4 + $0xc0] sm:$0x33] %v3192
        %3198 = vst [vmem:[#allocation4 + $0xc8] sm:$0x33] %v3194
        %v3199 = vld [vmem:[#allocation2 + $0x2] sm:$0xff]
        %v3200 = vld [vmem:[#allocation2 + $0xa] sm:$0x3]
        %s3201 = scalar_lea.vmem [#allocation9], 97
        %v3202 = vld [vmem:[%s3201] ss:$8 sm:$0xf]
        %v3204 = vperm.slane %v3202, 0
        %v3205 = vperm.slane %v3202, 1
        %v3206 = vperm.slane %v3202, 2
        %v3207 = vperm.slane %v3202, 3
        %v3212 = vpack.c.bf16 %v3205, %v3204
        %v3213 = vpack.c.bf16 %v3207, %v3206
        %v3216 = vunpack.c.l.b16 %v3212
        %v3217 = vunpack.c.h.b16 %v3212
        %v3218 = vunpack.c.l.b16 %v3213
        %v3219 = vunpack.c.h.b16 %v3213
        %v3220 = vpack.c.b16 %v3216, %v3216
        %v3221 = vpack.c.b16 %v3217, %v3217
        %v3222 = vpack.c.b16 %v3218, %v3218
        %v3223 = vpack.c.b16 %v3219, %v3219
        %v3225 = vpack.i.b16 %v3220, %v3220
        %v3227 = vperm.slane %v3225, 0
        %v3229 = vpack.i.b16 %v3221, %v3221
        %v3231 = vperm.slane %v3229, 0
        %v3233 = vpack.i.b16 %v3222, %v3222
        %v3235 = vperm.slane %v3233, 0
        %v3237 = vpack.i.b16 %v3223, %v3223
        %v3239 = vperm.slane %v3237, 0
        %v3240 = vunpack.c.l.bf16 %v3199
        %v3241 = vunpack.c.h.bf16 %v3199
        %v3242 = vunpack.c.l.bf16 %v3200
        %v3243 = vunpack.c.l.bf16 %v3227
        %v3244 = vunpack.c.l.bf16 %v3231
        %v3245 = vunpack.c.l.bf16 %v3235
        %v3246 = vunpack.c.l.bf16 %v3239
        %v3251 = vrot.slane %v3244, 4
        %v3252 = vrot.slane %v3246, 4
        %v3253 = vsel %vm430, %v3243, %v3251
        %v3254 = vsel %vm430, %v3245, %v3252
        %3255 = vrot.lane.b32.xlu0 %v3253, 72
        %v3256 = vpop.permute.xlu0 %3255
        %3257 = vrot.lane.b32.xlu0 %v3254, 72
        %v3258 = vpop.permute.xlu0 %3257
        %v3259 = vrot.slane %v3256, 4
        %v3260 = vrot.slane %v3258, 4
        %v3261 = vsel %vm1303, %v3259, %v3256
        %v3262 = vsel %vm430, %v3259, %v3260
        %v3263 = vsel %vm1303, %v3262, %v3258
        %v3267 = vmul.f32 %v3240, %v3261
        %v3268 = vmul.f32 %v3241, %v3263
        %v3269 = vmul.f32 %v3242, %v3260
        %3273 = vst [vmem:[#allocation1] ss:$2 sm:$0xff] %v3267
        %s3274 = scalar_lea.vmem [#allocation1], 16
        %3275 = vst [vmem:[%s3274] ss:$2 sm:$0xff] %v3268
        %s3276 = scalar_lea.vmem [#allocation1], 32
        %3277 = vst [vmem:[%s3276] ss:$2 sm:$0xff] %v3269
        %v3278 = vld.sshfl [vmem:[#allocation1] sm:$0xff pattern:$0x75316420]
        %v3279 = vld.sshfl [vmem:[#allocation1 + $0x8] sm:$0xff pattern:$0x75316420]
        %v3280 = vld.sshfl [vmem:[#allocation1 + $0x10] sm:$0xff pattern:$0x75316420]
        %v3281 = vld.sshfl [vmem:[#allocation1 + $0x18] sm:$0xff pattern:$0x75316420]
        %v3282 = vld.sshfl [vmem:[#allocation1 + $0x20] sm:$0xff pattern:$0x75316420]
        %v3288 = vpack.c.bf16 %v3279, %v3278
        %v3289 = vpack.c.bf16 %v3281, %v3280
        %v3290 = vpack.c.bf16 %v3282, %v3282
        %v3294 = vrot.slane %v3288, 6
        %v3295 = vrot.slane %v3289, 6
        %v3296 = vrot.slane %v3290, 6
        %3297 = vrot.lane.b32.xlu0 %v3294, 56
        %v3298 = vpop.permute.xlu0 %3297
        %3299 = vrot.lane.b32.xlu0 %v3295, 56
        %v3300 = vpop.permute.xlu0 %3299
        %3301 = vrot.lane.b32.xlu0 %v3296, 56
        %v3302 = vpop.permute.xlu0 %3301
        %v3303 = vrot.slane %v3298, 4
        %v3304 = vrot.slane %v3300, 4
        %v3305 = vrot.slane %v3302, 4
        %v3306 = vsel %vm538, %v3303, %v3304
        %v3307 = vsel %vm1350, %v3298, %v3306
        %v3308 = vsel %vm538, %v3304, %v3305
        %v3309 = vsel %vm1350, %v3300, %v3308
        %3312 = vst [vmem:[#allocation4 + $0xc0] sm:$0xcc] %v3307
        %3313 = vst [vmem:[#allocation4 + $0xc8] sm:$0xcc] %v3309
        %v3314 = vld [vmem:[#allocation2 + $0x2] sm:$0xff]
        %v3315 = vld [vmem:[#allocation2 + $0xa] sm:$0x3]
        %s3316 = scalar_lea.vmem [#allocation9], 98
        %v3317 = vld [vmem:[%s3316] ss:$8 sm:$0xf]
        %v3319 = vperm.slane %v3317, 0
        %v3320 = vperm.slane %v3317, 1
        %v3321 = vperm.slane %v3317, 2
        %v3322 = vperm.slane %v3317, 3
        %v3327 = vpack.c.bf16 %v3320, %v3319
        %v3328 = vpack.c.bf16 %v3322, %v3321
        %v3331 = vunpack.c.l.b16 %v3327
        %v3332 = vunpack.c.h.b16 %v3327
        %v3333 = vunpack.c.l.b16 %v3328
        %v3334 = vunpack.c.h.b16 %v3328
        %v3335 = vpack.c.b16 %v3331, %v3331
        %v3336 = vpack.c.b16 %v3332, %v3332
        %v3337 = vpack.c.b16 %v3333, %v3333
        %v3338 = vpack.c.b16 %v3334, %v3334
        %v3340 = vpack.i.b16 %v3335, %v3335
        %v3342 = vperm.slane %v3340, 0
        %v3344 = vpack.i.b16 %v3336, %v3336
        %v3346 = vperm.slane %v3344, 0
        %v3348 = vpack.i.b16 %v3337, %v3337
        %v3350 = vperm.slane %v3348, 0
        %v3352 = vpack.i.b16 %v3338, %v3338
        %v3354 = vperm.slane %v3352, 0
        %v3355 = vunpack.c.l.bf16 %v3314
        %v3356 = vunpack.c.h.bf16 %v3314
        %v3357 = vunpack.c.l.bf16 %v3315
        %v3358 = vunpack.c.l.bf16 %v3342
        %v3359 = vunpack.c.l.bf16 %v3346
        %v3360 = vunpack.c.l.bf16 %v3350
        %v3361 = vunpack.c.l.bf16 %v3354
        %v3366 = vrot.slane %v3359, 4
        %v3367 = vrot.slane %v3361, 4
        %v3368 = vsel %vm430, %v3358, %v3366
        %v3369 = vsel %vm430, %v3360, %v3367
        %3370 = vrot.lane.b32.xlu0 %v3368, 73
        %v3371 = vpop.permute.xlu0 %3370
        %3372 = vrot.lane.b32.xlu0 %v3369, 73
        %v3373 = vpop.permute.xlu0 %3372
        %v3374 = vrot.slane %v3371, 4
        %v3375 = vrot.slane %v3373, 4
        %v3376 = vsel %vm1420, %v3374, %v3371
        %v3377 = vsel %vm430, %v3374, %v3375
        %v3378 = vsel %vm1420, %v3377, %v3373
        %v3382 = vmul.f32 %v3355, %v3376
        %v3383 = vmul.f32 %v3356, %v3378
        %v3384 = vmul.f32 %v3357, %v3375
        %3388 = vst [vmem:[#allocation1] ss:$2 sm:$0xff] %v3382
        %s3389 = scalar_lea.vmem [#allocation1], 16
        %3390 = vst [vmem:[%s3389] ss:$2 sm:$0xff] %v3383
        %s3391 = scalar_lea.vmem [#allocation1], 32
        %3392 = vst [vmem:[%s3391] ss:$2 sm:$0xff] %v3384
        %v3393 = vld.sshfl [vmem:[#allocation1] sm:$0xff pattern:$0x75316420]
        %v3394 = vld.sshfl [vmem:[#allocation1 + $0x8] sm:$0xff pattern:$0x75316420]
        %v3395 = vld.sshfl [vmem:[#allocation1 + $0x10] sm:$0xff pattern:$0x75316420]
        %v3396 = vld.sshfl [vmem:[#allocation1 + $0x18] sm:$0xff pattern:$0x75316420]
        %v3397 = vld.sshfl [vmem:[#allocation1 + $0x20] sm:$0xff pattern:$0x75316420]
        %v3403 = vpack.c.bf16 %v3394, %v3393
        %v3404 = vpack.c.bf16 %v3396, %v3395
        %v3405 = vpack.c.bf16 %v3397, %v3397
        %3409 = vrot.lane.b32.xlu0 %v3403, 55
        %v3410 = vpop.permute.xlu0 %3409
        %3411 = vrot.lane.b32.xlu0 %v3404, 55
        %v3412 = vpop.permute.xlu0 %3411
        %3413 = vrot.lane.b32.xlu0 %v3405, 55
        %v3414 = vpop.permute.xlu0 %3413
        %v3415 = vrot.slane %v3410, 4
        %v3416 = vrot.slane %v3412, 4
        %v3417 = vrot.slane %v3414, 4
        %v3418 = vsel %vm538, %v3415, %v3416
        %v3419 = vsel %vm1464, %v3410, %v3418
        %v3420 = vsel %vm538, %v3416, %v3417
        %v3421 = vsel %vm1464, %v3412, %v3420
        %3424 = vst [vmem:[#allocation4 + $0xd0] sm:$0x33] %v3419
        %3425 = vst [vmem:[#allocation4 + $0xd8] sm:$0x33] %v3421
        %v3426 = vld [vmem:[%s2] sm:$0xf]
        %v3427 = vld [vmem:[%s2 + $0x4] sm:$0xf]
        %v3428 = vld [vmem:[#allocation4] sm:$0xff]
        %v3429 = vld [vmem:[#allocation4 + $0x8] sm:$0xff]
        %v3430 = vld [vmem:[#allocation4 + $0x10] sm:$0xff]
        %v3431 = vld [vmem:[#allocation4 + $0x18] sm:$0xff]
        %v3432 = vld [vmem:[#allocation4 + $0x20] sm:$0xff]
        %v3433 = vld [vmem:[#allocation4 + $0x28] sm:$0xff]
        %v3434 = vld [vmem:[#allocation4 + $0x30] sm:$0xff]
        %v3435 = vld [vmem:[#allocation4 + $0x38] sm:$0xff]
        %v3436 = vld [vmem:[#allocation4 + $0x40] sm:$0xff]
        %v3437 = vld [vmem:[#allocation4 + $0x48] sm:$0xff]
        %v3438 = vld [vmem:[#allocation4 + $0x50] sm:$0xff]
        %v3439 = vld [vmem:[#allocation4 + $0x58] sm:$0xff]
        %v3440 = vld [vmem:[#allocation4 + $0x60] sm:$0xff]
        %v3441 = vld [vmem:[#allocation4 + $0x68] sm:$0xff]
        %v3442 = vld [vmem:[#allocation4 + $0x70] sm:$0xff]
        %v3443 = vld [vmem:[#allocation4 + $0x78] sm:$0xff]
        %v3444 = vld [vmem:[#allocation4 + $0x80] sm:$0xff]
        %v3445 = vld [vmem:[#allocation4 + $0x88] sm:$0xff]
        %v3446 = vld [vmem:[#allocation4 + $0x90] sm:$0xff]
        %v3447 = vld [vmem:[#allocation4 + $0x98] sm:$0xff]
        %v3448 = vld [vmem:[#allocation4 + $0xa0] sm:$0xff]
        %v3449 = vld [vmem:[#allocation4 + $0xa8] sm:$0xff]
        %v3450 = vld [vmem:[#allocation4 + $0xb0] sm:$0xff]
        %v3451 = vld [vmem:[#allocation4 + $0xb8] sm:$0xff]
        %v3452 = vld [vmem:[#allocation4 + $0xc0] sm:$0xff]
        %v3453 = vld [vmem:[#allocation4 + $0xc8] sm:$0xff]
        %v3454 = vld [vmem:[#allocation4 + $0xd0] sm:$0x33]
        %v3455 = vld [vmem:[#allocation4 + $0xd8] sm:$0x33]
        %v3456 = vld [vmem:[%s3] sm:$0xff]
        %v3457 = vld [vmem:[%s3 + $0x8] sm:$0xff]
        %3459 = vset.pattern.permute.xlu0 0
        %3460 = vperm.xlu0 %3459, %v3456
        %v3461 = vpop.permute.xlu0 %3460
        %3464 = vset.pattern.permute.xlu0 0
        %3465 = vperm.xlu0 %3464, %v3457
        %v3466 = vpop.permute.xlu0 %3465
        %v3470 = vunpack.c.l.b16 %v3426
        %v3471 = vunpack.c.l.b16 %v3427
        %v3472 = vpack.c.b16 %v3471, %v3470
        %v3501 = vunpack.c.l.b16 %v3428
        %v3502 = vunpack.c.h.b16 %v3428
        %v3503 = vunpack.c.l.b16 %v3429
        %v3504 = vunpack.c.h.b16 %v3429
        %v3505 = vunpack.c.l.b16 %v3430
        %v3506 = vunpack.c.h.b16 %v3430
        %v3507 = vunpack.c.l.b16 %v3431
        %v3508 = vunpack.c.h.b16 %v3431
        %v3509 = vunpack.c.l.b16 %v3432
        %v3510 = vunpack.c.h.b16 %v3432
        %v3511 = vunpack.c.l.b16 %v3433
        %v3512 = vunpack.c.h.b16 %v3433
        %v3513 = vunpack.c.l.b16 %v3434
        %v3514 = vunpack.c.h.b16 %v3434
        %v3515 = vunpack.c.l.b16 %v3435
        %v3516 = vunpack.c.h.b16 %v3435
        %v3517 = vunpack.c.l.b16 %v3436
        %v3518 = vunpack.c.h.b16 %v3436
        %v3519 = vunpack.c.l.b16 %v3437
        %v3520 = vunpack.c.h.b16 %v3437
        %v3521 = vunpack.c.l.b16 %v3438
        %v3522 = vunpack.c.h.b16 %v3438
        %v3523 = vunpack.c.l.b16 %v3439
        %v3524 = vunpack.c.h.b16 %v3439
        %v3525 = vunpack.c.l.b16 %v3440
        %v3526 = vunpack.c.h.b16 %v3440
        %v3527 = vunpack.c.l.b16 %v3441
        %v3528 = vunpack.c.h.b16 %v3441
        %v3529 = vunpack.c.l.b16 %v3442
        %v3530 = vunpack.c.h.b16 %v3442
        %v3531 = vunpack.c.l.b16 %v3443
        %v3532 = vunpack.c.h.b16 %v3443
        %v3533 = vunpack.c.l.b16 %v3444
        %v3534 = vunpack.c.h.b16 %v3444
        %v3535 = vunpack.c.l.b16 %v3445
        %v3536 = vunpack.c.h.b16 %v3445
        %v3537 = vunpack.c.l.b16 %v3446
        %v3538 = vunpack.c.h.b16 %v3446
        %v3539 = vunpack.c.l.b16 %v3447
        %v3540 = vunpack.c.h.b16 %v3447
        %v3541 = vunpack.c.l.b16 %v3448
        %v3542 = vunpack.c.h.b16 %v3448
        %v3543 = vunpack.c.l.b16 %v3449
        %v3544 = vunpack.c.h.b16 %v3449
        %v3545 = vunpack.c.l.b16 %v3450
        %v3546 = vunpack.c.h.b16 %v3450
        %v3547 = vunpack.c.l.b16 %v3451
        %v3548 = vunpack.c.h.b16 %v3451
        %v3549 = vunpack.c.l.b16 %v3452
        %v3550 = vunpack.c.h.b16 %v3452
        %v3551 = vunpack.c.l.b16 %v3453
        %v3552 = vunpack.c.h.b16 %v3453
        %v3553 = vunpack.c.l.b16 %v3454
        %v3554 = vunpack.c.h.b16 %v3454
        %v3555 = vunpack.c.l.b16 %v3455
        %v3556 = vunpack.c.h.b16 %v3455
        %v3557 = vpack.c.b16 %v3505, %v3501
        %v3558 = vpack.c.b16 %v3506, %v3502
        %v3559 = vpack.c.b16 %v3507, %v3503
        %v3560 = vpack.c.b16 %v3508, %v3504
        %v3561 = vpack.c.b16 %v3513, %v3509
        %v3562 = vpack.c.b16 %v3514, %v3510
        %v3563 = vpack.c.b16 %v3515, %v3511
        %v3564 = vpack.c.b16 %v3516, %v3512
        %v3565 = vpack.c.b16 %v3521, %v3517
        %v3566 = vpack.c.b16 %v3522, %v3518
        %v3567 = vpack.c.b16 %v3523, %v3519
        %v3568 = vpack.c.b16 %v3524, %v3520
        %v3569 = vpack.c.b16 %v3529, %v3525
        %v3570 = vpack.c.b16 %v3530, %v3526
        %v3571 = vpack.c.b16 %v3531, %v3527
        %v3572 = vpack.c.b16 %v3532, %v3528
        %v3573 = vpack.c.b16 %v3537, %v3533
        %v3574 = vpack.c.b16 %v3538, %v3534
        %v3575 = vpack.c.b16 %v3539, %v3535
        %v3576 = vpack.c.b16 %v3540, %v3536
        %v3577 = vpack.c.b16 %v3545, %v3541
        %v3578 = vpack.c.b16 %v3546, %v3542
        %v3579 = vpack.c.b16 %v3547, %v3543
        %v3580 = vpack.c.b16 %v3548, %v3544
        %v3581 = vpack.c.b16 %v3553, %v3549
        %v3582 = vpack.c.b16 %v3554, %v3550
        %v3583 = vpack.c.b16 %v3555, %v3551
        %v3584 = vpack.c.b16 %v3556, %v3552
        %vm3609 = vcmask 883712
        %v3611 = vsel %vm3609, %v3472, 0
        %vm3613 = vcmask 1045504
        %v3615 = vsel %vm3613, %v3581, 0
        %v3618 = vsel %vm3613, %v3582, 0
        %v3621 = vsel %vm3613, %v3583, 0
        %v3624 = vsel %vm3613, %v3584, 0
        %3626 = vmatpush.bf16.msra.mxu0 0
        %3627 = vmatpush.bf16.msra.mxu0 %v3615
        %3628 = vmatpush.bf16.msra.mxu0 %v3577
        %3629 = vmatpush.bf16.msra.mxu0 %v3573
        %3630 = vmatpush.bf16.msra.mxu0 %v3569
        %3631 = vmatpush.bf16.msra.mxu0 %v3565
        %3632 = vmatpush.bf16.msra.mxu0 %v3561
        %3633 = vmatpush.bf16.msra.mxu0 %v3557
        %3634 = vmatmul.bf16.gmra.mxu0 %v3611
        %v3635 = vpop.f32.mrf.mxu0
        %v3636 = vadd.f32 %v3461, %v3635
        %v3637 = vpop.f32.mrf.mxu0
        %v3638 = vadd.f32 %v3466, %v3637
        %3639 = vdwg.mxu0
        %3640 = vmatpush.bf16.msra.mxu0 0
        %3641 = vmatpush.bf16.msra.mxu0 %v3618
        %3642 = vmatpush.bf16.msra.mxu0 %v3578
        %3643 = vmatpush.bf16.msra.mxu0 %v3574
        %3644 = vmatpush.bf16.msra.mxu0 %v3570
        %3645 = vmatpush.bf16.msra.mxu0 %v3566
        %3646 = vmatpush.bf16.msra.mxu0 %v3562
        %3647 = vmatpush.bf16.msra.mxu0 %v3558
        %3648 = vmatmul.bf16.gmra.mxu0 %v3611
        %v3649 = vpop.f32.mrf.mxu0
        %v3650 = vadd.f32 %v3461, %v3649
        %v3651 = vpop.f32.mrf.mxu0
        %v3652 = vadd.f32 %v3466, %v3651
        %3653 = vdwg.mxu0
        %3654 = vmatpush.bf16.msra.mxu0 0
        %3655 = vmatpush.bf16.msra.mxu0 %v3621
        %3656 = vmatpush.bf16.msra.mxu0 %v3579
        %3657 = vmatpush.bf16.msra.mxu0 %v3575
        %3658 = vmatpush.bf16.msra.mxu0 %v3571
        %3659 = vmatpush.bf16.msra.mxu0 %v3567
        %3660 = vmatpush.bf16.msra.mxu0 %v3563
        %3661 = vmatpush.bf16.msra.mxu0 %v3559
        %3662 = vmatmul.bf16.gmra.mxu0 %v3611
        %v3663 = vpop.f32.mrf.mxu0
        %v3664 = vadd.f32 %v3461, %v3663
        %v3665 = vpop.f32.mrf.mxu0
        %v3666 = vadd.f32 %v3466, %v3665
        %3667 = vdwg.mxu0
        %3668 = vmatpush.bf16.msra.mxu0 0
        %3669 = vmatpush.bf16.msra.mxu0 %v3624
        %3670 = vmatpush.bf16.msra.mxu0 %v3580
        %3671 = vmatpush.bf16.msra.mxu0 %v3576
        %3672 = vmatpush.bf16.msra.mxu0 %v3572
        %3673 = vmatpush.bf16.msra.mxu0 %v3568
        %3674 = vmatpush.bf16.msra.mxu0 %v3564
        %3675 = vmatpush.bf16.msra.mxu0 %v3560
        %3676 = vmatmul.bf16.gmra.mxu0 %v3611
        %v3677 = vpop.f32.mrf.mxu0
        %v3678 = vadd.f32 %v3461, %v3677
        %v3679 = vpop.f32.mrf.mxu0
        %v3680 = vadd.f32 %v3466, %v3679
        %3681 = vdwg.mxu0
        %v3682 = vld [vmem:[%s4] sm:$0xff]
        %v3683 = vld [vmem:[%s5] sm:$0xff]
        %v3684 = vadd.f32 %v3636, %v3650
        %v3685 = vadd.f32 %v3684, %v3664
        %v3686 = vadd.f32 %v3685, %v3678
        %3687 = vadd.xlane.f32.xlu0 %v3686
        %v3688 = vpop.xlane.xlu0 %3687
        %v3689 = vrcp.pop 512.0
        %v3690 = vmul.f32 512.0, %v3689
        %v3691 = vsub.f32 1.0, %v3690
        %v3692 = vmul.f32 %v3689, %v3691
        %v3693 = vadd.f32 %v3689, %v3692
        %vm3694 = vweird.f32 %v3689
        %v3695 = vsel %vm3694, %v3689, %v3693
        %v3696 = vmul.f32 %v3688, %v3695
        %v3697 = vsub.f32 %v3636, %v3696
        %v3698 = vsub.f32 %v3650, %v3696
        %v3699 = vsub.f32 %v3664, %v3696
        %v3700 = vsub.f32 %v3678, %v3696
        %v3701 = vmul.f32 %v3697, %v3697
        %v3702 = vmul.f32 %v3698, %v3698
        %v3703 = vmul.f32 %v3699, %v3699
        %v3704 = vmul.f32 %v3700, %v3700
        %v3705 = vadd.f32 %v3701, %v3702
        %v3706 = vadd.f32 %v3705, %v3703
        %v3707 = vadd.f32 %v3706, %v3704
        %3708 = vadd.xlane.f32.xlu0 %v3707
        %v3709 = vpop.xlane.xlu0 %3708
        %v3710 = vmul.f32 %v3709, %v3695
        %v3711 = vadd.f32 %v3710, 1e-05
        %v3712 = vrsqrt.pop %v3711
        %v3713 = vmul.f32 %v3712, %v3711
        %v3714 = vmul.f32 %v3713, %v3712
        %v3715 = vmul.f32 0.5, %v3714
        %v3716 = vsub.f32 1.5, %v3715
        %v3717 = vmul.f32 %v3712, %v3716
        %vm3718 = vweird.f32 %v3711
        %vm3719 = vweird.f32 %v3712
        %vm3720 = vmor %vm3718, %vm3719
        %v3721 = vsel %vm3720, %v3712, %v3717
        %v3722 = vmul.f32 %v3697, %v3721
        %v3723 = vmul.f32 %v3698, %v3721
        %v3724 = vmul.f32 %v3699, %v3721
        %v3725 = vmul.f32 %v3700, %v3721
        %3727 = vset.pattern.permute.xlu0 0
        %3728 = vperm.xlu0 %3727, %v3682
        %v3729 = vpop.permute.xlu0 %3728
        %v3731 = vmul.f32 %v3722, %v3729
        %v3732 = vmul.f32 %v3723, %v3729
        %v3733 = vmul.f32 %v3724, %v3729
        %v3734 = vmul.f32 %v3725, %v3729
        %3736 = vset.pattern.permute.xlu0 0
        %3737 = vperm.xlu0 %3736, %v3683
        %v3738 = vpop.permute.xlu0 %3737
        %v3740 = vadd.f32 %v3731, %v3738
        %v3741 = vadd.f32 %v3732, %v3738
        %v3742 = vadd.f32 %v3733, %v3738
        %v3743 = vadd.f32 %v3734, %v3738
        %vm3744 = vcmp.ge.f32.partialorder %v3740, 0.0
        %vm3745 = vcmp.ge.f32.partialorder %v3741, 0.0
        %vm3746 = vcmp.ge.f32.partialorder %v3742, 0.0
        %vm3747 = vcmp.ge.f32.partialorder %v3743, 0.0
        %v3748 = vmul.f32 %v3740, 0.01
        %v3749 = vmul.f32 %v3741, 0.01
        %v3750 = vmul.f32 %v3742, 0.01
        %v3751 = vmul.f32 %v3743, 0.01
        %v3752 = vsel %vm3744, %v3740, %v3748
        %v3753 = vsel %vm3745, %v3741, %v3749
        %v3754 = vsel %vm3746, %v3742, %v3750
        %v3755 = vsel %vm3747, %v3743, %v3751
        %v3756 = vpack.c.bf16 %v3753, %v3752
        %v3757 = vpack.c.bf16 %v3755, %v3754
        %3758 = vst [vmem:[#allocation3 + $0x4] sm:$0xff] %v3756
        %3759 = vst [vmem:[#allocation3 + $0xc] sm:$0xff] %v3757
        %v3760 = vld [vmem:[#allocation3] sm:$0xff]
        %v3761 = vld [vmem:[#allocation3 + $0x8] sm:$0xff]
        %v3762 = vld [vmem:[#allocation3 + $0x10] sm:$0xf]
        %v3763 = vld [vmem:[#allocation9] ss:$8 sm:$0xf]
        %v3765 = vperm.slane %v3763, 0
        %v3766 = vperm.slane %v3763, 1
        %v3767 = vperm.slane %v3763, 2
        %v3768 = vperm.slane %v3763, 3
        %v3773 = vpack.c.bf16 %v3766, %v3765
        %v3774 = vpack.c.bf16 %v3768, %v3767
        %v3777 = vunpack.c.l.b16 %v3773
        %v3778 = vunpack.c.h.b16 %v3773
        %v3779 = vunpack.c.l.b16 %v3774
        %v3780 = vunpack.c.h.b16 %v3774
        %v3781 = vpack.c.b16 %v3777, %v3777
        %v3782 = vpack.c.b16 %v3778, %v3778
        %v3783 = vpack.c.b16 %v3779, %v3779
        %v3784 = vpack.c.b16 %v3780, %v3780
        %v3786 = vpack.i.b16 %v3781, %v3781
        %v3788 = vperm.slane %v3786, 0
        %v3790 = vpack.i.b16 %v3782, %v3782
        %v3792 = vperm.slane %v3790, 0
        %v3794 = vpack.i.b16 %v3783, %v3783
        %v3796 = vperm.slane %v3794, 0
        %v3798 = vpack.i.b16 %v3784, %v3784
        %v3800 = vperm.slane %v3798, 0
        %v3801 = vunpack.c.l.bf16 %v3760
        %v3802 = vunpack.c.h.bf16 %v3760
        %v3803 = vunpack.c.l.bf16 %v3761
        %v3804 = vunpack.c.h.bf16 %v3761
        %v3805 = vunpack.c.l.bf16 %v3762
        %v3806 = vunpack.c.l.bf16 %v3788
        %v3807 = vunpack.c.l.bf16 %v3792
        %v3808 = vunpack.c.l.bf16 %v3796
        %v3809 = vunpack.c.l.bf16 %v3800
        %3814 = vrot.lane.b32.xlu0 %v3806, 55
        %v3815 = vpop.permute.xlu0 %3814
        %3816 = vrot.lane.b32.xlu0 %v3807, 55
        %v3817 = vpop.permute.xlu0 %3816
        %3818 = vrot.lane.b32.xlu0 %v3808, 55
        %v3819 = vpop.permute.xlu0 %3818
        %3820 = vrot.lane.b32.xlu0 %v3809, 55
        %v3821 = vpop.permute.xlu0 %3820
        %v3822 = vsel %vm495, %v3815, %v3817
        %v3823 = vsel %vm495, %v3817, %v3819
        %v3824 = vsel %vm495, %v3819, %v3821
        %v3830 = vmul.f32 %v3801, %v3815
        %v3831 = vmul.f32 %v3802, %v3822
        %v3832 = vmul.f32 %v3803, %v3823
        %v3833 = vmul.f32 %v3804, %v3824
        %v3834 = vmul.f32 %v3805, %v3821
        %v3835 = vpack.c.bf16 %v3831, %v3830
        %v3836 = vpack.c.bf16 %v3833, %v3832
        %v3837 = vpack.c.bf16 %v3834, %v3834
        %3841 = vrot.lane.b32.xlu0 %v3835, 73
        %v3842 = vpop.permute.xlu0 %3841
        %3843 = vrot.lane.b32.xlu0 %v3836, 73
        %v3844 = vpop.permute.xlu0 %3843
        %3845 = vrot.lane.b32.xlu0 %v3837, 73
        %v3846 = vpop.permute.xlu0 %3845
        %v3847 = vrot.slane %v3842, 4
        %v3848 = vrot.slane %v3844, 4
        %v3849 = vrot.slane %v3846, 4
        %v3850 = vsel %vm538, %v3847, %v3848
        %v3851 = vsel %vm540, %v3842, %v3850
        %v3852 = vsel %vm538, %v3848, %v3849
        %v3853 = vsel %vm540, %v3844, %v3852
        %3856 = vst [vmem:[#allocation5] sm:$0xff] %v3851
        %3857 = vst [vmem:[#allocation5 + $0x8] sm:$0xff] %v3853
        %v3858 = vld [vmem:[#allocation3] sm:$0xff]
        %v3859 = vld [vmem:[#allocation3 + $0x8] sm:$0xff]
        %v3860 = vld [vmem:[#allocation3 + $0x10] sm:$0xf]
        %v3861 = vld [vmem:[%s550] ss:$8 sm:$0xf]
        %v3863 = vperm.slane %v3861, 0
        %v3864 = vperm.slane %v3861, 1
        %v3865 = vperm.slane %v3861, 2
        %v3866 = vperm.slane %v3861, 3
        %v3871 = vpack.c.bf16 %v3864, %v3863
        %v3872 = vpack.c.bf16 %v3866, %v3865
        %v3875 = vunpack.c.l.b16 %v3871
        %v3876 = vunpack.c.h.b16 %v3871
        %v3877 = vunpack.c.l.b16 %v3872
        %v3878 = vunpack.c.h.b16 %v3872
        %v3879 = vpack.c.b16 %v3875, %v3875
        %v3880 = vpack.c.b16 %v3876, %v3876
        %v3881 = vpack.c.b16 %v3877, %v3877
        %v3882 = vpack.c.b16 %v3878, %v3878
        %v3884 = vpack.i.b16 %v3879, %v3879
        %v3886 = vperm.slane %v3884, 0
        %v3888 = vpack.i.b16 %v3880, %v3880
        %v3890 = vperm.slane %v3888, 0
        %v3892 = vpack.i.b16 %v3881, %v3881
        %v3894 = vperm.slane %v3892, 0
        %v3896 = vpack.i.b16 %v3882, %v3882
        %v3898 = vperm.slane %v3896, 0
        %v3899 = vunpack.c.l.bf16 %v3858
        %v3900 = vunpack.c.h.bf16 %v3858
        %v3901 = vunpack.c.l.bf16 %v3859
        %v3902 = vunpack.c.h.bf16 %v3859
        %v3903 = vunpack.c.l.bf16 %v3860
        %v3904 = vunpack.c.l.bf16 %v3886
        %v3905 = vunpack.c.l.bf16 %v3890
        %v3906 = vunpack.c.l.bf16 %v3894
        %v3907 = vunpack.c.l.bf16 %v3898
        %3912 = vrot.lane.b32.xlu0 %v3904, 56
        %v3913 = vpop.permute.xlu0 %3912
        %3914 = vrot.lane.b32.xlu0 %v3905, 56
        %v3915 = vpop.permute.xlu0 %3914
        %3916 = vrot.lane.b32.xlu0 %v3906, 56
        %v3917 = vpop.permute.xlu0 %3916
        %3918 = vrot.lane.b32.xlu0 %v3907, 56
        %v3919 = vpop.permute.xlu0 %3918
        %v3920 = vsel %vm610, %v3913, %v3915
        %v3921 = vsel %vm610, %v3915, %v3917
        %v3922 = vsel %vm610, %v3917, %v3919
        %v3928 = vmul.f32 %v3899, %v3913
        %v3929 = vmul.f32 %v3900, %v3920
        %v3930 = vmul.f32 %v3901, %v3921
        %v3931 = vmul.f32 %v3902, %v3922
        %v3932 = vmul.f32 %v3903, %v3919
        %v3933 = vpack.c.bf16 %v3929, %v3928
        %v3934 = vpack.c.bf16 %v3931, %v3930
        %v3935 = vpack.c.bf16 %v3932, %v3932
        %3939 = vrot.lane.b32.xlu0 %v3933, 72
        %v3940 = vpop.permute.xlu0 %3939
        %3941 = vrot.lane.b32.xlu0 %v3934, 72
        %v3942 = vpop.permute.xlu0 %3941
        %3943 = vrot.lane.b32.xlu0 %v3935, 72
        %v3944 = vpop.permute.xlu0 %3943
        %v3945 = vrot.slane %v3940, 4
        %v3946 = vrot.slane %v3942, 4
        %v3947 = vrot.slane %v3944, 4
        %v3948 = vsel %vm538, %v3945, %v3946
        %v3949 = vsel %vm657, %v3940, %v3948
        %v3950 = vsel %vm538, %v3946, %v3947
        %v3951 = vsel %vm657, %v3942, %v3950
        %3954 = vst [vmem:[#allocation5 + $0x10] sm:$0xff] %v3949
        %3955 = vst [vmem:[#allocation5 + $0x18] sm:$0xff] %v3951
        %v3956 = vld [vmem:[#allocation3] sm:$0xff]
        %v3957 = vld [vmem:[#allocation3 + $0x8] sm:$0xff]
        %v3958 = vld [vmem:[#allocation3 + $0x10] sm:$0xf]
        %v3959 = vld [vmem:[%s667] ss:$8 sm:$0xf]
        %v3961 = vperm.slane %v3959, 0
        %v3962 = vperm.slane %v3959, 1
        %v3963 = vperm.slane %v3959, 2
        %v3964 = vperm.slane %v3959, 3
        %v3969 = vpack.c.bf16 %v3962, %v3961
        %v3970 = vpack.c.bf16 %v3964, %v3963
        %v3973 = vunpack.c.l.b16 %v3969
        %v3974 = vunpack.c.h.b16 %v3969
        %v3975 = vunpack.c.l.b16 %v3970
        %v3976 = vunpack.c.h.b16 %v3970
        %v3977 = vpack.c.b16 %v3973, %v3973
        %v3978 = vpack.c.b16 %v3974, %v3974
        %v3979 = vpack.c.b16 %v3975, %v3975
        %v3980 = vpack.c.b16 %v3976, %v3976
        %v3982 = vpack.i.b16 %v3977, %v3977
        %v3984 = vperm.slane %v3982, 0
        %v3986 = vpack.i.b16 %v3978, %v3978
        %v3988 = vperm.slane %v3986, 0
        %v3990 = vpack.i.b16 %v3979, %v3979
        %v3992 = vperm.slane %v3990, 0
        %v3994 = vpack.i.b16 %v3980, %v3980
        %v3996 = vperm.slane %v3994, 0
        %v3997 = vunpack.c.l.bf16 %v3956
        %v3998 = vunpack.c.h.bf16 %v3956
        %v3999 = vunpack.c.l.bf16 %v3957
        %v4000 = vunpack.c.h.bf16 %v3957
        %v4001 = vunpack.c.l.bf16 %v3958
        %v4002 = vunpack.c.l.bf16 %v3984
        %v4003 = vunpack.c.l.bf16 %v3988
        %v4004 = vunpack.c.l.bf16 %v3992
        %v4005 = vunpack.c.l.bf16 %v3996
        %4010 = vrot.lane.b32.xlu0 %v4002, 57
        %v4011 = vpop.permute.xlu0 %4010
        %4012 = vrot.lane.b32.xlu0 %v4003, 57
        %v4013 = vpop.permute.xlu0 %4012
        %4014 = vrot.lane.b32.xlu0 %v4004, 57
        %v4015 = vpop.permute.xlu0 %4014
        %4016 = vrot.lane.b32.xlu0 %v4005, 57
        %v4017 = vpop.permute.xlu0 %4016
        %v4018 = vsel %vm727, %v4011, %v4013
        %v4019 = vsel %vm727, %v4013, %v4015
        %v4020 = vsel %vm727, %v4015, %v4017
        %v4026 = vmul.f32 %v3997, %v4011
        %v4027 = vmul.f32 %v3998, %v4018
        %v4028 = vmul.f32 %v3999, %v4019
        %v4029 = vmul.f32 %v4000, %v4020
        %v4030 = vmul.f32 %v4001, %v4017
        %v4031 = vpack.c.bf16 %v4027, %v4026
        %v4032 = vpack.c.bf16 %v4029, %v4028
        %v4033 = vpack.c.bf16 %v4030, %v4030
        %4037 = vrot.lane.b32.xlu0 %v4031, 71
        %v4038 = vpop.permute.xlu0 %4037
        %4039 = vrot.lane.b32.xlu0 %v4032, 71
        %v4040 = vpop.permute.xlu0 %4039
        %4041 = vrot.lane.b32.xlu0 %v4033, 71
        %v4042 = vpop.permute.xlu0 %4041
        %v4043 = vrot.slane %v4038, 4
        %v4044 = vrot.slane %v4040, 4
        %v4045 = vrot.slane %v4042, 4
        %v4046 = vsel %vm538, %v4043, %v4044
        %v4047 = vsel %vm771, %v4038, %v4046
        %v4048 = vsel %vm538, %v4044, %v4045
        %v4049 = vsel %vm771, %v4040, %v4048
        %4052 = vst [vmem:[#allocation5 + $0x20] sm:$0xff] %v4047
        %4053 = vst [vmem:[#allocation5 + $0x28] sm:$0xff] %v4049
        %v4054 = vld [vmem:[#allocation3] sm:$0xff]
        %v4055 = vld [vmem:[#allocation3 + $0x8] sm:$0xff]
        %v4056 = vld [vmem:[#allocation3 + $0x10] sm:$0xf]
        %v4057 = vld [vmem:[%s781] ss:$8 sm:$0xf]
        %v4059 = vperm.slane %v4057, 0
        %v4060 = vperm.slane %v4057, 1
        %v4061 = vperm.slane %v4057, 2
        %v4062 = vperm.slane %v4057, 3
        %v4067 = vpack.c.bf16 %v4060, %v4059
        %v4068 = vpack.c.bf16 %v4062, %v4061
        %v4071 = vunpack.c.l.b16 %v4067
        %v4072 = vunpack.c.h.b16 %v4067
        %v4073 = vunpack.c.l.b16 %v4068
        %v4074 = vunpack.c.h.b16 %v4068
        %v4075 = vpack.c.b16 %v4071, %v4071
        %v4076 = vpack.c.b16 %v4072, %v4072
        %v4077 = vpack.c.b16 %v4073, %v4073
        %v4078 = vpack.c.b16 %v4074, %v4074
        %v4080 = vpack.i.b16 %v4075, %v4075
        %v4082 = vperm.slane %v4080, 0
        %v4084 = vpack.i.b16 %v4076, %v4076
        %v4086 = vperm.slane %v4084, 0
        %v4088 = vpack.i.b16 %v4077, %v4077
        %v4090 = vperm.slane %v4088, 0
        %v4092 = vpack.i.b16 %v4078, %v4078
        %v4094 = vperm.slane %v4092, 0
        %v4095 = vunpack.c.l.bf16 %v4054
        %v4096 = vunpack.c.h.bf16 %v4054
        %v4097 = vunpack.c.l.bf16 %v4055
        %v4098 = vunpack.c.h.bf16 %v4055
        %v4099 = vunpack.c.l.bf16 %v4056
        %v4100 = vunpack.c.l.bf16 %v4082
        %v4101 = vunpack.c.l.bf16 %v4086
        %v4102 = vunpack.c.l.bf16 %v4090
        %v4103 = vunpack.c.l.bf16 %v4094
        %4108 = vrot.lane.b32.xlu0 %v4100, 63
        %v4109 = vpop.permute.xlu0 %4108
        %4110 = vrot.lane.b32.xlu0 %v4101, 63
        %v4111 = vpop.permute.xlu0 %4110
        %4112 = vrot.lane.b32.xlu0 %v4102, 63
        %v4113 = vpop.permute.xlu0 %4112
        %4114 = vrot.lane.b32.xlu0 %v4103, 63
        %v4115 = vpop.permute.xlu0 %4114
        %v4116 = vsel %vm841, %v4109, %v4111
        %v4117 = vsel %vm841, %v4111, %v4113
        %v4118 = vsel %vm841, %v4113, %v4115
        %v4124 = vmul.f32 %v4095, %v4109
        %v4125 = vmul.f32 %v4096, %v4116
        %v4126 = vmul.f32 %v4097, %v4117
        %v4127 = vmul.f32 %v4098, %v4118
        %v4128 = vmul.f32 %v4099, %v4115
        %v4129 = vpack.c.bf16 %v4125, %v4124
        %v4130 = vpack.c.bf16 %v4127, %v4126
        %v4131 = vpack.c.bf16 %v4128, %v4128
        %4135 = vrot.lane.b32.xlu0 %v4129, 65
        %v4136 = vpop.permute.xlu0 %4135
        %4137 = vrot.lane.b32.xlu0 %v4130, 65
        %v4138 = vpop.permute.xlu0 %4137
        %4139 = vrot.lane.b32.xlu0 %v4131, 65
        %v4140 = vpop.permute.xlu0 %4139
        %v4141 = vrot.slane %v4136, 4
        %v4142 = vrot.slane %v4138, 4
        %v4143 = vrot.slane %v4140, 4
        %v4144 = vsel %vm538, %v4141, %v4142
        %v4145 = vsel %vm888, %v4136, %v4144
        %v4146 = vsel %vm538, %v4142, %v4143
        %v4147 = vsel %vm888, %v4138, %v4146
        %4150 = vst [vmem:[#allocation5 + $0x30] sm:$0xff] %v4145
        %4151 = vst [vmem:[#allocation5 + $0x38] sm:$0xff] %v4147
        %v4152 = vld [vmem:[#allocation3] sm:$0xff]
        %v4153 = vld [vmem:[#allocation3 + $0x8] sm:$0xff]
        %v4154 = vld [vmem:[#allocation3 + $0x10] sm:$0xf]
        %v4155 = vld [vmem:[%s898] ss:$8 sm:$0xf]
        %v4157 = vperm.slane %v4155, 0
        %v4158 = vperm.slane %v4155, 1
        %v4159 = vperm.slane %v4155, 2
        %v4160 = vperm.slane %v4155, 3
        %v4165 = vpack.c.bf16 %v4158, %v4157
        %v4166 = vpack.c.bf16 %v4160, %v4159
        %v4169 = vunpack.c.l.b16 %v4165
        %v4170 = vunpack.c.h.b16 %v4165
        %v4171 = vunpack.c.l.b16 %v4166
        %v4172 = vunpack.c.h.b16 %v4166
        %v4173 = vpack.c.b16 %v4169, %v4169
        %v4174 = vpack.c.b16 %v4170, %v4170
        %v4175 = vpack.c.b16 %v4171, %v4171
        %v4176 = vpack.c.b16 %v4172, %v4172
        %v4178 = vpack.i.b16 %v4173, %v4173
        %v4180 = vperm.slane %v4178, 0
        %v4182 = vpack.i.b16 %v4174, %v4174
        %v4184 = vperm.slane %v4182, 0
        %v4186 = vpack.i.b16 %v4175, %v4175
        %v4188 = vperm.slane %v4186, 0
        %v4190 = vpack.i.b16 %v4176, %v4176
        %v4192 = vperm.slane %v4190, 0
        %v4193 = vunpack.c.l.bf16 %v4152
        %v4194 = vunpack.c.h.bf16 %v4152
        %v4195 = vunpack.c.l.bf16 %v4153
        %v4196 = vunpack.c.h.bf16 %v4153
        %v4197 = vunpack.c.l.bf16 %v4154
        %v4198 = vunpack.c.l.bf16 %v4180
        %v4199 = vunpack.c.l.bf16 %v4184
        %v4200 = vunpack.c.l.bf16 %v4188
        %v4201 = vunpack.c.l.bf16 %v4192
        %4206 = vrot.lane.b32.xlu0 %v4198, 64
        %v4207 = vpop.permute.xlu0 %4206
        %4208 = vrot.lane.b32.xlu0 %v4199, 64
        %v4209 = vpop.permute.xlu0 %4208
        %4210 = vrot.lane.b32.xlu0 %v4200, 64
        %v4211 = vpop.permute.xlu0 %4210
        %4212 = vrot.lane.b32.xlu0 %v4201, 64
        %v4213 = vpop.permute.xlu0 %4212
        %v4214 = vsel %vm958, %v4207, %v4209
        %v4215 = vsel %vm958, %v4209, %v4211
        %v4216 = vsel %vm958, %v4211, %v4213
        %v4222 = vmul.f32 %v4193, %v4207
        %v4223 = vmul.f32 %v4194, %v4214
        %v4224 = vmul.f32 %v4195, %v4215
        %v4225 = vmul.f32 %v4196, %v4216
        %v4226 = vmul.f32 %v4197, %v4213
        %v4227 = vpack.c.bf16 %v4223, %v4222
        %v4228 = vpack.c.bf16 %v4225, %v4224
        %v4229 = vpack.c.bf16 %v4226, %v4226
        %4233 = vrot.lane.b32.xlu0 %v4227, 64
        %v4234 = vpop.permute.xlu0 %4233
        %4235 = vrot.lane.b32.xlu0 %v4228, 64
        %v4236 = vpop.permute.xlu0 %4235
        %4237 = vrot.lane.b32.xlu0 %v4229, 64
        %v4238 = vpop.permute.xlu0 %4237
        %v4239 = vrot.slane %v4234, 4
        %v4240 = vrot.slane %v4236, 4
        %v4241 = vrot.slane %v4238, 4
        %v4242 = vsel %vm538, %v4239, %v4240
        %v4243 = vsel %vm1002, %v4234, %v4242
        %v4244 = vsel %vm538, %v4240, %v4241
        %v4245 = vsel %vm1002, %v4236, %v4244
        %4248 = vst [vmem:[#allocation5 + $0x40] sm:$0xff] %v4243
        %4249 = vst [vmem:[#allocation5 + $0x48] sm:$0xff] %v4245
        %v4250 = vld [vmem:[#allocation3] sm:$0xff]
        %v4251 = vld [vmem:[#allocation3 + $0x8] sm:$0xff]
        %v4252 = vld [vmem:[#allocation3 + $0x10] sm:$0xf]
        %v4253 = vld [vmem:[%s1012] ss:$8 sm:$0xf]
        %v4255 = vperm.slane %v4253, 0
        %v4256 = vperm.slane %v4253, 1
        %v4257 = vperm.slane %v4253, 2
        %v4258 = vperm.slane %v4253, 3
        %v4263 = vpack.c.bf16 %v4256, %v4255
        %v4264 = vpack.c.bf16 %v4258, %v4257
        %v4267 = vunpack.c.l.b16 %v4263
        %v4268 = vunpack.c.h.b16 %v4263
        %v4269 = vunpack.c.l.b16 %v4264
        %v4270 = vunpack.c.h.b16 %v4264
        %v4271 = vpack.c.b16 %v4267, %v4267
        %v4272 = vpack.c.b16 %v4268, %v4268
        %v4273 = vpack.c.b16 %v4269, %v4269
        %v4274 = vpack.c.b16 %v4270, %v4270
        %v4276 = vpack.i.b16 %v4271, %v4271
        %v4278 = vperm.slane %v4276, 0
        %v4280 = vpack.i.b16 %v4272, %v4272
        %v4282 = vperm.slane %v4280, 0
        %v4284 = vpack.i.b16 %v4273, %v4273
        %v4286 = vperm.slane %v4284, 0
        %v4288 = vpack.i.b16 %v4274, %v4274
        %v4290 = vperm.slane %v4288, 0
        %v4291 = vunpack.c.l.bf16 %v4250
        %v4292 = vunpack.c.h.bf16 %v4250
        %v4293 = vunpack.c.l.bf16 %v4251
        %v4294 = vunpack.c.h.bf16 %v4251
        %v4295 = vunpack.c.l.bf16 %v4252
        %v4296 = vunpack.c.l.bf16 %v4278
        %v4297 = vunpack.c.l.bf16 %v4282
        %v4298 = vunpack.c.l.bf16 %v4286
        %v4299 = vunpack.c.l.bf16 %v4290
        %4304 = vrot.lane.b32.xlu0 %v4296, 65
        %v4305 = vpop.permute.xlu0 %4304
        %4306 = vrot.lane.b32.xlu0 %v4297, 65
        %v4307 = vpop.permute.xlu0 %4306
        %4308 = vrot.lane.b32.xlu0 %v4298, 65
        %v4309 = vpop.permute.xlu0 %4308
        %4310 = vrot.lane.b32.xlu0 %v4299, 65
        %v4311 = vpop.permute.xlu0 %4310
        %v4312 = vsel %vm1072, %v4305, %v4307
        %v4313 = vsel %vm1072, %v4307, %v4309
        %v4314 = vsel %vm1072, %v4309, %v4311
        %v4320 = vmul.f32 %v4291, %v4305
        %v4321 = vmul.f32 %v4292, %v4312
        %v4322 = vmul.f32 %v4293, %v4313
        %v4323 = vmul.f32 %v4294, %v4314
        %v4324 = vmul.f32 %v4295, %v4311
        %v4325 = vpack.c.bf16 %v4321, %v4320
        %v4326 = vpack.c.bf16 %v4323, %v4322
        %v4327 = vpack.c.bf16 %v4324, %v4324
        %4331 = vrot.lane.b32.xlu0 %v4325, 63
        %v4332 = vpop.permute.xlu0 %4331
        %4333 = vrot.lane.b32.xlu0 %v4326, 63
        %v4334 = vpop.permute.xlu0 %4333
        %4335 = vrot.lane.b32.xlu0 %v4327, 63
        %v4336 = vpop.permute.xlu0 %4335
        %v4337 = vrot.slane %v4332, 4
        %v4338 = vrot.slane %v4334, 4
        %v4339 = vrot.slane %v4336, 4
        %v4340 = vsel %vm538, %v4337, %v4338
        %v4341 = vsel %vm1119, %v4332, %v4340
        %v4342 = vsel %vm538, %v4338, %v4339
        %v4343 = vsel %vm1119, %v4334, %v4342
        %4346 = vst [vmem:[#allocation5 + $0x50] sm:$0xff] %v4341
        %4347 = vst [vmem:[#allocation5 + $0x58] sm:$0xff] %v4343
        %v4348 = vld [vmem:[#allocation3] sm:$0xff]
        %v4349 = vld [vmem:[#allocation3 + $0x8] sm:$0xff]
        %v4350 = vld [vmem:[#allocation3 + $0x10] sm:$0xf]
        %v4351 = vld [vmem:[%s1129] ss:$8 sm:$0xf]
        %v4353 = vperm.slane %v4351, 0
        %v4354 = vperm.slane %v4351, 1
        %v4355 = vperm.slane %v4351, 2
        %v4356 = vperm.slane %v4351, 3
        %v4361 = vpack.c.bf16 %v4354, %v4353
        %v4362 = vpack.c.bf16 %v4356, %v4355
        %v4365 = vunpack.c.l.b16 %v4361
        %v4366 = vunpack.c.h.b16 %v4361
        %v4367 = vunpack.c.l.b16 %v4362
        %v4368 = vunpack.c.h.b16 %v4362
        %v4369 = vpack.c.b16 %v4365, %v4365
        %v4370 = vpack.c.b16 %v4366, %v4366
        %v4371 = vpack.c.b16 %v4367, %v4367
        %v4372 = vpack.c.b16 %v4368, %v4368
        %v4374 = vpack.i.b16 %v4369, %v4369
        %v4376 = vperm.slane %v4374, 0
        %v4378 = vpack.i.b16 %v4370, %v4370
        %v4380 = vperm.slane %v4378, 0
        %v4382 = vpack.i.b16 %v4371, %v4371
        %v4384 = vperm.slane %v4382, 0
        %v4386 = vpack.i.b16 %v4372, %v4372
        %v4388 = vperm.slane %v4386, 0
        %v4389 = vunpack.c.l.bf16 %v4348
        %v4390 = vunpack.c.h.bf16 %v4348
        %v4391 = vunpack.c.l.bf16 %v4349
        %v4392 = vunpack.c.h.bf16 %v4349
        %v4393 = vunpack.c.l.bf16 %v4350
        %v4394 = vunpack.c.l.bf16 %v4376
        %v4395 = vunpack.c.l.bf16 %v4380
        %v4396 = vunpack.c.l.bf16 %v4384
        %v4397 = vunpack.c.l.bf16 %v4388
        %4402 = vrot.lane.b32.xlu0 %v4394, 71
        %v4403 = vpop.permute.xlu0 %4402
        %4404 = vrot.lane.b32.xlu0 %v4395, 71
        %v4405 = vpop.permute.xlu0 %4404
        %4406 = vrot.lane.b32.xlu0 %v4396, 71
        %v4407 = vpop.permute.xlu0 %4406
        %4408 = vrot.lane.b32.xlu0 %v4397, 71
        %v4409 = vpop.permute.xlu0 %4408
        %v4410 = vsel %vm1189, %v4403, %v4405
        %v4411 = vsel %vm1189, %v4405, %v4407
        %v4412 = vsel %vm1189, %v4407, %v4409
        %v4418 = vmul.f32 %v4389, %v4403
        %v4419 = vmul.f32 %v4390, %v4410
        %v4420 = vmul.f32 %v4391, %v4411
        %v4421 = vmul.f32 %v4392, %v4412
        %v4422 = vmul.f32 %v4393, %v4409
        %v4423 = vpack.c.bf16 %v4419, %v4418
        %v4424 = vpack.c.bf16 %v4421, %v4420
        %v4425 = vpack.c.bf16 %v4422, %v4422
        %4429 = vrot.lane.b32.xlu0 %v4423, 57
        %v4430 = vpop.permute.xlu0 %4429
        %4431 = vrot.lane.b32.xlu0 %v4424, 57
        %v4432 = vpop.permute.xlu0 %4431
        %4433 = vrot.lane.b32.xlu0 %v4425, 57
        %v4434 = vpop.permute.xlu0 %4433
        %v4435 = vrot.slane %v4430, 4
        %v4436 = vrot.slane %v4432, 4
        %v4437 = vrot.slane %v4434, 4
        %v4438 = vsel %vm538, %v4435, %v4436
        %v4439 = vsel %vm1233, %v4430, %v4438
        %v4440 = vsel %vm538, %v4436, %v4437
        %v4441 = vsel %vm1233, %v4432, %v4440
        %4444 = vst [vmem:[#allocation5 + $0x60] sm:$0xff] %v4439
        %4445 = vst [vmem:[#allocation5 + $0x68] sm:$0xff] %v4441
        %v4446 = vld [vmem:[#allocation3] sm:$0xff]
        %v4447 = vld [vmem:[#allocation3 + $0x8] sm:$0xff]
        %v4448 = vld [vmem:[#allocation3 + $0x10] sm:$0xf]
        %v4449 = vld [vmem:[%s1243] ss:$8 sm:$0xf]
        %v4451 = vperm.slane %v4449, 0
        %v4452 = vperm.slane %v4449, 1
        %v4453 = vperm.slane %v4449, 2
        %v4454 = vperm.slane %v4449, 3
        %v4459 = vpack.c.bf16 %v4452, %v4451
        %v4460 = vpack.c.bf16 %v4454, %v4453
        %v4463 = vunpack.c.l.b16 %v4459
        %v4464 = vunpack.c.h.b16 %v4459
        %v4465 = vunpack.c.l.b16 %v4460
        %v4466 = vunpack.c.h.b16 %v4460
        %v4467 = vpack.c.b16 %v4463, %v4463
        %v4468 = vpack.c.b16 %v4464, %v4464
        %v4469 = vpack.c.b16 %v4465, %v4465
        %v4470 = vpack.c.b16 %v4466, %v4466
        %v4472 = vpack.i.b16 %v4467, %v4467
        %v4474 = vperm.slane %v4472, 0
        %v4476 = vpack.i.b16 %v4468, %v4468
        %v4478 = vperm.slane %v4476, 0
        %v4480 = vpack.i.b16 %v4469, %v4469
        %v4482 = vperm.slane %v4480, 0
        %v4484 = vpack.i.b16 %v4470, %v4470
        %v4486 = vperm.slane %v4484, 0
        %v4487 = vunpack.c.l.bf16 %v4446
        %v4488 = vunpack.c.h.bf16 %v4446
        %v4489 = vunpack.c.l.bf16 %v4447
        %v4490 = vunpack.c.h.bf16 %v4447
        %v4491 = vunpack.c.l.bf16 %v4448
        %v4492 = vunpack.c.l.bf16 %v4474
        %v4493 = vunpack.c.l.bf16 %v4478
        %v4494 = vunpack.c.l.bf16 %v4482
        %v4495 = vunpack.c.l.bf16 %v4486
        %4500 = vrot.lane.b32.xlu0 %v4492, 72
        %v4501 = vpop.permute.xlu0 %4500
        %4502 = vrot.lane.b32.xlu0 %v4493, 72
        %v4503 = vpop.permute.xlu0 %4502
        %4504 = vrot.lane.b32.xlu0 %v4494, 72
        %v4505 = vpop.permute.xlu0 %4504
        %4506 = vrot.lane.b32.xlu0 %v4495, 72
        %v4507 = vpop.permute.xlu0 %4506
        %v4508 = vsel %vm1303, %v4501, %v4503
        %v4509 = vsel %vm1303, %v4503, %v4505
        %v4510 = vsel %vm1303, %v4505, %v4507
        %v4516 = vmul.f32 %v4487, %v4501
        %v4517 = vmul.f32 %v4488, %v4508
        %v4518 = vmul.f32 %v4489, %v4509
        %v4519 = vmul.f32 %v4490, %v4510
        %v4520 = vmul.f32 %v4491, %v4507
        %v4521 = vpack.c.bf16 %v4517, %v4516
        %v4522 = vpack.c.bf16 %v4519, %v4518
        %v4523 = vpack.c.bf16 %v4520, %v4520
        %4527 = vrot.lane.b32.xlu0 %v4521, 56
        %v4528 = vpop.permute.xlu0 %4527
        %4529 = vrot.lane.b32.xlu0 %v4522, 56
        %v4530 = vpop.permute.xlu0 %4529
        %4531 = vrot.lane.b32.xlu0 %v4523, 56
        %v4532 = vpop.permute.xlu0 %4531
        %v4533 = vrot.slane %v4528, 4
        %v4534 = vrot.slane %v4530, 4
        %v4535 = vrot.slane %v4532, 4
        %v4536 = vsel %vm538, %v4533, %v4534
        %v4537 = vsel %vm1350, %v4528, %v4536
        %v4538 = vsel %vm538, %v4534, %v4535
        %v4539 = vsel %vm1350, %v4530, %v4538
        %4542 = vst [vmem:[#allocation5 + $0x70] sm:$0xff] %v4537
        %4543 = vst [vmem:[#allocation5 + $0x78] sm:$0xff] %v4539
        %v4544 = vld [vmem:[#allocation3] sm:$0xff]
        %v4545 = vld [vmem:[#allocation3 + $0x8] sm:$0xff]
        %v4546 = vld [vmem:[#allocation3 + $0x10] sm:$0xf]
        %v4547 = vld [vmem:[%s1360] ss:$8 sm:$0xf]
        %v4549 = vperm.slane %v4547, 0
        %v4550 = vperm.slane %v4547, 1
        %v4551 = vperm.slane %v4547, 2
        %v4552 = vperm.slane %v4547, 3
        %v4557 = vpack.c.bf16 %v4550, %v4549
        %v4558 = vpack.c.bf16 %v4552, %v4551
        %v4561 = vunpack.c.l.b16 %v4557
        %v4562 = vunpack.c.h.b16 %v4557
        %v4563 = vunpack.c.l.b16 %v4558
        %v4564 = vunpack.c.h.b16 %v4558
        %v4565 = vpack.c.b16 %v4561, %v4561
        %v4566 = vpack.c.b16 %v4562, %v4562
        %v4567 = vpack.c.b16 %v4563, %v4563
        %v4568 = vpack.c.b16 %v4564, %v4564
        %v4570 = vpack.i.b16 %v4565, %v4565
        %v4572 = vperm.slane %v4570, 0
        %v4574 = vpack.i.b16 %v4566, %v4566
        %v4576 = vperm.slane %v4574, 0
        %v4578 = vpack.i.b16 %v4567, %v4567
        %v4580 = vperm.slane %v4578, 0
        %v4582 = vpack.i.b16 %v4568, %v4568
        %v4584 = vperm.slane %v4582, 0
        %v4585 = vunpack.c.l.bf16 %v4544
        %v4586 = vunpack.c.h.bf16 %v4544
        %v4587 = vunpack.c.l.bf16 %v4545
        %v4588 = vunpack.c.h.bf16 %v4545
        %v4589 = vunpack.c.l.bf16 %v4546
        %v4590 = vunpack.c.l.bf16 %v4572
        %v4591 = vunpack.c.l.bf16 %v4576
        %v4592 = vunpack.c.l.bf16 %v4580
        %v4593 = vunpack.c.l.bf16 %v4584
        %4598 = vrot.lane.b32.xlu0 %v4590, 73
        %v4599 = vpop.permute.xlu0 %4598
        %4600 = vrot.lane.b32.xlu0 %v4591, 73
        %v4601 = vpop.permute.xlu0 %4600
        %4602 = vrot.lane.b32.xlu0 %v4592, 73
        %v4603 = vpop.permute.xlu0 %4602
        %4604 = vrot.lane.b32.xlu0 %v4593, 73
        %v4605 = vpop.permute.xlu0 %4604
        %v4606 = vsel %vm1420, %v4599, %v4601
        %v4607 = vsel %vm1420, %v4601, %v4603
        %v4608 = vsel %vm1420, %v4603, %v4605
        %v4614 = vmul.f32 %v4585, %v4599
        %v4615 = vmul.f32 %v4586, %v4606
        %v4616 = vmul.f32 %v4587, %v4607
        %v4617 = vmul.f32 %v4588, %v4608
        %v4618 = vmul.f32 %v4589, %v4605
        %v4619 = vpack.c.bf16 %v4615, %v4614
        %v4620 = vpack.c.bf16 %v4617, %v4616
        %v4621 = vpack.c.bf16 %v4618, %v4618
        %4625 = vrot.lane.b32.xlu0 %v4619, 55
        %v4626 = vpop.permute.xlu0 %4625
        %4627 = vrot.lane.b32.xlu0 %v4620, 55
        %v4628 = vpop.permute.xlu0 %4627
        %4629 = vrot.lane.b32.xlu0 %v4621, 55
        %v4630 = vpop.permute.xlu0 %4629
        %v4631 = vrot.slane %v4626, 4
        %v4632 = vrot.slane %v4628, 4
        %v4633 = vrot.slane %v4630, 4
        %v4634 = vsel %vm538, %v4631, %v4632
        %v4635 = vsel %vm1464, %v4626, %v4634
        %v4636 = vsel %vm538, %v4632, %v4633
        %v4637 = vsel %vm1464, %v4628, %v4636
        %4640 = vst [vmem:[#allocation5 + $0x80] sm:$0xff] %v4635
        %4641 = vst [vmem:[#allocation5 + $0x88] sm:$0xff] %v4637
        %v4642 = vld [vmem:[#allocation3] sm:$0xff]
        %v4643 = vld [vmem:[#allocation3 + $0x8] sm:$0xff]
        %v4644 = vld [vmem:[#allocation3 + $0x10] sm:$0xf]
        %v4645 = vld [vmem:[%s1474] ss:$8 sm:$0xf]
        %v4647 = vperm.slane %v4645, 0
        %v4648 = vperm.slane %v4645, 1
        %v4649 = vperm.slane %v4645, 2
        %v4650 = vperm.slane %v4645, 3
        %v4655 = vpack.c.bf16 %v4648, %v4647
        %v4656 = vpack.c.bf16 %v4650, %v4649
        %v4659 = vunpack.c.l.b16 %v4655
        %v4660 = vunpack.c.h.b16 %v4655
        %v4661 = vunpack.c.l.b16 %v4656
        %v4662 = vunpack.c.h.b16 %v4656
        %v4663 = vpack.c.b16 %v4659, %v4659
        %v4664 = vpack.c.b16 %v4660, %v4660
        %v4665 = vpack.c.b16 %v4661, %v4661
        %v4666 = vpack.c.b16 %v4662, %v4662
        %v4668 = vpack.i.b16 %v4663, %v4663
        %v4670 = vperm.slane %v4668, 0
        %v4672 = vpack.i.b16 %v4664, %v4664
        %v4674 = vperm.slane %v4672, 0
        %v4676 = vpack.i.b16 %v4665, %v4665
        %v4678 = vperm.slane %v4676, 0
        %v4680 = vpack.i.b16 %v4666, %v4666
        %v4682 = vperm.slane %v4680, 0
        %v4683 = vunpack.c.l.bf16 %v4642
        %v4684 = vunpack.c.h.bf16 %v4642
        %v4685 = vunpack.c.l.bf16 %v4643
        %v4686 = vunpack.c.h.bf16 %v4643
        %v4687 = vunpack.c.l.bf16 %v4644
        %v4688 = vunpack.c.l.bf16 %v4670
        %v4689 = vunpack.c.l.bf16 %v4674
        %v4690 = vunpack.c.l.bf16 %v4678
        %v4691 = vunpack.c.l.bf16 %v4682
        %4696 = vrot.lane.b32.xlu0 %v4688, 119
        %v4697 = vpop.permute.xlu0 %4696
        %4698 = vrot.lane.b32.xlu0 %v4689, 119
        %v4699 = vpop.permute.xlu0 %4698
        %4700 = vrot.lane.b32.xlu0 %v4690, 119
        %v4701 = vpop.permute.xlu0 %4700
        %4702 = vrot.lane.b32.xlu0 %v4691, 119
        %v4703 = vpop.permute.xlu0 %4702
        %v4704 = vsel %vm1534, %v4697, %v4699
        %v4705 = vsel %vm1534, %v4699, %v4701
        %v4706 = vsel %vm1534, %v4701, %v4703
        %v4712 = vmul.f32 %v4683, %v4697
        %v4713 = vmul.f32 %v4684, %v4704
        %v4714 = vmul.f32 %v4685, %v4705
        %v4715 = vmul.f32 %v4686, %v4706
        %v4716 = vmul.f32 %v4687, %v4703
        %v4717 = vpack.c.bf16 %v4713, %v4712
        %v4718 = vpack.c.bf16 %v4715, %v4714
        %v4719 = vpack.c.bf16 %v4716, %v4716
        %4723 = vrot.lane.b32.xlu0 %v4717, 9
        %v4724 = vpop.permute.xlu0 %4723
        %4725 = vrot.lane.b32.xlu0 %v4718, 9
        %v4726 = vpop.permute.xlu0 %4725
        %4727 = vrot.lane.b32.xlu0 %v4719, 9
        %v4728 = vpop.permute.xlu0 %4727
        %v4729 = vrot.slane %v4724, 4
        %v4730 = vrot.slane %v4726, 4
        %v4731 = vrot.slane %v4728, 4
        %v4732 = vsel %vm538, %v4729, %v4730
        %v4733 = vsel %vm1581, %v4724, %v4732
        %v4734 = vsel %vm538, %v4730, %v4731
        %v4735 = vsel %vm1581, %v4726, %v4734
        %4738 = vst [vmem:[#allocation5 + $0x90] sm:$0xff] %v4733
        %4739 = vst [vmem:[#allocation5 + $0x98] sm:$0xff] %v4735
        %v4740 = vld [vmem:[#allocation3] sm:$0xff]
        %v4741 = vld [vmem:[#allocation3 + $0x8] sm:$0xff]
        %v4742 = vld [vmem:[#allocation3 + $0x10] sm:$0xf]
        %v4743 = vld [vmem:[%s1591] ss:$8 sm:$0xf]
        %v4745 = vperm.slane %v4743, 0
        %v4746 = vperm.slane %v4743, 1
        %v4747 = vperm.slane %v4743, 2
        %v4748 = vperm.slane %v4743, 3
        %v4753 = vpack.c.bf16 %v4746, %v4745
        %v4754 = vpack.c.bf16 %v4748, %v4747
        %v4757 = vunpack.c.l.b16 %v4753
        %v4758 = vunpack.c.h.b16 %v4753
        %v4759 = vunpack.c.l.b16 %v4754
        %v4760 = vunpack.c.h.b16 %v4754
        %v4761 = vpack.c.b16 %v4757, %v4757
        %v4762 = vpack.c.b16 %v4758, %v4758
        %v4763 = vpack.c.b16 %v4759, %v4759
        %v4764 = vpack.c.b16 %v4760, %v4760
        %v4766 = vpack.i.b16 %v4761, %v4761
        %v4768 = vperm.slane %v4766, 0
        %v4770 = vpack.i.b16 %v4762, %v4762
        %v4772 = vperm.slane %v4770, 0
        %v4774 = vpack.i.b16 %v4763, %v4763
        %v4776 = vperm.slane %v4774, 0
        %v4778 = vpack.i.b16 %v4764, %v4764
        %v4780 = vperm.slane %v4778, 0
        %v4781 = vunpack.c.l.bf16 %v4740
        %v4782 = vunpack.c.h.bf16 %v4740
        %v4783 = vunpack.c.l.bf16 %v4741
        %v4784 = vunpack.c.h.bf16 %v4741
        %v4785 = vunpack.c.l.bf16 %v4742
        %v4786 = vunpack.c.l.bf16 %v4768
        %v4787 = vunpack.c.l.bf16 %v4772
        %v4788 = vunpack.c.l.bf16 %v4776
        %v4789 = vunpack.c.l.bf16 %v4780
        %4794 = vrot.lane.b32.xlu0 %v4786, 120
        %v4795 = vpop.permute.xlu0 %4794
        %4796 = vrot.lane.b32.xlu0 %v4787, 120
        %v4797 = vpop.permute.xlu0 %4796
        %4798 = vrot.lane.b32.xlu0 %v4788, 120
        %v4799 = vpop.permute.xlu0 %4798
        %4800 = vrot.lane.b32.xlu0 %v4789, 120
        %v4801 = vpop.permute.xlu0 %4800
        %v4802 = vsel %vm1651, %v4795, %v4797
        %v4803 = vsel %vm1651, %v4797, %v4799
        %v4804 = vsel %vm1651, %v4799, %v4801
        %v4810 = vmul.f32 %v4781, %v4795
        %v4811 = vmul.f32 %v4782, %v4802
        %v4812 = vmul.f32 %v4783, %v4803
        %v4813 = vmul.f32 %v4784, %v4804
        %v4814 = vmul.f32 %v4785, %v4801
        %v4815 = vpack.c.bf16 %v4811, %v4810
        %v4816 = vpack.c.bf16 %v4813, %v4812
        %v4817 = vpack.c.bf16 %v4814, %v4814
        %4821 = vrot.lane.b32.xlu0 %v4815, 8
        %v4822 = vpop.permute.xlu0 %4821
        %4823 = vrot.lane.b32.xlu0 %v4816, 8
        %v4824 = vpop.permute.xlu0 %4823
        %4825 = vrot.lane.b32.xlu0 %v4817, 8
        %v4826 = vpop.permute.xlu0 %4825
        %v4827 = vrot.slane %v4822, 4
        %v4828 = vrot.slane %v4824, 4
        %v4829 = vrot.slane %v4826, 4
        %v4830 = vsel %vm538, %v4827, %v4828
        %v4831 = vsel %vm1695, %v4822, %v4830
        %v4832 = vsel %vm538, %v4828, %v4829
        %v4833 = vsel %vm1695, %v4824, %v4832
        %4836 = vst [vmem:[#allocation5 + $0xa0] sm:$0xff] %v4831
        %4837 = vst [vmem:[#allocation5 + $0xa8] sm:$0xff] %v4833
        %v4838 = vld [vmem:[#allocation3] sm:$0xff]
        %v4839 = vld [vmem:[#allocation3 + $0x8] sm:$0xff]
        %v4840 = vld [vmem:[#allocation3 + $0x10] sm:$0xf]
        %v4841 = vld [vmem:[%s1705] ss:$8 sm:$0xf]
        %v4843 = vperm.slane %v4841, 0
        %v4844 = vperm.slane %v4841, 1
        %v4845 = vperm.slane %v4841, 2
        %v4846 = vperm.slane %v4841, 3
        %v4851 = vpack.c.bf16 %v4844, %v4843
        %v4852 = vpack.c.bf16 %v4846, %v4845
        %v4855 = vunpack.c.l.b16 %v4851
        %v4856 = vunpack.c.h.b16 %v4851
        %v4857 = vunpack.c.l.b16 %v4852
        %v4858 = vunpack.c.h.b16 %v4852
        %v4859 = vpack.c.b16 %v4855, %v4855
        %v4860 = vpack.c.b16 %v4856, %v4856
        %v4861 = vpack.c.b16 %v4857, %v4857
        %v4862 = vpack.c.b16 %v4858, %v4858
        %v4864 = vpack.i.b16 %v4859, %v4859
        %v4866 = vperm.slane %v4864, 0
        %v4868 = vpack.i.b16 %v4860, %v4860
        %v4870 = vperm.slane %v4868, 0
        %v4872 = vpack.i.b16 %v4861, %v4861
        %v4874 = vperm.slane %v4872, 0
        %v4876 = vpack.i.b16 %v4862, %v4862
        %v4878 = vperm.slane %v4876, 0
        %v4879 = vunpack.c.l.bf16 %v4838
        %v4880 = vunpack.c.h.bf16 %v4838
        %v4881 = vunpack.c.l.bf16 %v4839
        %v4882 = vunpack.c.h.bf16 %v4839
        %v4883 = vunpack.c.l.bf16 %v4840
        %v4884 = vunpack.c.l.bf16 %v4866
        %v4885 = vunpack.c.l.bf16 %v4870
        %v4886 = vunpack.c.l.bf16 %v4874
        %v4887 = vunpack.c.l.bf16 %v4878
        %4892 = vrot.lane.b32.xlu0 %v4884, 121
        %v4893 = vpop.permute.xlu0 %4892
        %4894 = vrot.lane.b32.xlu0 %v4885, 121
        %v4895 = vpop.permute.xlu0 %4894
        %4896 = vrot.lane.b32.xlu0 %v4886, 121
        %v4897 = vpop.permute.xlu0 %4896
        %4898 = vrot.lane.b32.xlu0 %v4887, 121
        %v4899 = vpop.permute.xlu0 %4898
        %v4900 = vsel %vm1765, %v4893, %v4895
        %v4901 = vsel %vm1765, %v4895, %v4897
        %v4902 = vsel %vm1765, %v4897, %v4899
        %v4908 = vmul.f32 %v4879, %v4893
        %v4909 = vmul.f32 %v4880, %v4900
        %v4910 = vmul.f32 %v4881, %v4901
        %v4911 = vmul.f32 %v4882, %v4902
        %v4912 = vmul.f32 %v4883, %v4899
        %v4913 = vpack.c.bf16 %v4909, %v4908
        %v4914 = vpack.c.bf16 %v4911, %v4910
        %v4915 = vpack.c.bf16 %v4912, %v4912
        %4919 = vrot.lane.b32.xlu0 %v4913, 7
        %v4920 = vpop.permute.xlu0 %4919
        %4921 = vrot.lane.b32.xlu0 %v4914, 7
        %v4922 = vpop.permute.xlu0 %4921
        %4923 = vrot.lane.b32.xlu0 %v4915, 7
        %v4924 = vpop.permute.xlu0 %4923
        %v4925 = vrot.slane %v4920, 4
        %v4926 = vrot.slane %v4922, 4
        %v4927 = vrot.slane %v4924, 4
        %v4928 = vsel %vm538, %v4925, %v4926
        %v4929 = vsel %vm1812, %v4920, %v4928
        %v4930 = vsel %vm538, %v4926, %v4927
        %v4931 = vsel %vm1812, %v4922, %v4930
        %4934 = vst [vmem:[#allocation5 + $0xb0] sm:$0xff] %v4929
        %4935 = vst [vmem:[#allocation5 + $0xb8] sm:$0xff] %v4931
        %v4936 = vld [vmem:[#allocation3] sm:$0xff]
        %v4937 = vld [vmem:[#allocation3 + $0x8] sm:$0xff]
        %v4938 = vld [vmem:[#allocation3 + $0x10] sm:$0xf]
        %v4939 = vld [vmem:[%s1822] ss:$8 sm:$0xf]
        %v4941 = vperm.slane %v4939, 0
        %v4942 = vperm.slane %v4939, 1
        %v4943 = vperm.slane %v4939, 2
        %v4944 = vperm.slane %v4939, 3
        %v4949 = vpack.c.bf16 %v4942, %v4941
        %v4950 = vpack.c.bf16 %v4944, %v4943
        %v4953 = vunpack.c.l.b16 %v4949
        %v4954 = vunpack.c.h.b16 %v4949
        %v4955 = vunpack.c.l.b16 %v4950
        %v4956 = vunpack.c.h.b16 %v4950
        %v4957 = vpack.c.b16 %v4953, %v4953
        %v4958 = vpack.c.b16 %v4954, %v4954
        %v4959 = vpack.c.b16 %v4955, %v4955
        %v4960 = vpack.c.b16 %v4956, %v4956
        %v4962 = vpack.i.b16 %v4957, %v4957
        %v4964 = vperm.slane %v4962, 0
        %v4966 = vpack.i.b16 %v4958, %v4958
        %v4968 = vperm.slane %v4966, 0
        %v4970 = vpack.i.b16 %v4959, %v4959
        %v4972 = vperm.slane %v4970, 0
        %v4974 = vpack.i.b16 %v4960, %v4960
        %v4976 = vperm.slane %v4974, 0
        %v4977 = vunpack.c.l.bf16 %v4936
        %v4978 = vunpack.c.h.bf16 %v4936
        %v4979 = vunpack.c.l.bf16 %v4937
        %v4980 = vunpack.c.h.bf16 %v4937
        %v4981 = vunpack.c.l.bf16 %v4938
        %v4982 = vunpack.c.l.bf16 %v4964
        %v4983 = vunpack.c.l.bf16 %v4968
        %v4984 = vunpack.c.l.bf16 %v4972
        %v4985 = vunpack.c.l.bf16 %v4976
        %4990 = vrot.lane.b32.xlu0 %v4982, 127
        %v4991 = vpop.permute.xlu0 %4990
        %4992 = vrot.lane.b32.xlu0 %v4983, 127
        %v4993 = vpop.permute.xlu0 %4992
        %4994 = vrot.lane.b32.xlu0 %v4984, 127
        %v4995 = vpop.permute.xlu0 %4994
        %4996 = vrot.lane.b32.xlu0 %v4985, 127
        %v4997 = vpop.permute.xlu0 %4996
        %v4998 = vsel %vm1882, %v4991, %v4993
        %v4999 = vsel %vm1882, %v4993, %v4995
        %v5000 = vsel %vm1882, %v4995, %v4997
        %v5006 = vmul.f32 %v4977, %v4991
        %v5007 = vmul.f32 %v4978, %v4998
        %v5008 = vmul.f32 %v4979, %v4999
        %v5009 = vmul.f32 %v4980, %v5000
        %v5010 = vmul.f32 %v4981, %v4997
        %v5011 = vpack.c.bf16 %v5007, %v5006
        %v5012 = vpack.c.bf16 %v5009, %v5008
        %v5013 = vpack.c.bf16 %v5010, %v5010
        %5017 = vrot.lane.b32.xlu0 %v5011, 1
        %v5018 = vpop.permute.xlu0 %5017
        %5019 = vrot.lane.b32.xlu0 %v5012, 1
        %v5020 = vpop.permute.xlu0 %5019
        %5021 = vrot.lane.b32.xlu0 %v5013, 1
        %v5022 = vpop.permute.xlu0 %5021
        %v5023 = vrot.slane %v5018, 4
        %v5024 = vrot.slane %v5020, 4
        %v5025 = vrot.slane %v5022, 4
        %v5026 = vsel %vm538, %v5023, %v5024
        %v5027 = vsel %vm1926, %v5018, %v5026
        %v5028 = vsel %vm538, %v5024, %v5025
        %v5029 = vsel %vm1926, %v5020, %v5028
        %5032 = vst [vmem:[#allocation5 + $0xc0] sm:$0xff] %v5027
        %5033 = vst [vmem:[#allocation5 + $0xc8] sm:$0xff] %v5029
        %v5034 = vld [vmem:[#allocation3 + $0x4] sm:$0xff]
        %v5035 = vld [vmem:[#allocation3 + $0xc] sm:$0xff]
        %5036 = vst [vmem:[#allocation5 + $0xd0] sm:$0xff] %v5034
        %5037 = vst [vmem:[#allocation5 + $0xd8] sm:$0xff] %v5035
        %v5038 = vld [vmem:[#allocation3 + $0x4] sm:$0xff]
        %v5039 = vld [vmem:[#allocation3 + $0xc] sm:$0xff]
        %v5040 = vld [vmem:[#allocation3 + $0x14] sm:$0xf]
        %v5041 = vld [vmem:[%s1946] ss:$8 sm:$0xf]
        %v5043 = vperm.slane %v5041, 0
        %v5044 = vperm.slane %v5041, 1
        %v5045 = vperm.slane %v5041, 2
        %v5046 = vperm.slane %v5041, 3
        %v5051 = vpack.c.bf16 %v5044, %v5043
        %v5052 = vpack.c.bf16 %v5046, %v5045
        %v5055 = vunpack.c.l.b16 %v5051
        %v5056 = vunpack.c.h.b16 %v5051
        %v5057 = vunpack.c.l.b16 %v5052
        %v5058 = vunpack.c.h.b16 %v5052
        %v5059 = vpack.c.b16 %v5055, %v5055
        %v5060 = vpack.c.b16 %v5056, %v5056
        %v5061 = vpack.c.b16 %v5057, %v5057
        %v5062 = vpack.c.b16 %v5058, %v5058
        %v5064 = vpack.i.b16 %v5059, %v5059
        %v5066 = vperm.slane %v5064, 0
        %v5068 = vpack.i.b16 %v5060, %v5060
        %v5070 = vperm.slane %v5068, 0
        %v5072 = vpack.i.b16 %v5061, %v5061
        %v5074 = vperm.slane %v5072, 0
        %v5076 = vpack.i.b16 %v5062, %v5062
        %v5078 = vperm.slane %v5076, 0
        %v5079 = vunpack.c.l.bf16 %v5038
        %v5080 = vunpack.c.h.bf16 %v5038
        %v5081 = vunpack.c.l.bf16 %v5039
        %v5082 = vunpack.c.h.bf16 %v5039
        %v5083 = vunpack.c.l.bf16 %v5040
        %v5084 = vunpack.c.l.bf16 %v5066
        %v5085 = vunpack.c.l.bf16 %v5070
        %v5086 = vunpack.c.l.bf16 %v5074
        %v5087 = vunpack.c.l.bf16 %v5078
        %5092 = vrot.lane.b32.xlu0 %v5084, 1
        %v5093 = vpop.permute.xlu0 %5092
        %5094 = vrot.lane.b32.xlu0 %v5085, 1
        %v5095 = vpop.permute.xlu0 %5094
        %5096 = vrot.lane.b32.xlu0 %v5086, 1
        %v5097 = vpop.permute.xlu0 %5096
        %5098 = vrot.lane.b32.xlu0 %v5087, 1
        %v5099 = vpop.permute.xlu0 %5098
        %v5100 = vsel %vm2006, %v5093, %v5095
        %v5101 = vsel %vm2006, %v5095, %v5097
        %v5102 = vsel %vm2006, %v5097, %v5099
        %v5108 = vmul.f32 %v5079, %v5093
        %v5109 = vmul.f32 %v5080, %v5100
        %v5110 = vmul.f32 %v5081, %v5101
        %v5111 = vmul.f32 %v5082, %v5102
        %v5112 = vmul.f32 %v5083, %v5099
        %v5113 = vpack.c.bf16 %v5109, %v5108
        %v5114 = vpack.c.bf16 %v5111, %v5110
        %v5115 = vpack.c.bf16 %v5112, %v5112
        %5119 = vrot.lane.b32.xlu0 %v5113, 127
        %v5120 = vpop.permute.xlu0 %5119
        %5121 = vrot.lane.b32.xlu0 %v5114, 127
        %v5122 = vpop.permute.xlu0 %5121
        %5123 = vrot.lane.b32.xlu0 %v5115, 127
        %v5124 = vpop.permute.xlu0 %5123
        %v5125 = vrot.slane %v5120, 4
        %v5126 = vrot.slane %v5122, 4
        %v5127 = vrot.slane %v5124, 4
        %v5128 = vsel %vm538, %v5125, %v5126
        %v5129 = vsel %vm2050, %v5120, %v5128
        %v5130 = vsel %vm538, %v5126, %v5127
        %v5131 = vsel %vm2050, %v5122, %v5130
        %5134 = vst [vmem:[#allocation5 + $0xe0] sm:$0xff] %v5129
        %5135 = vst [vmem:[#allocation5 + $0xe8] sm:$0xff] %v5131
        %v5136 = vld [vmem:[#allocation3 + $0x4] sm:$0xff]
        %v5137 = vld [vmem:[#allocation3 + $0xc] sm:$0xff]
        %v5138 = vld [vmem:[#allocation3 + $0x14] sm:$0xf]
        %v5139 = vld [vmem:[%s2060] ss:$8 sm:$0xf]
        %v5141 = vperm.slane %v5139, 0
        %v5142 = vperm.slane %v5139, 1
        %v5143 = vperm.slane %v5139, 2
        %v5144 = vperm.slane %v5139, 3
        %v5149 = vpack.c.bf16 %v5142, %v5141
        %v5150 = vpack.c.bf16 %v5144, %v5143
        %v5153 = vunpack.c.l.b16 %v5149
        %v5154 = vunpack.c.h.b16 %v5149
        %v5155 = vunpack.c.l.b16 %v5150
        %v5156 = vunpack.c.h.b16 %v5150
        %v5157 = vpack.c.b16 %v5153, %v5153
        %v5158 = vpack.c.b16 %v5154, %v5154
        %v5159 = vpack.c.b16 %v5155, %v5155
        %v5160 = vpack.c.b16 %v5156, %v5156
        %v5162 = vpack.i.b16 %v5157, %v5157
        %v5164 = vperm.slane %v5162, 0
        %v5166 = vpack.i.b16 %v5158, %v5158
        %v5168 = vperm.slane %v5166, 0
        %v5170 = vpack.i.b16 %v5159, %v5159
        %v5172 = vperm.slane %v5170, 0
        %v5174 = vpack.i.b16 %v5160, %v5160
        %v5176 = vperm.slane %v5174, 0
        %v5177 = vunpack.c.l.bf16 %v5136
        %v5178 = vunpack.c.h.bf16 %v5136
        %v5179 = vunpack.c.l.bf16 %v5137
        %v5180 = vunpack.c.h.bf16 %v5137
        %v5181 = vunpack.c.l.bf16 %v5138
        %v5182 = vunpack.c.l.bf16 %v5164
        %v5183 = vunpack.c.l.bf16 %v5168
        %v5184 = vunpack.c.l.bf16 %v5172
        %v5185 = vunpack.c.l.bf16 %v5176
        %5190 = vrot.lane.b32.xlu0 %v5182, 7
        %v5191 = vpop.permute.xlu0 %5190
        %5192 = vrot.lane.b32.xlu0 %v5183, 7
        %v5193 = vpop.permute.xlu0 %5192
        %5194 = vrot.lane.b32.xlu0 %v5184, 7
        %v5195 = vpop.permute.xlu0 %5194
        %5196 = vrot.lane.b32.xlu0 %v5185, 7
        %v5197 = vpop.permute.xlu0 %5196
        %v5198 = vsel %vm2120, %v5191, %v5193
        %v5199 = vsel %vm2120, %v5193, %v5195
        %v5200 = vsel %vm2120, %v5195, %v5197
        %v5206 = vmul.f32 %v5177, %v5191
        %v5207 = vmul.f32 %v5178, %v5198
        %v5208 = vmul.f32 %v5179, %v5199
        %v5209 = vmul.f32 %v5180, %v5200
        %v5210 = vmul.f32 %v5181, %v5197
        %v5211 = vpack.c.bf16 %v5207, %v5206
        %v5212 = vpack.c.bf16 %v5209, %v5208
        %v5213 = vpack.c.bf16 %v5210, %v5210
        %5217 = vrot.lane.b32.xlu0 %v5211, 121
        %v5218 = vpop.permute.xlu0 %5217
        %5219 = vrot.lane.b32.xlu0 %v5212, 121
        %v5220 = vpop.permute.xlu0 %5219
        %5221 = vrot.lane.b32.xlu0 %v5213, 121
        %v5222 = vpop.permute.xlu0 %5221
        %v5223 = vrot.slane %v5218, 4
        %v5224 = vrot.slane %v5220, 4
        %v5225 = vrot.slane %v5222, 4
        %v5226 = vsel %vm538, %v5223, %v5224
        %v5227 = vsel %vm2167, %v5218, %v5226
        %v5228 = vsel %vm538, %v5224, %v5225
        %v5229 = vsel %vm2167, %v5220, %v5228
        %5232 = vst [vmem:[#allocation5 + $0xf0] sm:$0xff] %v5227
        %5233 = vst [vmem:[#allocation5 + $0xf8] sm:$0xff] %v5229
        %v5234 = vld [vmem:[#allocation3 + $0x4] sm:$0xff]
        %v5235 = vld [vmem:[#allocation3 + $0xc] sm:$0xff]
        %v5236 = vld [vmem:[#allocation3 + $0x14] sm:$0xf]
        %v5237 = vld [vmem:[%s2177] ss:$8 sm:$0xf]
        %v5239 = vperm.slane %v5237, 0
        %v5240 = vperm.slane %v5237, 1
        %v5241 = vperm.slane %v5237, 2
        %v5242 = vperm.slane %v5237, 3
        %v5247 = vpack.c.bf16 %v5240, %v5239
        %v5248 = vpack.c.bf16 %v5242, %v5241
        %v5251 = vunpack.c.l.b16 %v5247
        %v5252 = vunpack.c.h.b16 %v5247
        %v5253 = vunpack.c.l.b16 %v5248
        %v5254 = vunpack.c.h.b16 %v5248
        %v5255 = vpack.c.b16 %v5251, %v5251
        %v5256 = vpack.c.b16 %v5252, %v5252
        %v5257 = vpack.c.b16 %v5253, %v5253
        %v5258 = vpack.c.b16 %v5254, %v5254
        %v5260 = vpack.i.b16 %v5255, %v5255
        %v5262 = vperm.slane %v5260, 0
        %v5264 = vpack.i.b16 %v5256, %v5256
        %v5266 = vperm.slane %v5264, 0
        %v5268 = vpack.i.b16 %v5257, %v5257
        %v5270 = vperm.slane %v5268, 0
        %v5272 = vpack.i.b16 %v5258, %v5258
        %v5274 = vperm.slane %v5272, 0
        %v5275 = vunpack.c.l.bf16 %v5234
        %v5276 = vunpack.c.h.bf16 %v5234
        %v5277 = vunpack.c.l.bf16 %v5235
        %v5278 = vunpack.c.h.bf16 %v5235
        %v5279 = vunpack.c.l.bf16 %v5236
        %v5280 = vunpack.c.l.bf16 %v5262
        %v5281 = vunpack.c.l.bf16 %v5266
        %v5282 = vunpack.c.l.bf16 %v5270
        %v5283 = vunpack.c.l.bf16 %v5274
        %5288 = vrot.lane.b32.xlu0 %v5280, 8
        %v5289 = vpop.permute.xlu0 %5288
        %5290 = vrot.lane.b32.xlu0 %v5281, 8
        %v5291 = vpop.permute.xlu0 %5290
        %5292 = vrot.lane.b32.xlu0 %v5282, 8
        %v5293 = vpop.permute.xlu0 %5292
        %5294 = vrot.lane.b32.xlu0 %v5283, 8
        %v5295 = vpop.permute.xlu0 %5294
        %v5296 = vsel %vm2237, %v5289, %v5291
        %v5297 = vsel %vm2237, %v5291, %v5293
        %v5298 = vsel %vm2237, %v5293, %v5295
        %v5304 = vmul.f32 %v5275, %v5289
        %v5305 = vmul.f32 %v5276, %v5296
        %v5306 = vmul.f32 %v5277, %v5297
        %v5307 = vmul.f32 %v5278, %v5298
        %v5308 = vmul.f32 %v5279, %v5295
        %v5309 = vpack.c.bf16 %v5305, %v5304
        %v5310 = vpack.c.bf16 %v5307, %v5306
        %v5311 = vpack.c.bf16 %v5308, %v5308
        %5315 = vrot.lane.b32.xlu0 %v5309, 120
        %v5316 = vpop.permute.xlu0 %5315
        %5317 = vrot.lane.b32.xlu0 %v5310, 120
        %v5318 = vpop.permute.xlu0 %5317
        %5319 = vrot.lane.b32.xlu0 %v5311, 120
        %v5320 = vpop.permute.xlu0 %5319
        %v5321 = vrot.slane %v5316, 4
        %v5322 = vrot.slane %v5318, 4
        %v5323 = vrot.slane %v5320, 4
        %v5324 = vsel %vm538, %v5321, %v5322
        %v5325 = vsel %vm2281, %v5316, %v5324
        %v5326 = vsel %vm538, %v5322, %v5323
        %v5327 = vsel %vm2281, %v5318, %v5326
        %5330 = vst [vmem:[#allocation5 + $0x100] sm:$0xff] %v5325
        %5331 = vst [vmem:[#allocation5 + $0x108] sm:$0xff] %v5327
        %v5332 = vld [vmem:[#allocation3 + $0x4] sm:$0xff]
        %v5333 = vld [vmem:[#allocation3 + $0xc] sm:$0xff]
        %v5334 = vld [vmem:[#allocation3 + $0x14] sm:$0xf]
        %v5335 = vld [vmem:[%s2291] ss:$8 sm:$0xf]
        %v5337 = vperm.slane %v5335, 0
        %v5338 = vperm.slane %v5335, 1
        %v5339 = vperm.slane %v5335, 2
        %v5340 = vperm.slane %v5335, 3
        %v5345 = vpack.c.bf16 %v5338, %v5337
        %v5346 = vpack.c.bf16 %v5340, %v5339
        %v5349 = vunpack.c.l.b16 %v5345
        %v5350 = vunpack.c.h.b16 %v5345
        %v5351 = vunpack.c.l.b16 %v5346
        %v5352 = vunpack.c.h.b16 %v5346
        %v5353 = vpack.c.b16 %v5349, %v5349
        %v5354 = vpack.c.b16 %v5350, %v5350
        %v5355 = vpack.c.b16 %v5351, %v5351
        %v5356 = vpack.c.b16 %v5352, %v5352
        %v5358 = vpack.i.b16 %v5353, %v5353
        %v5360 = vperm.slane %v5358, 0
        %v5362 = vpack.i.b16 %v5354, %v5354
        %v5364 = vperm.slane %v5362, 0
        %v5366 = vpack.i.b16 %v5355, %v5355
        %v5368 = vperm.slane %v5366, 0
        %v5370 = vpack.i.b16 %v5356, %v5356
        %v5372 = vperm.slane %v5370, 0
        %v5373 = vunpack.c.l.bf16 %v5332
        %v5374 = vunpack.c.h.bf16 %v5332
        %v5375 = vunpack.c.l.bf16 %v5333
        %v5376 = vunpack.c.h.bf16 %v5333
        %v5377 = vunpack.c.l.bf16 %v5334
        %v5378 = vunpack.c.l.bf16 %v5360
        %v5379 = vunpack.c.l.bf16 %v5364
        %v5380 = vunpack.c.l.bf16 %v5368
        %v5381 = vunpack.c.l.bf16 %v5372
        %5386 = vrot.lane.b32.xlu0 %v5378, 9
        %v5387 = vpop.permute.xlu0 %5386
        %5388 = vrot.lane.b32.xlu0 %v5379, 9
        %v5389 = vpop.permute.xlu0 %5388
        %5390 = vrot.lane.b32.xlu0 %v5380, 9
        %v5391 = vpop.permute.xlu0 %5390
        %5392 = vrot.lane.b32.xlu0 %v5381, 9
        %v5393 = vpop.permute.xlu0 %5392
        %v5394 = vsel %vm2351, %v5387, %v5389
        %v5395 = vsel %vm2351, %v5389, %v5391
        %v5396 = vsel %vm2351, %v5391, %v5393
        %v5402 = vmul.f32 %v5373, %v5387
        %v5403 = vmul.f32 %v5374, %v5394
        %v5404 = vmul.f32 %v5375, %v5395
        %v5405 = vmul.f32 %v5376, %v5396
        %v5406 = vmul.f32 %v5377, %v5393
        %v5407 = vpack.c.bf16 %v5403, %v5402
        %v5408 = vpack.c.bf16 %v5405, %v5404
        %v5409 = vpack.c.bf16 %v5406, %v5406
        %5413 = vrot.lane.b32.xlu0 %v5407, 119
        %v5414 = vpop.permute.xlu0 %5413
        %5415 = vrot.lane.b32.xlu0 %v5408, 119
        %v5416 = vpop.permute.xlu0 %5415
        %5417 = vrot.lane.b32.xlu0 %v5409, 119
        %v5418 = vpop.permute.xlu0 %5417
        %v5419 = vrot.slane %v5414, 4
        %v5420 = vrot.slane %v5416, 4
        %v5421 = vrot.slane %v5418, 4
        %v5422 = vsel %vm538, %v5419, %v5420
        %v5423 = vsel %vm2398, %v5414, %v5422
        %v5424 = vsel %vm538, %v5420, %v5421
        %v5425 = vsel %vm2398, %v5416, %v5424
        %5428 = vst [vmem:[#allocation5 + $0x110] sm:$0xff] %v5423
        %5429 = vst [vmem:[#allocation5 + $0x118] sm:$0xff] %v5425
        %v5430 = vld [vmem:[#allocation3 + $0x4] sm:$0xff]
        %v5431 = vld [vmem:[#allocation3 + $0xc] sm:$0xff]
        %v5432 = vld [vmem:[#allocation3 + $0x14] sm:$0xf]
        %v5433 = vld [vmem:[%s2408] ss:$8 sm:$0xf]
        %v5435 = vperm.slane %v5433, 0
        %v5436 = vperm.slane %v5433, 1
        %v5437 = vperm.slane %v5433, 2
        %v5438 = vperm.slane %v5433, 3
        %v5443 = vpack.c.bf16 %v5436, %v5435
        %v5444 = vpack.c.bf16 %v5438, %v5437
        %v5447 = vunpack.c.l.b16 %v5443
        %v5448 = vunpack.c.h.b16 %v5443
        %v5449 = vunpack.c.l.b16 %v5444
        %v5450 = vunpack.c.h.b16 %v5444
        %v5451 = vpack.c.b16 %v5447, %v5447
        %v5452 = vpack.c.b16 %v5448, %v5448
        %v5453 = vpack.c.b16 %v5449, %v5449
        %v5454 = vpack.c.b16 %v5450, %v5450
        %v5456 = vpack.i.b16 %v5451, %v5451
        %v5458 = vperm.slane %v5456, 0
        %v5460 = vpack.i.b16 %v5452, %v5452
        %v5462 = vperm.slane %v5460, 0
        %v5464 = vpack.i.b16 %v5453, %v5453
        %v5466 = vperm.slane %v5464, 0
        %v5468 = vpack.i.b16 %v5454, %v5454
        %v5470 = vperm.slane %v5468, 0
        %v5471 = vunpack.c.l.bf16 %v5430
        %v5472 = vunpack.c.h.bf16 %v5430
        %v5473 = vunpack.c.l.bf16 %v5431
        %v5474 = vunpack.c.h.bf16 %v5431
        %v5475 = vunpack.c.l.bf16 %v5432
        %v5476 = vunpack.c.l.bf16 %v5458
        %v5477 = vunpack.c.l.bf16 %v5462
        %v5478 = vunpack.c.l.bf16 %v5466
        %v5479 = vunpack.c.l.bf16 %v5470
        %5484 = vrot.lane.b32.xlu0 %v5476, 55
        %v5485 = vpop.permute.xlu0 %5484
        %5486 = vrot.lane.b32.xlu0 %v5477, 55
        %v5487 = vpop.permute.xlu0 %5486
        %5488 = vrot.lane.b32.xlu0 %v5478, 55
        %v5489 = vpop.permute.xlu0 %5488
        %5490 = vrot.lane.b32.xlu0 %v5479, 55
        %v5491 = vpop.permute.xlu0 %5490
        %v5492 = vsel %vm495, %v5485, %v5487
        %v5493 = vsel %vm495, %v5487, %v5489
        %v5494 = vsel %vm495, %v5489, %v5491
        %v5500 = vmul.f32 %v5471, %v5485
        %v5501 = vmul.f32 %v5472, %v5492
        %v5502 = vmul.f32 %v5473, %v5493
        %v5503 = vmul.f32 %v5474, %v5494
        %v5504 = vmul.f32 %v5475, %v5491
        %v5505 = vpack.c.bf16 %v5501, %v5500
        %v5506 = vpack.c.bf16 %v5503, %v5502
        %v5507 = vpack.c.bf16 %v5504, %v5504
        %5511 = vrot.lane.b32.xlu0 %v5505, 73
        %v5512 = vpop.permute.xlu0 %5511
        %5513 = vrot.lane.b32.xlu0 %v5506, 73
        %v5514 = vpop.permute.xlu0 %5513
        %5515 = vrot.lane.b32.xlu0 %v5507, 73
        %v5516 = vpop.permute.xlu0 %5515
        %v5517 = vrot.slane %v5512, 4
        %v5518 = vrot.slane %v5514, 4
        %v5519 = vrot.slane %v5516, 4
        %v5520 = vsel %vm538, %v5517, %v5518
        %v5521 = vsel %vm540, %v5512, %v5520
        %v5522 = vsel %vm538, %v5518, %v5519
        %v5523 = vsel %vm540, %v5514, %v5522
        %5526 = vst [vmem:[#allocation5 + $0x120] sm:$0xff] %v5521
        %5527 = vst [vmem:[#allocation5 + $0x128] sm:$0xff] %v5523
        %v5528 = vld [vmem:[#allocation3 + $0x4] sm:$0xff]
        %v5529 = vld [vmem:[#allocation3 + $0xc] sm:$0xff]
        %v5530 = vld [vmem:[#allocation3 + $0x14] sm:$0xf]
        %v5531 = vld [vmem:[%s2520] ss:$8 sm:$0xf]
        %v5533 = vperm.slane %v5531, 0
        %v5534 = vperm.slane %v5531, 1
        %v5535 = vperm.slane %v5531, 2
        %v5536 = vperm.slane %v5531, 3
        %v5541 = vpack.c.bf16 %v5534, %v5533
        %v5542 = vpack.c.bf16 %v5536, %v5535
        %v5545 = vunpack.c.l.b16 %v5541
        %v5546 = vunpack.c.h.b16 %v5541
        %v5547 = vunpack.c.l.b16 %v5542
        %v5548 = vunpack.c.h.b16 %v5542
        %v5549 = vpack.c.b16 %v5545, %v5545
        %v5550 = vpack.c.b16 %v5546, %v5546
        %v5551 = vpack.c.b16 %v5547, %v5547
        %v5552 = vpack.c.b16 %v5548, %v5548
        %v5554 = vpack.i.b16 %v5549, %v5549
        %v5556 = vperm.slane %v5554, 0
        %v5558 = vpack.i.b16 %v5550, %v5550
        %v5560 = vperm.slane %v5558, 0
        %v5562 = vpack.i.b16 %v5551, %v5551
        %v5564 = vperm.slane %v5562, 0
        %v5566 = vpack.i.b16 %v5552, %v5552
        %v5568 = vperm.slane %v5566, 0
        %v5569 = vunpack.c.l.bf16 %v5528
        %v5570 = vunpack.c.h.bf16 %v5528
        %v5571 = vunpack.c.l.bf16 %v5529
        %v5572 = vunpack.c.h.bf16 %v5529
        %v5573 = vunpack.c.l.bf16 %v5530
        %v5574 = vunpack.c.l.bf16 %v5556
        %v5575 = vunpack.c.l.bf16 %v5560
        %v5576 = vunpack.c.l.bf16 %v5564
        %v5577 = vunpack.c.l.bf16 %v5568
        %5582 = vrot.lane.b32.xlu0 %v5574, 56
        %v5583 = vpop.permute.xlu0 %5582
        %5584 = vrot.lane.b32.xlu0 %v5575, 56
        %v5585 = vpop.permute.xlu0 %5584
        %5586 = vrot.lane.b32.xlu0 %v5576, 56
        %v5587 = vpop.permute.xlu0 %5586
        %5588 = vrot.lane.b32.xlu0 %v5577, 56
        %v5589 = vpop.permute.xlu0 %5588
        %v5590 = vsel %vm610, %v5583, %v5585
        %v5591 = vsel %vm610, %v5585, %v5587
        %v5592 = vsel %vm610, %v5587, %v5589
        %v5598 = vmul.f32 %v5569, %v5583
        %v5599 = vmul.f32 %v5570, %v5590
        %v5600 = vmul.f32 %v5571, %v5591
        %v5601 = vmul.f32 %v5572, %v5592
        %v5602 = vmul.f32 %v5573, %v5589
        %v5603 = vpack.c.bf16 %v5599, %v5598
        %v5604 = vpack.c.bf16 %v5601, %v5600
        %v5605 = vpack.c.bf16 %v5602, %v5602
        %5609 = vrot.lane.b32.xlu0 %v5603, 72
        %v5610 = vpop.permute.xlu0 %5609
        %5611 = vrot.lane.b32.xlu0 %v5604, 72
        %v5612 = vpop.permute.xlu0 %5611
        %5613 = vrot.lane.b32.xlu0 %v5605, 72
        %v5614 = vpop.permute.xlu0 %5613
        %v5615 = vrot.slane %v5610, 4
        %v5616 = vrot.slane %v5612, 4
        %v5617 = vrot.slane %v5614, 4
        %v5618 = vsel %vm538, %v5615, %v5616
        %v5619 = vsel %vm657, %v5610, %v5618
        %v5620 = vsel %vm538, %v5616, %v5617
        %v5621 = vsel %vm657, %v5612, %v5620
        %5624 = vst [vmem:[#allocation5 + $0x130] sm:$0xff] %v5619
        %5625 = vst [vmem:[#allocation5 + $0x138] sm:$0xff] %v5621
        %v5626 = vld [vmem:[#allocation3 + $0x4] sm:$0xff]
        %v5627 = vld [vmem:[#allocation3 + $0xc] sm:$0xff]
        %v5628 = vld [vmem:[#allocation3 + $0x14] sm:$0xf]
        %v5629 = vld [vmem:[%s2635] ss:$8 sm:$0xf]
        %v5631 = vperm.slane %v5629, 0
        %v5632 = vperm.slane %v5629, 1
        %v5633 = vperm.slane %v5629, 2
        %v5634 = vperm.slane %v5629, 3
        %v5639 = vpack.c.bf16 %v5632, %v5631
        %v5640 = vpack.c.bf16 %v5634, %v5633
        %v5643 = vunpack.c.l.b16 %v5639
        %v5644 = vunpack.c.h.b16 %v5639
        %v5645 = vunpack.c.l.b16 %v5640
        %v5646 = vunpack.c.h.b16 %v5640
        %v5647 = vpack.c.b16 %v5643, %v5643
        %v5648 = vpack.c.b16 %v5644, %v5644
        %v5649 = vpack.c.b16 %v5645, %v5645
        %v5650 = vpack.c.b16 %v5646, %v5646
        %v5652 = vpack.i.b16 %v5647, %v5647
        %v5654 = vperm.slane %v5652, 0
        %v5656 = vpack.i.b16 %v5648, %v5648
        %v5658 = vperm.slane %v5656, 0
        %v5660 = vpack.i.b16 %v5649, %v5649
        %v5662 = vperm.slane %v5660, 0
        %v5664 = vpack.i.b16 %v5650, %v5650
        %v5666 = vperm.slane %v5664, 0
        %v5667 = vunpack.c.l.bf16 %v5626
        %v5668 = vunpack.c.h.bf16 %v5626
        %v5669 = vunpack.c.l.bf16 %v5627
        %v5670 = vunpack.c.h.bf16 %v5627
        %v5671 = vunpack.c.l.bf16 %v5628
        %v5672 = vunpack.c.l.bf16 %v5654
        %v5673 = vunpack.c.l.bf16 %v5658
        %v5674 = vunpack.c.l.bf16 %v5662
        %v5675 = vunpack.c.l.bf16 %v5666
        %5680 = vrot.lane.b32.xlu0 %v5672, 57
        %v5681 = vpop.permute.xlu0 %5680
        %5682 = vrot.lane.b32.xlu0 %v5673, 57
        %v5683 = vpop.permute.xlu0 %5682
        %5684 = vrot.lane.b32.xlu0 %v5674, 57
        %v5685 = vpop.permute.xlu0 %5684
        %5686 = vrot.lane.b32.xlu0 %v5675, 57
        %v5687 = vpop.permute.xlu0 %5686
        %v5688 = vsel %vm727, %v5681, %v5683
        %v5689 = vsel %vm727, %v5683, %v5685
        %v5690 = vsel %vm727, %v5685, %v5687
        %v5696 = vmul.f32 %v5667, %v5681
        %v5697 = vmul.f32 %v5668, %v5688
        %v5698 = vmul.f32 %v5669, %v5689
        %v5699 = vmul.f32 %v5670, %v5690
        %v5700 = vmul.f32 %v5671, %v5687
        %v5701 = vpack.c.bf16 %v5697, %v5696
        %v5702 = vpack.c.bf16 %v5699, %v5698
        %v5703 = vpack.c.bf16 %v5700, %v5700
        %5707 = vrot.lane.b32.xlu0 %v5701, 71
        %v5708 = vpop.permute.xlu0 %5707
        %5709 = vrot.lane.b32.xlu0 %v5702, 71
        %v5710 = vpop.permute.xlu0 %5709
        %5711 = vrot.lane.b32.xlu0 %v5703, 71
        %v5712 = vpop.permute.xlu0 %5711
        %v5713 = vrot.slane %v5708, 4
        %v5714 = vrot.slane %v5710, 4
        %v5715 = vrot.slane %v5712, 4
        %v5716 = vsel %vm538, %v5713, %v5714
        %v5717 = vsel %vm771, %v5708, %v5716
        %v5718 = vsel %vm538, %v5714, %v5715
        %v5719 = vsel %vm771, %v5710, %v5718
        %5722 = vst [vmem:[#allocation5 + $0x140] sm:$0xff] %v5717
        %5723 = vst [vmem:[#allocation5 + $0x148] sm:$0xff] %v5719
        %v5724 = vld [vmem:[#allocation3 + $0x4] sm:$0xff]
        %v5725 = vld [vmem:[#allocation3 + $0xc] sm:$0xff]
        %v5726 = vld [vmem:[#allocation3 + $0x14] sm:$0xf]
        %v5727 = vld [vmem:[%s2747] ss:$8 sm:$0xf]
        %v5729 = vperm.slane %v5727, 0
        %v5730 = vperm.slane %v5727, 1
        %v5731 = vperm.slane %v5727, 2
        %v5732 = vperm.slane %v5727, 3
        %v5737 = vpack.c.bf16 %v5730, %v5729
        %v5738 = vpack.c.bf16 %v5732, %v5731
        %v5741 = vunpack.c.l.b16 %v5737
        %v5742 = vunpack.c.h.b16 %v5737
        %v5743 = vunpack.c.l.b16 %v5738
        %v5744 = vunpack.c.h.b16 %v5738
        %v5745 = vpack.c.b16 %v5741, %v5741
        %v5746 = vpack.c.b16 %v5742, %v5742
        %v5747 = vpack.c.b16 %v5743, %v5743
        %v5748 = vpack.c.b16 %v5744, %v5744
        %v5750 = vpack.i.b16 %v5745, %v5745
        %v5752 = vperm.slane %v5750, 0
        %v5754 = vpack.i.b16 %v5746, %v5746
        %v5756 = vperm.slane %v5754, 0
        %v5758 = vpack.i.b16 %v5747, %v5747
        %v5760 = vperm.slane %v5758, 0
        %v5762 = vpack.i.b16 %v5748, %v5748
        %v5764 = vperm.slane %v5762, 0
        %v5765 = vunpack.c.l.bf16 %v5724
        %v5766 = vunpack.c.h.bf16 %v5724
        %v5767 = vunpack.c.l.bf16 %v5725
        %v5768 = vunpack.c.h.bf16 %v5725
        %v5769 = vunpack.c.l.bf16 %v5726
        %v5770 = vunpack.c.l.bf16 %v5752
        %v5771 = vunpack.c.l.bf16 %v5756
        %v5772 = vunpack.c.l.bf16 %v5760
        %v5773 = vunpack.c.l.bf16 %v5764
        %5778 = vrot.lane.b32.xlu0 %v5770, 63
        %v5779 = vpop.permute.xlu0 %5778
        %5780 = vrot.lane.b32.xlu0 %v5771, 63
        %v5781 = vpop.permute.xlu0 %5780
        %5782 = vrot.lane.b32.xlu0 %v5772, 63
        %v5783 = vpop.permute.xlu0 %5782
        %5784 = vrot.lane.b32.xlu0 %v5773, 63
        %v5785 = vpop.permute.xlu0 %5784
        %v5786 = vsel %vm841, %v5779, %v5781
        %v5787 = vsel %vm841, %v5781, %v5783
        %v5788 = vsel %vm841, %v5783, %v5785
        %v5794 = vmul.f32 %v5765, %v5779
        %v5795 = vmul.f32 %v5766, %v5786
        %v5796 = vmul.f32 %v5767, %v5787
        %v5797 = vmul.f32 %v5768, %v5788
        %v5798 = vmul.f32 %v5769, %v5785
        %v5799 = vpack.c.bf16 %v5795, %v5794
        %v5800 = vpack.c.bf16 %v5797, %v5796
        %v5801 = vpack.c.bf16 %v5798, %v5798
        %5805 = vrot.lane.b32.xlu0 %v5799, 65
        %v5806 = vpop.permute.xlu0 %5805
        %5807 = vrot.lane.b32.xlu0 %v5800, 65
        %v5808 = vpop.permute.xlu0 %5807
        %5809 = vrot.lane.b32.xlu0 %v5801, 65
        %v5810 = vpop.permute.xlu0 %5809
        %v5811 = vrot.slane %v5806, 4
        %v5812 = vrot.slane %v5808, 4
        %v5813 = vrot.slane %v5810, 4
        %v5814 = vsel %vm538, %v5811, %v5812
        %v5815 = vsel %vm888, %v5806, %v5814
        %v5816 = vsel %vm538, %v5812, %v5813
        %v5817 = vsel %vm888, %v5808, %v5816
        %5820 = vst [vmem:[#allocation5 + $0x150] sm:$0xff] %v5815
        %5821 = vst [vmem:[#allocation5 + $0x158] sm:$0xff] %v5817
        %v5822 = vld [vmem:[#allocation3 + $0x4] sm:$0xff]
        %v5823 = vld [vmem:[#allocation3 + $0xc] sm:$0xff]
        %v5824 = vld [vmem:[#allocation3 + $0x14] sm:$0xf]
        %v5825 = vld [vmem:[%s2862] ss:$8 sm:$0xf]
        %v5827 = vperm.slane %v5825, 0
        %v5828 = vperm.slane %v5825, 1
        %v5829 = vperm.slane %v5825, 2
        %v5830 = vperm.slane %v5825, 3
        %v5835 = vpack.c.bf16 %v5828, %v5827
        %v5836 = vpack.c.bf16 %v5830, %v5829
        %v5839 = vunpack.c.l.b16 %v5835
        %v5840 = vunpack.c.h.b16 %v5835
        %v5841 = vunpack.c.l.b16 %v5836
        %v5842 = vunpack.c.h.b16 %v5836
        %v5843 = vpack.c.b16 %v5839, %v5839
        %v5844 = vpack.c.b16 %v5840, %v5840
        %v5845 = vpack.c.b16 %v5841, %v5841
        %v5846 = vpack.c.b16 %v5842, %v5842
        %v5848 = vpack.i.b16 %v5843, %v5843
        %v5850 = vperm.slane %v5848, 0
        %v5852 = vpack.i.b16 %v5844, %v5844
        %v5854 = vperm.slane %v5852, 0
        %v5856 = vpack.i.b16 %v5845, %v5845
        %v5858 = vperm.slane %v5856, 0
        %v5860 = vpack.i.b16 %v5846, %v5846
        %v5862 = vperm.slane %v5860, 0
        %v5863 = vunpack.c.l.bf16 %v5822
        %v5864 = vunpack.c.h.bf16 %v5822
        %v5865 = vunpack.c.l.bf16 %v5823
        %v5866 = vunpack.c.h.bf16 %v5823
        %v5867 = vunpack.c.l.bf16 %v5824
        %v5868 = vunpack.c.l.bf16 %v5850
        %v5869 = vunpack.c.l.bf16 %v5854
        %v5870 = vunpack.c.l.bf16 %v5858
        %v5871 = vunpack.c.l.bf16 %v5862
        %5876 = vrot.lane.b32.xlu0 %v5868, 64
        %v5877 = vpop.permute.xlu0 %5876
        %5878 = vrot.lane.b32.xlu0 %v5869, 64
        %v5879 = vpop.permute.xlu0 %5878
        %5880 = vrot.lane.b32.xlu0 %v5870, 64
        %v5881 = vpop.permute.xlu0 %5880
        %5882 = vrot.lane.b32.xlu0 %v5871, 64
        %v5883 = vpop.permute.xlu0 %5882
        %v5884 = vsel %vm958, %v5877, %v5879
        %v5885 = vsel %vm958, %v5879, %v5881
        %v5886 = vsel %vm958, %v5881, %v5883
        %v5892 = vmul.f32 %v5863, %v5877
        %v5893 = vmul.f32 %v5864, %v5884
        %v5894 = vmul.f32 %v5865, %v5885
        %v5895 = vmul.f32 %v5866, %v5886
        %v5896 = vmul.f32 %v5867, %v5883
        %v5897 = vpack.c.bf16 %v5893, %v5892
        %v5898 = vpack.c.bf16 %v5895, %v5894
        %v5899 = vpack.c.bf16 %v5896, %v5896
        %5903 = vrot.lane.b32.xlu0 %v5897, 64
        %v5904 = vpop.permute.xlu0 %5903
        %5905 = vrot.lane.b32.xlu0 %v5898, 64
        %v5906 = vpop.permute.xlu0 %5905
        %5907 = vrot.lane.b32.xlu0 %v5899, 64
        %v5908 = vpop.permute.xlu0 %5907
        %v5909 = vrot.slane %v5904, 4
        %v5910 = vrot.slane %v5906, 4
        %v5911 = vrot.slane %v5908, 4
        %v5912 = vsel %vm538, %v5909, %v5910
        %v5913 = vsel %vm1002, %v5904, %v5912
        %v5914 = vsel %vm538, %v5910, %v5911
        %v5915 = vsel %vm1002, %v5906, %v5914
        %5918 = vst [vmem:[#allocation5 + $0x160] sm:$0xff] %v5913
        %5919 = vst [vmem:[#allocation5 + $0x168] sm:$0xff] %v5915
        %v5920 = vld [vmem:[#allocation3 + $0x4] sm:$0xff]
        %v5921 = vld [vmem:[#allocation3 + $0xc] sm:$0xff]
        %v5922 = vld [vmem:[#allocation3 + $0x14] sm:$0xf]
        %v5923 = vld [vmem:[%s2974] ss:$8 sm:$0xf]
        %v5925 = vperm.slane %v5923, 0
        %v5926 = vperm.slane %v5923, 1
        %v5927 = vperm.slane %v5923, 2
        %v5928 = vperm.slane %v5923, 3
        %v5933 = vpack.c.bf16 %v5926, %v5925
        %v5934 = vpack.c.bf16 %v5928, %v5927
        %v5937 = vunpack.c.l.b16 %v5933
        %v5938 = vunpack.c.h.b16 %v5933
        %v5939 = vunpack.c.l.b16 %v5934
        %v5940 = vunpack.c.h.b16 %v5934
        %v5941 = vpack.c.b16 %v5937, %v5937
        %v5942 = vpack.c.b16 %v5938, %v5938
        %v5943 = vpack.c.b16 %v5939, %v5939
        %v5944 = vpack.c.b16 %v5940, %v5940
        %v5946 = vpack.i.b16 %v5941, %v5941
        %v5948 = vperm.slane %v5946, 0
        %v5950 = vpack.i.b16 %v5942, %v5942
        %v5952 = vperm.slane %v5950, 0
        %v5954 = vpack.i.b16 %v5943, %v5943
        %v5956 = vperm.slane %v5954, 0
        %v5958 = vpack.i.b16 %v5944, %v5944
        %v5960 = vperm.slane %v5958, 0
        %v5961 = vunpack.c.l.bf16 %v5920
        %v5962 = vunpack.c.h.bf16 %v5920
        %v5963 = vunpack.c.l.bf16 %v5921
        %v5964 = vunpack.c.h.bf16 %v5921
        %v5965 = vunpack.c.l.bf16 %v5922
        %v5966 = vunpack.c.l.bf16 %v5948
        %v5967 = vunpack.c.l.bf16 %v5952
        %v5968 = vunpack.c.l.bf16 %v5956
        %v5969 = vunpack.c.l.bf16 %v5960
        %5974 = vrot.lane.b32.xlu0 %v5966, 65
        %v5975 = vpop.permute.xlu0 %5974
        %5976 = vrot.lane.b32.xlu0 %v5967, 65
        %v5977 = vpop.permute.xlu0 %5976
        %5978 = vrot.lane.b32.xlu0 %v5968, 65
        %v5979 = vpop.permute.xlu0 %5978
        %5980 = vrot.lane.b32.xlu0 %v5969, 65
        %v5981 = vpop.permute.xlu0 %5980
        %v5982 = vsel %vm1072, %v5975, %v5977
        %v5983 = vsel %vm1072, %v5977, %v5979
        %v5984 = vsel %vm1072, %v5979, %v5981
        %v5990 = vmul.f32 %v5961, %v5975
        %v5991 = vmul.f32 %v5962, %v5982
        %v5992 = vmul.f32 %v5963, %v5983
        %v5993 = vmul.f32 %v5964, %v5984
        %v5994 = vmul.f32 %v5965, %v5981
        %v5995 = vpack.c.bf16 %v5991, %v5990
        %v5996 = vpack.c.bf16 %v5993, %v5992
        %v5997 = vpack.c.bf16 %v5994, %v5994
        %6001 = vrot.lane.b32.xlu0 %v5995, 63
        %v6002 = vpop.permute.xlu0 %6001
        %6003 = vrot.lane.b32.xlu0 %v5996, 63
        %v6004 = vpop.permute.xlu0 %6003
        %6005 = vrot.lane.b32.xlu0 %v5997, 63
        %v6006 = vpop.permute.xlu0 %6005
        %v6007 = vrot.slane %v6002, 4
        %v6008 = vrot.slane %v6004, 4
        %v6009 = vrot.slane %v6006, 4
        %v6010 = vsel %vm538, %v6007, %v6008
        %v6011 = vsel %vm1119, %v6002, %v6010
        %v6012 = vsel %vm538, %v6008, %v6009
        %v6013 = vsel %vm1119, %v6004, %v6012
        %6016 = vst [vmem:[#allocation5 + $0x170] sm:$0xff] %v6011
        %6017 = vst [vmem:[#allocation5 + $0x178] sm:$0xff] %v6013
        %v6018 = vld [vmem:[#allocation3 + $0x4] sm:$0xff]
        %v6019 = vld [vmem:[#allocation3 + $0xc] sm:$0xff]
        %v6020 = vld [vmem:[#allocation3 + $0x14] sm:$0xf]
        %v6021 = vld [vmem:[%s3089] ss:$8 sm:$0xf]
        %v6023 = vperm.slane %v6021, 0
        %v6024 = vperm.slane %v6021, 1
        %v6025 = vperm.slane %v6021, 2
        %v6026 = vperm.slane %v6021, 3
        %v6031 = vpack.c.bf16 %v6024, %v6023
        %v6032 = vpack.c.bf16 %v6026, %v6025
        %v6035 = vunpack.c.l.b16 %v6031
        %v6036 = vunpack.c.h.b16 %v6031
        %v6037 = vunpack.c.l.b16 %v6032
        %v6038 = vunpack.c.h.b16 %v6032
        %v6039 = vpack.c.b16 %v6035, %v6035
        %v6040 = vpack.c.b16 %v6036, %v6036
        %v6041 = vpack.c.b16 %v6037, %v6037
        %v6042 = vpack.c.b16 %v6038, %v6038
        %v6044 = vpack.i.b16 %v6039, %v6039
        %v6046 = vperm.slane %v6044, 0
        %v6048 = vpack.i.b16 %v6040, %v6040
        %v6050 = vperm.slane %v6048, 0
        %v6052 = vpack.i.b16 %v6041, %v6041
        %v6054 = vperm.slane %v6052, 0
        %v6056 = vpack.i.b16 %v6042, %v6042
        %v6058 = vperm.slane %v6056, 0
        %v6059 = vunpack.c.l.bf16 %v6018
        %v6060 = vunpack.c.h.bf16 %v6018
        %v6061 = vunpack.c.l.bf16 %v6019
        %v6062 = vunpack.c.h.bf16 %v6019
        %v6063 = vunpack.c.l.bf16 %v6020
        %v6064 = vunpack.c.l.bf16 %v6046
        %v6065 = vunpack.c.l.bf16 %v6050
        %v6066 = vunpack.c.l.bf16 %v6054
        %v6067 = vunpack.c.l.bf16 %v6058
        %6072 = vrot.lane.b32.xlu0 %v6064, 71
        %v6073 = vpop.permute.xlu0 %6072
        %6074 = vrot.lane.b32.xlu0 %v6065, 71
        %v6075 = vpop.permute.xlu0 %6074
        %6076 = vrot.lane.b32.xlu0 %v6066, 71
        %v6077 = vpop.permute.xlu0 %6076
        %6078 = vrot.lane.b32.xlu0 %v6067, 71
        %v6079 = vpop.permute.xlu0 %6078
        %v6080 = vsel %vm1189, %v6073, %v6075
        %v6081 = vsel %vm1189, %v6075, %v6077
        %v6082 = vsel %vm1189, %v6077, %v6079
        %v6088 = vmul.f32 %v6059, %v6073
        %v6089 = vmul.f32 %v6060, %v6080
        %v6090 = vmul.f32 %v6061, %v6081
        %v6091 = vmul.f32 %v6062, %v6082
        %v6092 = vmul.f32 %v6063, %v6079
        %v6093 = vpack.c.bf16 %v6089, %v6088
        %v6094 = vpack.c.bf16 %v6091, %v6090
        %v6095 = vpack.c.bf16 %v6092, %v6092
        %6099 = vrot.lane.b32.xlu0 %v6093, 57
        %v6100 = vpop.permute.xlu0 %6099
        %6101 = vrot.lane.b32.xlu0 %v6094, 57
        %v6102 = vpop.permute.xlu0 %6101
        %6103 = vrot.lane.b32.xlu0 %v6095, 57
        %v6104 = vpop.permute.xlu0 %6103
        %v6105 = vrot.slane %v6100, 4
        %v6106 = vrot.slane %v6102, 4
        %v6107 = vrot.slane %v6104, 4
        %v6108 = vsel %vm538, %v6105, %v6106
        %v6109 = vsel %vm1233, %v6100, %v6108
        %v6110 = vsel %vm538, %v6106, %v6107
        %v6111 = vsel %vm1233, %v6102, %v6110
        %6114 = vst [vmem:[#allocation5 + $0x180] sm:$0xff] %v6109
        %6115 = vst [vmem:[#allocation5 + $0x188] sm:$0xff] %v6111
        %v6116 = vld [vmem:[#allocation3 + $0x4] sm:$0xff]
        %v6117 = vld [vmem:[#allocation3 + $0xc] sm:$0xff]
        %v6118 = vld [vmem:[#allocation3 + $0x14] sm:$0xf]
        %v6119 = vld [vmem:[%s3201] ss:$8 sm:$0xf]
        %v6121 = vperm.slane %v6119, 0
        %v6122 = vperm.slane %v6119, 1
        %v6123 = vperm.slane %v6119, 2
        %v6124 = vperm.slane %v6119, 3
        %v6129 = vpack.c.bf16 %v6122, %v6121
        %v6130 = vpack.c.bf16 %v6124, %v6123
        %v6133 = vunpack.c.l.b16 %v6129
        %v6134 = vunpack.c.h.b16 %v6129
        %v6135 = vunpack.c.l.b16 %v6130
        %v6136 = vunpack.c.h.b16 %v6130
        %v6137 = vpack.c.b16 %v6133, %v6133
        %v6138 = vpack.c.b16 %v6134, %v6134
        %v6139 = vpack.c.b16 %v6135, %v6135
        %v6140 = vpack.c.b16 %v6136, %v6136
        %v6142 = vpack.i.b16 %v6137, %v6137
        %v6144 = vperm.slane %v6142, 0
        %v6146 = vpack.i.b16 %v6138, %v6138
        %v6148 = vperm.slane %v6146, 0
        %v6150 = vpack.i.b16 %v6139, %v6139
        %v6152 = vperm.slane %v6150, 0
        %v6154 = vpack.i.b16 %v6140, %v6140
        %v6156 = vperm.slane %v6154, 0
        %v6157 = vunpack.c.l.bf16 %v6116
        %v6158 = vunpack.c.h.bf16 %v6116
        %v6159 = vunpack.c.l.bf16 %v6117
        %v6160 = vunpack.c.h.bf16 %v6117
        %v6161 = vunpack.c.l.bf16 %v6118
        %v6162 = vunpack.c.l.bf16 %v6144
        %v6163 = vunpack.c.l.bf16 %v6148
        %v6164 = vunpack.c.l.bf16 %v6152
        %v6165 = vunpack.c.l.bf16 %v6156
        %6170 = vrot.lane.b32.xlu0 %v6162, 72
        %v6171 = vpop.permute.xlu0 %6170
        %6172 = vrot.lane.b32.xlu0 %v6163, 72
        %v6173 = vpop.permute.xlu0 %6172
        %6174 = vrot.lane.b32.xlu0 %v6164, 72
        %v6175 = vpop.permute.xlu0 %6174
        %6176 = vrot.lane.b32.xlu0 %v6165, 72
        %v6177 = vpop.permute.xlu0 %6176
        %v6178 = vsel %vm1303, %v6171, %v6173
        %v6179 = vsel %vm1303, %v6173, %v6175
        %v6180 = vsel %vm1303, %v6175, %v6177
        %v6186 = vmul.f32 %v6157, %v6171
        %v6187 = vmul.f32 %v6158, %v6178
        %v6188 = vmul.f32 %v6159, %v6179
        %v6189 = vmul.f32 %v6160, %v6180
        %v6190 = vmul.f32 %v6161, %v6177
        %v6191 = vpack.c.bf16 %v6187, %v6186
        %v6192 = vpack.c.bf16 %v6189, %v6188
        %v6193 = vpack.c.bf16 %v6190, %v6190
        %6197 = vrot.lane.b32.xlu0 %v6191, 56
        %v6198 = vpop.permute.xlu0 %6197
        %6199 = vrot.lane.b32.xlu0 %v6192, 56
        %v6200 = vpop.permute.xlu0 %6199
        %6201 = vrot.lane.b32.xlu0 %v6193, 56
        %v6202 = vpop.permute.xlu0 %6201
        %v6203 = vrot.slane %v6198, 4
        %v6204 = vrot.slane %v6200, 4
        %v6205 = vrot.slane %v6202, 4
        %v6206 = vsel %vm538, %v6203, %v6204
        %v6207 = vsel %vm1350, %v6198, %v6206
        %v6208 = vsel %vm538, %v6204, %v6205
        %v6209 = vsel %vm1350, %v6200, %v6208
        %6212 = vst [vmem:[#allocation5 + $0x190] sm:$0xff] %v6207
        %6213 = vst [vmem:[#allocation5 + $0x198] sm:$0xff] %v6209
        %v6214 = vld [vmem:[#allocation3 + $0x4] sm:$0xff]
        %v6215 = vld [vmem:[#allocation3 + $0xc] sm:$0xff]
        %v6216 = vld [vmem:[#allocation3 + $0x14] sm:$0xf]
        %v6217 = vld [vmem:[%s3316] ss:$8 sm:$0xf]
        %v6219 = vperm.slane %v6217, 0
        %v6220 = vperm.slane %v6217, 1
        %v6221 = vperm.slane %v6217, 2
        %v6222 = vperm.slane %v6217, 3
        %v6227 = vpack.c.bf16 %v6220, %v6219
        %v6228 = vpack.c.bf16 %v6222, %v6221
        %v6231 = vunpack.c.l.b16 %v6227
        %v6232 = vunpack.c.h.b16 %v6227
        %v6233 = vunpack.c.l.b16 %v6228
        %v6234 = vunpack.c.h.b16 %v6228
        %v6235 = vpack.c.b16 %v6231, %v6231
        %v6236 = vpack.c.b16 %v6232, %v6232
        %v6237 = vpack.c.b16 %v6233, %v6233
        %v6238 = vpack.c.b16 %v6234, %v6234
        %v6240 = vpack.i.b16 %v6235, %v6235
        %v6242 = vperm.slane %v6240, 0
        %v6244 = vpack.i.b16 %v6236, %v6236
        %v6246 = vperm.slane %v6244, 0
        %v6248 = vpack.i.b16 %v6237, %v6237
        %v6250 = vperm.slane %v6248, 0
        %v6252 = vpack.i.b16 %v6238, %v6238
        %v6254 = vperm.slane %v6252, 0
        %v6255 = vunpack.c.l.bf16 %v6214
        %v6256 = vunpack.c.h.bf16 %v6214
        %v6257 = vunpack.c.l.bf16 %v6215
        %v6258 = vunpack.c.h.bf16 %v6215
        %v6259 = vunpack.c.l.bf16 %v6216
        %v6260 = vunpack.c.l.bf16 %v6242
        %v6261 = vunpack.c.l.bf16 %v6246
        %v6262 = vunpack.c.l.bf16 %v6250
        %v6263 = vunpack.c.l.bf16 %v6254
        %6268 = vrot.lane.b32.xlu0 %v6260, 73
        %v6269 = vpop.permute.xlu0 %6268
        %6270 = vrot.lane.b32.xlu0 %v6261, 73
        %v6271 = vpop.permute.xlu0 %6270
        %6272 = vrot.lane.b32.xlu0 %v6262, 73
        %v6273 = vpop.permute.xlu0 %6272
        %6274 = vrot.lane.b32.xlu0 %v6263, 73
        %v6275 = vpop.permute.xlu0 %6274
        %v6276 = vsel %vm1420, %v6269, %v6271
        %v6277 = vsel %vm1420, %v6271, %v6273
        %v6278 = vsel %vm1420, %v6273, %v6275
        %v6284 = vmul.f32 %v6255, %v6269
        %v6285 = vmul.f32 %v6256, %v6276
        %v6286 = vmul.f32 %v6257, %v6277
        %v6287 = vmul.f32 %v6258, %v6278
        %v6288 = vmul.f32 %v6259, %v6275
        %v6289 = vpack.c.bf16 %v6285, %v6284
        %v6290 = vpack.c.bf16 %v6287, %v6286
        %v6291 = vpack.c.bf16 %v6288, %v6288
        %6295 = vrot.lane.b32.xlu0 %v6289, 55
        %v6296 = vpop.permute.xlu0 %6295
        %6297 = vrot.lane.b32.xlu0 %v6290, 55
        %v6298 = vpop.permute.xlu0 %6297
        %6299 = vrot.lane.b32.xlu0 %v6291, 55
        %v6300 = vpop.permute.xlu0 %6299
        %v6301 = vrot.slane %v6296, 4
        %v6302 = vrot.slane %v6298, 4
        %v6303 = vrot.slane %v6300, 4
        %v6304 = vsel %vm538, %v6301, %v6302
        %v6305 = vsel %vm1464, %v6296, %v6304
        %v6306 = vsel %vm538, %v6302, %v6303
        %v6307 = vsel %vm1464, %v6298, %v6306
        %6310 = vst [vmem:[#allocation5 + $0x1a0] sm:$0xff] %v6305
        %6311 = vst [vmem:[#allocation5 + $0x1a8] sm:$0xff] %v6307
        %v6312 = vld [vmem:[%s6] sm:$0xff]
        %v6313 = vld [vmem:[#allocation5] sm:$0xff]
        %v6314 = vld [vmem:[#allocation5 + $0x8] sm:$0xff]
        %v6315 = vld [vmem:[#allocation5 + $0x10] sm:$0xff]
        %v6316 = vld [vmem:[#allocation5 + $0x18] sm:$0xff]
        %v6317 = vld [vmem:[#allocation5 + $0x20] sm:$0xff]
        %v6318 = vld [vmem:[#allocation5 + $0x28] sm:$0xff]
        %v6319 = vld [vmem:[#allocation5 + $0x30] sm:$0xff]
        %v6320 = vld [vmem:[#allocation5 + $0x38] sm:$0xff]
        %v6321 = vld [vmem:[#allocation5 + $0x40] sm:$0xff]
        %v6322 = vld [vmem:[#allocation5 + $0x48] sm:$0xff]
        %v6323 = vld [vmem:[#allocation5 + $0x50] sm:$0xff]
        %v6324 = vld [vmem:[#allocation5 + $0x58] sm:$0xff]
        %v6325 = vld [vmem:[#allocation5 + $0x60] sm:$0xff]
        %v6326 = vld [vmem:[#allocation5 + $0x68] sm:$0xff]
        %v6327 = vld [vmem:[#allocation5 + $0x70] sm:$0xff]
        %v6328 = vld [vmem:[#allocation5 + $0x78] sm:$0xff]
        %v6329 = vld [vmem:[#allocation5 + $0x80] sm:$0xff]
        %v6330 = vld [vmem:[#allocation5 + $0x88] sm:$0xff]
        %v6331 = vld [vmem:[#allocation5 + $0x90] sm:$0xff]
        %v6332 = vld [vmem:[#allocation5 + $0x98] sm:$0xff]
        %v6333 = vld [vmem:[#allocation5 + $0xa0] sm:$0xff]
        %v6334 = vld [vmem:[#allocation5 + $0xa8] sm:$0xff]
        %v6335 = vld [vmem:[#allocation5 + $0xb0] sm:$0xff]
        %v6336 = vld [vmem:[#allocation5 + $0xb8] sm:$0xff]
        %v6337 = vld [vmem:[#allocation5 + $0xc0] sm:$0xff]
        %v6338 = vld [vmem:[#allocation5 + $0xc8] sm:$0xff]
        %v6339 = vld [vmem:[#allocation5 + $0xd0] sm:$0xff]
        %v6340 = vld [vmem:[#allocation5 + $0xd8] sm:$0xff]
        %v6341 = vld [vmem:[#allocation5 + $0xe0] sm:$0xff]
        %v6342 = vld [vmem:[#allocation5 + $0xe8] sm:$0xff]
        %v6343 = vld [vmem:[#allocation5 + $0xf0] sm:$0xff]
        %v6344 = vld [vmem:[#allocation5 + $0xf8] sm:$0xff]
        %v6345 = vld [vmem:[#allocation5 + $0x100] sm:$0xff]
        %v6346 = vld [vmem:[#allocation5 + $0x108] sm:$0xff]
        %v6347 = vld [vmem:[#allocation5 + $0x110] sm:$0xff]
        %v6348 = vld [vmem:[#allocation5 + $0x118] sm:$0xff]
        %v6349 = vld [vmem:[#allocation5 + $0x120] sm:$0xff]
        %v6350 = vld [vmem:[#allocation5 + $0x128] sm:$0xff]
        %v6351 = vld [vmem:[#allocation5 + $0x130] sm:$0xff]
        %v6352 = vld [vmem:[#allocation5 + $0x138] sm:$0xff]
        %v6353 = vld [vmem:[#allocation5 + $0x140] sm:$0xff]
        %v6354 = vld [vmem:[#allocation5 + $0x148] sm:$0xff]
        %v6355 = vld [vmem:[#allocation5 + $0x150] sm:$0xff]
        %v6356 = vld [vmem:[#allocation5 + $0x158] sm:$0xff]
        %v6357 = vld [vmem:[#allocation5 + $0x160] sm:$0xff]
        %v6358 = vld [vmem:[#allocation5 + $0x168] sm:$0xff]
        %v6359 = vld [vmem:[#allocation5 + $0x170] sm:$0xff]
        %v6360 = vld [vmem:[#allocation5 + $0x178] sm:$0xff]
        %v6361 = vld [vmem:[#allocation5 + $0x180] sm:$0xff]
        %v6362 = vld [vmem:[#allocation5 + $0x188] sm:$0xff]
        %v6363 = vld [vmem:[#allocation5 + $0x190] sm:$0xff]
        %v6364 = vld [vmem:[#allocation5 + $0x198] sm:$0xff]
        %v6365 = vld [vmem:[#allocation5 + $0x1a0] sm:$0xff]
        %v6366 = vld [vmem:[#allocation5 + $0x1a8] sm:$0xff]
        %v6367 = vld [vmem:[%s7] sm:$0xff]
        %6369 = vset.pattern.permute.xlu0 0
        %6370 = vperm.xlu0 %6369, %v6367
        %v6371 = vpop.permute.xlu0 %6370
        %v6374 = vunpack.c.l.b16 %v6312
        %v6375 = vunpack.c.h.b16 %v6312
        %v6376 = vpack.c.b16 %v6374, %v6374
        %v6377 = vpack.c.b16 %v6375, %v6375
        %v6433 = vunpack.c.l.b16 %v6313
        %v6434 = vunpack.c.h.b16 %v6313
        %v6435 = vunpack.c.l.b16 %v6314
        %v6436 = vunpack.c.h.b16 %v6314
        %v6437 = vunpack.c.l.b16 %v6315
        %v6438 = vunpack.c.h.b16 %v6315
        %v6439 = vunpack.c.l.b16 %v6316
        %v6440 = vunpack.c.h.b16 %v6316
        %v6441 = vunpack.c.l.b16 %v6317
        %v6442 = vunpack.c.h.b16 %v6317
        %v6443 = vunpack.c.l.b16 %v6318
        %v6444 = vunpack.c.h.b16 %v6318
        %v6445 = vunpack.c.l.b16 %v6319
        %v6446 = vunpack.c.h.b16 %v6319
        %v6447 = vunpack.c.l.b16 %v6320
        %v6448 = vunpack.c.h.b16 %v6320
        %v6449 = vunpack.c.l.b16 %v6321
        %v6450 = vunpack.c.h.b16 %v6321
        %v6451 = vunpack.c.l.b16 %v6322
        %v6452 = vunpack.c.h.b16 %v6322
        %v6453 = vunpack.c.l.b16 %v6323
        %v6454 = vunpack.c.h.b16 %v6323
        %v6455 = vunpack.c.l.b16 %v6324
        %v6456 = vunpack.c.h.b16 %v6324
        %v6457 = vunpack.c.l.b16 %v6325
        %v6458 = vunpack.c.h.b16 %v6325
        %v6459 = vunpack.c.l.b16 %v6326
        %v6460 = vunpack.c.h.b16 %v6326
        %v6461 = vunpack.c.l.b16 %v6327
        %v6462 = vunpack.c.h.b16 %v6327
        %v6463 = vunpack.c.l.b16 %v6328
        %v6464 = vunpack.c.h.b16 %v6328
        %v6465 = vunpack.c.l.b16 %v6329
        %v6466 = vunpack.c.h.b16 %v6329
        %v6467 = vunpack.c.l.b16 %v6330
        %v6468 = vunpack.c.h.b16 %v6330
        %v6469 = vunpack.c.l.b16 %v6331
        %v6470 = vunpack.c.h.b16 %v6331
        %v6471 = vunpack.c.l.b16 %v6332
        %v6472 = vunpack.c.h.b16 %v6332
        %v6473 = vunpack.c.l.b16 %v6333
        %v6474 = vunpack.c.h.b16 %v6333
        %v6475 = vunpack.c.l.b16 %v6334
        %v6476 = vunpack.c.h.b16 %v6334
        %v6477 = vunpack.c.l.b16 %v6335
        %v6478 = vunpack.c.h.b16 %v6335
        %v6479 = vunpack.c.l.b16 %v6336
        %v6480 = vunpack.c.h.b16 %v6336
        %v6481 = vunpack.c.l.b16 %v6337
        %v6482 = vunpack.c.h.b16 %v6337
        %v6483 = vunpack.c.l.b16 %v6338
        %v6484 = vunpack.c.h.b16 %v6338
        %v6485 = vunpack.c.l.b16 %v6339
        %v6486 = vunpack.c.h.b16 %v6339
        %v6487 = vunpack.c.l.b16 %v6340
        %v6488 = vunpack.c.h.b16 %v6340
        %v6489 = vunpack.c.l.b16 %v6341
        %v6490 = vunpack.c.h.b16 %v6341
        %v6491 = vunpack.c.l.b16 %v6342
        %v6492 = vunpack.c.h.b16 %v6342
        %v6493 = vunpack.c.l.b16 %v6343
        %v6494 = vunpack.c.h.b16 %v6343
        %v6495 = vunpack.c.l.b16 %v6344
        %v6496 = vunpack.c.h.b16 %v6344
        %v6497 = vunpack.c.l.b16 %v6345
        %v6498 = vunpack.c.h.b16 %v6345
        %v6499 = vunpack.c.l.b16 %v6346
        %v6500 = vunpack.c.h.b16 %v6346
        %v6501 = vunpack.c.l.b16 %v6347
        %v6502 = vunpack.c.h.b16 %v6347
        %v6503 = vunpack.c.l.b16 %v6348
        %v6504 = vunpack.c.h.b16 %v6348
        %v6505 = vunpack.c.l.b16 %v6349
        %v6506 = vunpack.c.h.b16 %v6349
        %v6507 = vunpack.c.l.b16 %v6350
        %v6508 = vunpack.c.h.b16 %v6350
        %v6509 = vunpack.c.l.b16 %v6351
        %v6510 = vunpack.c.h.b16 %v6351
        %v6511 = vunpack.c.l.b16 %v6352
        %v6512 = vunpack.c.h.b16 %v6352
        %v6513 = vunpack.c.l.b16 %v6353
        %v6514 = vunpack.c.h.b16 %v6353
        %v6515 = vunpack.c.l.b16 %v6354
        %v6516 = vunpack.c.h.b16 %v6354
        %v6517 = vunpack.c.l.b16 %v6355
        %v6518 = vunpack.c.h.b16 %v6355
        %v6519 = vunpack.c.l.b16 %v6356
        %v6520 = vunpack.c.h.b16 %v6356
        %v6521 = vunpack.c.l.b16 %v6357
        %v6522 = vunpack.c.h.b16 %v6357
        %v6523 = vunpack.c.l.b16 %v6358
        %v6524 = vunpack.c.h.b16 %v6358
        %v6525 = vunpack.c.l.b16 %v6359
        %v6526 = vunpack.c.h.b16 %v6359
        %v6527 = vunpack.c.l.b16 %v6360
        %v6528 = vunpack.c.h.b16 %v6360
        %v6529 = vunpack.c.l.b16 %v6361
        %v6530 = vunpack.c.h.b16 %v6361
        %v6531 = vunpack.c.l.b16 %v6362
        %v6532 = vunpack.c.h.b16 %v6362
        %v6533 = vunpack.c.l.b16 %v6363
        %v6534 = vunpack.c.h.b16 %v6363
        %v6535 = vunpack.c.l.b16 %v6364
        %v6536 = vunpack.c.h.b16 %v6364
        %v6537 = vunpack.c.l.b16 %v6365
        %v6538 = vunpack.c.h.b16 %v6365
        %v6539 = vunpack.c.l.b16 %v6366
        %v6540 = vunpack.c.h.b16 %v6366
        %v6541 = vpack.c.b16 %v6437, %v6433
        %v6542 = vpack.c.b16 %v6438, %v6434
        %v6543 = vpack.c.b16 %v6439, %v6435
        %v6544 = vpack.c.b16 %v6440, %v6436
        %v6545 = vpack.c.b16 %v6445, %v6441
        %v6546 = vpack.c.b16 %v6446, %v6442
        %v6547 = vpack.c.b16 %v6447, %v6443
        %v6548 = vpack.c.b16 %v6448, %v6444
        %v6549 = vpack.c.b16 %v6453, %v6449
        %v6550 = vpack.c.b16 %v6454, %v6450
        %v6551 = vpack.c.b16 %v6455, %v6451
        %v6552 = vpack.c.b16 %v6456, %v6452
        %v6553 = vpack.c.b16 %v6461, %v6457
        %v6554 = vpack.c.b16 %v6462, %v6458
        %v6555 = vpack.c.b16 %v6463, %v6459
        %v6556 = vpack.c.b16 %v6464, %v6460
        %v6557 = vpack.c.b16 %v6469, %v6465
        %v6558 = vpack.c.b16 %v6470, %v6466
        %v6559 = vpack.c.b16 %v6471, %v6467
        %v6560 = vpack.c.b16 %v6472, %v6468
        %v6561 = vpack.c.b16 %v6477, %v6473
        %v6562 = vpack.c.b16 %v6478, %v6474
        %v6563 = vpack.c.b16 %v6479, %v6475
        %v6564 = vpack.c.b16 %v6480, %v6476
        %v6565 = vpack.c.b16 %v6485, %v6481
        %v6566 = vpack.c.b16 %v6486, %v6482
        %v6567 = vpack.c.b16 %v6487, %v6483
        %v6568 = vpack.c.b16 %v6488, %v6484
        %v6569 = vpack.c.b16 %v6493, %v6489
        %v6570 = vpack.c.b16 %v6494, %v6490
        %v6571 = vpack.c.b16 %v6495, %v6491
        %v6572 = vpack.c.b16 %v6496, %v6492
        %v6573 = vpack.c.b16 %v6501, %v6497
        %v6574 = vpack.c.b16 %v6502, %v6498
        %v6575 = vpack.c.b16 %v6503, %v6499
        %v6576 = vpack.c.b16 %v6504, %v6500
        %v6577 = vpack.c.b16 %v6509, %v6505
        %v6578 = vpack.c.b16 %v6510, %v6506
        %v6579 = vpack.c.b16 %v6511, %v6507
        %v6580 = vpack.c.b16 %v6512, %v6508
        %v6581 = vpack.c.b16 %v6517, %v6513
        %v6582 = vpack.c.b16 %v6518, %v6514
        %v6583 = vpack.c.b16 %v6519, %v6515
        %v6584 = vpack.c.b16 %v6520, %v6516
        %v6585 = vpack.c.b16 %v6525, %v6521
        %v6586 = vpack.c.b16 %v6526, %v6522
        %v6587 = vpack.c.b16 %v6527, %v6523
        %v6588 = vpack.c.b16 %v6528, %v6524
        %v6589 = vpack.c.b16 %v6533, %v6529
        %v6590 = vpack.c.b16 %v6534, %v6530
        %v6591 = vpack.c.b16 %v6535, %v6531
        %v6592 = vpack.c.b16 %v6536, %v6532
        %v6593 = vpack.c.b16 %v6537, %v6537
        %v6594 = vpack.c.b16 %v6538, %v6538
        %v6595 = vpack.c.b16 %v6539, %v6539
        %v6596 = vpack.c.b16 %v6540, %v6540
        %vm6649 = vcmask 719872
        %v6651 = vsel %vm6649, %v6377, 0
        %v6654 = vsel %vm430, %v6593, 0
        %v6657 = vsel %vm430, %v6594, 0
        %v6660 = vsel %vm430, %v6595, 0
        %v6663 = vsel %vm430, %v6596, 0
        %6665 = vmatpush.bf16.msra.mxu0 %v6569
        %6666 = vmatpush.bf16.msra.mxu0 %v6565
        %6667 = vmatpush.bf16.msra.mxu0 %v6561
        %6668 = vmatpush.bf16.msra.mxu0 %v6557
        %6669 = vmatpush.bf16.msra.mxu0 %v6553
        %6670 = vmatpush.bf16.msra.mxu0 %v6549
        %6671 = vmatpush.bf16.msra.mxu0 %v6545
        %6672 = vmatpush.bf16.msra.mxu0 %v6541
        %6673 = vmatmul.bf16.gmra.mxu0 %v6376
        %v6674 = vpop.f32.mrf.mxu0
        %v6675 = vadd.f32 %v6371, %v6674
        %v6676 = vpop.f32.mrf.mxu0
        %6677 = vdwg.mxu0
        %6678 = vmatpush.bf16.msra.mxu0 0
        %6679 = vmatpush.bf16.msra.mxu0 0
        %6680 = vmatpush.bf16.msra.mxu0 %v6654
        %6681 = vmatpush.bf16.msra.mxu0 %v6589
        %6682 = vmatpush.bf16.msra.mxu0 %v6585
        %6683 = vmatpush.bf16.msra.mxu0 %v6581
        %6684 = vmatpush.bf16.msra.mxu0 %v6577
        %6685 = vmatpush.bf16.msra.mxu0 %v6573
        %6686 = vmatmul.bf16.gmra.mxu0 %v6651
        %v6687 = vpop.f32.mrf.mxu0
        %v6688 = vadd.f32 %v6675, %v6687
        %v6689 = vpop.f32.mrf.mxu0
        %6690 = vdwg.mxu0
        %6691 = vmatpush.bf16.msra.mxu0 %v6570
        %6692 = vmatpush.bf16.msra.mxu0 %v6566
        %6693 = vmatpush.bf16.msra.mxu0 %v6562
        %6694 = vmatpush.bf16.msra.mxu0 %v6558
        %6695 = vmatpush.bf16.msra.mxu0 %v6554
        %6696 = vmatpush.bf16.msra.mxu0 %v6550
        %6697 = vmatpush.bf16.msra.mxu0 %v6546
        %6698 = vmatpush.bf16.msra.mxu0 %v6542
        %6699 = vmatmul.bf16.gmra.mxu0 %v6376
        %v6700 = vpop.f32.mrf.mxu0
        %v6701 = vadd.f32 %v6371, %v6700
        %v6702 = vpop.f32.mrf.mxu0
        %6703 = vdwg.mxu0
        %6704 = vmatpush.bf16.msra.mxu0 0
        %6705 = vmatpush.bf16.msra.mxu0 0
        %6706 = vmatpush.bf16.msra.mxu0 %v6657
        %6707 = vmatpush.bf16.msra.mxu0 %v6590
        %6708 = vmatpush.bf16.msra.mxu0 %v6586
        %6709 = vmatpush.bf16.msra.mxu0 %v6582
        %6710 = vmatpush.bf16.msra.mxu0 %v6578
        %6711 = vmatpush.bf16.msra.mxu0 %v6574
        %6712 = vmatmul.bf16.gmra.mxu0 %v6651
        %v6713 = vpop.f32.mrf.mxu0
        %v6714 = vadd.f32 %v6701, %v6713
        %v6715 = vpop.f32.mrf.mxu0
        %6716 = vdwg.mxu0
        %6717 = vmatpush.bf16.msra.mxu0 %v6571
        %6718 = vmatpush.bf16.msra.mxu0 %v6567
        %6719 = vmatpush.bf16.msra.mxu0 %v6563
        %6720 = vmatpush.bf16.msra.mxu0 %v6559
        %6721 = vmatpush.bf16.msra.mxu0 %v6555
        %6722 = vmatpush.bf16.msra.mxu0 %v6551
        %6723 = vmatpush.bf16.msra.mxu0 %v6547
        %6724 = vmatpush.bf16.msra.mxu0 %v6543
        %6725 = vmatmul.bf16.gmra.mxu0 %v6376
        %v6726 = vpop.f32.mrf.mxu0
        %v6727 = vadd.f32 %v6371, %v6726
        %v6728 = vpop.f32.mrf.mxu0
        %6729 = vdwg.mxu0
        %6730 = vmatpush.bf16.msra.mxu0 0
        %6731 = vmatpush.bf16.msra.mxu0 0
        %6732 = vmatpush.bf16.msra.mxu0 %v6660
        %6733 = vmatpush.bf16.msra.mxu0 %v6591
        %6734 = vmatpush.bf16.msra.mxu0 %v6587
        %6735 = vmatpush.bf16.msra.mxu0 %v6583
        %6736 = vmatpush.bf16.msra.mxu0 %v6579
        %6737 = vmatpush.bf16.msra.mxu0 %v6575
        %6738 = vmatmul.bf16.gmra.mxu0 %v6651
        %v6739 = vpop.f32.mrf.mxu0
        %v6740 = vadd.f32 %v6727, %v6739
        %v6741 = vpop.f32.mrf.mxu0
        %6742 = vdwg.mxu0
        %6743 = vmatpush.bf16.msra.mxu0 %v6572
        %6744 = vmatpush.bf16.msra.mxu0 %v6568
        %6745 = vmatpush.bf16.msra.mxu0 %v6564
        %6746 = vmatpush.bf16.msra.mxu0 %v6560
        %6747 = vmatpush.bf16.msra.mxu0 %v6556
        %6748 = vmatpush.bf16.msra.mxu0 %v6552
        %6749 = vmatpush.bf16.msra.mxu0 %v6548
        %6750 = vmatpush.bf16.msra.mxu0 %v6544
        %6751 = vmatmul.bf16.gmra.mxu0 %v6376
        %v6752 = vpop.f32.mrf.mxu0
        %v6753 = vadd.f32 %v6371, %v6752
        %v6754 = vpop.f32.mrf.mxu0
        %6755 = vdwg.mxu0
        %6756 = vmatpush.bf16.msra.mxu0 0
        %6757 = vmatpush.bf16.msra.mxu0 0
        %6758 = vmatpush.bf16.msra.mxu0 %v6663
        %6759 = vmatpush.bf16.msra.mxu0 %v6592
        %6760 = vmatpush.bf16.msra.mxu0 %v6588
        %6761 = vmatpush.bf16.msra.mxu0 %v6584
        %6762 = vmatpush.bf16.msra.mxu0 %v6580
        %6763 = vmatpush.bf16.msra.mxu0 %v6576
        %6764 = vmatmul.bf16.gmra.mxu0 %v6651
        %v6765 = vpop.f32.mrf.mxu0
        %v6766 = vadd.f32 %v6753, %v6765
        %v6767 = vpop.f32.mrf.mxu0
        %6768 = vdwg.mxu0
        %v6769 = vld [vmem:[%s8] sm:$0xff]
        %v6770 = vld [vmem:[%s9] sm:$0xff]
        %v6771 = vadd.f32 %v6688, %v6714
        %v6772 = vadd.f32 %v6771, %v6740
        %v6773 = vadd.f32 %v6772, %v6766
        %6774 = vadd.xlane.f32.xlu0 %v6773
        %v6775 = vpop.xlane.xlu0 %6774
        %v6776 = vmul.f32 %v6775, %v3695
        %v6777 = vsub.f32 %v6688, %v6776
        %v6778 = vsub.f32 %v6714, %v6776
        %v6779 = vsub.f32 %v6740, %v6776
        %v6780 = vsub.f32 %v6766, %v6776
        %v6781 = vmul.f32 %v6777, %v6777
        %v6782 = vmul.f32 %v6778, %v6778
        %v6783 = vmul.f32 %v6779, %v6779
        %v6784 = vmul.f32 %v6780, %v6780
        %v6785 = vadd.f32 %v6781, %v6782
        %v6786 = vadd.f32 %v6785, %v6783
        %v6787 = vadd.f32 %v6786, %v6784
        %6788 = vadd.xlane.f32.xlu0 %v6787
        %v6789 = vpop.xlane.xlu0 %6788
        %v6790 = vmul.f32 %v6789, %v3695
        %v6791 = vadd.f32 %v6790, 1e-05
        %v6792 = vrsqrt.pop %v6791
        %v6793 = vmul.f32 %v6792, %v6791
        %v6794 = vmul.f32 %v6793, %v6792
        %v6795 = vmul.f32 0.5, %v6794
        %v6796 = vsub.f32 1.5, %v6795
        %v6797 = vmul.f32 %v6792, %v6796
        %vm6798 = vweird.f32 %v6791
        %vm6799 = vweird.f32 %v6792
        %vm6800 = vmor %vm6798, %vm6799
        %v6801 = vsel %vm6800, %v6792, %v6797
        %v6802 = vmul.f32 %v6777, %v6801
        %v6803 = vmul.f32 %v6778, %v6801
        %v6804 = vmul.f32 %v6779, %v6801
        %v6805 = vmul.f32 %v6780, %v6801
        %6807 = vset.pattern.permute.xlu0 0
        %6808 = vperm.xlu0 %6807, %v6769
        %v6809 = vpop.permute.xlu0 %6808
        %v6811 = vmul.f32 %v6802, %v6809
        %v6812 = vmul.f32 %v6803, %v6809
        %v6813 = vmul.f32 %v6804, %v6809
        %v6814 = vmul.f32 %v6805, %v6809
        %6816 = vset.pattern.permute.xlu0 0
        %6817 = vperm.xlu0 %6816, %v6770
        %v6818 = vpop.permute.xlu0 %6817
        %v6820 = vadd.f32 %v6811, %v6818
        %v6821 = vadd.f32 %v6812, %v6818
        %v6822 = vadd.f32 %v6813, %v6818
        %v6823 = vadd.f32 %v6814, %v6818
        %v6824 = vadd.f32 %v6820, %v3638
        %v6825 = vadd.f32 %v6821, %v3652
        %v6826 = vadd.f32 %v6822, %v3666
        %v6827 = vadd.f32 %v6823, %v3680
        %vm6828 = vcmp.ge.f32.partialorder %v6824, 0.0
        %vm6829 = vcmp.ge.f32.partialorder %v6825, 0.0
        %vm6830 = vcmp.ge.f32.partialorder %v6826, 0.0
        %vm6831 = vcmp.ge.f32.partialorder %v6827, 0.0
        %v6832 = vmul.f32 %v6824, 0.01
        %v6833 = vmul.f32 %v6825, 0.01
        %v6834 = vmul.f32 %v6826, 0.01
        %v6835 = vmul.f32 %v6827, 0.01
        %v6836 = vsel %vm6828, %v6824, %v6832
        %v6837 = vsel %vm6829, %v6825, %v6833
        %v6838 = vsel %vm6830, %v6826, %v6834
        %v6839 = vsel %vm6831, %v6827, %v6835
        %6840 = vst [vmem:[%s394] sm:$0xff] %v6836
        %6841 = vst [vmem:[%s394 + $0x8] sm:$0xff] %v6837
        %6842 = vst [vmem:[%s394 + $0x10] sm:$0xff] %v6838
        %6843 = vst [vmem:[%s394 + $0x18] sm:$0xff] %v6839
        %s6844 = sand.u32 %s251, 1
        %s6845 = scalar_lea.sflag [#allocation8], %s6844
        %s6846 = sand.u32 %s251, 1
        %s6847 = smul.addr %s6846, 32
        %s6848 = scalar_lea.vmem [#allocation11], %s6847
        // Predicated region
        $region69: #{tpu_custom_call.1} parent=59 // pred_check
          %p6849 = pneg %p261
        $region70: #{tpu_custom_call.1} parent=59 // pred_check_branch
          %6851 = sbr.rel (%p6849) target = $region72
        $region71: #{tpu_custom_call.1} parent=59 // pred_region
          %6853 = vsyncadd %s6845, 0
          %s6854 = smul.addr %s28, 4
          %s6855 = smul.addr %s6854, 8
          %s6856 = scalar_lea.hbm %s10, %s6855
          %s6858 = sshll.u32 %s6848, 4
          %s6859 = int_to_ptr.vmem [resolvable:$true] %s6858
          %s6860 = sshll.u32 %s6856, 4
          %s6861 = int_to_ptr.hbm [resolvable:$true] %s6860
          %6863 = dma.vmem_to_hbm [thread:$0]  %s6859, 512, %s6861, %s6845
        $region72: #{tpu_custom_call.1} parent=59 // pred_fallthru
          _
      $region60: #{tpu_custom_call.1} parent=5 // pred_fallthru
        _
      %p6864 = scmp.le.s32.totalorder 2, %s23
      // Predicated region
      $region73: #{tpu_custom_call.1} parent=5 // pred_check
        %p6865 = pneg %p6864
      $region74: #{tpu_custom_call.1} parent=5 // pred_check_branch
        %6867 = sbr.rel (%p6865) target = $region76
      $region75: #{tpu_custom_call.1} parent=5 // pred_region
        %s6868 = ssub.s32 %s23, 2
        // Predicated region
        $region77: #{tpu_custom_call.1} parent=75 // pred_check
          %p6869 = pneg %p267
        $region78: #{tpu_custom_call.1} parent=75 // pred_check_branch
          %6871 = sbr.rel (%p6869) target = $region80
        $region79: #{tpu_custom_call.1} parent=75 // pred_region
          %s6872 = sand.u32 %s252, 1
          %s6873 = scalar_lea.sflag [#allocation8], %s6872
          %s6874 = sand.u32 %s252, 1
          %s6875 = smul.addr %s6874, 32
          %s6876 = scalar_lea.vmem [#allocation11], %s6875
          %6878 = dma.done %s6873, 512
        $region80: #{tpu_custom_call.1} parent=75 // pred_fallthru
          _
      $region76: #{tpu_custom_call.1} parent=5 // pred_fallthru
        _
    $region6: #{tpu_custom_call.1} parent=1 // loop_footer
      %s27 = sadd.s32 1, %s23
    $region7: #{tpu_custom_call.1} parent=1 // loop_footer_branch
      %22 = sbr.rel target = $region3
    $region8: #{tpu_custom_call.1} parent=1 // loop_exit
      _
    %6879 = vsyncpa [#allocation7], 1
    %s6880 = scalar_lea.sflag [#allocation7], 1
    %6881 = vsyncpa %s6880, 1
    %6882 = vsyncpa [#allocation10], 1
    %6883 = vsyncpa [#allocation8], 1
    %s6884 = scalar_lea.sflag [#allocation8], 1
    %6885 = vsyncpa %s6884, 1

</llo_original>
